<compile_context>
chip_gen: v5e
topology: v5e:2x2
jax: 0.10.0
libtpu: 0.0.40
codegen_flags: <defaults>
</compile_context>

<pallas_src>
import functools

import jax
import jax.numpy as jnp
import numpy as np
from jax import lax
from jax.experimental import pallas as pl
from jax.experimental.pallas import tpu as pltpu

WINDOW_SIZE = 11
LANES = 128        # planes processed per grid step (lane axis)
ROW_STRIP = 8      # output rows per inner-loop iteration


def _gaussian_1d(window_size: int = WINDOW_SIZE, sigma: float = 1.5) -> np.ndarray:
    """Same construction as gaussian(): normalized 1D gaussian."""
    x = np.arange(window_size, dtype=np.float64)
    g = np.exp(-((x - window_size // 2) ** 2) / (2.0 * sigma ** 2))
    g = g / g.sum()
    return g.astype(np.float32)


def _gaussian_window(window_size: int = WINDOW_SIZE, sigma: float = 1.5) -> np.ndarray:
    g = _gaussian_1d(window_size, sigma).astype(np.float64)
    return np.outer(g, g).astype(np.float32)  # (K, K) — reference only


def _ssim_kernel(c_ref, x_ref, y_ref, out_ref, *, H, W, K, HS, num_strips, w1d):
    # c_ref   : SMEM (2,)                 -> [c1, c2] (dynamic val_range path)
    # x_ref   : VMEM (Hp_pad, Wp, LANES)  zero-padded img1, plane idx on lanes
    # y_ref   : VMEM (Hp_pad, Wp, LANES)  zero-padded img2
    # out_ref : VMEM (W, LANES)           per-(column, plane) sum of ssim_map
    c1 = c_ref[0]
    c2 = c_ref[1]
    L = out_ref.shape[-1]
    need_row_mask = (num_strips * HS) != H  # static

    def vconv(a):
        # (HS+K-1, Wp, L) -> (HS, Wp, L); leading-axis taps (cheap slices),
        # weights are compile-time constants.
        acc = w1d[0] * a[0:HS]
        for kh in range(1, K):
            acc = acc + w1d[kh] * a[kh:kh + HS]
        return acc

    def hconv(a):
        # (HS, Wp, L) -> (HS, W, L); sublane-axis taps.
        acc = w1d[0] * a[:, 0:W]
        for kw in range(1, K):
            acc = acc + w1d[kw] * a[:, kw:kw + W]
        return acc

    def strip_body(s, acc_wl):
        h0 = pl.multiple_of(s * HS, HS)
        xs = x_ref[pl.ds(h0, HS + K - 1)]          # (HS+K-1, Wp, L)
        ys = y_ref[pl.ds(h0, HS + K - 1)]

        # Products computed once, not per tap.
        xx = xs * xs
        yy = ys * ys
        xy = xs * ys

        # Separable gaussian blur of the 5 maps.
        mu1 = hconv(vconv(xs))                     # (HS, W, L)
        mu2 = hconv(vconv(ys))
        s11 = hconv(vconv(xx))
        s22 = hconv(vconv(yy))
        s12 = hconv(vconv(xy))

        mu1_sq = mu1 * mu1
        mu2_sq = mu2 * mu2
        mu1_mu2 = mu1 * mu2
        sigma1_sq = s11 - mu1_sq
        sigma2_sq = s22 - mu2_sq
        sigma12 = s12 - mu1_mu2

        v1 = 2.0 * sigma12 + c2
        v2 = sigma1_sq + sigma2_sq + c2
        num = (2.0 * mu1_mu2 + c1) * v1
        den = (mu1_sq + mu2_sq + c1) * v2
        ssim_map = num * pl.reciprocal(den, approx=False)

        if need_row_mask:
            rows = h0 + lax.broadcasted_iota(jnp.int32, (HS, W, L), 0)
            ssim_map = jnp.where(rows < H, ssim_map, 0.0)

        # Reduce the leading (row) axis: plain VALU adds of HS planes.
        return acc_wl + jnp.sum(ssim_map, axis=0)  # (W, L)

    acc0 = jnp.zeros((W, L), jnp.float32)
    acc = lax.fori_loop(0, num_strips, strip_body, acc0)
    out_ref[...] = acc                             # dense (W, 128) store


def ssim_loss_pallas(img1, img2, window_size=WINDOW_SIZE, val_range=None):
    """Implements SSIM.forward: returns 1 - mean(ssim_map) as a scalar."""
    img1 = img1.astype(jnp.float32)
    img2 = img2.astype(jnp.float32)
    N, C, H, W = img1.shape
    K = window_size
    p = K // 2

    # Dynamic value-range logic from ssim() (val_range=None path).
    if val_range is None:
        max_val = jnp.where(jnp.max(img1) > 128.0, 255.0, 1.0)
        min_val = jnp.where(jnp.min(img1) < -0.5, -1.0, 0.0)
        l = max_val - min_val
    else:
        l = jnp.float32(val_range)
    c1 = (0.01 * l) ** 2
    c2 = (0.03 * l) ** 2
    c_arr = jnp.stack([c1, c2]).astype(jnp.float32)            # (2,) -> SMEM

    NC = N * C
    L = LANES
    n_blocks = pl.cdiv(NC, L)
    NCpad = n_blocks * L
    HS = ROW_STRIP
    num_strips = pl.cdiv(H, HS)
    Hp_pad = num_strips * HS + K - 1
    Wp = W + K - 1

    # Lane-dense layout: (rows, cols, planes), plane index on the lane axis.
    def prep(img):
        t = jnp.transpose(img.reshape(NC, H, W), (1, 2, 0))    # (H, W, NC)
        return jnp.pad(t, ((p, Hp_pad - H - p), (p, p), (0, NCpad - NC)))

    xp = prep(img1)
    yp = prep(img2)

    w1d = tuple(float(v) for v in _gaussian_1d(K))             # baked constants

    kernel = functools.partial(
        _ssim_kernel, H=H, W=W, K=K, HS=HS, num_strips=num_strips, w1d=w1d)

    part = pl.pallas_call(
        kernel,
        out_shape=jax.ShapeDtypeStruct((W, NCpad), jnp.float32),
        grid=(n_blocks,),
        in_specs=[
            pl.BlockSpec(memory_space=pltpu.MemorySpace.SMEM),      # [c1, c2]
            pl.BlockSpec((Hp_pad, Wp, L), lambda i: (0, 0, i)),     # img1 planes
            pl.BlockSpec((Hp_pad, Wp, L), lambda i: (0, 0, i)),     # img2 planes
        ],
        out_specs=pl.BlockSpec((W, L), lambda i: (0, i)),           # partial sums
        compiler_params=pltpu.CompilerParams(
            dimension_semantics=("parallel",)),
    )(c_arr, xp, yp)

    # Drop the padded planes, finish the mean in f32 in XLA.
    total = jnp.sum(part[:, :NC])
    mean_ssim = total / (NC * H * W)
    return 1.0 - mean_ssim


def _ssim_loss_ref(img1, img2, window_size=WINDOW_SIZE):
    """Pure-JAX reference mirroring the PyTorch code (for correctness check)."""
    img1 = img1.astype(jnp.float32)
    img2 = img2.astype(jnp.float32)
    N, C, H, W = img1.shape
    p = window_size // 2
    w2d = jnp.asarray(_gaussian_window(window_size))
    kern = jnp.broadcast_to(w2d, (C, 1, window_size, window_size))

    def conv(x):
        return lax.conv_general_dilated(
            x, kern, (1, 1), [(p, p), (p, p)],
            feature_group_count=C,
            dimension_numbers=("NCHW", "OIHW", "NCHW"))

    max_val = jnp.where(jnp.max(img1) > 128.0, 255.0, 1.0)
    min_val = jnp.where(jnp.min(img1) < -0.5, -1.0, 0.0)
    l = max_val - min_val
    c1 = (0.01 * l) ** 2
    c2 = (0.03 * l) ** 2

    mu1 = conv(img1)
    mu2 = conv(img2)
    mu1_sq, mu2_sq, mu1_mu2 = mu1 * mu1, mu2 * mu2, mu1 * mu2
    sigma1_sq = conv(img1 * img1) - mu1_sq
    sigma2_sq = conv(img2 * img2) - mu2_sq
    sigma12 = conv(img1 * img2) - mu1_mu2
    v1 = 2.0 * sigma12 + c2
    v2 = sigma1_sq + sigma2_sq + c2
    ssim_map = (2.0 * mu1_mu2 + c1) * v1 / ((mu1_sq + mu2_sq + c1) * v2)
    return 1.0 - jnp.mean(ssim_map)


if __name__ == "__main__":
    key = jax.random.PRNGKey(0)
    k1, k2 = jax.random.split(key)
    N, C, H, W = 2, 4, 16, 16
    img1 = jax.random.normal(k1, (N, C, H, W), dtype=jnp.float32)
    img2 = jax.random.normal(k2, (N, C, H, W), dtype=jnp.float32)

    out = jax.block_until_ready(ssim_loss_pallas(img1, img2))
    ref = jax.block_until_ready(_ssim_loss_ref(img1, img2))

    if not np.allclose(np.asarray(out), np.asarray(ref), rtol=1e-4, atol=1e-5):
        raise AssertionError(f"mismatch: pallas={out} ref={ref}")

    print("KERNEL_OK")
</pallas_src>

<mosaic_0001>
module attributes {stable_mosaic.version = 11 : i64} {
  func.func @_ssim_kernel(%arg0: i32, %arg1: memref<2xf32, #tpu.memory_space<smem>>, %arg2: memref<26x26x128xf32, #tpu.memory_space<vmem>>, %arg3: memref<26x26x128xf32, #tpu.memory_space<vmem>>, %arg4: memref<16x128xf32, #tpu.memory_space<vmem>>) attributes {dimension_semantics = [#tpu.dimension_semantics<parallel>], iteration_bounds = array<i64: 1>, scalar_prefetch = 0 : i64, scratch_operands = 0 : i64, tpu.core_type = #tpu.core_type<tc>, window_params = [{transform_indices = @transform_0, window_bounds = array<i64: 2>}, {transform_indices = @transform_1, window_bounds = array<i64: 26, 26, 128>}, {transform_indices = @transform_2, window_bounds = array<i64: 26, 26, 128>}, {transform_indices = @transform_3, window_bounds = array<i64: 16, 128>}]} {
    %c0 = arith.constant 0 : index
    %0 = memref.load %arg1[%c0] : memref<2xf32, #tpu.memory_space<smem>>
    %c1 = arith.constant 1 : index
    %1 = memref.load %arg1[%c1] : memref<2xf32, #tpu.memory_space<smem>>
    %cst = arith.constant 0.000000e+00 : f32
    %2 = vector.broadcast %cst : f32 to vector<16x128xf32>
    %c0_i32 = arith.constant 0 : i32
    %c2_i32 = arith.constant 2 : i32
    %3 = arith.addi %c0_i32, %c2_i32 : i32
    %c1_i32 = arith.constant 1 : i32
    %4 = scf.for %arg5 = %c0_i32 to %3 step %c1_i32 iter_args(%arg6 = %2) -> (vector<16x128xf32>)  : i32 {
      %c8_i32 = arith.constant 8 : i32
      %6 = arith.muli %arg5, %c8_i32 : i32
      %7 = tpu.assume_multiple %6, 8 : i32
      %8 = arith.index_cast %7 : i32 to index
      %c0_3 = arith.constant 0 : index
      %c0_4 = arith.constant 0 : index
      %9 = vector.load %arg2[%8, %c0_3, %c0_4] : memref<26x26x128xf32, #tpu.memory_space<vmem>>, vector<18x26x128xf32>
      %10 = arith.index_cast %7 : i32 to index
      %c0_5 = arith.constant 0 : index
      %c0_6 = arith.constant 0 : index
      %11 = vector.load %arg3[%10, %c0_5, %c0_6] : memref<26x26x128xf32, #tpu.memory_space<vmem>>, vector<18x26x128xf32>
      %12 = arith.mulf %9, %9 : vector<18x26x128xf32>
      %13 = arith.mulf %11, %11 : vector<18x26x128xf32>
      %14 = arith.mulf %9, %11 : vector<18x26x128xf32>
      %15 = vector.extract_strided_slice %9 {offsets = [0, 0, 0], sizes = [8, 26, 128], strides = [1, 1, 1]} : vector<18x26x128xf32> to vector<8x26x128xf32>
      %cst_7 = arith.constant 0.00102838012 : f32
      %16 = vector.broadcast %cst_7 : f32 to vector<8x26x128xf32>
      %17 = arith.mulf %16, %15 : vector<8x26x128xf32>
      %18 = vector.extract_strided_slice %9 {offsets = [1, 0, 0], sizes = [8, 26, 128], strides = [1, 1, 1]} : vector<18x26x128xf32> to vector<8x26x128xf32>
      %cst_8 = arith.constant 0.00759875821 : f32
      %19 = vector.broadcast %cst_8 : f32 to vector<8x26x128xf32>
      %20 = arith.mulf %19, %18 : vector<8x26x128xf32>
      %21 = arith.addf %17, %20 : vector<8x26x128xf32>
      %22 = vector.extract_strided_slice %9 {offsets = [2, 0, 0], sizes = [8, 26, 128], strides = [1, 1, 1]} : vector<18x26x128xf32> to vector<8x26x128xf32>
      %cst_9 = arith.constant 0.0360007733 : f32
      %23 = vector.broadcast %cst_9 : f32 to vector<8x26x128xf32>
      %24 = arith.mulf %23, %22 : vector<8x26x128xf32>
      %25 = arith.addf %21, %24 : vector<8x26x128xf32>
      %26 = vector.extract_strided_slice %9 {offsets = [3, 0, 0], sizes = [8, 26, 128], strides = [1, 1, 1]} : vector<18x26x128xf32> to vector<8x26x128xf32>
      %cst_10 = arith.constant 0.109360687 : f32
      %27 = vector.broadcast %cst_10 : f32 to vector<8x26x128xf32>
      %28 = arith.mulf %27, %26 : vector<8x26x128xf32>
      %29 = arith.addf %25, %28 : vector<8x26x128xf32>
      %30 = vector.extract_strided_slice %9 {offsets = [4, 0, 0], sizes = [8, 26, 128], strides = [1, 1, 1]} : vector<18x26x128xf32> to vector<8x26x128xf32>
      %cst_11 = arith.constant 0.213005543 : f32
      %31 = vector.broadcast %cst_11 : f32 to vector<8x26x128xf32>
      %32 = arith.mulf %31, %30 : vector<8x26x128xf32>
      %33 = arith.addf %29, %32 : vector<8x26x128xf32>
      %34 = vector.extract_strided_slice %9 {offsets = [5, 0, 0], sizes = [8, 26, 128], strides = [1, 1, 1]} : vector<18x26x128xf32> to vector<8x26x128xf32>
      %cst_12 = arith.constant 0.266011715 : f32
      %35 = vector.broadcast %cst_12 : f32 to vector<8x26x128xf32>
      %36 = arith.mulf %35, %34 : vector<8x26x128xf32>
      %37 = arith.addf %33, %36 : vector<8x26x128xf32>
      %38 = vector.extract_strided_slice %9 {offsets = [6, 0, 0], sizes = [8, 26, 128], strides = [1, 1, 1]} : vector<18x26x128xf32> to vector<8x26x128xf32>
      %cst_13 = arith.constant 0.213005543 : f32
      %39 = vector.broadcast %cst_13 : f32 to vector<8x26x128xf32>
      %40 = arith.mulf %39, %38 : vector<8x26x128xf32>
      %41 = arith.addf %37, %40 : vector<8x26x128xf32>
      %42 = vector.extract_strided_slice %9 {offsets = [7, 0, 0], sizes = [8, 26, 128], strides = [1, 1, 1]} : vector<18x26x128xf32> to vector<8x26x128xf32>
      %cst_14 = arith.constant 0.109360687 : f32
      %43 = vector.broadcast %cst_14 : f32 to vector<8x26x128xf32>
      %44 = arith.mulf %43, %42 : vector<8x26x128xf32>
      %45 = arith.addf %41, %44 : vector<8x26x128xf32>
      %46 = vector.extract_strided_slice %9 {offsets = [8, 0, 0], sizes = [8, 26, 128], strides = [1, 1, 1]} : vector<18x26x128xf32> to vector<8x26x128xf32>
      %cst_15 = arith.constant 0.0360007733 : f32
      %47 = vector.broadcast %cst_15 : f32 to vector<8x26x128xf32>
      %48 = arith.mulf %47, %46 : vector<8x26x128xf32>
      %49 = arith.addf %45, %48 : vector<8x26x128xf32>
      %50 = vector.extract_strided_slice %9 {offsets = [9, 0, 0], sizes = [8, 26, 128], strides = [1, 1, 1]} : vector<18x26x128xf32> to vector<8x26x128xf32>
      %cst_16 = arith.constant 0.00759875821 : f32
      %51 = vector.broadcast %cst_16 : f32 to vector<8x26x128xf32>
      %52 = arith.mulf %51, %50 : vector<8x26x128xf32>
      %53 = arith.addf %49, %52 : vector<8x26x128xf32>
      %54 = vector.extract_strided_slice %9 {offsets = [10, 0, 0], sizes = [8, 26, 128], strides = [1, 1, 1]} : vector<18x26x128xf32> to vector<8x26x128xf32>
      %cst_17 = arith.constant 0.00102838012 : f32
      %55 = vector.broadcast %cst_17 : f32 to vector<8x26x128xf32>
      %56 = arith.mulf %55, %54 : vector<8x26x128xf32>
      %57 = arith.addf %53, %56 : vector<8x26x128xf32>
      %58 = vector.extract_strided_slice %57 {offsets = [0, 0, 0], sizes = [8, 16, 128], strides = [1, 1, 1]} : vector<8x26x128xf32> to vector<8x16x128xf32>
      %cst_18 = arith.constant 0.00102838012 : f32
      %59 = vector.broadcast %cst_18 : f32 to vector<8x16x128xf32>
      %60 = arith.mulf %59, %58 : vector<8x16x128xf32>
      %61 = vector.extract_strided_slice %57 {offsets = [0, 1, 0], sizes = [8, 16, 128], strides = [1, 1, 1]} : vector<8x26x128xf32> to vector<8x16x128xf32>
      %cst_19 = arith.constant 0.00759875821 : f32
      %62 = vector.broadcast %cst_19 : f32 to vector<8x16x128xf32>
      %63 = arith.mulf %62, %61 : vector<8x16x128xf32>
      %64 = arith.addf %60, %63 : vector<8x16x128xf32>
      %65 = vector.extract_strided_slice %57 {offsets = [0, 2, 0], sizes = [8, 16, 128], strides = [1, 1, 1]} : vector<8x26x128xf32> to vector<8x16x128xf32>
      %cst_20 = arith.constant 0.0360007733 : f32
      %66 = vector.broadcast %cst_20 : f32 to vector<8x16x128xf32>
      %67 = arith.mulf %66, %65 : vector<8x16x128xf32>
      %68 = arith.addf %64, %67 : vector<8x16x128xf32>
      %69 = vector.extract_strided_slice %57 {offsets = [0, 3, 0], sizes = [8, 16, 128], strides = [1, 1, 1]} : vector<8x26x128xf32> to vector<8x16x128xf32>
      %cst_21 = arith.constant 0.109360687 : f32
      %70 = vector.broadcast %cst_21 : f32 to vector<8x16x128xf32>
      %71 = arith.mulf %70, %69 : vector<8x16x128xf32>
      %72 = arith.addf %68, %71 : vector<8x16x128xf32>
      %73 = vector.extract_strided_slice %57 {offsets = [0, 4, 0], sizes = [8, 16, 128], strides = [1, 1, 1]} : vector<8x26x128xf32> to vector<8x16x128xf32>
      %cst_22 = arith.constant 0.213005543 : f32
      %74 = vector.broadcast %cst_22 : f32 to vector<8x16x128xf32>
      %75 = arith.mulf %74, %73 : vector<8x16x128xf32>
      %76 = arith.addf %72, %75 : vector<8x16x128xf32>
      %77 = vector.extract_strided_slice %57 {offsets = [0, 5, 0], sizes = [8, 16, 128], strides = [1, 1, 1]} : vector<8x26x128xf32> to vector<8x16x128xf32>
      %cst_23 = arith.constant 0.266011715 : f32
      %78 = vector.broadcast %cst_23 : f32 to vector<8x16x128xf32>
      %79 = arith.mulf %78, %77 : vector<8x16x128xf32>
      %80 = arith.addf %76, %79 : vector<8x16x128xf32>
      %81 = vector.extract_strided_slice %57 {offsets = [0, 6, 0], sizes = [8, 16, 128], strides = [1, 1, 1]} : vector<8x26x128xf32> to vector<8x16x128xf32>
      %cst_24 = arith.constant 0.213005543 : f32
      %82 = vector.broadcast %cst_24 : f32 to vector<8x16x128xf32>
      %83 = arith.mulf %82, %81 : vector<8x16x128xf32>
      %84 = arith.addf %80, %83 : vector<8x16x128xf32>
      %85 = vector.extract_strided_slice %57 {offsets = [0, 7, 0], sizes = [8, 16, 128], strides = [1, 1, 1]} : vector<8x26x128xf32> to vector<8x16x128xf32>
      %cst_25 = arith.constant 0.109360687 : f32
      %86 = vector.broadcast %cst_25 : f32 to vector<8x16x128xf32>
      %87 = arith.mulf %86, %85 : vector<8x16x128xf32>
      %88 = arith.addf %84, %87 : vector<8x16x128xf32>
      %89 = vector.extract_strided_slice %57 {offsets = [0, 8, 0], sizes = [8, 16, 128], strides = [1, 1, 1]} : vector<8x26x128xf32> to vector<8x16x128xf32>
      %cst_26 = arith.constant 0.0360007733 : f32
      %90 = vector.broadcast %cst_26 : f32 to vector<8x16x128xf32>
      %91 = arith.mulf %90, %89 : vector<8x16x128xf32>
      %92 = arith.addf %88, %91 : vector<8x16x128xf32>
      %93 = vector.extract_strided_slice %57 {offsets = [0, 9, 0], sizes = [8, 16, 128], strides = [1, 1, 1]} : vector<8x26x128xf32> to vector<8x16x128xf32>
      %cst_27 = arith.constant 0.00759875821 : f32
      %94 = vector.broadcast %cst_27 : f32 to vector<8x16x128xf32>
      %95 = arith.mulf %94, %93 : vector<8x16x128xf32>
      %96 = arith.addf %92, %95 : vector<8x16x128xf32>
      %97 = vector.extract_strided_slice %57 {offsets = [0, 10, 0], sizes = [8, 16, 128], strides = [1, 1, 1]} : vector<8x26x128xf32> to vector<8x16x128xf32>
      %cst_28 = arith.constant 0.00102838012 : f32
      %98 = vector.broadcast %cst_28 : f32 to vector<8x16x128xf32>
      %99 = arith.mulf %98, %97 : vector<8x16x128xf32>
      %100 = arith.addf %96, %99 : vector<8x16x128xf32>
      %101 = vector.extract_strided_slice %11 {offsets = [0, 0, 0], sizes = [8, 26, 128], strides = [1, 1, 1]} : vector<18x26x128xf32> to vector<8x26x128xf32>
      %cst_29 = arith.constant 0.00102838012 : f32
      %102 = vector.broadcast %cst_29 : f32 to vector<8x26x128xf32>
      %103 = arith.mulf %102, %101 : vector<8x26x128xf32>
      %104 = vector.extract_strided_slice %11 {offsets = [1, 0, 0], sizes = [8, 26, 128], strides = [1, 1, 1]} : vector<18x26x128xf32> to vector<8x26x128xf32>
      %cst_30 = arith.constant 0.00759875821 : f32
      %105 = vector.broadcast %cst_30 : f32 to vector<8x26x128xf32>
      %106 = arith.mulf %105, %104 : vector<8x26x128xf32>
      %107 = arith.addf %103, %106 : vector<8x26x128xf32>
      %108 = vector.extract_strided_slice %11 {offsets = [2, 0, 0], sizes = [8, 26, 128], strides = [1, 1, 1]} : vector<18x26x128xf32> to vector<8x26x128xf32>
      %cst_31 = arith.constant 0.0360007733 : f32
      %109 = vector.broadcast %cst_31 : f32 to vector<8x26x128xf32>
      %110 = arith.mulf %109, %108 : vector<8x26x128xf32>
      %111 = arith.addf %107, %110 : vector<8x26x128xf32>
      %112 = vector.extract_strided_slice %11 {offsets = [3, 0, 0], sizes = [8, 26, 128], strides = [1, 1, 1]} : vector<18x26x128xf32> to vector<8x26x128xf32>
      %cst_32 = arith.constant 0.109360687 : f32
      %113 = vector.broadcast %cst_32 : f32 to vector<8x26x128xf32>
      %114 = arith.mulf %113, %112 : vector<8x26x128xf32>
      %115 = arith.addf %111, %114 : vector<8x26x128xf32>
      %116 = vector.extract_strided_slice %11 {offsets = [4, 0, 0], sizes = [8, 26, 128], strides = [1, 1, 1]} : vector<18x26x128xf32> to vector<8x26x128xf32>
      %cst_33 = arith.constant 0.213005543 : f32
      %117 = vector.broadcast %cst_33 : f32 to vector<8x26x128xf32>
      %118 = arith.mulf %117, %116 : vector<8x26x128xf32>
      %119 = arith.addf %115, %118 : vector<8x26x128xf32>
      %120 = vector.extract_strided_slice %11 {offsets = [5, 0, 0], sizes = [8, 26, 128], strides = [1, 1, 1]} : vector<18x26x128xf32> to vector<8x26x128xf32>
      %cst_34 = arith.constant 0.266011715 : f32
      %121 = vector.broadcast %cst_34 : f32 to vector<8x26x128xf32>
      %122 = arith.mulf %121, %120 : vector<8x26x128xf32>
      %123 = arith.addf %119, %122 : vector<8x26x128xf32>
      %124 = vector.extract_strided_slice %11 {offsets = [6, 0, 0], sizes = [8, 26, 128], strides = [1, 1, 1]} : vector<18x26x128xf32> to vector<8x26x128xf32>
      %cst_35 = arith.constant 0.213005543 : f32
      %125 = vector.broadcast %cst_35 : f32 to vector<8x26x128xf32>
      %126 = arith.mulf %125, %124 : vector<8x26x128xf32>
      %127 = arith.addf %123, %126 : vector<8x26x128xf32>
      %128 = vector.extract_strided_slice %11 {offsets = [7, 0, 0], sizes = [8, 26, 128], strides = [1, 1, 1]} : vector<18x26x128xf32> to vector<8x26x128xf32>
      %cst_36 = arith.constant 0.109360687 : f32
      %129 = vector.broadcast %cst_36 : f32 to vector<8x26x128xf32>
      %130 = arith.mulf %129, %128 : vector<8x26x128xf32>
      %131 = arith.addf %127, %130 : vector<8x26x128xf32>
      %132 = vector.extract_strided_slice %11 {offsets = [8, 0, 0], sizes = [8, 26, 128], strides = [1, 1, 1]} : vector<18x26x128xf32> to vector<8x26x128xf32>
      %cst_37 = arith.constant 0.0360007733 : f32
      %133 = vector.broadcast %cst_37 : f32 to vector<8x26x128xf32>
      %134 = arith.mulf %133, %132 : vector<8x26x128xf32>
      %135 = arith.addf %131, %134 : vector<8x26x128xf32>
      %136 = vector.extract_strided_slice %11 {offsets = [9, 0, 0], sizes = [8, 26, 128], strides = [1, 1, 1]} : vector<18x26x128xf32> to vector<8x26x128xf32>
      %cst_38 = arith.constant 0.00759875821 : f32
      %137 = vector.broadcast %cst_38 : f32 to vector<8x26x128xf32>
      %138 = arith.mulf %137, %136 : vector<8x26x128xf32>
      %139 = arith.addf %135, %138 : vector<8x26x128xf32>
      %140 = vector.extract_strided_slice %11 {offsets = [10, 0, 0], sizes = [8, 26, 128], strides = [1, 1, 1]} : vector<18x26x128xf32> to vector<8x26x128xf32>
      %cst_39 = arith.constant 0.00102838012 : f32
      %141 = vector.broadcast %cst_39 : f32 to vector<8x26x128xf32>
      %142 = arith.mulf %141, %140 : vector<8x26x128xf32>
      %143 = arith.addf %139, %142 : vector<8x26x128xf32>
      %144 = vector.extract_strided_slice %143 {offsets = [0, 0, 0], sizes = [8, 16, 128], strides = [1, 1, 1]} : vector<8x26x128xf32> to vector<8x16x128xf32>
      %cst_40 = arith.constant 0.00102838012 : f32
      %145 = vector.broadcast %cst_40 : f32 to vector<8x16x128xf32>
      %146 = arith.mulf %145, %144 : vector<8x16x128xf32>
      %147 = vector.extract_strided_slice %143 {offsets = [0, 1, 0], sizes = [8, 16, 128], strides = [1, 1, 1]} : vector<8x26x128xf32> to vector<8x16x128xf32>
      %cst_41 = arith.constant 0.00759875821 : f32
      %148 = vector.broadcast %cst_41 : f32 to vector<8x16x128xf32>
      %149 = arith.mulf %148, %147 : vector<8x16x128xf32>
      %150 = arith.addf %146, %149 : vector<8x16x128xf32>
      %151 = vector.extract_strided_slice %143 {offsets = [0, 2, 0], sizes = [8, 16, 128], strides = [1, 1, 1]} : vector<8x26x128xf32> to vector<8x16x128xf32>
      %cst_42 = arith.constant 0.0360007733 : f32
      %152 = vector.broadcast %cst_42 : f32 to vector<8x16x128xf32>
      %153 = arith.mulf %152, %151 : vector<8x16x128xf32>
      %154 = arith.addf %150, %153 : vector<8x16x128xf32>
      %155 = vector.extract_strided_slice %143 {offsets = [0, 3, 0], sizes = [8, 16, 128], strides = [1, 1, 1]} : vector<8x26x128xf32> to vector<8x16x128xf32>
      %cst_43 = arith.constant 0.109360687 : f32
      %156 = vector.broadcast %cst_43 : f32 to vector<8x16x128xf32>
      %157 = arith.mulf %156, %155 : vector<8x16x128xf32>
      %158 = arith.addf %154, %157 : vector<8x16x128xf32>
      %159 = vector.extract_strided_slice %143 {offsets = [0, 4, 0], sizes = [8, 16, 128], strides = [1, 1, 1]} : vector<8x26x128xf32> to vector<8x16x128xf32>
      %cst_44 = arith.constant 0.213005543 : f32
      %160 = vector.broadcast %cst_44 : f32 to vector<8x16x128xf32>
      %161 = arith.mulf %160, %159 : vector<8x16x128xf32>
      %162 = arith.addf %158, %161 : vector<8x16x128xf32>
      %163 = vector.extract_strided_slice %143 {offsets = [0, 5, 0], sizes = [8, 16, 128], strides = [1, 1, 1]} : vector<8x26x128xf32> to vector<8x16x128xf32>
      %cst_45 = arith.constant 0.266011715 : f32
      %164 = vector.broadcast %cst_45 : f32 to vector<8x16x128xf32>
      %165 = arith.mulf %164, %163 : vector<8x16x128xf32>
      %166 = arith.addf %162, %165 : vector<8x16x128xf32>
      %167 = vector.extract_strided_slice %143 {offsets = [0, 6, 0], sizes = [8, 16, 128], strides = [1, 1, 1]} : vector<8x26x128xf32> to vector<8x16x128xf32>
      %cst_46 = arith.constant 0.213005543 : f32
      %168 = vector.broadcast %cst_46 : f32 to vector<8x16x128xf32>
      %169 = arith.mulf %168, %167 : vector<8x16x128xf32>
      %170 = arith.addf %166, %169 : vector<8x16x128xf32>
      %171 = vector.extract_strided_slice %143 {offsets = [0, 7, 0], sizes = [8, 16, 128], strides = [1, 1, 1]} : vector<8x26x128xf32> to vector<8x16x128xf32>
      %cst_47 = arith.constant 0.109360687 : f32
      %172 = vector.broadcast %cst_47 : f32 to vector<8x16x128xf32>
      %173 = arith.mulf %172, %171 : vector<8x16x128xf32>
      %174 = arith.addf %170, %173 : vector<8x16x128xf32>
      %175 = vector.extract_strided_slice %143 {offsets = [0, 8, 0], sizes = [8, 16, 128], strides = [1, 1, 1]} : vector<8x26x128xf32> to vector<8x16x128xf32>
      %cst_48 = arith.constant 0.0360007733 : f32
      %176 = vector.broadcast %cst_48 : f32 to vector<8x16x128xf32>
      %177 = arith.mulf %176, %175 : vector<8x16x128xf32>
      %178 = arith.addf %174, %177 : vector<8x16x128xf32>
      %179 = vector.extract_strided_slice %143 {offsets = [0, 9, 0], sizes = [8, 16, 128], strides = [1, 1, 1]} : vector<8x26x128xf32> to vector<8x16x128xf32>
      %cst_49 = arith.constant 0.00759875821 : f32
      %180 = vector.broadcast %cst_49 : f32 to vector<8x16x128xf32>
      %181 = arith.mulf %180, %179 : vector<8x16x128xf32>
      %182 = arith.addf %178, %181 : vector<8x16x128xf32>
      %183 = vector.extract_strided_slice %143 {offsets = [0, 10, 0], sizes = [8, 16, 128], strides = [1, 1, 1]} : vector<8x26x128xf32> to vector<8x16x128xf32>
      %cst_50 = arith.constant 0.00102838012 : f32
      %184 = vector.broadcast %cst_50 : f32 to vector<8x16x128xf32>
      %185 = arith.mulf %184, %183 : vector<8x16x128xf32>
      %186 = arith.addf %182, %185 : vector<8x16x128xf32>
      %187 = vector.extract_strided_slice %12 {offsets = [0, 0, 0], sizes = [8, 26, 128], strides = [1, 1, 1]} : vector<18x26x128xf32> to vector<8x26x128xf32>
      %cst_51 = arith.constant 0.00102838012 : f32
      %188 = vector.broadcast %cst_51 : f32 to vector<8x26x128xf32>
      %189 = arith.mulf %188, %187 : vector<8x26x128xf32>
      %190 = vector.extract_strided_slice %12 {offsets = [1, 0, 0], sizes = [8, 26, 128], strides = [1, 1, 1]} : vector<18x26x128xf32> to vector<8x26x128xf32>
      %cst_52 = arith.constant 0.00759875821 : f32
      %191 = vector.broadcast %cst_52 : f32 to vector<8x26x128xf32>
      %192 = arith.mulf %191, %190 : vector<8x26x128xf32>
      %193 = arith.addf %189, %192 : vector<8x26x128xf32>
      %194 = vector.extract_strided_slice %12 {offsets = [2, 0, 0], sizes = [8, 26, 128], strides = [1, 1, 1]} : vector<18x26x128xf32> to vector<8x26x128xf32>
      %cst_53 = arith.constant 0.0360007733 : f32
      %195 = vector.broadcast %cst_53 : f32 to vector<8x26x128xf32>
      %196 = arith.mulf %195, %194 : vector<8x26x128xf32>
      %197 = arith.addf %193, %196 : vector<8x26x128xf32>
      %198 = vector.extract_strided_slice %12 {offsets = [3, 0, 0], sizes = [8, 26, 128], strides = [1, 1, 1]} : vector<18x26x128xf32> to vector<8x26x128xf32>
      %cst_54 = arith.constant 0.109360687 : f32
      %199 = vector.broadcast %cst_54 : f32 to vector<8x26x128xf32>
      %200 = arith.mulf %199, %198 : vector<8x26x128xf32>
      %201 = arith.addf %197, %200 : vector<8x26x128xf32>
      %202 = vector.extract_strided_slice %12 {offsets = [4, 0, 0], sizes = [8, 26, 128], strides = [1, 1, 1]} : vector<18x26x128xf32> to vector<8x26x128xf32>
      %cst_55 = arith.constant 0.213005543 : f32
      %203 = vector.broadcast %cst_55 : f32 to vector<8x26x128xf32>
      %204 = arith.mulf %203, %202 : vector<8x26x128xf32>
      %205 = arith.addf %201, %204 : vector<8x26x128xf32>
      %206 = vector.extract_strided_slice %12 {offsets = [5, 0, 0], sizes = [8, 26, 128], strides = [1, 1, 1]} : vector<18x26x128xf32> to vector<8x26x128xf32>
      %cst_56 = arith.constant 0.266011715 : f32
      %207 = vector.broadcast %cst_56 : f32 to vector<8x26x128xf32>
      %208 = arith.mulf %207, %206 : vector<8x26x128xf32>
      %209 = arith.addf %205, %208 : vector<8x26x128xf32>
      %210 = vector.extract_strided_slice %12 {offsets = [6, 0, 0], sizes = [8, 26, 128], strides = [1, 1, 1]} : vector<18x26x128xf32> to vector<8x26x128xf32>
      %cst_57 = arith.constant 0.213005543 : f32
      %211 = vector.broadcast %cst_57 : f32 to vector<8x26x128xf32>
      %212 = arith.mulf %211, %210 : vector<8x26x128xf32>
      %213 = arith.addf %209, %212 : vector<8x26x128xf32>
      %214 = vector.extract_strided_slice %12 {offsets = [7, 0, 0], sizes = [8, 26, 128], strides = [1, 1, 1]} : vector<18x26x128xf32> to vector<8x26x128xf32>
      %cst_58 = arith.constant 0.109360687 : f32
      %215 = vector.broadcast %cst_58 : f32 to vector<8x26x128xf32>
      %216 = arith.mulf %215, %214 : vector<8x26x128xf32>
      %217 = arith.addf %213, %216 : vector<8x26x128xf32>
      %218 = vector.extract_strided_slice %12 {offsets = [8, 0, 0], sizes = [8, 26, 128], strides = [1, 1, 1]} : vector<18x26x128xf32> to vector<8x26x128xf32>
      %cst_59 = arith.constant 0.0360007733 : f32
      %219 = vector.broadcast %cst_59 : f32 to vector<8x26x128xf32>
      %220 = arith.mulf %219, %218 : vector<8x26x128xf32>
      %221 = arith.addf %217, %220 : vector<8x26x128xf32>
      %222 = vector.extract_strided_slice %12 {offsets = [9, 0, 0], sizes = [8, 26, 128], strides = [1, 1, 1]} : vector<18x26x128xf32> to vector<8x26x128xf32>
      %cst_60 = arith.constant 0.00759875821 : f32
      %223 = vector.broadcast %cst_60 : f32 to vector<8x26x128xf32>
      %224 = arith.mulf %223, %222 : vector<8x26x128xf32>
      %225 = arith.addf %221, %224 : vector<8x26x128xf32>
      %226 = vector.extract_strided_slice %12 {offsets = [10, 0, 0], sizes = [8, 26, 128], strides = [1, 1, 1]} : vector<18x26x128xf32> to vector<8x26x128xf32>
      %cst_61 = arith.constant 0.00102838012 : f32
      %227 = vector.broadcast %cst_61 : f32 to vector<8x26x128xf32>
      %228 = arith.mulf %227, %226 : vector<8x26x128xf32>
      %229 = arith.addf %225, %228 : vector<8x26x128xf32>
      %230 = vector.extract_strided_slice %229 {offsets = [0, 0, 0], sizes = [8, 16, 128], strides = [1, 1, 1]} : vector<8x26x128xf32> to vector<8x16x128xf32>
      %cst_62 = arith.constant 0.00102838012 : f32
      %231 = vector.broadcast %cst_62 : f32 to vector<8x16x128xf32>
      %232 = arith.mulf %231, %230 : vector<8x16x128xf32>
      %233 = vector.extract_strided_slice %229 {offsets = [0, 1, 0], sizes = [8, 16, 128], strides = [1, 1, 1]} : vector<8x26x128xf32> to vector<8x16x128xf32>
      %cst_63 = arith.constant 0.00759875821 : f32
      %234 = vector.broadcast %cst_63 : f32 to vector<8x16x128xf32>
      %235 = arith.mulf %234, %233 : vector<8x16x128xf32>
      %236 = arith.addf %232, %235 : vector<8x16x128xf32>
      %237 = vector.extract_strided_slice %229 {offsets = [0, 2, 0], sizes = [8, 16, 128], strides = [1, 1, 1]} : vector<8x26x128xf32> to vector<8x16x128xf32>
      %cst_64 = arith.constant 0.0360007733 : f32
      %238 = vector.broadcast %cst_64 : f32 to vector<8x16x128xf32>
      %239 = arith.mulf %238, %237 : vector<8x16x128xf32>
      %240 = arith.addf %236, %239 : vector<8x16x128xf32>
      %241 = vector.extract_strided_slice %229 {offsets = [0, 3, 0], sizes = [8, 16, 128], strides = [1, 1, 1]} : vector<8x26x128xf32> to vector<8x16x128xf32>
      %cst_65 = arith.constant 0.109360687 : f32
      %242 = vector.broadcast %cst_65 : f32 to vector<8x16x128xf32>
      %243 = arith.mulf %242, %241 : vector<8x16x128xf32>
      %244 = arith.addf %240, %243 : vector<8x16x128xf32>
      %245 = vector.extract_strided_slice %229 {offsets = [0, 4, 0], sizes = [8, 16, 128], strides = [1, 1, 1]} : vector<8x26x128xf32> to vector<8x16x128xf32>
      %cst_66 = arith.constant 0.213005543 : f32
      %246 = vector.broadcast %cst_66 : f32 to vector<8x16x128xf32>
      %247 = arith.mulf %246, %245 : vector<8x16x128xf32>
      %248 = arith.addf %244, %247 : vector<8x16x128xf32>
      %249 = vector.extract_strided_slice %229 {offsets = [0, 5, 0], sizes = [8, 16, 128], strides = [1, 1, 1]} : vector<8x26x128xf32> to vector<8x16x128xf32>
      %cst_67 = arith.constant 0.266011715 : f32
      %250 = vector.broadcast %cst_67 : f32 to vector<8x16x128xf32>
      %251 = arith.mulf %250, %249 : vector<8x16x128xf32>
      %252 = arith.addf %248, %251 : vector<8x16x128xf32>
      %253 = vector.extract_strided_slice %229 {offsets = [0, 6, 0], sizes = [8, 16, 128], strides = [1, 1, 1]} : vector<8x26x128xf32> to vector<8x16x128xf32>
      %cst_68 = arith.constant 0.213005543 : f32
      %254 = vector.broadcast %cst_68 : f32 to vector<8x16x128xf32>
      %255 = arith.mulf %254, %253 : vector<8x16x128xf32>
      %256 = arith.addf %252, %255 : vector<8x16x128xf32>
      %257 = vector.extract_strided_slice %229 {offsets = [0, 7, 0], sizes = [8, 16, 128], strides = [1, 1, 1]} : vector<8x26x128xf32> to vector<8x16x128xf32>
      %cst_69 = arith.constant 0.109360687 : f32
      %258 = vector.broadcast %cst_69 : f32 to vector<8x16x128xf32>
      %259 = arith.mulf %258, %257 : vector<8x16x128xf32>
      %260 = arith.addf %256, %259 : vector<8x16x128xf32>
      %261 = vector.extract_strided_slice %229 {offsets = [0, 8, 0], sizes = [8, 16, 128], strides = [1, 1, 1]} : vector<8x26x128xf32> to vector<8x16x128xf32>
      %cst_70 = arith.constant 0.0360007733 : f32
      %262 = vector.broadcast %cst_70 : f32 to vector<8x16x128xf32>
      %263 = arith.mulf %262, %261 : vector<8x16x128xf32>
      %264 = arith.addf %260, %263 : vector<8x16x128xf32>
      %265 = vector.extract_strided_slice %229 {offsets = [0, 9, 0], sizes = [8, 16, 128], strides = [1, 1, 1]} : vector<8x26x128xf32> to vector<8x16x128xf32>
      %cst_71 = arith.constant 0.00759875821 : f32
      %266 = vector.broadcast %cst_71 : f32 to vector<8x16x128xf32>
      %267 = arith.mulf %266, %265 : vector<8x16x128xf32>
      %268 = arith.addf %264, %267 : vector<8x16x128xf32>
      %269 = vector.extract_strided_slice %229 {offsets = [0, 10, 0], sizes = [8, 16, 128], strides = [1, 1, 1]} : vector<8x26x128xf32> to vector<8x16x128xf32>
      %cst_72 = arith.constant 0.00102838012 : f32
      %270 = vector.broadcast %cst_72 : f32 to vector<8x16x128xf32>
      %271 = arith.mulf %270, %269 : vector<8x16x128xf32>
      %272 = arith.addf %268, %271 : vector<8x16x128xf32>
      %273 = vector.extract_strided_slice %13 {offsets = [0, 0, 0], sizes = [8, 26, 128], strides = [1, 1, 1]} : vector<18x26x128xf32> to vector<8x26x128xf32>
      %cst_73 = arith.constant 0.00102838012 : f32
      %274 = vector.broadcast %cst_73 : f32 to vector<8x26x128xf32>
      %275 = arith.mulf %274, %273 : vector<8x26x128xf32>
      %276 = vector.extract_strided_slice %13 {offsets = [1, 0, 0], sizes = [8, 26, 128], strides = [1, 1, 1]} : vector<18x26x128xf32> to vector<8x26x128xf32>
      %cst_74 = arith.constant 0.00759875821 : f32
      %277 = vector.broadcast %cst_74 : f32 to vector<8x26x128xf32>
      %278 = arith.mulf %277, %276 : vector<8x26x128xf32>
      %279 = arith.addf %275, %278 : vector<8x26x128xf32>
      %280 = vector.extract_strided_slice %13 {offsets = [2, 0, 0], sizes = [8, 26, 128], strides = [1, 1, 1]} : vector<18x26x128xf32> to vector<8x26x128xf32>
      %cst_75 = arith.constant 0.0360007733 : f32
      %281 = vector.broadcast %cst_75 : f32 to vector<8x26x128xf32>
      %282 = arith.mulf %281, %280 : vector<8x26x128xf32>
      %283 = arith.addf %279, %282 : vector<8x26x128xf32>
      %284 = vector.extract_strided_slice %13 {offsets = [3, 0, 0], sizes = [8, 26, 128], strides = [1, 1, 1]} : vector<18x26x128xf32> to vector<8x26x128xf32>
      %cst_76 = arith.constant 0.109360687 : f32
      %285 = vector.broadcast %cst_76 : f32 to vector<8x26x128xf32>
      %286 = arith.mulf %285, %284 : vector<8x26x128xf32>
      %287 = arith.addf %283, %286 : vector<8x26x128xf32>
      %288 = vector.extract_strided_slice %13 {offsets = [4, 0, 0], sizes = [8, 26, 128], strides = [1, 1, 1]} : vector<18x26x128xf32> to vector<8x26x128xf32>
      %cst_77 = arith.constant 0.213005543 : f32
      %289 = vector.broadcast %cst_77 : f32 to vector<8x26x128xf32>
      %290 = arith.mulf %289, %288 : vector<8x26x128xf32>
      %291 = arith.addf %287, %290 : vector<8x26x128xf32>
      %292 = vector.extract_strided_slice %13 {offsets = [5, 0, 0], sizes = [8, 26, 128], strides = [1, 1, 1]} : vector<18x26x128xf32> to vector<8x26x128xf32>
      %cst_78 = arith.constant 0.266011715 : f32
      %293 = vector.broadcast %cst_78 : f32 to vector<8x26x128xf32>
      %294 = arith.mulf %293, %292 : vector<8x26x128xf32>
      %295 = arith.addf %291, %294 : vector<8x26x128xf32>
      %296 = vector.extract_strided_slice %13 {offsets = [6, 0, 0], sizes = [8, 26, 128], strides = [1, 1, 1]} : vector<18x26x128xf32> to vector<8x26x128xf32>
      %cst_79 = arith.constant 0.213005543 : f32
      %297 = vector.broadcast %cst_79 : f32 to vector<8x26x128xf32>
      %298 = arith.mulf %297, %296 : vector<8x26x128xf32>
      %299 = arith.addf %295, %298 : vector<8x26x128xf32>
      %300 = vector.extract_strided_slice %13 {offsets = [7, 0, 0], sizes = [8, 26, 128], strides = [1, 1, 1]} : vector<18x26x128xf32> to vector<8x26x128xf32>
      %cst_80 = arith.constant 0.109360687 : f32
      %301 = vector.broadcast %cst_80 : f32 to vector<8x26x128xf32>
      %302 = arith.mulf %301, %300 : vector<8x26x128xf32>
      %303 = arith.addf %299, %302 : vector<8x26x128xf32>
      %304 = vector.extract_strided_slice %13 {offsets = [8, 0, 0], sizes = [8, 26, 128], strides = [1, 1, 1]} : vector<18x26x128xf32> to vector<8x26x128xf32>
      %cst_81 = arith.constant 0.0360007733 : f32
      %305 = vector.broadcast %cst_81 : f32 to vector<8x26x128xf32>
      %306 = arith.mulf %305, %304 : vector<8x26x128xf32>
      %307 = arith.addf %303, %306 : vector<8x26x128xf32>
      %308 = vector.extract_strided_slice %13 {offsets = [9, 0, 0], sizes = [8, 26, 128], strides = [1, 1, 1]} : vector<18x26x128xf32> to vector<8x26x128xf32>
      %cst_82 = arith.constant 0.00759875821 : f32
      %309 = vector.broadcast %cst_82 : f32 to vector<8x26x128xf32>
      %310 = arith.mulf %309, %308 : vector<8x26x128xf32>
      %311 = arith.addf %307, %310 : vector<8x26x128xf32>
      %312 = vector.extract_strided_slice %13 {offsets = [10, 0, 0], sizes = [8, 26, 128], strides = [1, 1, 1]} : vector<18x26x128xf32> to vector<8x26x128xf32>
      %cst_83 = arith.constant 0.00102838012 : f32
      %313 = vector.broadcast %cst_83 : f32 to vector<8x26x128xf32>
      %314 = arith.mulf %313, %312 : vector<8x26x128xf32>
      %315 = arith.addf %311, %314 : vector<8x26x128xf32>
      %316 = vector.extract_strided_slice %315 {offsets = [0, 0, 0], sizes = [8, 16, 128], strides = [1, 1, 1]} : vector<8x26x128xf32> to vector<8x16x128xf32>
      %cst_84 = arith.constant 0.00102838012 : f32
      %317 = vector.broadcast %cst_84 : f32 to vector<8x16x128xf32>
      %318 = arith.mulf %317, %316 : vector<8x16x128xf32>
      %319 = vector.extract_strided_slice %315 {offsets = [0, 1, 0], sizes = [8, 16, 128], strides = [1, 1, 1]} : vector<8x26x128xf32> to vector<8x16x128xf32>
      %cst_85 = arith.constant 0.00759875821 : f32
      %320 = vector.broadcast %cst_85 : f32 to vector<8x16x128xf32>
      %321 = arith.mulf %320, %319 : vector<8x16x128xf32>
      %322 = arith.addf %318, %321 : vector<8x16x128xf32>
      %323 = vector.extract_strided_slice %315 {offsets = [0, 2, 0], sizes = [8, 16, 128], strides = [1, 1, 1]} : vector<8x26x128xf32> to vector<8x16x128xf32>
      %cst_86 = arith.constant 0.0360007733 : f32
      %324 = vector.broadcast %cst_86 : f32 to vector<8x16x128xf32>
      %325 = arith.mulf %324, %323 : vector<8x16x128xf32>
      %326 = arith.addf %322, %325 : vector<8x16x128xf32>
      %327 = vector.extract_strided_slice %315 {offsets = [0, 3, 0], sizes = [8, 16, 128], strides = [1, 1, 1]} : vector<8x26x128xf32> to vector<8x16x128xf32>
      %cst_87 = arith.constant 0.109360687 : f32
      %328 = vector.broadcast %cst_87 : f32 to vector<8x16x128xf32>
      %329 = arith.mulf %328, %327 : vector<8x16x128xf32>
      %330 = arith.addf %326, %329 : vector<8x16x128xf32>
      %331 = vector.extract_strided_slice %315 {offsets = [0, 4, 0], sizes = [8, 16, 128], strides = [1, 1, 1]} : vector<8x26x128xf32> to vector<8x16x128xf32>
      %cst_88 = arith.constant 0.213005543 : f32
      %332 = vector.broadcast %cst_88 : f32 to vector<8x16x128xf32>
      %333 = arith.mulf %332, %331 : vector<8x16x128xf32>
      %334 = arith.addf %330, %333 : vector<8x16x128xf32>
      %335 = vector.extract_strided_slice %315 {offsets = [0, 5, 0], sizes = [8, 16, 128], strides = [1, 1, 1]} : vector<8x26x128xf32> to vector<8x16x128xf32>
      %cst_89 = arith.constant 0.266011715 : f32
      %336 = vector.broadcast %cst_89 : f32 to vector<8x16x128xf32>
      %337 = arith.mulf %336, %335 : vector<8x16x128xf32>
      %338 = arith.addf %334, %337 : vector<8x16x128xf32>
      %339 = vector.extract_strided_slice %315 {offsets = [0, 6, 0], sizes = [8, 16, 128], strides = [1, 1, 1]} : vector<8x26x128xf32> to vector<8x16x128xf32>
      %cst_90 = arith.constant 0.213005543 : f32
      %340 = vector.broadcast %cst_90 : f32 to vector<8x16x128xf32>
      %341 = arith.mulf %340, %339 : vector<8x16x128xf32>
      %342 = arith.addf %338, %341 : vector<8x16x128xf32>
      %343 = vector.extract_strided_slice %315 {offsets = [0, 7, 0], sizes = [8, 16, 128], strides = [1, 1, 1]} : vector<8x26x128xf32> to vector<8x16x128xf32>
      %cst_91 = arith.constant 0.109360687 : f32
      %344 = vector.broadcast %cst_91 : f32 to vector<8x16x128xf32>
      %345 = arith.mulf %344, %343 : vector<8x16x128xf32>
      %346 = arith.addf %342, %345 : vector<8x16x128xf32>
      %347 = vector.extract_strided_slice %315 {offsets = [0, 8, 0], sizes = [8, 16, 128], strides = [1, 1, 1]} : vector<8x26x128xf32> to vector<8x16x128xf32>
      %cst_92 = arith.constant 0.0360007733 : f32
      %348 = vector.broadcast %cst_92 : f32 to vector<8x16x128xf32>
      %349 = arith.mulf %348, %347 : vector<8x16x128xf32>
      %350 = arith.addf %346, %349 : vector<8x16x128xf32>
      %351 = vector.extract_strided_slice %315 {offsets = [0, 9, 0], sizes = [8, 16, 128], strides = [1, 1, 1]} : vector<8x26x128xf32> to vector<8x16x128xf32>
      %cst_93 = arith.constant 0.00759875821 : f32
      %352 = vector.broadcast %cst_93 : f32 to vector<8x16x128xf32>
      %353 = arith.mulf %352, %351 : vector<8x16x128xf32>
      %354 = arith.addf %350, %353 : vector<8x16x128xf32>
      %355 = vector.extract_strided_slice %315 {offsets = [0, 10, 0], sizes = [8, 16, 128], strides = [1, 1, 1]} : vector<8x26x128xf32> to vector<8x16x128xf32>
      %cst_94 = arith.constant 0.00102838012 : f32
      %356 = vector.broadcast %cst_94 : f32 to vector<8x16x128xf32>
      %357 = arith.mulf %356, %355 : vector<8x16x128xf32>
      %358 = arith.addf %354, %357 : vector<8x16x128xf32>
      %359 = vector.extract_strided_slice %14 {offsets = [0, 0, 0], sizes = [8, 26, 128], strides = [1, 1, 1]} : vector<18x26x128xf32> to vector<8x26x128xf32>
      %cst_95 = arith.constant 0.00102838012 : f32
      %360 = vector.broadcast %cst_95 : f32 to vector<8x26x128xf32>
      %361 = arith.mulf %360, %359 : vector<8x26x128xf32>
      %362 = vector.extract_strided_slice %14 {offsets = [1, 0, 0], sizes = [8, 26, 128], strides = [1, 1, 1]} : vector<18x26x128xf32> to vector<8x26x128xf32>
      %cst_96 = arith.constant 0.00759875821 : f32
      %363 = vector.broadcast %cst_96 : f32 to vector<8x26x128xf32>
      %364 = arith.mulf %363, %362 : vector<8x26x128xf32>
      %365 = arith.addf %361, %364 : vector<8x26x128xf32>
      %366 = vector.extract_strided_slice %14 {offsets = [2, 0, 0], sizes = [8, 26, 128], strides = [1, 1, 1]} : vector<18x26x128xf32> to vector<8x26x128xf32>
      %cst_97 = arith.constant 0.0360007733 : f32
      %367 = vector.broadcast %cst_97 : f32 to vector<8x26x128xf32>
      %368 = arith.mulf %367, %366 : vector<8x26x128xf32>
      %369 = arith.addf %365, %368 : vector<8x26x128xf32>
      %370 = vector.extract_strided_slice %14 {offsets = [3, 0, 0], sizes = [8, 26, 128], strides = [1, 1, 1]} : vector<18x26x128xf32> to vector<8x26x128xf32>
      %cst_98 = arith.constant 0.109360687 : f32
      %371 = vector.broadcast %cst_98 : f32 to vector<8x26x128xf32>
      %372 = arith.mulf %371, %370 : vector<8x26x128xf32>
      %373 = arith.addf %369, %372 : vector<8x26x128xf32>
      %374 = vector.extract_strided_slice %14 {offsets = [4, 0, 0], sizes = [8, 26, 128], strides = [1, 1, 1]} : vector<18x26x128xf32> to vector<8x26x128xf32>
      %cst_99 = arith.constant 0.213005543 : f32
      %375 = vector.broadcast %cst_99 : f32 to vector<8x26x128xf32>
      %376 = arith.mulf %375, %374 : vector<8x26x128xf32>
      %377 = arith.addf %373, %376 : vector<8x26x128xf32>
      %378 = vector.extract_strided_slice %14 {offsets = [5, 0, 0], sizes = [8, 26, 128], strides = [1, 1, 1]} : vector<18x26x128xf32> to vector<8x26x128xf32>
      %cst_100 = arith.constant 0.266011715 : f32
      %379 = vector.broadcast %cst_100 : f32 to vector<8x26x128xf32>
      %380 = arith.mulf %379, %378 : vector<8x26x128xf32>
      %381 = arith.addf %377, %380 : vector<8x26x128xf32>
      %382 = vector.extract_strided_slice %14 {offsets = [6, 0, 0], sizes = [8, 26, 128], strides = [1, 1, 1]} : vector<18x26x128xf32> to vector<8x26x128xf32>
      %cst_101 = arith.constant 0.213005543 : f32
      %383 = vector.broadcast %cst_101 : f32 to vector<8x26x128xf32>
      %384 = arith.mulf %383, %382 : vector<8x26x128xf32>
      %385 = arith.addf %381, %384 : vector<8x26x128xf32>
      %386 = vector.extract_strided_slice %14 {offsets = [7, 0, 0], sizes = [8, 26, 128], strides = [1, 1, 1]} : vector<18x26x128xf32> to vector<8x26x128xf32>
      %cst_102 = arith.constant 0.109360687 : f32
      %387 = vector.broadcast %cst_102 : f32 to vector<8x26x128xf32>
      %388 = arith.mulf %387, %386 : vector<8x26x128xf32>
      %389 = arith.addf %385, %388 : vector<8x26x128xf32>
      %390 = vector.extract_strided_slice %14 {offsets = [8, 0, 0], sizes = [8, 26, 128], strides = [1, 1, 1]} : vector<18x26x128xf32> to vector<8x26x128xf32>
      %cst_103 = arith.constant 0.0360007733 : f32
      %391 = vector.broadcast %cst_103 : f32 to vector<8x26x128xf32>
      %392 = arith.mulf %391, %390 : vector<8x26x128xf32>
      %393 = arith.addf %389, %392 : vector<8x26x128xf32>
      %394 = vector.extract_strided_slice %14 {offsets = [9, 0, 0], sizes = [8, 26, 128], strides = [1, 1, 1]} : vector<18x26x128xf32> to vector<8x26x128xf32>
      %cst_104 = arith.constant 0.00759875821 : f32
      %395 = vector.broadcast %cst_104 : f32 to vector<8x26x128xf32>
      %396 = arith.mulf %395, %394 : vector<8x26x128xf32>
      %397 = arith.addf %393, %396 : vector<8x26x128xf32>
      %398 = vector.extract_strided_slice %14 {offsets = [10, 0, 0], sizes = [8, 26, 128], strides = [1, 1, 1]} : vector<18x26x128xf32> to vector<8x26x128xf32>
      %cst_105 = arith.constant 0.00102838012 : f32
      %399 = vector.broadcast %cst_105 : f32 to vector<8x26x128xf32>
      %400 = arith.mulf %399, %398 : vector<8x26x128xf32>
      %401 = arith.addf %397, %400 : vector<8x26x128xf32>
      %402 = vector.extract_strided_slice %401 {offsets = [0, 0, 0], sizes = [8, 16, 128], strides = [1, 1, 1]} : vector<8x26x128xf32> to vector<8x16x128xf32>
      %cst_106 = arith.constant 0.00102838012 : f32
      %403 = vector.broadcast %cst_106 : f32 to vector<8x16x128xf32>
      %404 = arith.mulf %403, %402 : vector<8x16x128xf32>
      %405 = vector.extract_strided_slice %401 {offsets = [0, 1, 0], sizes = [8, 16, 128], strides = [1, 1, 1]} : vector<8x26x128xf32> to vector<8x16x128xf32>
      %cst_107 = arith.constant 0.00759875821 : f32
      %406 = vector.broadcast %cst_107 : f32 to vector<8x16x128xf32>
      %407 = arith.mulf %406, %405 : vector<8x16x128xf32>
      %408 = arith.addf %404, %407 : vector<8x16x128xf32>
      %409 = vector.extract_strided_slice %401 {offsets = [0, 2, 0], sizes = [8, 16, 128], strides = [1, 1, 1]} : vector<8x26x128xf32> to vector<8x16x128xf32>
      %cst_108 = arith.constant 0.0360007733 : f32
      %410 = vector.broadcast %cst_108 : f32 to vector<8x16x128xf32>
      %411 = arith.mulf %410, %409 : vector<8x16x128xf32>
      %412 = arith.addf %408, %411 : vector<8x16x128xf32>
      %413 = vector.extract_strided_slice %401 {offsets = [0, 3, 0], sizes = [8, 16, 128], strides = [1, 1, 1]} : vector<8x26x128xf32> to vector<8x16x128xf32>
      %cst_109 = arith.constant 0.109360687 : f32
      %414 = vector.broadcast %cst_109 : f32 to vector<8x16x128xf32>
      %415 = arith.mulf %414, %413 : vector<8x16x128xf32>
      %416 = arith.addf %412, %415 : vector<8x16x128xf32>
      %417 = vector.extract_strided_slice %401 {offsets = [0, 4, 0], sizes = [8, 16, 128], strides = [1, 1, 1]} : vector<8x26x128xf32> to vector<8x16x128xf32>
      %cst_110 = arith.constant 0.213005543 : f32
      %418 = vector.broadcast %cst_110 : f32 to vector<8x16x128xf32>
      %419 = arith.mulf %418, %417 : vector<8x16x128xf32>
      %420 = arith.addf %416, %419 : vector<8x16x128xf32>
      %421 = vector.extract_strided_slice %401 {offsets = [0, 5, 0], sizes = [8, 16, 128], strides = [1, 1, 1]} : vector<8x26x128xf32> to vector<8x16x128xf32>
      %cst_111 = arith.constant 0.266011715 : f32
      %422 = vector.broadcast %cst_111 : f32 to vector<8x16x128xf32>
      %423 = arith.mulf %422, %421 : vector<8x16x128xf32>
      %424 = arith.addf %420, %423 : vector<8x16x128xf32>
      %425 = vector.extract_strided_slice %401 {offsets = [0, 6, 0], sizes = [8, 16, 128], strides = [1, 1, 1]} : vector<8x26x128xf32> to vector<8x16x128xf32>
      %cst_112 = arith.constant 0.213005543 : f32
      %426 = vector.broadcast %cst_112 : f32 to vector<8x16x128xf32>
      %427 = arith.mulf %426, %425 : vector<8x16x128xf32>
      %428 = arith.addf %424, %427 : vector<8x16x128xf32>
      %429 = vector.extract_strided_slice %401 {offsets = [0, 7, 0], sizes = [8, 16, 128], strides = [1, 1, 1]} : vector<8x26x128xf32> to vector<8x16x128xf32>
      %cst_113 = arith.constant 0.109360687 : f32
      %430 = vector.broadcast %cst_113 : f32 to vector<8x16x128xf32>
      %431 = arith.mulf %430, %429 : vector<8x16x128xf32>
      %432 = arith.addf %428, %431 : vector<8x16x128xf32>
      %433 = vector.extract_strided_slice %401 {offsets = [0, 8, 0], sizes = [8, 16, 128], strides = [1, 1, 1]} : vector<8x26x128xf32> to vector<8x16x128xf32>
      %cst_114 = arith.constant 0.0360007733 : f32
      %434 = vector.broadcast %cst_114 : f32 to vector<8x16x128xf32>
      %435 = arith.mulf %434, %433 : vector<8x16x128xf32>
      %436 = arith.addf %432, %435 : vector<8x16x128xf32>
      %437 = vector.extract_strided_slice %401 {offsets = [0, 9, 0], sizes = [8, 16, 128], strides = [1, 1, 1]} : vector<8x26x128xf32> to vector<8x16x128xf32>
      %cst_115 = arith.constant 0.00759875821 : f32
      %438 = vector.broadcast %cst_115 : f32 to vector<8x16x128xf32>
      %439 = arith.mulf %438, %437 : vector<8x16x128xf32>
      %440 = arith.addf %436, %439 : vector<8x16x128xf32>
      %441 = vector.extract_strided_slice %401 {offsets = [0, 10, 0], sizes = [8, 16, 128], strides = [1, 1, 1]} : vector<8x26x128xf32> to vector<8x16x128xf32>
      %cst_116 = arith.constant 0.00102838012 : f32
      %442 = vector.broadcast %cst_116 : f32 to vector<8x16x128xf32>
      %443 = arith.mulf %442, %441 : vector<8x16x128xf32>
      %444 = arith.addf %440, %443 : vector<8x16x128xf32>
      %445 = arith.mulf %100, %100 : vector<8x16x128xf32>
      %446 = arith.mulf %186, %186 : vector<8x16x128xf32>
      %447 = arith.mulf %100, %186 : vector<8x16x128xf32>
      %448 = arith.subf %272, %445 : vector<8x16x128xf32>
      %449 = arith.subf %358, %446 : vector<8x16x128xf32>
      %450 = arith.subf %444, %447 : vector<8x16x128xf32>
      %cst_117 = arith.constant 2.000000e+00 : f32
      %451 = vector.broadcast %cst_117 : f32 to vector<8x16x128xf32>
      %452 = arith.mulf %451, %450 : vector<8x16x128xf32>
      %453 = vector.broadcast %1 : f32 to vector<8x16x128xf32>
      %454 = arith.addf %452, %453 : vector<8x16x128xf32>
      %455 = arith.addf %448, %449 : vector<8x16x128xf32>
      %456 = vector.broadcast %1 : f32 to vector<8x16x128xf32>
      %457 = arith.addf %455, %456 : vector<8x16x128xf32>
      %cst_118 = arith.constant 2.000000e+00 : f32
      %458 = vector.broadcast %cst_118 : f32 to vector<8x16x128xf32>
      %459 = arith.mulf %458, %447 : vector<8x16x128xf32>
      %460 = vector.broadcast %0 : f32 to vector<8x16x128xf32>
      %461 = arith.addf %459, %460 : vector<8x16x128xf32>
      %462 = arith.mulf %461, %454 : vector<8x16x128xf32>
      %463 = arith.addf %445, %446 : vector<8x16x128xf32>
      %464 = vector.broadcast %0 : f32 to vector<8x16x128xf32>
      %465 = arith.addf %463, %464 : vector<8x16x128xf32>
      %466 = arith.mulf %465, %457 : vector<8x16x128xf32>
      %467 = tpu.reciprocal %466 : vector<8x16x128xf32> -> vector<8x16x128xf32>
      %468 = arith.mulf %462, %467 : vector<8x16x128xf32>
      %cst_119 = arith.constant dense<0.000000e+00> : vector<16x128xf32>
      %469 = vector.multi_reduction <add>, %468, %cst_119 [0] : vector<8x16x128xf32> to vector<16x128xf32>
      %470 = arith.addf %arg6, %469 : vector<16x128xf32>
      scf.yield %470 : vector<16x128xf32>
    }
    %c2_i32_0 = arith.constant 2 : i32
    %c0_1 = arith.constant 0 : index
    %c0_2 = arith.constant 0 : index
    %5 = vector.load %arg4[%c0_1, %c0_2] : memref<16x128xf32, #tpu.memory_space<vmem>>, vector<16x128xf32>
    tpu.vector_store %arg4[%c0_1, %c0_2], %4 {strides = array<i32>} : memref<16x128xf32, #tpu.memory_space<vmem>>, vector<16x128xf32>,
    return
  }
  func.func @transform_0(%arg0: i32) -> i32 {
    %c0_i32 = arith.constant 0 : i32
    %c0_i32_0 = arith.constant 0 : i32
    return %c0_i32 : i32
  }
  func.func @transform_1(%arg0: i32) -> (i32, i32, i32) {
    %c0_i32 = arith.constant 0 : i32
    %c0_i32_0 = arith.constant 0 : i32
    %c0_i32_1 = arith.constant 0 : i32
    return %c0_i32, %c0_i32_0, %arg0 : i32, i32, i32
  }
  func.func @transform_2(%arg0: i32) -> (i32, i32, i32) {
    %c0_i32 = arith.constant 0 : i32
    %c0_i32_0 = arith.constant 0 : i32
    %c0_i32_1 = arith.constant 0 : i32
    return %c0_i32, %c0_i32_0, %arg0 : i32, i32, i32
  }
  func.func @transform_3(%arg0: i32) -> (i32, i32) {
    %c0_i32 = arith.constant 0 : i32
    %c0_i32_0 = arith.constant 0 : i32
    return %c0_i32, %arg0 : i32, i32
  }
}

</mosaic_0001>

<llo_original>
// kernel: tpu_custom_call.1
$region0: #{tpu_custom_call.1}
  #allocation0 [shape = 'u32[]', space=smem, size = 0x4, offset = 0x4, fixed_abs, tag = 'smem constant byte address 0x4 - core index']
  #allocation1 [shape = 'u32[72,128]{1,0:T(1,128)}', space=vmem, size = 0x9000, scoped, tag = 'internal scratch']
  %s0 = inlined_call_operand.hbm [shape: f32[2], index: 0, kind: input, shape index: {}]
  %s1 = inlined_call_operand.hbm [shape: f32[26,26,128], index: 1, kind: input, shape index: {}]
  %s2 = inlined_call_operand.hbm [shape: f32[26,26,128], index: 2, kind: input, shape index: {}]
  %s3 = inlined_call_operand.hbm [shape: f32[16,128], index: 3, kind: output, shape index: {}]
  %s4 = sld [smem:[#allocation0]]
  $region41: #{tpu_custom_call.1} parent=0
    _
  %s6 = ssub.s32 1, %s4
  %s7 = scalar_select 0, %s6, %s4
  $region1: #{tpu_custom_call.1} parent=0
    #allocation2 [shape = 'u8[512]{0}', space=smem, size = 0x200, scoped, tag = 'input window, operand 0, single buffered']
    #allocation3 [shape = 's32[1]{0}', space=sflag, size = 0x4, scoped, tag = 'scoped memory for tpu_custom_call.1']
    #allocation4 [shape = 's32[1]{0}', space=sflag, size = 0x4, scoped, tag = 'scoped memory for tpu_custom_call.1']
    #allocation5 [shape = 's32[1]{0}', space=sflag, size = 0x4, scoped, tag = 'scoped memory for tpu_custom_call.1']
    #allocation6 [shape = 'u8[425984]{0}', space=vmem, size = 0x68000, scoped, tag = 'input window, operand 1, single buffered']
    #allocation7 [shape = 'u8[425984]{0}', space=vmem, size = 0x68000, scoped, tag = 'input window, operand 2, single buffered']
    #allocation8 [shape = 's32[1]{0}', space=sflag, size = 0x4, scoped, tag = 'scoped memory for tpu_custom_call.1']
    #allocation9 [shape = 'u8[8192]{0}', space=vmem, size = 0x2000, scoped, tag = 'output window, operand 0, single buffered']
    %8 = vsyncpa [#allocation5], 0
    %9 = vsyncpa [#allocation3], 0
    %10 = vsyncpa [#allocation8], 0
    %11 = vsyncpa [#allocation4], 0
    // Predicated region
    $region2: #{tpu_custom_call.1} parent=1 // pred_check
      _
    $region3: #{tpu_custom_call.1} parent=1 // pred_check_branch
      %13 = sbr.rel (0) target = $region5
    $region4: #{tpu_custom_call.1} parent=1 // pred_region
      %15 = vsyncadd [#allocation5], 0
      %s17 = sshll.u32 %s0, 4
      %s18 = int_to_ptr.hbm [resolvable:$true] %s17
      %20 = dma.hbm_to_smem %s18, 16, [#allocation2], [#allocation5]
    $region5: #{tpu_custom_call.1} parent=1 // pred_fallthru
      _
    // Predicated region
    $region6: #{tpu_custom_call.1} parent=1 // pred_check
      _
    $region7: #{tpu_custom_call.1} parent=1 // pred_check_branch
      %22 = sbr.rel (0) target = $region9
    $region8: #{tpu_custom_call.1} parent=1 // pred_region
      %24 = vsyncadd [#allocation3], 0
      %s25 = sshll.u32 %s1, 4
      %s26 = int_to_ptr.hbm [resolvable:$true] %s25
      %s27 = sshll.u32 [#allocation6], 4
      %s28 = int_to_ptr.vmem [resolvable:$true] %s27
      %33 = dma.hbm_to_vmem [thread:$0]  %s26, 13312, %s28, [#allocation3], 128, 128, 8
    $region9: #{tpu_custom_call.1} parent=1 // pred_fallthru
      _
    // Predicated region
    $region10: #{tpu_custom_call.1} parent=1 // pred_check
      _
    $region11: #{tpu_custom_call.1} parent=1 // pred_check_branch
      %35 = sbr.rel (0) target = $region13
    $region12: #{tpu_custom_call.1} parent=1 // pred_region
      %37 = vsyncadd [#allocation8], 0
      %s38 = sshll.u32 %s2, 4
      %s39 = int_to_ptr.hbm [resolvable:$true] %s38
      %s40 = sshll.u32 [#allocation7], 4
      %s41 = int_to_ptr.vmem [resolvable:$true] %s40
      %46 = dma.hbm_to_vmem [thread:$0]  %s39, 13312, %s41, [#allocation8], 128, 128, 8
    $region13: #{tpu_custom_call.1} parent=1 // pred_fallthru
      _
    // Predicated region
    $region14: #{tpu_custom_call.1} parent=1 // pred_check
      _
    $region15: #{tpu_custom_call.1} parent=1 // pred_check_branch
      %48 = sbr.rel (0) target = $region17
    $region16: #{tpu_custom_call.1} parent=1 // pred_region
      %50 = dma.done [#allocation5], 16
    $region17: #{tpu_custom_call.1} parent=1 // pred_fallthru
      _
    // Predicated region
    $region18: #{tpu_custom_call.1} parent=1 // pred_check
      _
    $region19: #{tpu_custom_call.1} parent=1 // pred_check_branch
      %52 = sbr.rel (0) target = $region21
    $region20: #{tpu_custom_call.1} parent=1 // pred_region
      %54 = dma.done [#allocation3], 13312
    $region21: #{tpu_custom_call.1} parent=1 // pred_fallthru
      _
    // Predicated region
    $region22: #{tpu_custom_call.1} parent=1 // pred_check
      _
    $region23: #{tpu_custom_call.1} parent=1 // pred_check_branch
      %56 = sbr.rel (0) target = $region25
    $region24: #{tpu_custom_call.1} parent=1 // pred_region
      %58 = dma.done [#allocation8], 13312
    $region25: #{tpu_custom_call.1} parent=1 // pred_fallthru
      _
    %59 = sfence
    %s60 = sld [smem:[#allocation2]]
    %s61 = sld [smem:[#allocation2 + $0x1]]
    loop: start=0, step=1, limit=2
    $region26: #{tpu_custom_call.1} parent=1 // loop_pre_header
      _
    $region27: #{tpu_custom_call.1} parent=1 // loop_header
      %s63 = sphi 0, %s67
      %p64 = scmp.ge.s32.totalorder %s63, 2
      %v68 = vphi 0.0, %v8793
      %v69 = vphi 0.0, %v8794
    $region28: #{tpu_custom_call.1} parent=1 // loop_header_branch
      %66 = sbr.rel (%p64) target = $region32
    $region29: #{tpu_custom_call.1} parent=1 // loop_body
      %s70 = smul.u32 %s63, 8
      %s71 = smul.u32 %s70, 32
      %s72 = scalar_lea.vmem [#allocation6], %s71
      %v73 = vld [vmem:[%s72] sm:$0xff]
      %v74 = vld [vmem:[%s72 + $0x8] sm:$0xff]
      %v75 = vld [vmem:[%s72 + $0x10] sm:$0xff]
      %v76 = vld [vmem:[%s72 + $0x18] sm:$0x3]
      %v77 = vld [vmem:[%s72 + $0x20] sm:$0xff]
      %v78 = vld [vmem:[%s72 + $0x28] sm:$0xff]
      %v79 = vld [vmem:[%s72 + $0x30] sm:$0xff]
      %v80 = vld [vmem:[%s72 + $0x38] sm:$0x3]
      %v81 = vld [vmem:[%s72 + $0x40] sm:$0xff]
      %v82 = vld [vmem:[%s72 + $0x48] sm:$0xff]
      %v83 = vld [vmem:[%s72 + $0x50] sm:$0xff]
      %v84 = vld [vmem:[%s72 + $0x58] sm:$0x3]
      %v85 = vld [vmem:[%s72 + $0x60] sm:$0xff]
      %v86 = vld [vmem:[%s72 + $0x68] sm:$0xff]
      %v87 = vld [vmem:[%s72 + $0x70] sm:$0xff]
      %v88 = vld [vmem:[%s72 + $0x78] sm:$0x3]
      %v89 = vld [vmem:[%s72 + $0x80] sm:$0xff]
      %v90 = vld [vmem:[%s72 + $0x88] sm:$0xff]
      %v91 = vld [vmem:[%s72 + $0x90] sm:$0xff]
      %v92 = vld [vmem:[%s72 + $0x98] sm:$0x3]
      %v93 = vld [vmem:[%s72 + $0xa0] sm:$0xff]
      %v94 = vld [vmem:[%s72 + $0xa8] sm:$0xff]
      %v95 = vld [vmem:[%s72 + $0xb0] sm:$0xff]
      %v96 = vld [vmem:[%s72 + $0xb8] sm:$0x3]
      %v97 = vld [vmem:[%s72 + $0xc0] sm:$0xff]
      %v98 = vld [vmem:[%s72 + $0xc8] sm:$0xff]
      %v99 = vld [vmem:[%s72 + $0xd0] sm:$0xff]
      %v100 = vld [vmem:[%s72 + $0xd8] sm:$0x3]
      %v101 = vld [vmem:[%s72 + $0xe0] sm:$0xff]
      %v102 = vld [vmem:[%s72 + $0xe8] sm:$0xff]
      %v103 = vld [vmem:[%s72 + $0xf0] sm:$0xff]
      %v104 = vld [vmem:[%s72 + $0xf8] sm:$0x3]
      %v105 = vld [vmem:[%s72 + $0x100] sm:$0xff]
      %v106 = vld [vmem:[%s72 + $0x108] sm:$0xff]
      %v107 = vld [vmem:[%s72 + $0x110] sm:$0xff]
      %v108 = vld [vmem:[%s72 + $0x118] sm:$0x3]
      %v109 = vld [vmem:[%s72 + $0x120] sm:$0xff]
      %v110 = vld [vmem:[%s72 + $0x128] sm:$0xff]
      %v111 = vld [vmem:[%s72 + $0x130] sm:$0xff]
      %v112 = vld [vmem:[%s72 + $0x138] sm:$0x3]
      %v113 = vld [vmem:[%s72 + $0x140] sm:$0xff]
      %v114 = vld [vmem:[%s72 + $0x148] sm:$0xff]
      %v115 = vld [vmem:[%s72 + $0x150] sm:$0xff]
      %v116 = vld [vmem:[%s72 + $0x158] sm:$0x3]
      %v117 = vld [vmem:[%s72 + $0x160] sm:$0xff]
      %v118 = vld [vmem:[%s72 + $0x168] sm:$0xff]
      %v119 = vld [vmem:[%s72 + $0x170] sm:$0xff]
      %v120 = vld [vmem:[%s72 + $0x178] sm:$0x3]
      %v121 = vld [vmem:[%s72 + $0x180] sm:$0xff]
      %v122 = vld [vmem:[%s72 + $0x188] sm:$0xff]
      %v123 = vld [vmem:[%s72 + $0x190] sm:$0xff]
      %v124 = vld [vmem:[%s72 + $0x198] sm:$0x3]
      %v125 = vld [vmem:[%s72 + $0x1a0] sm:$0xff]
      %v126 = vld [vmem:[%s72 + $0x1a8] sm:$0xff]
      %v127 = vld [vmem:[%s72 + $0x1b0] sm:$0xff]
      %v128 = vld [vmem:[%s72 + $0x1b8] sm:$0x3]
      %v129 = vld [vmem:[%s72 + $0x1c0] sm:$0xff]
      %v130 = vld [vmem:[%s72 + $0x1c8] sm:$0xff]
      %v131 = vld [vmem:[%s72 + $0x1d0] sm:$0xff]
      %v132 = vld [vmem:[%s72 + $0x1d8] sm:$0x3]
      %v133 = vld [vmem:[%s72 + $0x1e0] sm:$0xff]
      %v134 = vld [vmem:[%s72 + $0x1e8] sm:$0xff]
      %v135 = vld [vmem:[%s72 + $0x1f0] sm:$0xff]
      %v136 = vld [vmem:[%s72 + $0x1f8] sm:$0x3]
      %v137 = vld [vmem:[%s72 + $0x200] sm:$0xff]
      %v138 = vld [vmem:[%s72 + $0x208] sm:$0xff]
      %v139 = vld [vmem:[%s72 + $0x210] sm:$0xff]
      %v140 = vld [vmem:[%s72 + $0x218] sm:$0x3]
      %v141 = vld [vmem:[%s72 + $0x220] sm:$0xff]
      %v142 = vld [vmem:[%s72 + $0x228] sm:$0xff]
      %v143 = vld [vmem:[%s72 + $0x230] sm:$0xff]
      %v144 = vld [vmem:[%s72 + $0x238] sm:$0x3]
      %s145 = scalar_lea.vmem [#allocation7], %s71
      %v146 = vld [vmem:[%s145] sm:$0xff]
      %v147 = vld [vmem:[%s145 + $0x8] sm:$0xff]
      %v148 = vld [vmem:[%s145 + $0x10] sm:$0xff]
      %v149 = vld [vmem:[%s145 + $0x18] sm:$0x3]
      %v150 = vld [vmem:[%s145 + $0x20] sm:$0xff]
      %v151 = vld [vmem:[%s145 + $0x28] sm:$0xff]
      %v152 = vld [vmem:[%s145 + $0x30] sm:$0xff]
      %v153 = vld [vmem:[%s145 + $0x38] sm:$0x3]
      %v154 = vld [vmem:[%s145 + $0x40] sm:$0xff]
      %v155 = vld [vmem:[%s145 + $0x48] sm:$0xff]
      %v156 = vld [vmem:[%s145 + $0x50] sm:$0xff]
      %v157 = vld [vmem:[%s145 + $0x58] sm:$0x3]
      %v158 = vld [vmem:[%s145 + $0x60] sm:$0xff]
      %v159 = vld [vmem:[%s145 + $0x68] sm:$0xff]
      %v160 = vld [vmem:[%s145 + $0x70] sm:$0xff]
      %v161 = vld [vmem:[%s145 + $0x78] sm:$0x3]
      %v162 = vld [vmem:[%s145 + $0x80] sm:$0xff]
      %v163 = vld [vmem:[%s145 + $0x88] sm:$0xff]
      %v164 = vld [vmem:[%s145 + $0x90] sm:$0xff]
      %v165 = vld [vmem:[%s145 + $0x98] sm:$0x3]
      %v166 = vld [vmem:[%s145 + $0xa0] sm:$0xff]
      %v167 = vld [vmem:[%s145 + $0xa8] sm:$0xff]
      %v168 = vld [vmem:[%s145 + $0xb0] sm:$0xff]
      %v169 = vld [vmem:[%s145 + $0xb8] sm:$0x3]
      %v170 = vld [vmem:[%s145 + $0xc0] sm:$0xff]
      %v171 = vld [vmem:[%s145 + $0xc8] sm:$0xff]
      %v172 = vld [vmem:[%s145 + $0xd0] sm:$0xff]
      %v173 = vld [vmem:[%s145 + $0xd8] sm:$0x3]
      %v174 = vld [vmem:[%s145 + $0xe0] sm:$0xff]
      %v175 = vld [vmem:[%s145 + $0xe8] sm:$0xff]
      %v176 = vld [vmem:[%s145 + $0xf0] sm:$0xff]
      %v177 = vld [vmem:[%s145 + $0xf8] sm:$0x3]
      %v178 = vld [vmem:[%s145 + $0x100] sm:$0xff]
      %v179 = vld [vmem:[%s145 + $0x108] sm:$0xff]
      %v180 = vld [vmem:[%s145 + $0x110] sm:$0xff]
      %v181 = vld [vmem:[%s145 + $0x118] sm:$0x3]
      %v182 = vld [vmem:[%s145 + $0x120] sm:$0xff]
      %v183 = vld [vmem:[%s145 + $0x128] sm:$0xff]
      %v184 = vld [vmem:[%s145 + $0x130] sm:$0xff]
      %v185 = vld [vmem:[%s145 + $0x138] sm:$0x3]
      %v186 = vld [vmem:[%s145 + $0x140] sm:$0xff]
      %v187 = vld [vmem:[%s145 + $0x148] sm:$0xff]
      %v188 = vld [vmem:[%s145 + $0x150] sm:$0xff]
      %v189 = vld [vmem:[%s145 + $0x158] sm:$0x3]
      %v190 = vld [vmem:[%s145 + $0x160] sm:$0xff]
      %v191 = vld [vmem:[%s145 + $0x168] sm:$0xff]
      %v192 = vld [vmem:[%s145 + $0x170] sm:$0xff]
      %v193 = vld [vmem:[%s145 + $0x178] sm:$0x3]
      %v194 = vld [vmem:[%s145 + $0x180] sm:$0xff]
      %v195 = vld [vmem:[%s145 + $0x188] sm:$0xff]
      %v196 = vld [vmem:[%s145 + $0x190] sm:$0xff]
      %v197 = vld [vmem:[%s145 + $0x198] sm:$0x3]
      %v198 = vld [vmem:[%s145 + $0x1a0] sm:$0xff]
      %v199 = vld [vmem:[%s145 + $0x1a8] sm:$0xff]
      %v200 = vld [vmem:[%s145 + $0x1b0] sm:$0xff]
      %v201 = vld [vmem:[%s145 + $0x1b8] sm:$0x3]
      %v202 = vld [vmem:[%s145 + $0x1c0] sm:$0xff]
      %v203 = vld [vmem:[%s145 + $0x1c8] sm:$0xff]
      %v204 = vld [vmem:[%s145 + $0x1d0] sm:$0xff]
      %v205 = vld [vmem:[%s145 + $0x1d8] sm:$0x3]
      %v206 = vld [vmem:[%s145 + $0x1e0] sm:$0xff]
      %v207 = vld [vmem:[%s145 + $0x1e8] sm:$0xff]
      %v208 = vld [vmem:[%s145 + $0x1f0] sm:$0xff]
      %v209 = vld [vmem:[%s145 + $0x1f8] sm:$0x3]
      %v210 = vld [vmem:[%s145 + $0x200] sm:$0xff]
      %v211 = vld [vmem:[%s145 + $0x208] sm:$0xff]
      %v212 = vld [vmem:[%s145 + $0x210] sm:$0xff]
      %v213 = vld [vmem:[%s145 + $0x218] sm:$0x3]
      %v214 = vld [vmem:[%s145 + $0x220] sm:$0xff]
      %v215 = vld [vmem:[%s145 + $0x228] sm:$0xff]
      %v216 = vld [vmem:[%s145 + $0x230] sm:$0xff]
      %v217 = vld [vmem:[%s145 + $0x238] sm:$0x3]
      %v218 = vmul.f32 %v73, %v73
      %v219 = vmul.f32 %v74, %v74
      %v220 = vmul.f32 %v75, %v75
      %v221 = vmul.f32 %v76, %v76
      %v222 = vmul.f32 %v77, %v77
      %v223 = vmul.f32 %v78, %v78
      %v224 = vmul.f32 %v79, %v79
      %v225 = vmul.f32 %v80, %v80
      %v226 = vmul.f32 %v81, %v81
      %v227 = vmul.f32 %v82, %v82
      %v228 = vmul.f32 %v83, %v83
      %v229 = vmul.f32 %v84, %v84
      %v230 = vmul.f32 %v85, %v85
      %v231 = vmul.f32 %v86, %v86
      %v232 = vmul.f32 %v87, %v87
      %v233 = vmul.f32 %v88, %v88
      %v234 = vmul.f32 %v89, %v89
      %v235 = vmul.f32 %v90, %v90
      %v236 = vmul.f32 %v91, %v91
      %v237 = vmul.f32 %v92, %v92
      %v238 = vmul.f32 %v93, %v93
      %v239 = vmul.f32 %v94, %v94
      %v240 = vmul.f32 %v95, %v95
      %v241 = vmul.f32 %v96, %v96
      %v242 = vmul.f32 %v97, %v97
      %v243 = vmul.f32 %v98, %v98
      %v244 = vmul.f32 %v99, %v99
      %v245 = vmul.f32 %v100, %v100
      %v246 = vmul.f32 %v101, %v101
      %v247 = vmul.f32 %v102, %v102
      %v248 = vmul.f32 %v103, %v103
      %v249 = vmul.f32 %v104, %v104
      %v250 = vmul.f32 %v105, %v105
      %v251 = vmul.f32 %v106, %v106
      %v252 = vmul.f32 %v107, %v107
      %v253 = vmul.f32 %v108, %v108
      %v254 = vmul.f32 %v109, %v109
      %v255 = vmul.f32 %v110, %v110
      %v256 = vmul.f32 %v111, %v111
      %v257 = vmul.f32 %v112, %v112
      %v258 = vmul.f32 %v113, %v113
      %v259 = vmul.f32 %v114, %v114
      %v260 = vmul.f32 %v115, %v115
      %v261 = vmul.f32 %v116, %v116
      %v262 = vmul.f32 %v117, %v117
      %v263 = vmul.f32 %v118, %v118
      %v264 = vmul.f32 %v119, %v119
      %v265 = vmul.f32 %v120, %v120
      %v266 = vmul.f32 %v121, %v121
      %v267 = vmul.f32 %v122, %v122
      %v268 = vmul.f32 %v123, %v123
      %v269 = vmul.f32 %v124, %v124
      %v270 = vmul.f32 %v125, %v125
      %v271 = vmul.f32 %v126, %v126
      %v272 = vmul.f32 %v127, %v127
      %v273 = vmul.f32 %v128, %v128
      %v274 = vmul.f32 %v129, %v129
      %v275 = vmul.f32 %v130, %v130
      %v276 = vmul.f32 %v131, %v131
      %v277 = vmul.f32 %v132, %v132
      %v278 = vmul.f32 %v133, %v133
      %v279 = vmul.f32 %v134, %v134
      %v280 = vmul.f32 %v135, %v135
      %v281 = vmul.f32 %v136, %v136
      %v282 = vmul.f32 %v137, %v137
      %v283 = vmul.f32 %v138, %v138
      %v284 = vmul.f32 %v139, %v139
      %v285 = vmul.f32 %v140, %v140
      %v286 = vmul.f32 %v141, %v141
      %v287 = vmul.f32 %v142, %v142
      %v288 = vmul.f32 %v143, %v143
      %v289 = vmul.f32 %v144, %v144
      %v290 = vmul.f32 %v146, %v146
      %v291 = vmul.f32 %v147, %v147
      %v292 = vmul.f32 %v148, %v148
      %v293 = vmul.f32 %v149, %v149
      %v294 = vmul.f32 %v150, %v150
      %v295 = vmul.f32 %v151, %v151
      %v296 = vmul.f32 %v152, %v152
      %v297 = vmul.f32 %v153, %v153
      %v298 = vmul.f32 %v154, %v154
      %v299 = vmul.f32 %v155, %v155
      %v300 = vmul.f32 %v156, %v156
      %v301 = vmul.f32 %v157, %v157
      %v302 = vmul.f32 %v158, %v158
      %v303 = vmul.f32 %v159, %v159
      %v304 = vmul.f32 %v160, %v160
      %v305 = vmul.f32 %v161, %v161
      %v306 = vmul.f32 %v162, %v162
      %v307 = vmul.f32 %v163, %v163
      %v308 = vmul.f32 %v164, %v164
      %v309 = vmul.f32 %v165, %v165
      %v310 = vmul.f32 %v166, %v166
      %v311 = vmul.f32 %v167, %v167
      %v312 = vmul.f32 %v168, %v168
      %v313 = vmul.f32 %v169, %v169
      %v314 = vmul.f32 %v170, %v170
      %v315 = vmul.f32 %v171, %v171
      %v316 = vmul.f32 %v172, %v172
      %v317 = vmul.f32 %v173, %v173
      %v318 = vmul.f32 %v174, %v174
      %v319 = vmul.f32 %v175, %v175
      %v320 = vmul.f32 %v176, %v176
      %v321 = vmul.f32 %v177, %v177
      %v322 = vmul.f32 %v178, %v178
      %v323 = vmul.f32 %v179, %v179
      %v324 = vmul.f32 %v180, %v180
      %v325 = vmul.f32 %v181, %v181
      %v326 = vmul.f32 %v182, %v182
      %v327 = vmul.f32 %v183, %v183
      %v328 = vmul.f32 %v184, %v184
      %v329 = vmul.f32 %v185, %v185
      %v330 = vmul.f32 %v186, %v186
      %v331 = vmul.f32 %v187, %v187
      %v332 = vmul.f32 %v188, %v188
      %v333 = vmul.f32 %v189, %v189
      %v334 = vmul.f32 %v190, %v190
      %v335 = vmul.f32 %v191, %v191
      %v336 = vmul.f32 %v192, %v192
      %v337 = vmul.f32 %v193, %v193
      %v338 = vmul.f32 %v194, %v194
      %v339 = vmul.f32 %v195, %v195
      %v340 = vmul.f32 %v196, %v196
      %v341 = vmul.f32 %v197, %v197
      %v342 = vmul.f32 %v198, %v198
      %v343 = vmul.f32 %v199, %v199
      %v344 = vmul.f32 %v200, %v200
      %v345 = vmul.f32 %v201, %v201
      %v346 = vmul.f32 %v202, %v202
      %v347 = vmul.f32 %v203, %v203
      %v348 = vmul.f32 %v204, %v204
      %v349 = vmul.f32 %v205, %v205
      %v350 = vmul.f32 %v206, %v206
      %v351 = vmul.f32 %v207, %v207
      %v352 = vmul.f32 %v208, %v208
      %v353 = vmul.f32 %v209, %v209
      %v354 = vmul.f32 %v210, %v210
      %v355 = vmul.f32 %v211, %v211
      %v356 = vmul.f32 %v212, %v212
      %v357 = vmul.f32 %v213, %v213
      %v358 = vmul.f32 %v214, %v214
      %v359 = vmul.f32 %v215, %v215
      %v360 = vmul.f32 %v216, %v216
      %v361 = vmul.f32 %v217, %v217
      %v362 = vmul.f32 %v73, %v146
      %v363 = vmul.f32 %v74, %v147
      %v364 = vmul.f32 %v75, %v148
      %v365 = vmul.f32 %v76, %v149
      %v366 = vmul.f32 %v77, %v150
      %v367 = vmul.f32 %v78, %v151
      %v368 = vmul.f32 %v79, %v152
      %v369 = vmul.f32 %v80, %v153
      %v370 = vmul.f32 %v81, %v154
      %v371 = vmul.f32 %v82, %v155
      %v372 = vmul.f32 %v83, %v156
      %v373 = vmul.f32 %v84, %v157
      %v374 = vmul.f32 %v85, %v158
      %v375 = vmul.f32 %v86, %v159
      %v376 = vmul.f32 %v87, %v160
      %v377 = vmul.f32 %v88, %v161
      %v378 = vmul.f32 %v89, %v162
      %v379 = vmul.f32 %v90, %v163
      %v380 = vmul.f32 %v91, %v164
      %v381 = vmul.f32 %v92, %v165
      %v382 = vmul.f32 %v93, %v166
      %v383 = vmul.f32 %v94, %v167
      %v384 = vmul.f32 %v95, %v168
      %v385 = vmul.f32 %v96, %v169
      %v386 = vmul.f32 %v97, %v170
      %v387 = vmul.f32 %v98, %v171
      %v388 = vmul.f32 %v99, %v172
      %v389 = vmul.f32 %v100, %v173
      %v390 = vmul.f32 %v101, %v174
      %v391 = vmul.f32 %v102, %v175
      %v392 = vmul.f32 %v103, %v176
      %v393 = vmul.f32 %v104, %v177
      %v394 = vmul.f32 %v105, %v178
      %v395 = vmul.f32 %v106, %v179
      %v396 = vmul.f32 %v107, %v180
      %v397 = vmul.f32 %v108, %v181
      %v398 = vmul.f32 %v109, %v182
      %v399 = vmul.f32 %v110, %v183
      %v400 = vmul.f32 %v111, %v184
      %v401 = vmul.f32 %v112, %v185
      %v402 = vmul.f32 %v113, %v186
      %v403 = vmul.f32 %v114, %v187
      %v404 = vmul.f32 %v115, %v188
      %v405 = vmul.f32 %v116, %v189
      %v406 = vmul.f32 %v117, %v190
      %v407 = vmul.f32 %v118, %v191
      %v408 = vmul.f32 %v119, %v192
      %v409 = vmul.f32 %v120, %v193
      %v410 = vmul.f32 %v121, %v194
      %v411 = vmul.f32 %v122, %v195
      %v412 = vmul.f32 %v123, %v196
      %v413 = vmul.f32 %v124, %v197
      %v414 = vmul.f32 %v125, %v198
      %v415 = vmul.f32 %v126, %v199
      %v416 = vmul.f32 %v127, %v200
      %v417 = vmul.f32 %v128, %v201
      %v418 = vmul.f32 %v129, %v202
      %v419 = vmul.f32 %v130, %v203
      %v420 = vmul.f32 %v131, %v204
      %v421 = vmul.f32 %v132, %v205
      %v422 = vmul.f32 %v133, %v206
      %v423 = vmul.f32 %v134, %v207
      %v424 = vmul.f32 %v135, %v208
      %v425 = vmul.f32 %v136, %v209
      %v426 = vmul.f32 %v137, %v210
      %v427 = vmul.f32 %v138, %v211
      %v428 = vmul.f32 %v139, %v212
      %v429 = vmul.f32 %v140, %v213
      %v430 = vmul.f32 %v141, %v214
      %v431 = vmul.f32 %v142, %v215
      %v432 = vmul.f32 %v143, %v216
      %v433 = vmul.f32 %v144, %v217
      %v434 = vmul.f32 %v73, 0.0010283801
      %v435 = vmul.f32 %v74, 0.0010283801
      %v436 = vmul.f32 %v75, 0.0010283801
      %v437 = vmul.f32 %v76, 0.0010283801
      %v438 = vmul.f32 %v77, 0.0010283801
      %v439 = vmul.f32 %v78, 0.0010283801
      %v440 = vmul.f32 %v79, 0.0010283801
      %v441 = vmul.f32 %v80, 0.0010283801
      %v442 = vmul.f32 %v81, 0.0010283801
      %v443 = vmul.f32 %v82, 0.0010283801
      %v444 = vmul.f32 %v83, 0.0010283801
      %v445 = vmul.f32 %v84, 0.0010283801
      %v446 = vmul.f32 %v85, 0.0010283801
      %v447 = vmul.f32 %v86, 0.0010283801
      %v448 = vmul.f32 %v87, 0.0010283801
      %v449 = vmul.f32 %v88, 0.0010283801
      %v450 = vmul.f32 %v89, 0.0010283801
      %v451 = vmul.f32 %v90, 0.0010283801
      %v452 = vmul.f32 %v91, 0.0010283801
      %v453 = vmul.f32 %v92, 0.0010283801
      %v454 = vmul.f32 %v93, 0.0010283801
      %v455 = vmul.f32 %v94, 0.0010283801
      %v456 = vmul.f32 %v95, 0.0010283801
      %v457 = vmul.f32 %v96, 0.0010283801
      %v458 = vmul.f32 %v97, 0.0010283801
      %v459 = vmul.f32 %v98, 0.0010283801
      %v460 = vmul.f32 %v99, 0.0010283801
      %v461 = vmul.f32 %v100, 0.0010283801
      %v462 = vmul.f32 %v101, 0.0010283801
      %v463 = vmul.f32 %v102, 0.0010283801
      %v464 = vmul.f32 %v103, 0.0010283801
      %v465 = vmul.f32 %v104, 0.0010283801
      %v466 = vmul.f32 %v77, 0.007598758
      %v467 = vmul.f32 %v78, 0.007598758
      %v468 = vmul.f32 %v79, 0.007598758
      %v469 = vmul.f32 %v80, 0.007598758
      %v470 = vmul.f32 %v81, 0.007598758
      %v471 = vmul.f32 %v82, 0.007598758
      %v472 = vmul.f32 %v83, 0.007598758
      %v473 = vmul.f32 %v84, 0.007598758
      %v474 = vmul.f32 %v85, 0.007598758
      %v475 = vmul.f32 %v86, 0.007598758
      %v476 = vmul.f32 %v87, 0.007598758
      %v477 = vmul.f32 %v88, 0.007598758
      %v478 = vmul.f32 %v89, 0.007598758
      %v479 = vmul.f32 %v90, 0.007598758
      %v480 = vmul.f32 %v91, 0.007598758
      %v481 = vmul.f32 %v92, 0.007598758
      %v482 = vmul.f32 %v93, 0.007598758
      %v483 = vmul.f32 %v94, 0.007598758
      %v484 = vmul.f32 %v95, 0.007598758
      %v485 = vmul.f32 %v96, 0.007598758
      %v486 = vmul.f32 %v97, 0.007598758
      %v487 = vmul.f32 %v98, 0.007598758
      %v488 = vmul.f32 %v99, 0.007598758
      %v489 = vmul.f32 %v100, 0.007598758
      %v490 = vmul.f32 %v101, 0.007598758
      %v491 = vmul.f32 %v102, 0.007598758
      %v492 = vmul.f32 %v103, 0.007598758
      %v493 = vmul.f32 %v104, 0.007598758
      %v494 = vmul.f32 %v105, 0.007598758
      %v495 = vmul.f32 %v106, 0.007598758
      %v496 = vmul.f32 %v107, 0.007598758
      %v497 = vmul.f32 %v108, 0.007598758
      %v498 = vadd.f32 %v434, %v466
      %v499 = vadd.f32 %v435, %v467
      %v500 = vadd.f32 %v436, %v468
      %v501 = vadd.f32 %v437, %v469
      %v502 = vadd.f32 %v438, %v470
      %v503 = vadd.f32 %v439, %v471
      %v504 = vadd.f32 %v440, %v472
      %v505 = vadd.f32 %v441, %v473
      %v506 = vadd.f32 %v442, %v474
      %v507 = vadd.f32 %v443, %v475
      %v508 = vadd.f32 %v444, %v476
      %v509 = vadd.f32 %v445, %v477
      %v510 = vadd.f32 %v446, %v478
      %v511 = vadd.f32 %v447, %v479
      %v512 = vadd.f32 %v448, %v480
      %v513 = vadd.f32 %v449, %v481
      %v514 = vadd.f32 %v450, %v482
      %v515 = vadd.f32 %v451, %v483
      %v516 = vadd.f32 %v452, %v484
      %v517 = vadd.f32 %v453, %v485
      %v518 = vadd.f32 %v454, %v486
      %v519 = vadd.f32 %v455, %v487
      %v520 = vadd.f32 %v456, %v488
      %v521 = vadd.f32 %v457, %v489
      %v522 = vadd.f32 %v458, %v490
      %v523 = vadd.f32 %v459, %v491
      %v524 = vadd.f32 %v460, %v492
      %v525 = vadd.f32 %v461, %v493
      %v526 = vadd.f32 %v462, %v494
      %v527 = vadd.f32 %v463, %v495
      %v528 = vadd.f32 %v464, %v496
      %v529 = vadd.f32 %v465, %v497
      %v530 = vmul.f32 %v81, 0.036000773
      %v531 = vmul.f32 %v82, 0.036000773
      %v532 = vmul.f32 %v83, 0.036000773
      %v533 = vmul.f32 %v84, 0.036000773
      %v534 = vmul.f32 %v85, 0.036000773
      %v535 = vmul.f32 %v86, 0.036000773
      %v536 = vmul.f32 %v87, 0.036000773
      %v537 = vmul.f32 %v88, 0.036000773
      %v538 = vmul.f32 %v89, 0.036000773
      %v539 = vmul.f32 %v90, 0.036000773
      %v540 = vmul.f32 %v91, 0.036000773
      %v541 = vmul.f32 %v92, 0.036000773
      %v542 = vmul.f32 %v93, 0.036000773
      %v543 = vmul.f32 %v94, 0.036000773
      %v544 = vmul.f32 %v95, 0.036000773
      %v545 = vmul.f32 %v96, 0.036000773
      %v546 = vmul.f32 %v97, 0.036000773
      %v547 = vmul.f32 %v98, 0.036000773
      %v548 = vmul.f32 %v99, 0.036000773
      %v549 = vmul.f32 %v100, 0.036000773
      %v550 = vmul.f32 %v101, 0.036000773
      %v551 = vmul.f32 %v102, 0.036000773
      %v552 = vmul.f32 %v103, 0.036000773
      %v553 = vmul.f32 %v104, 0.036000773
      %v554 = vmul.f32 %v105, 0.036000773
      %v555 = vmul.f32 %v106, 0.036000773
      %v556 = vmul.f32 %v107, 0.036000773
      %v557 = vmul.f32 %v108, 0.036000773
      %v558 = vmul.f32 %v109, 0.036000773
      %v559 = vmul.f32 %v110, 0.036000773
      %v560 = vmul.f32 %v111, 0.036000773
      %v561 = vmul.f32 %v112, 0.036000773
      %v562 = vadd.f32 %v498, %v530
      %v563 = vadd.f32 %v499, %v531
      %v564 = vadd.f32 %v500, %v532
      %v565 = vadd.f32 %v501, %v533
      %v566 = vadd.f32 %v502, %v534
      %v567 = vadd.f32 %v503, %v535
      %v568 = vadd.f32 %v504, %v536
      %v569 = vadd.f32 %v505, %v537
      %v570 = vadd.f32 %v506, %v538
      %v571 = vadd.f32 %v507, %v539
      %v572 = vadd.f32 %v508, %v540
      %v573 = vadd.f32 %v509, %v541
      %v574 = vadd.f32 %v510, %v542
      %v575 = vadd.f32 %v511, %v543
      %v576 = vadd.f32 %v512, %v544
      %v577 = vadd.f32 %v513, %v545
      %v578 = vadd.f32 %v514, %v546
      %v579 = vadd.f32 %v515, %v547
      %v580 = vadd.f32 %v516, %v548
      %v581 = vadd.f32 %v517, %v549
      %v582 = vadd.f32 %v518, %v550
      %v583 = vadd.f32 %v519, %v551
      %v584 = vadd.f32 %v520, %v552
      %v585 = vadd.f32 %v521, %v553
      %v586 = vadd.f32 %v522, %v554
      %v587 = vadd.f32 %v523, %v555
      %v588 = vadd.f32 %v524, %v556
      %v589 = vadd.f32 %v525, %v557
      %v590 = vadd.f32 %v526, %v558
      %v591 = vadd.f32 %v527, %v559
      %v592 = vadd.f32 %v528, %v560
      %v593 = vadd.f32 %v529, %v561
      %v594 = vmul.f32 %v85, 0.10936069
      %v595 = vmul.f32 %v86, 0.10936069
      %v596 = vmul.f32 %v87, 0.10936069
      %v597 = vmul.f32 %v88, 0.10936069
      %v598 = vmul.f32 %v89, 0.10936069
      %v599 = vmul.f32 %v90, 0.10936069
      %v600 = vmul.f32 %v91, 0.10936069
      %v601 = vmul.f32 %v92, 0.10936069
      %v602 = vmul.f32 %v93, 0.10936069
      %v603 = vmul.f32 %v94, 0.10936069
      %v604 = vmul.f32 %v95, 0.10936069
      %v605 = vmul.f32 %v96, 0.10936069
      %v606 = vmul.f32 %v97, 0.10936069
      %v607 = vmul.f32 %v98, 0.10936069
      %v608 = vmul.f32 %v99, 0.10936069
      %v609 = vmul.f32 %v100, 0.10936069
      %v610 = vmul.f32 %v101, 0.10936069
      %v611 = vmul.f32 %v102, 0.10936069
      %v612 = vmul.f32 %v103, 0.10936069
      %v613 = vmul.f32 %v104, 0.10936069
      %v614 = vmul.f32 %v105, 0.10936069
      %v615 = vmul.f32 %v106, 0.10936069
      %v616 = vmul.f32 %v107, 0.10936069
      %v617 = vmul.f32 %v108, 0.10936069
      %v618 = vmul.f32 %v109, 0.10936069
      %v619 = vmul.f32 %v110, 0.10936069
      %v620 = vmul.f32 %v111, 0.10936069
      %v621 = vmul.f32 %v112, 0.10936069
      %v622 = vmul.f32 %v113, 0.10936069
      %v623 = vmul.f32 %v114, 0.10936069
      %v624 = vmul.f32 %v115, 0.10936069
      %v625 = vmul.f32 %v116, 0.10936069
      %v626 = vadd.f32 %v562, %v594
      %v627 = vadd.f32 %v563, %v595
      %v628 = vadd.f32 %v564, %v596
      %v629 = vadd.f32 %v565, %v597
      %v630 = vadd.f32 %v566, %v598
      %v631 = vadd.f32 %v567, %v599
      %v632 = vadd.f32 %v568, %v600
      %v633 = vadd.f32 %v569, %v601
      %v634 = vadd.f32 %v570, %v602
      %v635 = vadd.f32 %v571, %v603
      %v636 = vadd.f32 %v572, %v604
      %v637 = vadd.f32 %v573, %v605
      %v638 = vadd.f32 %v574, %v606
      %v639 = vadd.f32 %v575, %v607
      %v640 = vadd.f32 %v576, %v608
      %v641 = vadd.f32 %v577, %v609
      %v642 = vadd.f32 %v578, %v610
      %v643 = vadd.f32 %v579, %v611
      %v644 = vadd.f32 %v580, %v612
      %v645 = vadd.f32 %v581, %v613
      %v646 = vadd.f32 %v582, %v614
      %v647 = vadd.f32 %v583, %v615
      %v648 = vadd.f32 %v584, %v616
      %v649 = vadd.f32 %v585, %v617
      %v650 = vadd.f32 %v586, %v618
      %v651 = vadd.f32 %v587, %v619
      %v652 = vadd.f32 %v588, %v620
      %v653 = vadd.f32 %v589, %v621
      %v654 = vadd.f32 %v590, %v622
      %v655 = vadd.f32 %v591, %v623
      %v656 = vadd.f32 %v592, %v624
      %v657 = vadd.f32 %v593, %v625
      %v658 = vmul.f32 %v89, 0.21300554
      %v659 = vmul.f32 %v90, 0.21300554
      %v660 = vmul.f32 %v91, 0.21300554
      %v661 = vmul.f32 %v92, 0.21300554
      %v662 = vmul.f32 %v93, 0.21300554
      %v663 = vmul.f32 %v94, 0.21300554
      %v664 = vmul.f32 %v95, 0.21300554
      %v665 = vmul.f32 %v96, 0.21300554
      %v666 = vmul.f32 %v97, 0.21300554
      %v667 = vmul.f32 %v98, 0.21300554
      %v668 = vmul.f32 %v99, 0.21300554
      %v669 = vmul.f32 %v100, 0.21300554
      %v670 = vmul.f32 %v101, 0.21300554
      %v671 = vmul.f32 %v102, 0.21300554
      %v672 = vmul.f32 %v103, 0.21300554
      %v673 = vmul.f32 %v104, 0.21300554
      %v674 = vmul.f32 %v105, 0.21300554
      %v675 = vmul.f32 %v106, 0.21300554
      %v676 = vmul.f32 %v107, 0.21300554
      %v677 = vmul.f32 %v108, 0.21300554
      %v678 = vmul.f32 %v109, 0.21300554
      %v679 = vmul.f32 %v110, 0.21300554
      %v680 = vmul.f32 %v111, 0.21300554
      %v681 = vmul.f32 %v112, 0.21300554
      %v682 = vmul.f32 %v113, 0.21300554
      %v683 = vmul.f32 %v114, 0.21300554
      %v684 = vmul.f32 %v115, 0.21300554
      %v685 = vmul.f32 %v116, 0.21300554
      %v686 = vmul.f32 %v117, 0.21300554
      %v687 = vmul.f32 %v118, 0.21300554
      %v688 = vmul.f32 %v119, 0.21300554
      %v689 = vmul.f32 %v120, 0.21300554
      %v690 = vadd.f32 %v626, %v658
      %v691 = vadd.f32 %v627, %v659
      %v692 = vadd.f32 %v628, %v660
      %v693 = vadd.f32 %v629, %v661
      %v694 = vadd.f32 %v630, %v662
      %v695 = vadd.f32 %v631, %v663
      %v696 = vadd.f32 %v632, %v664
      %v697 = vadd.f32 %v633, %v665
      %v698 = vadd.f32 %v634, %v666
      %v699 = vadd.f32 %v635, %v667
      %v700 = vadd.f32 %v636, %v668
      %v701 = vadd.f32 %v637, %v669
      %v702 = vadd.f32 %v638, %v670
      %v703 = vadd.f32 %v639, %v671
      %v704 = vadd.f32 %v640, %v672
      %v705 = vadd.f32 %v641, %v673
      %v706 = vadd.f32 %v642, %v674
      %v707 = vadd.f32 %v643, %v675
      %v708 = vadd.f32 %v644, %v676
      %v709 = vadd.f32 %v645, %v677
      %v710 = vadd.f32 %v646, %v678
      %v711 = vadd.f32 %v647, %v679
      %v712 = vadd.f32 %v648, %v680
      %v713 = vadd.f32 %v649, %v681
      %v714 = vadd.f32 %v650, %v682
      %v715 = vadd.f32 %v651, %v683
      %v716 = vadd.f32 %v652, %v684
      %v717 = vadd.f32 %v653, %v685
      %v718 = vadd.f32 %v654, %v686
      %v719 = vadd.f32 %v655, %v687
      %v720 = vadd.f32 %v656, %v688
      %v721 = vadd.f32 %v657, %v689
      %v722 = vmul.f32 %v93, 0.26601171
      %v723 = vmul.f32 %v94, 0.26601171
      %v724 = vmul.f32 %v95, 0.26601171
      %v725 = vmul.f32 %v96, 0.26601171
      %v726 = vmul.f32 %v97, 0.26601171
      %v727 = vmul.f32 %v98, 0.26601171
      %v728 = vmul.f32 %v99, 0.26601171
      %v729 = vmul.f32 %v100, 0.26601171
      %v730 = vmul.f32 %v101, 0.26601171
      %v731 = vmul.f32 %v102, 0.26601171
      %v732 = vmul.f32 %v103, 0.26601171
      %v733 = vmul.f32 %v104, 0.26601171
      %v734 = vmul.f32 %v105, 0.26601171
      %v735 = vmul.f32 %v106, 0.26601171
      %v736 = vmul.f32 %v107, 0.26601171
      %v737 = vmul.f32 %v108, 0.26601171
      %v738 = vmul.f32 %v109, 0.26601171
      %v739 = vmul.f32 %v110, 0.26601171
      %v740 = vmul.f32 %v111, 0.26601171
      %v741 = vmul.f32 %v112, 0.26601171
      %v742 = vmul.f32 %v113, 0.26601171
      %v743 = vmul.f32 %v114, 0.26601171
      %v744 = vmul.f32 %v115, 0.26601171
      %v745 = vmul.f32 %v116, 0.26601171
      %v746 = vmul.f32 %v117, 0.26601171
      %v747 = vmul.f32 %v118, 0.26601171
      %v748 = vmul.f32 %v119, 0.26601171
      %v749 = vmul.f32 %v120, 0.26601171
      %v750 = vmul.f32 %v121, 0.26601171
      %v751 = vmul.f32 %v122, 0.26601171
      %v752 = vmul.f32 %v123, 0.26601171
      %v753 = vmul.f32 %v124, 0.26601171
      %v754 = vadd.f32 %v690, %v722
      %v755 = vadd.f32 %v691, %v723
      %v756 = vadd.f32 %v692, %v724
      %v757 = vadd.f32 %v693, %v725
      %v758 = vadd.f32 %v694, %v726
      %v759 = vadd.f32 %v695, %v727
      %v760 = vadd.f32 %v696, %v728
      %v761 = vadd.f32 %v697, %v729
      %v762 = vadd.f32 %v698, %v730
      %v763 = vadd.f32 %v699, %v731
      %v764 = vadd.f32 %v700, %v732
      %v765 = vadd.f32 %v701, %v733
      %v766 = vadd.f32 %v702, %v734
      %v767 = vadd.f32 %v703, %v735
      %v768 = vadd.f32 %v704, %v736
      %v769 = vadd.f32 %v705, %v737
      %v770 = vadd.f32 %v706, %v738
      %v771 = vadd.f32 %v707, %v739
      %v772 = vadd.f32 %v708, %v740
      %v773 = vadd.f32 %v709, %v741
      %v774 = vadd.f32 %v710, %v742
      %v775 = vadd.f32 %v711, %v743
      %v776 = vadd.f32 %v712, %v744
      %v777 = vadd.f32 %v713, %v745
      %v778 = vadd.f32 %v714, %v746
      %v779 = vadd.f32 %v715, %v747
      %v780 = vadd.f32 %v716, %v748
      %v781 = vadd.f32 %v717, %v749
      %v782 = vadd.f32 %v718, %v750
      %v783 = vadd.f32 %v719, %v751
      %v784 = vadd.f32 %v720, %v752
      %v785 = vadd.f32 %v721, %v753
      %v786 = vmul.f32 %v121, 0.21300554
      %v787 = vmul.f32 %v122, 0.21300554
      %v788 = vmul.f32 %v123, 0.21300554
      %v789 = vmul.f32 %v124, 0.21300554
      %v790 = vmul.f32 %v125, 0.21300554
      %v791 = vmul.f32 %v126, 0.21300554
      %v792 = vmul.f32 %v127, 0.21300554
      %v793 = vmul.f32 %v128, 0.21300554
      %v794 = vadd.f32 %v754, %v666
      %v795 = vadd.f32 %v755, %v667
      %v796 = vadd.f32 %v756, %v668
      %v797 = vadd.f32 %v757, %v669
      %v798 = vadd.f32 %v758, %v670
      %v799 = vadd.f32 %v759, %v671
      %v800 = vadd.f32 %v760, %v672
      %v801 = vadd.f32 %v761, %v673
      %v802 = vadd.f32 %v762, %v674
      %v803 = vadd.f32 %v763, %v675
      %v804 = vadd.f32 %v764, %v676
      %v805 = vadd.f32 %v765, %v677
      %v806 = vadd.f32 %v766, %v678
      %v807 = vadd.f32 %v767, %v679
      %v808 = vadd.f32 %v768, %v680
      %v809 = vadd.f32 %v769, %v681
      %v810 = vadd.f32 %v770, %v682
      %v811 = vadd.f32 %v771, %v683
      %v812 = vadd.f32 %v772, %v684
      %v813 = vadd.f32 %v773, %v685
      %v814 = vadd.f32 %v774, %v686
      %v815 = vadd.f32 %v775, %v687
      %v816 = vadd.f32 %v776, %v688
      %v817 = vadd.f32 %v777, %v689
      %v818 = vadd.f32 %v778, %v786
      %v819 = vadd.f32 %v779, %v787
      %v820 = vadd.f32 %v780, %v788
      %v821 = vadd.f32 %v781, %v789
      %v822 = vadd.f32 %v782, %v790
      %v823 = vadd.f32 %v783, %v791
      %v824 = vadd.f32 %v784, %v792
      %v825 = vadd.f32 %v785, %v793
      %v826 = vmul.f32 %v117, 0.10936069
      %v827 = vmul.f32 %v118, 0.10936069
      %v828 = vmul.f32 %v119, 0.10936069
      %v829 = vmul.f32 %v120, 0.10936069
      %v830 = vmul.f32 %v121, 0.10936069
      %v831 = vmul.f32 %v122, 0.10936069
      %v832 = vmul.f32 %v123, 0.10936069
      %v833 = vmul.f32 %v124, 0.10936069
      %v834 = vmul.f32 %v125, 0.10936069
      %v835 = vmul.f32 %v126, 0.10936069
      %v836 = vmul.f32 %v127, 0.10936069
      %v837 = vmul.f32 %v128, 0.10936069
      %v838 = vmul.f32 %v129, 0.10936069
      %v839 = vmul.f32 %v130, 0.10936069
      %v840 = vmul.f32 %v131, 0.10936069
      %v841 = vmul.f32 %v132, 0.10936069
      %v842 = vadd.f32 %v794, %v610
      %v843 = vadd.f32 %v795, %v611
      %v844 = vadd.f32 %v796, %v612
      %v845 = vadd.f32 %v797, %v613
      %v846 = vadd.f32 %v798, %v614
      %v847 = vadd.f32 %v799, %v615
      %v848 = vadd.f32 %v800, %v616
      %v849 = vadd.f32 %v801, %v617
      %v850 = vadd.f32 %v802, %v618
      %v851 = vadd.f32 %v803, %v619
      %v852 = vadd.f32 %v804, %v620
      %v853 = vadd.f32 %v805, %v621
      %v854 = vadd.f32 %v806, %v622
      %v855 = vadd.f32 %v807, %v623
      %v856 = vadd.f32 %v808, %v624
      %v857 = vadd.f32 %v809, %v625
      %v858 = vadd.f32 %v810, %v826
      %v859 = vadd.f32 %v811, %v827
      %v860 = vadd.f32 %v812, %v828
      %v861 = vadd.f32 %v813, %v829
      %v862 = vadd.f32 %v814, %v830
      %v863 = vadd.f32 %v815, %v831
      %v864 = vadd.f32 %v816, %v832
      %v865 = vadd.f32 %v817, %v833
      %v866 = vadd.f32 %v818, %v834
      %v867 = vadd.f32 %v819, %v835
      %v868 = vadd.f32 %v820, %v836
      %v869 = vadd.f32 %v821, %v837
      %v870 = vadd.f32 %v822, %v838
      %v871 = vadd.f32 %v823, %v839
      %v872 = vadd.f32 %v824, %v840
      %v873 = vadd.f32 %v825, %v841
      %v874 = vmul.f32 %v113, 0.036000773
      %v875 = vmul.f32 %v114, 0.036000773
      %v876 = vmul.f32 %v115, 0.036000773
      %v877 = vmul.f32 %v116, 0.036000773
      %v878 = vmul.f32 %v117, 0.036000773
      %v879 = vmul.f32 %v118, 0.036000773
      %v880 = vmul.f32 %v119, 0.036000773
      %v881 = vmul.f32 %v120, 0.036000773
      %v882 = vmul.f32 %v121, 0.036000773
      %v883 = vmul.f32 %v122, 0.036000773
      %v884 = vmul.f32 %v123, 0.036000773
      %v885 = vmul.f32 %v124, 0.036000773
      %v886 = vmul.f32 %v125, 0.036000773
      %v887 = vmul.f32 %v126, 0.036000773
      %v888 = vmul.f32 %v127, 0.036000773
      %v889 = vmul.f32 %v128, 0.036000773
      %v890 = vmul.f32 %v129, 0.036000773
      %v891 = vmul.f32 %v130, 0.036000773
      %v892 = vmul.f32 %v131, 0.036000773
      %v893 = vmul.f32 %v132, 0.036000773
      %v894 = vmul.f32 %v133, 0.036000773
      %v895 = vmul.f32 %v134, 0.036000773
      %v896 = vmul.f32 %v135, 0.036000773
      %v897 = vmul.f32 %v136, 0.036000773
      %v898 = vadd.f32 %v842, %v554
      %v899 = vadd.f32 %v843, %v555
      %v900 = vadd.f32 %v844, %v556
      %v901 = vadd.f32 %v845, %v557
      %v902 = vadd.f32 %v846, %v558
      %v903 = vadd.f32 %v847, %v559
      %v904 = vadd.f32 %v848, %v560
      %v905 = vadd.f32 %v849, %v561
      %v906 = vadd.f32 %v850, %v874
      %v907 = vadd.f32 %v851, %v875
      %v908 = vadd.f32 %v852, %v876
      %v909 = vadd.f32 %v853, %v877
      %v910 = vadd.f32 %v854, %v878
      %v911 = vadd.f32 %v855, %v879
      %v912 = vadd.f32 %v856, %v880
      %v913 = vadd.f32 %v857, %v881
      %v914 = vadd.f32 %v858, %v882
      %v915 = vadd.f32 %v859, %v883
      %v916 = vadd.f32 %v860, %v884
      %v917 = vadd.f32 %v861, %v885
      %v918 = vadd.f32 %v862, %v886
      %v919 = vadd.f32 %v863, %v887
      %v920 = vadd.f32 %v864, %v888
      %v921 = vadd.f32 %v865, %v889
      %v922 = vadd.f32 %v866, %v890
      %v923 = vadd.f32 %v867, %v891
      %v924 = vadd.f32 %v868, %v892
      %v925 = vadd.f32 %v869, %v893
      %v926 = vadd.f32 %v870, %v894
      %v927 = vadd.f32 %v871, %v895
      %v928 = vadd.f32 %v872, %v896
      %v929 = vadd.f32 %v873, %v897
      %v930 = vmul.f32 %v109, 0.007598758
      %v931 = vmul.f32 %v110, 0.007598758
      %v932 = vmul.f32 %v111, 0.007598758
      %v933 = vmul.f32 %v112, 0.007598758
      %v934 = vmul.f32 %v113, 0.007598758
      %v935 = vmul.f32 %v114, 0.007598758
      %v936 = vmul.f32 %v115, 0.007598758
      %v937 = vmul.f32 %v116, 0.007598758
      %v938 = vmul.f32 %v117, 0.007598758
      %v939 = vmul.f32 %v118, 0.007598758
      %v940 = vmul.f32 %v119, 0.007598758
      %v941 = vmul.f32 %v120, 0.007598758
      %v942 = vmul.f32 %v121, 0.007598758
      %v943 = vmul.f32 %v122, 0.007598758
      %v944 = vmul.f32 %v123, 0.007598758
      %v945 = vmul.f32 %v124, 0.007598758
      %v946 = vmul.f32 %v125, 0.007598758
      %v947 = vmul.f32 %v126, 0.007598758
      %v948 = vmul.f32 %v127, 0.007598758
      %v949 = vmul.f32 %v128, 0.007598758
      %v950 = vmul.f32 %v129, 0.007598758
      %v951 = vmul.f32 %v130, 0.007598758
      %v952 = vmul.f32 %v131, 0.007598758
      %v953 = vmul.f32 %v132, 0.007598758
      %v954 = vmul.f32 %v133, 0.007598758
      %v955 = vmul.f32 %v134, 0.007598758
      %v956 = vmul.f32 %v135, 0.007598758
      %v957 = vmul.f32 %v136, 0.007598758
      %v958 = vmul.f32 %v137, 0.007598758
      %v959 = vmul.f32 %v138, 0.007598758
      %v960 = vmul.f32 %v139, 0.007598758
      %v961 = vmul.f32 %v140, 0.007598758
      %v962 = vadd.f32 %v898, %v930
      %v963 = vadd.f32 %v899, %v931
      %v964 = vadd.f32 %v900, %v932
      %v965 = vadd.f32 %v901, %v933
      %v966 = vadd.f32 %v902, %v934
      %v967 = vadd.f32 %v903, %v935
      %v968 = vadd.f32 %v904, %v936
      %v969 = vadd.f32 %v905, %v937
      %v970 = vadd.f32 %v906, %v938
      %v971 = vadd.f32 %v907, %v939
      %v972 = vadd.f32 %v908, %v940
      %v973 = vadd.f32 %v909, %v941
      %v974 = vadd.f32 %v910, %v942
      %v975 = vadd.f32 %v911, %v943
      %v976 = vadd.f32 %v912, %v944
      %v977 = vadd.f32 %v913, %v945
      %v978 = vadd.f32 %v914, %v946
      %v979 = vadd.f32 %v915, %v947
      %v980 = vadd.f32 %v916, %v948
      %v981 = vadd.f32 %v917, %v949
      %v982 = vadd.f32 %v918, %v950
      %v983 = vadd.f32 %v919, %v951
      %v984 = vadd.f32 %v920, %v952
      %v985 = vadd.f32 %v921, %v953
      %v986 = vadd.f32 %v922, %v954
      %v987 = vadd.f32 %v923, %v955
      %v988 = vadd.f32 %v924, %v956
      %v989 = vadd.f32 %v925, %v957
      %v990 = vadd.f32 %v926, %v958
      %v991 = vadd.f32 %v927, %v959
      %v992 = vadd.f32 %v928, %v960
      %v993 = vadd.f32 %v929, %v961
      %v994 = vmul.f32 %v113, 0.0010283801
      %v995 = vmul.f32 %v114, 0.0010283801
      %v996 = vmul.f32 %v115, 0.0010283801
      %v997 = vmul.f32 %v116, 0.0010283801
      %v998 = vmul.f32 %v117, 0.0010283801
      %v999 = vmul.f32 %v118, 0.0010283801
      %v1000 = vmul.f32 %v119, 0.0010283801
      %v1001 = vmul.f32 %v120, 0.0010283801
      %v1002 = vmul.f32 %v121, 0.0010283801
      %v1003 = vmul.f32 %v122, 0.0010283801
      %v1004 = vmul.f32 %v123, 0.0010283801
      %v1005 = vmul.f32 %v124, 0.0010283801
      %v1006 = vmul.f32 %v125, 0.0010283801
      %v1007 = vmul.f32 %v126, 0.0010283801
      %v1008 = vmul.f32 %v127, 0.0010283801
      %v1009 = vmul.f32 %v128, 0.0010283801
      %v1010 = vmul.f32 %v129, 0.0010283801
      %v1011 = vmul.f32 %v130, 0.0010283801
      %v1012 = vmul.f32 %v131, 0.0010283801
      %v1013 = vmul.f32 %v132, 0.0010283801
      %v1014 = vmul.f32 %v133, 0.0010283801
      %v1015 = vmul.f32 %v134, 0.0010283801
      %v1016 = vmul.f32 %v135, 0.0010283801
      %v1017 = vmul.f32 %v136, 0.0010283801
      %v1018 = vmul.f32 %v137, 0.0010283801
      %v1019 = vmul.f32 %v138, 0.0010283801
      %v1020 = vmul.f32 %v139, 0.0010283801
      %v1021 = vmul.f32 %v140, 0.0010283801
      %v1022 = vmul.f32 %v141, 0.0010283801
      %v1023 = vmul.f32 %v142, 0.0010283801
      %v1024 = vmul.f32 %v143, 0.0010283801
      %v1025 = vmul.f32 %v144, 0.0010283801
      %v1026 = vadd.f32 %v962, %v994
      %v1027 = vadd.f32 %v963, %v995
      %v1028 = vadd.f32 %v964, %v996
      %v1029 = vadd.f32 %v965, %v997
      %v1030 = vadd.f32 %v966, %v998
      %v1031 = vadd.f32 %v967, %v999
      %v1032 = vadd.f32 %v968, %v1000
      %v1033 = vadd.f32 %v969, %v1001
      %v1034 = vadd.f32 %v970, %v1002
      %v1035 = vadd.f32 %v971, %v1003
      %v1036 = vadd.f32 %v972, %v1004
      %v1037 = vadd.f32 %v973, %v1005
      %v1038 = vadd.f32 %v974, %v1006
      %v1039 = vadd.f32 %v975, %v1007
      %v1040 = vadd.f32 %v976, %v1008
      %v1041 = vadd.f32 %v977, %v1009
      %v1042 = vadd.f32 %v978, %v1010
      %v1043 = vadd.f32 %v979, %v1011
      %v1044 = vadd.f32 %v980, %v1012
      %v1045 = vadd.f32 %v981, %v1013
      %v1046 = vadd.f32 %v982, %v1014
      %v1047 = vadd.f32 %v983, %v1015
      %v1048 = vadd.f32 %v984, %v1016
      %v1049 = vadd.f32 %v985, %v1017
      %v1050 = vadd.f32 %v986, %v1018
      %v1051 = vadd.f32 %v987, %v1019
      %v1052 = vadd.f32 %v988, %v1020
      %v1053 = vadd.f32 %v989, %v1021
      %v1054 = vadd.f32 %v990, %v1022
      %v1055 = vadd.f32 %v991, %v1023
      %v1056 = vadd.f32 %v992, %v1024
      %v1057 = vadd.f32 %v993, %v1025
      %v1058 = vmul.f32 %v1026, 0.0010283801
      %v1059 = vmul.f32 %v1027, 0.0010283801
      %v1060 = vmul.f32 %v1030, 0.0010283801
      %v1061 = vmul.f32 %v1031, 0.0010283801
      %v1062 = vmul.f32 %v1034, 0.0010283801
      %v1063 = vmul.f32 %v1035, 0.0010283801
      %v1064 = vmul.f32 %v1038, 0.0010283801
      %v1065 = vmul.f32 %v1039, 0.0010283801
      %v1066 = vmul.f32 %v1042, 0.0010283801
      %v1067 = vmul.f32 %v1043, 0.0010283801
      %v1068 = vmul.f32 %v1046, 0.0010283801
      %v1069 = vmul.f32 %v1047, 0.0010283801
      %v1070 = vmul.f32 %v1050, 0.0010283801
      %v1071 = vmul.f32 %v1051, 0.0010283801
      %v1072 = vmul.f32 %v1054, 0.0010283801
      %v1073 = vmul.f32 %v1055, 0.0010283801
      %v1074 = vmul.f32 %v1026, 0.007598758
      %v1075 = vmul.f32 %v1027, 0.007598758
      %v1076 = vmul.f32 %v1028, 0.007598758
      %v1077 = vmul.f32 %v1030, 0.007598758
      %v1078 = vmul.f32 %v1031, 0.007598758
      %v1079 = vmul.f32 %v1032, 0.007598758
      %v1080 = vmul.f32 %v1034, 0.007598758
      %v1081 = vmul.f32 %v1035, 0.007598758
      %v1082 = vmul.f32 %v1036, 0.007598758
      %v1083 = vmul.f32 %v1038, 0.007598758
      %v1084 = vmul.f32 %v1039, 0.007598758
      %v1085 = vmul.f32 %v1040, 0.007598758
      %v1086 = vmul.f32 %v1042, 0.007598758
      %v1087 = vmul.f32 %v1043, 0.007598758
      %v1088 = vmul.f32 %v1044, 0.007598758
      %v1089 = vmul.f32 %v1046, 0.007598758
      %v1090 = vmul.f32 %v1047, 0.007598758
      %v1091 = vmul.f32 %v1048, 0.007598758
      %v1092 = vmul.f32 %v1050, 0.007598758
      %v1093 = vmul.f32 %v1051, 0.007598758
      %v1094 = vmul.f32 %v1052, 0.007598758
      %v1095 = vmul.f32 %v1054, 0.007598758
      %v1096 = vmul.f32 %v1055, 0.007598758
      %v1097 = vmul.f32 %v1056, 0.007598758
      %vm1122 = vcmask 1046528
      %v1123 = vrot.slane %v1074, 1
      %v1124 = vrot.slane %v1075, 1
      %v1125 = vsel %vm1122, %v1123, %v1124
      %v1126 = vrot.slane %v1076, 1
      %v1127 = vsel %vm1122, %v1124, %v1126
      %v1128 = vrot.slane %v1077, 1
      %v1129 = vrot.slane %v1078, 1
      %v1130 = vsel %vm1122, %v1128, %v1129
      %v1131 = vrot.slane %v1079, 1
      %v1132 = vsel %vm1122, %v1129, %v1131
      %v1133 = vrot.slane %v1080, 1
      %v1134 = vrot.slane %v1081, 1
      %v1135 = vsel %vm1122, %v1133, %v1134
      %v1136 = vrot.slane %v1082, 1
      %v1137 = vsel %vm1122, %v1134, %v1136
      %v1138 = vrot.slane %v1083, 1
      %v1139 = vrot.slane %v1084, 1
      %v1140 = vsel %vm1122, %v1138, %v1139
      %v1141 = vrot.slane %v1085, 1
      %v1142 = vsel %vm1122, %v1139, %v1141
      %v1143 = vrot.slane %v1086, 1
      %v1144 = vrot.slane %v1087, 1
      %v1145 = vsel %vm1122, %v1143, %v1144
      %v1146 = vrot.slane %v1088, 1
      %v1147 = vsel %vm1122, %v1144, %v1146
      %v1148 = vrot.slane %v1089, 1
      %v1149 = vrot.slane %v1090, 1
      %v1150 = vsel %vm1122, %v1148, %v1149
      %v1151 = vrot.slane %v1091, 1
      %v1152 = vsel %vm1122, %v1149, %v1151
      %v1153 = vrot.slane %v1092, 1
      %v1154 = vrot.slane %v1093, 1
      %v1155 = vsel %vm1122, %v1153, %v1154
      %v1156 = vrot.slane %v1094, 1
      %v1157 = vsel %vm1122, %v1154, %v1156
      %v1158 = vrot.slane %v1095, 1
      %v1159 = vrot.slane %v1096, 1
      %v1160 = vsel %vm1122, %v1158, %v1159
      %v1161 = vrot.slane %v1097, 1
      %v1162 = vsel %vm1122, %v1159, %v1161
      %v1179 = vadd.f32 %v1058, %v1125
      %v1180 = vadd.f32 %v1059, %v1127
      %v1181 = vadd.f32 %v1060, %v1130
      %v1182 = vadd.f32 %v1061, %v1132
      %v1183 = vadd.f32 %v1062, %v1135
      %v1184 = vadd.f32 %v1063, %v1137
      %v1185 = vadd.f32 %v1064, %v1140
      %v1186 = vadd.f32 %v1065, %v1142
      %v1187 = vadd.f32 %v1066, %v1145
      %v1188 = vadd.f32 %v1067, %v1147
      %v1189 = vadd.f32 %v1068, %v1150
      %v1190 = vadd.f32 %v1069, %v1152
      %v1191 = vadd.f32 %v1070, %v1155
      %v1192 = vadd.f32 %v1071, %v1157
      %v1193 = vadd.f32 %v1072, %v1160
      %v1194 = vadd.f32 %v1073, %v1162
      %v1195 = vmul.f32 %v1026, 0.036000773
      %v1196 = vmul.f32 %v1027, 0.036000773
      %v1197 = vmul.f32 %v1028, 0.036000773
      %v1198 = vmul.f32 %v1030, 0.036000773
      %v1199 = vmul.f32 %v1031, 0.036000773
      %v1200 = vmul.f32 %v1032, 0.036000773
      %v1201 = vmul.f32 %v1034, 0.036000773
      %v1202 = vmul.f32 %v1035, 0.036000773
      %v1203 = vmul.f32 %v1036, 0.036000773
      %v1204 = vmul.f32 %v1038, 0.036000773
      %v1205 = vmul.f32 %v1039, 0.036000773
      %v1206 = vmul.f32 %v1040, 0.036000773
      %v1207 = vmul.f32 %v1042, 0.036000773
      %v1208 = vmul.f32 %v1043, 0.036000773
      %v1209 = vmul.f32 %v1044, 0.036000773
      %v1210 = vmul.f32 %v1046, 0.036000773
      %v1211 = vmul.f32 %v1047, 0.036000773
      %v1212 = vmul.f32 %v1048, 0.036000773
      %v1213 = vmul.f32 %v1050, 0.036000773
      %v1214 = vmul.f32 %v1051, 0.036000773
      %v1215 = vmul.f32 %v1052, 0.036000773
      %v1216 = vmul.f32 %v1054, 0.036000773
      %v1217 = vmul.f32 %v1055, 0.036000773
      %v1218 = vmul.f32 %v1056, 0.036000773
      %vm1243 = vcmask 1045504
      %v1244 = vrot.slane %v1195, 2
      %v1245 = vrot.slane %v1196, 2
      %v1246 = vsel %vm1243, %v1244, %v1245
      %v1247 = vrot.slane %v1197, 2
      %v1248 = vsel %vm1243, %v1245, %v1247
      %v1249 = vrot.slane %v1198, 2
      %v1250 = vrot.slane %v1199, 2
      %v1251 = vsel %vm1243, %v1249, %v1250
      %v1252 = vrot.slane %v1200, 2
      %v1253 = vsel %vm1243, %v1250, %v1252
      %v1254 = vrot.slane %v1201, 2
      %v1255 = vrot.slane %v1202, 2
      %v1256 = vsel %vm1243, %v1254, %v1255
      %v1257 = vrot.slane %v1203, 2
      %v1258 = vsel %vm1243, %v1255, %v1257
      %v1259 = vrot.slane %v1204, 2
      %v1260 = vrot.slane %v1205, 2
      %v1261 = vsel %vm1243, %v1259, %v1260
      %v1262 = vrot.slane %v1206, 2
      %v1263 = vsel %vm1243, %v1260, %v1262
      %v1264 = vrot.slane %v1207, 2
      %v1265 = vrot.slane %v1208, 2
      %v1266 = vsel %vm1243, %v1264, %v1265
      %v1267 = vrot.slane %v1209, 2
      %v1268 = vsel %vm1243, %v1265, %v1267
      %v1269 = vrot.slane %v1210, 2
      %v1270 = vrot.slane %v1211, 2
      %v1271 = vsel %vm1243, %v1269, %v1270
      %v1272 = vrot.slane %v1212, 2
      %v1273 = vsel %vm1243, %v1270, %v1272
      %v1274 = vrot.slane %v1213, 2
      %v1275 = vrot.slane %v1214, 2
      %v1276 = vsel %vm1243, %v1274, %v1275
      %v1277 = vrot.slane %v1215, 2
      %v1278 = vsel %vm1243, %v1275, %v1277
      %v1279 = vrot.slane %v1216, 2
      %v1280 = vrot.slane %v1217, 2
      %v1281 = vsel %vm1243, %v1279, %v1280
      %v1282 = vrot.slane %v1218, 2
      %v1283 = vsel %vm1243, %v1280, %v1282
      %v1300 = vadd.f32 %v1179, %v1246
      %v1301 = vadd.f32 %v1180, %v1248
      %v1302 = vadd.f32 %v1181, %v1251
      %v1303 = vadd.f32 %v1182, %v1253
      %v1304 = vadd.f32 %v1183, %v1256
      %v1305 = vadd.f32 %v1184, %v1258
      %v1306 = vadd.f32 %v1185, %v1261
      %v1307 = vadd.f32 %v1186, %v1263
      %v1308 = vadd.f32 %v1187, %v1266
      %v1309 = vadd.f32 %v1188, %v1268
      %v1310 = vadd.f32 %v1189, %v1271
      %v1311 = vadd.f32 %v1190, %v1273
      %v1312 = vadd.f32 %v1191, %v1276
      %v1313 = vadd.f32 %v1192, %v1278
      %v1314 = vadd.f32 %v1193, %v1281
      %v1315 = vadd.f32 %v1194, %v1283
      %v1316 = vmul.f32 %v1026, 0.10936069
      %v1317 = vmul.f32 %v1027, 0.10936069
      %v1318 = vmul.f32 %v1028, 0.10936069
      %v1319 = vmul.f32 %v1030, 0.10936069
      %v1320 = vmul.f32 %v1031, 0.10936069
      %v1321 = vmul.f32 %v1032, 0.10936069
      %v1322 = vmul.f32 %v1034, 0.10936069
      %v1323 = vmul.f32 %v1035, 0.10936069
      %v1324 = vmul.f32 %v1036, 0.10936069
      %v1325 = vmul.f32 %v1038, 0.10936069
      %v1326 = vmul.f32 %v1039, 0.10936069
      %v1327 = vmul.f32 %v1040, 0.10936069
      %v1328 = vmul.f32 %v1042, 0.10936069
      %v1329 = vmul.f32 %v1043, 0.10936069
      %v1330 = vmul.f32 %v1044, 0.10936069
      %v1331 = vmul.f32 %v1046, 0.10936069
      %v1332 = vmul.f32 %v1047, 0.10936069
      %v1333 = vmul.f32 %v1048, 0.10936069
      %v1334 = vmul.f32 %v1050, 0.10936069
      %v1335 = vmul.f32 %v1051, 0.10936069
      %v1336 = vmul.f32 %v1052, 0.10936069
      %v1337 = vmul.f32 %v1054, 0.10936069
      %v1338 = vmul.f32 %v1055, 0.10936069
      %v1339 = vmul.f32 %v1056, 0.10936069
      %vm1364 = vcmask 1044480
      %v1365 = vrot.slane %v1316, 3
      %v1366 = vrot.slane %v1317, 3
      %v1367 = vsel %vm1364, %v1365, %v1366
      %v1368 = vrot.slane %v1318, 3
      %v1369 = vsel %vm1364, %v1366, %v1368
      %v1370 = vrot.slane %v1319, 3
      %v1371 = vrot.slane %v1320, 3
      %v1372 = vsel %vm1364, %v1370, %v1371
      %v1373 = vrot.slane %v1321, 3
      %v1374 = vsel %vm1364, %v1371, %v1373
      %v1375 = vrot.slane %v1322, 3
      %v1376 = vrot.slane %v1323, 3
      %v1377 = vsel %vm1364, %v1375, %v1376
      %v1378 = vrot.slane %v1324, 3
      %v1379 = vsel %vm1364, %v1376, %v1378
      %v1380 = vrot.slane %v1325, 3
      %v1381 = vrot.slane %v1326, 3
      %v1382 = vsel %vm1364, %v1380, %v1381
      %v1383 = vrot.slane %v1327, 3
      %v1384 = vsel %vm1364, %v1381, %v1383
      %v1385 = vrot.slane %v1328, 3
      %v1386 = vrot.slane %v1329, 3
      %v1387 = vsel %vm1364, %v1385, %v1386
      %v1388 = vrot.slane %v1330, 3
      %v1389 = vsel %vm1364, %v1386, %v1388
      %v1390 = vrot.slane %v1331, 3
      %v1391 = vrot.slane %v1332, 3
      %v1392 = vsel %vm1364, %v1390, %v1391
      %v1393 = vrot.slane %v1333, 3
      %v1394 = vsel %vm1364, %v1391, %v1393
      %v1395 = vrot.slane %v1334, 3
      %v1396 = vrot.slane %v1335, 3
      %v1397 = vsel %vm1364, %v1395, %v1396
      %v1398 = vrot.slane %v1336, 3
      %v1399 = vsel %vm1364, %v1396, %v1398
      %v1400 = vrot.slane %v1337, 3
      %v1401 = vrot.slane %v1338, 3
      %v1402 = vsel %vm1364, %v1400, %v1401
      %v1403 = vrot.slane %v1339, 3
      %v1404 = vsel %vm1364, %v1401, %v1403
      %v1421 = vadd.f32 %v1300, %v1367
      %v1422 = vadd.f32 %v1301, %v1369
      %v1423 = vadd.f32 %v1302, %v1372
      %v1424 = vadd.f32 %v1303, %v1374
      %v1425 = vadd.f32 %v1304, %v1377
      %v1426 = vadd.f32 %v1305, %v1379
      %v1427 = vadd.f32 %v1306, %v1382
      %v1428 = vadd.f32 %v1307, %v1384
      %v1429 = vadd.f32 %v1308, %v1387
      %v1430 = vadd.f32 %v1309, %v1389
      %v1431 = vadd.f32 %v1310, %v1392
      %v1432 = vadd.f32 %v1311, %v1394
      %v1433 = vadd.f32 %v1312, %v1397
      %v1434 = vadd.f32 %v1313, %v1399
      %v1435 = vadd.f32 %v1314, %v1402
      %v1436 = vadd.f32 %v1315, %v1404
      %v1437 = vmul.f32 %v1026, 0.21300554
      %v1438 = vmul.f32 %v1027, 0.21300554
      %v1439 = vmul.f32 %v1028, 0.21300554
      %v1440 = vmul.f32 %v1030, 0.21300554
      %v1441 = vmul.f32 %v1031, 0.21300554
      %v1442 = vmul.f32 %v1032, 0.21300554
      %v1443 = vmul.f32 %v1034, 0.21300554
      %v1444 = vmul.f32 %v1035, 0.21300554
      %v1445 = vmul.f32 %v1036, 0.21300554
      %v1446 = vmul.f32 %v1038, 0.21300554
      %v1447 = vmul.f32 %v1039, 0.21300554
      %v1448 = vmul.f32 %v1040, 0.21300554
      %v1449 = vmul.f32 %v1042, 0.21300554
      %v1450 = vmul.f32 %v1043, 0.21300554
      %v1451 = vmul.f32 %v1044, 0.21300554
      %v1452 = vmul.f32 %v1046, 0.21300554
      %v1453 = vmul.f32 %v1047, 0.21300554
      %v1454 = vmul.f32 %v1048, 0.21300554
      %v1455 = vmul.f32 %v1050, 0.21300554
      %v1456 = vmul.f32 %v1051, 0.21300554
      %v1457 = vmul.f32 %v1052, 0.21300554
      %v1458 = vmul.f32 %v1054, 0.21300554
      %v1459 = vmul.f32 %v1055, 0.21300554
      %v1460 = vmul.f32 %v1056, 0.21300554
      %vm1485 = vcmask 1043456
      %v1486 = vrot.slane %v1437, 4
      %v1487 = vrot.slane %v1438, 4
      %v1488 = vsel %vm1485, %v1486, %v1487
      %v1489 = vrot.slane %v1439, 4
      %v1490 = vsel %vm1485, %v1487, %v1489
      %v1491 = vrot.slane %v1440, 4
      %v1492 = vrot.slane %v1441, 4
      %v1493 = vsel %vm1485, %v1491, %v1492
      %v1494 = vrot.slane %v1442, 4
      %v1495 = vsel %vm1485, %v1492, %v1494
      %v1496 = vrot.slane %v1443, 4
      %v1497 = vrot.slane %v1444, 4
      %v1498 = vsel %vm1485, %v1496, %v1497
      %v1499 = vrot.slane %v1445, 4
      %v1500 = vsel %vm1485, %v1497, %v1499
      %v1501 = vrot.slane %v1446, 4
      %v1502 = vrot.slane %v1447, 4
      %v1503 = vsel %vm1485, %v1501, %v1502
      %v1504 = vrot.slane %v1448, 4
      %v1505 = vsel %vm1485, %v1502, %v1504
      %v1506 = vrot.slane %v1449, 4
      %v1507 = vrot.slane %v1450, 4
      %v1508 = vsel %vm1485, %v1506, %v1507
      %v1509 = vrot.slane %v1451, 4
      %v1510 = vsel %vm1485, %v1507, %v1509
      %v1511 = vrot.slane %v1452, 4
      %v1512 = vrot.slane %v1453, 4
      %v1513 = vsel %vm1485, %v1511, %v1512
      %v1514 = vrot.slane %v1454, 4
      %v1515 = vsel %vm1485, %v1512, %v1514
      %v1516 = vrot.slane %v1455, 4
      %v1517 = vrot.slane %v1456, 4
      %v1518 = vsel %vm1485, %v1516, %v1517
      %v1519 = vrot.slane %v1457, 4
      %v1520 = vsel %vm1485, %v1517, %v1519
      %v1521 = vrot.slane %v1458, 4
      %v1522 = vrot.slane %v1459, 4
      %v1523 = vsel %vm1485, %v1521, %v1522
      %v1524 = vrot.slane %v1460, 4
      %v1525 = vsel %vm1485, %v1522, %v1524
      %v1542 = vadd.f32 %v1421, %v1488
      %v1543 = vadd.f32 %v1422, %v1490
      %v1544 = vadd.f32 %v1423, %v1493
      %v1545 = vadd.f32 %v1424, %v1495
      %v1546 = vadd.f32 %v1425, %v1498
      %v1547 = vadd.f32 %v1426, %v1500
      %v1548 = vadd.f32 %v1427, %v1503
      %v1549 = vadd.f32 %v1428, %v1505
      %v1550 = vadd.f32 %v1429, %v1508
      %v1551 = vadd.f32 %v1430, %v1510
      %v1552 = vadd.f32 %v1431, %v1513
      %v1553 = vadd.f32 %v1432, %v1515
      %v1554 = vadd.f32 %v1433, %v1518
      %v1555 = vadd.f32 %v1434, %v1520
      %v1556 = vadd.f32 %v1435, %v1523
      %v1557 = vadd.f32 %v1436, %v1525
      %v1558 = vmul.f32 %v1026, 0.26601171
      %v1559 = vmul.f32 %v1027, 0.26601171
      %v1560 = vmul.f32 %v1028, 0.26601171
      %v1561 = vmul.f32 %v1030, 0.26601171
      %v1562 = vmul.f32 %v1031, 0.26601171
      %v1563 = vmul.f32 %v1032, 0.26601171
      %v1564 = vmul.f32 %v1034, 0.26601171
      %v1565 = vmul.f32 %v1035, 0.26601171
      %v1566 = vmul.f32 %v1036, 0.26601171
      %v1567 = vmul.f32 %v1038, 0.26601171
      %v1568 = vmul.f32 %v1039, 0.26601171
      %v1569 = vmul.f32 %v1040, 0.26601171
      %v1570 = vmul.f32 %v1042, 0.26601171
      %v1571 = vmul.f32 %v1043, 0.26601171
      %v1572 = vmul.f32 %v1044, 0.26601171
      %v1573 = vmul.f32 %v1046, 0.26601171
      %v1574 = vmul.f32 %v1047, 0.26601171
      %v1575 = vmul.f32 %v1048, 0.26601171
      %v1576 = vmul.f32 %v1050, 0.26601171
      %v1577 = vmul.f32 %v1051, 0.26601171
      %v1578 = vmul.f32 %v1052, 0.26601171
      %v1579 = vmul.f32 %v1054, 0.26601171
      %v1580 = vmul.f32 %v1055, 0.26601171
      %v1581 = vmul.f32 %v1056, 0.26601171
      %vm1606 = vcmask 1042432
      %v1607 = vrot.slane %v1558, 5
      %v1608 = vrot.slane %v1559, 5
      %v1609 = vsel %vm1606, %v1607, %v1608
      %v1610 = vrot.slane %v1560, 5
      %v1611 = vsel %vm1606, %v1608, %v1610
      %v1612 = vrot.slane %v1561, 5
      %v1613 = vrot.slane %v1562, 5
      %v1614 = vsel %vm1606, %v1612, %v1613
      %v1615 = vrot.slane %v1563, 5
      %v1616 = vsel %vm1606, %v1613, %v1615
      %v1617 = vrot.slane %v1564, 5
      %v1618 = vrot.slane %v1565, 5
      %v1619 = vsel %vm1606, %v1617, %v1618
      %v1620 = vrot.slane %v1566, 5
      %v1621 = vsel %vm1606, %v1618, %v1620
      %v1622 = vrot.slane %v1567, 5
      %v1623 = vrot.slane %v1568, 5
      %v1624 = vsel %vm1606, %v1622, %v1623
      %v1625 = vrot.slane %v1569, 5
      %v1626 = vsel %vm1606, %v1623, %v1625
      %v1627 = vrot.slane %v1570, 5
      %v1628 = vrot.slane %v1571, 5
      %v1629 = vsel %vm1606, %v1627, %v1628
      %v1630 = vrot.slane %v1572, 5
      %v1631 = vsel %vm1606, %v1628, %v1630
      %v1632 = vrot.slane %v1573, 5
      %v1633 = vrot.slane %v1574, 5
      %v1634 = vsel %vm1606, %v1632, %v1633
      %v1635 = vrot.slane %v1575, 5
      %v1636 = vsel %vm1606, %v1633, %v1635
      %v1637 = vrot.slane %v1576, 5
      %v1638 = vrot.slane %v1577, 5
      %v1639 = vsel %vm1606, %v1637, %v1638
      %v1640 = vrot.slane %v1578, 5
      %v1641 = vsel %vm1606, %v1638, %v1640
      %v1642 = vrot.slane %v1579, 5
      %v1643 = vrot.slane %v1580, 5
      %v1644 = vsel %vm1606, %v1642, %v1643
      %v1645 = vrot.slane %v1581, 5
      %v1646 = vsel %vm1606, %v1643, %v1645
      %v1663 = vadd.f32 %v1542, %v1609
      %v1664 = vadd.f32 %v1543, %v1611
      %v1665 = vadd.f32 %v1544, %v1614
      %v1666 = vadd.f32 %v1545, %v1616
      %v1667 = vadd.f32 %v1546, %v1619
      %v1668 = vadd.f32 %v1547, %v1621
      %v1669 = vadd.f32 %v1548, %v1624
      %v1670 = vadd.f32 %v1549, %v1626
      %v1671 = vadd.f32 %v1550, %v1629
      %v1672 = vadd.f32 %v1551, %v1631
      %v1673 = vadd.f32 %v1552, %v1634
      %v1674 = vadd.f32 %v1553, %v1636
      %v1675 = vadd.f32 %v1554, %v1639
      %v1676 = vadd.f32 %v1555, %v1641
      %v1677 = vadd.f32 %v1556, %v1644
      %v1678 = vadd.f32 %v1557, %v1646
      %vm1679 = vcmask 1041408
      %v1680 = vrot.slane %v1437, 6
      %v1681 = vrot.slane %v1438, 6
      %v1682 = vsel %vm1679, %v1680, %v1681
      %v1683 = vrot.slane %v1439, 6
      %v1684 = vsel %vm1679, %v1681, %v1683
      %v1685 = vrot.slane %v1440, 6
      %v1686 = vrot.slane %v1441, 6
      %v1687 = vsel %vm1679, %v1685, %v1686
      %v1688 = vrot.slane %v1442, 6
      %v1689 = vsel %vm1679, %v1686, %v1688
      %v1690 = vrot.slane %v1443, 6
      %v1691 = vrot.slane %v1444, 6
      %v1692 = vsel %vm1679, %v1690, %v1691
      %v1693 = vrot.slane %v1445, 6
      %v1694 = vsel %vm1679, %v1691, %v1693
      %v1695 = vrot.slane %v1446, 6
      %v1696 = vrot.slane %v1447, 6
      %v1697 = vsel %vm1679, %v1695, %v1696
      %v1698 = vrot.slane %v1448, 6
      %v1699 = vsel %vm1679, %v1696, %v1698
      %v1700 = vrot.slane %v1449, 6
      %v1701 = vrot.slane %v1450, 6
      %v1702 = vsel %vm1679, %v1700, %v1701
      %v1703 = vrot.slane %v1451, 6
      %v1704 = vsel %vm1679, %v1701, %v1703
      %v1705 = vrot.slane %v1452, 6
      %v1706 = vrot.slane %v1453, 6
      %v1707 = vsel %vm1679, %v1705, %v1706
      %v1708 = vrot.slane %v1454, 6
      %v1709 = vsel %vm1679, %v1706, %v1708
      %v1710 = vrot.slane %v1455, 6
      %v1711 = vrot.slane %v1456, 6
      %v1712 = vsel %vm1679, %v1710, %v1711
      %v1713 = vrot.slane %v1457, 6
      %v1714 = vsel %vm1679, %v1711, %v1713
      %v1715 = vrot.slane %v1458, 6
      %v1716 = vrot.slane %v1459, 6
      %v1717 = vsel %vm1679, %v1715, %v1716
      %v1718 = vrot.slane %v1460, 6
      %v1719 = vsel %vm1679, %v1716, %v1718
      %v1736 = vadd.f32 %v1663, %v1682
      %v1737 = vadd.f32 %v1664, %v1684
      %v1738 = vadd.f32 %v1665, %v1687
      %v1739 = vadd.f32 %v1666, %v1689
      %v1740 = vadd.f32 %v1667, %v1692
      %v1741 = vadd.f32 %v1668, %v1694
      %v1742 = vadd.f32 %v1669, %v1697
      %v1743 = vadd.f32 %v1670, %v1699
      %v1744 = vadd.f32 %v1671, %v1702
      %v1745 = vadd.f32 %v1672, %v1704
      %v1746 = vadd.f32 %v1673, %v1707
      %v1747 = vadd.f32 %v1674, %v1709
      %v1748 = vadd.f32 %v1675, %v1712
      %v1749 = vadd.f32 %v1676, %v1714
      %v1750 = vadd.f32 %v1677, %v1717
      %v1751 = vadd.f32 %v1678, %v1719
      %vm1752 = vcmask 1040384
      %v1753 = vrot.slane %v1316, 7
      %v1754 = vrot.slane %v1317, 7
      %v1755 = vsel %vm1752, %v1753, %v1754
      %v1756 = vrot.slane %v1318, 7
      %v1757 = vsel %vm1752, %v1754, %v1756
      %v1758 = vrot.slane %v1319, 7
      %v1759 = vrot.slane %v1320, 7
      %v1760 = vsel %vm1752, %v1758, %v1759
      %v1761 = vrot.slane %v1321, 7
      %v1762 = vsel %vm1752, %v1759, %v1761
      %v1763 = vrot.slane %v1322, 7
      %v1764 = vrot.slane %v1323, 7
      %v1765 = vsel %vm1752, %v1763, %v1764
      %v1766 = vrot.slane %v1324, 7
      %v1767 = vsel %vm1752, %v1764, %v1766
      %v1768 = vrot.slane %v1325, 7
      %v1769 = vrot.slane %v1326, 7
      %v1770 = vsel %vm1752, %v1768, %v1769
      %v1771 = vrot.slane %v1327, 7
      %v1772 = vsel %vm1752, %v1769, %v1771
      %v1773 = vrot.slane %v1328, 7
      %v1774 = vrot.slane %v1329, 7
      %v1775 = vsel %vm1752, %v1773, %v1774
      %v1776 = vrot.slane %v1330, 7
      %v1777 = vsel %vm1752, %v1774, %v1776
      %v1778 = vrot.slane %v1331, 7
      %v1779 = vrot.slane %v1332, 7
      %v1780 = vsel %vm1752, %v1778, %v1779
      %v1781 = vrot.slane %v1333, 7
      %v1782 = vsel %vm1752, %v1779, %v1781
      %v1783 = vrot.slane %v1334, 7
      %v1784 = vrot.slane %v1335, 7
      %v1785 = vsel %vm1752, %v1783, %v1784
      %v1786 = vrot.slane %v1336, 7
      %v1787 = vsel %vm1752, %v1784, %v1786
      %v1788 = vrot.slane %v1337, 7
      %v1789 = vrot.slane %v1338, 7
      %v1790 = vsel %vm1752, %v1788, %v1789
      %v1791 = vrot.slane %v1339, 7
      %v1792 = vsel %vm1752, %v1789, %v1791
      %v1809 = vadd.f32 %v1736, %v1755
      %v1810 = vadd.f32 %v1737, %v1757
      %v1811 = vadd.f32 %v1738, %v1760
      %v1812 = vadd.f32 %v1739, %v1762
      %v1813 = vadd.f32 %v1740, %v1765
      %v1814 = vadd.f32 %v1741, %v1767
      %v1815 = vadd.f32 %v1742, %v1770
      %v1816 = vadd.f32 %v1743, %v1772
      %v1817 = vadd.f32 %v1744, %v1775
      %v1818 = vadd.f32 %v1745, %v1777
      %v1819 = vadd.f32 %v1746, %v1780
      %v1820 = vadd.f32 %v1747, %v1782
      %v1821 = vadd.f32 %v1748, %v1785
      %v1822 = vadd.f32 %v1749, %v1787
      %v1823 = vadd.f32 %v1750, %v1790
      %v1824 = vadd.f32 %v1751, %v1792
      %v1825 = vadd.f32 %v1809, %v1196
      %v1826 = vadd.f32 %v1810, %v1197
      %v1827 = vadd.f32 %v1811, %v1199
      %v1828 = vadd.f32 %v1812, %v1200
      %v1829 = vadd.f32 %v1813, %v1202
      %v1830 = vadd.f32 %v1814, %v1203
      %v1831 = vadd.f32 %v1815, %v1205
      %v1832 = vadd.f32 %v1816, %v1206
      %v1833 = vadd.f32 %v1817, %v1208
      %v1834 = vadd.f32 %v1818, %v1209
      %v1835 = vadd.f32 %v1819, %v1211
      %v1836 = vadd.f32 %v1820, %v1212
      %v1837 = vadd.f32 %v1821, %v1214
      %v1838 = vadd.f32 %v1822, %v1215
      %v1839 = vadd.f32 %v1823, %v1217
      %v1840 = vadd.f32 %v1824, %v1218
      %v1841 = vmul.f32 %v1029, 0.007598758
      %v1842 = vmul.f32 %v1033, 0.007598758
      %v1843 = vmul.f32 %v1037, 0.007598758
      %v1844 = vmul.f32 %v1041, 0.007598758
      %v1845 = vmul.f32 %v1045, 0.007598758
      %v1846 = vmul.f32 %v1049, 0.007598758
      %v1847 = vmul.f32 %v1053, 0.007598758
      %v1848 = vmul.f32 %v1057, 0.007598758
      %v1857 = vrot.slane %v1841, 1
      %v1858 = vsel %vm1122, %v1126, %v1857
      %v1859 = vrot.slane %v1842, 1
      %v1860 = vsel %vm1122, %v1131, %v1859
      %v1861 = vrot.slane %v1843, 1
      %v1862 = vsel %vm1122, %v1136, %v1861
      %v1863 = vrot.slane %v1844, 1
      %v1864 = vsel %vm1122, %v1141, %v1863
      %v1865 = vrot.slane %v1845, 1
      %v1866 = vsel %vm1122, %v1146, %v1865
      %v1867 = vrot.slane %v1846, 1
      %v1868 = vsel %vm1122, %v1151, %v1867
      %v1869 = vrot.slane %v1847, 1
      %v1870 = vsel %vm1122, %v1156, %v1869
      %v1871 = vrot.slane %v1848, 1
      %v1872 = vsel %vm1122, %v1161, %v1871
      %v1881 = vadd.f32 %v1825, %v1127
      %v1882 = vadd.f32 %v1826, %v1858
      %v1883 = vadd.f32 %v1827, %v1132
      %v1884 = vadd.f32 %v1828, %v1860
      %v1885 = vadd.f32 %v1829, %v1137
      %v1886 = vadd.f32 %v1830, %v1862
      %v1887 = vadd.f32 %v1831, %v1142
      %v1888 = vadd.f32 %v1832, %v1864
      %v1889 = vadd.f32 %v1833, %v1147
      %v1890 = vadd.f32 %v1834, %v1866
      %v1891 = vadd.f32 %v1835, %v1152
      %v1892 = vadd.f32 %v1836, %v1868
      %v1893 = vadd.f32 %v1837, %v1157
      %v1894 = vadd.f32 %v1838, %v1870
      %v1895 = vadd.f32 %v1839, %v1162
      %v1896 = vadd.f32 %v1840, %v1872
      %v1897 = vmul.f32 %v1028, 0.0010283801
      %v1898 = vmul.f32 %v1029, 0.0010283801
      %v1899 = vmul.f32 %v1032, 0.0010283801
      %v1900 = vmul.f32 %v1033, 0.0010283801
      %v1901 = vmul.f32 %v1036, 0.0010283801
      %v1902 = vmul.f32 %v1037, 0.0010283801
      %v1903 = vmul.f32 %v1040, 0.0010283801
      %v1904 = vmul.f32 %v1041, 0.0010283801
      %v1905 = vmul.f32 %v1044, 0.0010283801
      %v1906 = vmul.f32 %v1045, 0.0010283801
      %v1907 = vmul.f32 %v1048, 0.0010283801
      %v1908 = vmul.f32 %v1049, 0.0010283801
      %v1909 = vmul.f32 %v1052, 0.0010283801
      %v1910 = vmul.f32 %v1053, 0.0010283801
      %v1911 = vmul.f32 %v1056, 0.0010283801
      %v1912 = vmul.f32 %v1057, 0.0010283801
      %v1937 = vrot.slane %v1059, 2
      %v1938 = vrot.slane %v1897, 2
      %v1939 = vsel %vm1243, %v1937, %v1938
      %v1940 = vrot.slane %v1898, 2
      %v1941 = vsel %vm1243, %v1938, %v1940
      %v1942 = vrot.slane %v1061, 2
      %v1943 = vrot.slane %v1899, 2
      %v1944 = vsel %vm1243, %v1942, %v1943
      %v1945 = vrot.slane %v1900, 2
      %v1946 = vsel %vm1243, %v1943, %v1945
      %v1947 = vrot.slane %v1063, 2
      %v1948 = vrot.slane %v1901, 2
      %v1949 = vsel %vm1243, %v1947, %v1948
      %v1950 = vrot.slane %v1902, 2
      %v1951 = vsel %vm1243, %v1948, %v1950
      %v1952 = vrot.slane %v1065, 2
      %v1953 = vrot.slane %v1903, 2
      %v1954 = vsel %vm1243, %v1952, %v1953
      %v1955 = vrot.slane %v1904, 2
      %v1956 = vsel %vm1243, %v1953, %v1955
      %v1957 = vrot.slane %v1067, 2
      %v1958 = vrot.slane %v1905, 2
      %v1959 = vsel %vm1243, %v1957, %v1958
      %v1960 = vrot.slane %v1906, 2
      %v1961 = vsel %vm1243, %v1958, %v1960
      %v1962 = vrot.slane %v1069, 2
      %v1963 = vrot.slane %v1907, 2
      %v1964 = vsel %vm1243, %v1962, %v1963
      %v1965 = vrot.slane %v1908, 2
      %v1966 = vsel %vm1243, %v1963, %v1965
      %v1967 = vrot.slane %v1071, 2
      %v1968 = vrot.slane %v1909, 2
      %v1969 = vsel %vm1243, %v1967, %v1968
      %v1970 = vrot.slane %v1910, 2
      %v1971 = vsel %vm1243, %v1968, %v1970
      %v1972 = vrot.slane %v1073, 2
      %v1973 = vrot.slane %v1911, 2
      %v1974 = vsel %vm1243, %v1972, %v1973
      %v1975 = vrot.slane %v1912, 2
      %v1976 = vsel %vm1243, %v1973, %v1975
      %v1993 = vadd.f32 %v1881, %v1939
      %v1994 = vadd.f32 %v1882, %v1941
      %v1995 = vadd.f32 %v1883, %v1944
      %v1996 = vadd.f32 %v1884, %v1946
      %v1997 = vadd.f32 %v1885, %v1949
      %v1998 = vadd.f32 %v1886, %v1951
      %v1999 = vadd.f32 %v1887, %v1954
      %v2000 = vadd.f32 %v1888, %v1956
      %v2001 = vadd.f32 %v1889, %v1959
      %v2002 = vadd.f32 %v1890, %v1961
      %v2003 = vadd.f32 %v1891, %v1964
      %v2004 = vadd.f32 %v1892, %v1966
      %v2005 = vadd.f32 %v1893, %v1969
      %v2006 = vadd.f32 %v1894, %v1971
      %v2007 = vadd.f32 %v1895, %v1974
      %v2008 = vadd.f32 %v1896, %v1976
      %v2009 = vmul.f32 %v146, 0.0010283801
      %v2010 = vmul.f32 %v147, 0.0010283801
      %v2011 = vmul.f32 %v148, 0.0010283801
      %v2012 = vmul.f32 %v149, 0.0010283801
      %v2013 = vmul.f32 %v150, 0.0010283801
      %v2014 = vmul.f32 %v151, 0.0010283801
      %v2015 = vmul.f32 %v152, 0.0010283801
      %v2016 = vmul.f32 %v153, 0.0010283801
      %v2017 = vmul.f32 %v154, 0.0010283801
      %v2018 = vmul.f32 %v155, 0.0010283801
      %v2019 = vmul.f32 %v156, 0.0010283801
      %v2020 = vmul.f32 %v157, 0.0010283801
      %v2021 = vmul.f32 %v158, 0.0010283801
      %v2022 = vmul.f32 %v159, 0.0010283801
      %v2023 = vmul.f32 %v160, 0.0010283801
      %v2024 = vmul.f32 %v161, 0.0010283801
      %v2025 = vmul.f32 %v162, 0.0010283801
      %v2026 = vmul.f32 %v163, 0.0010283801
      %v2027 = vmul.f32 %v164, 0.0010283801
      %v2028 = vmul.f32 %v165, 0.0010283801
      %v2029 = vmul.f32 %v166, 0.0010283801
      %v2030 = vmul.f32 %v167, 0.0010283801
      %v2031 = vmul.f32 %v168, 0.0010283801
      %v2032 = vmul.f32 %v169, 0.0010283801
      %v2033 = vmul.f32 %v170, 0.0010283801
      %v2034 = vmul.f32 %v171, 0.0010283801
      %v2035 = vmul.f32 %v172, 0.0010283801
      %v2036 = vmul.f32 %v173, 0.0010283801
      %v2037 = vmul.f32 %v174, 0.0010283801
      %v2038 = vmul.f32 %v175, 0.0010283801
      %v2039 = vmul.f32 %v176, 0.0010283801
      %v2040 = vmul.f32 %v177, 0.0010283801
      %v2041 = vmul.f32 %v150, 0.007598758
      %v2042 = vmul.f32 %v151, 0.007598758
      %v2043 = vmul.f32 %v152, 0.007598758
      %v2044 = vmul.f32 %v153, 0.007598758
      %v2045 = vmul.f32 %v154, 0.007598758
      %v2046 = vmul.f32 %v155, 0.007598758
      %v2047 = vmul.f32 %v156, 0.007598758
      %v2048 = vmul.f32 %v157, 0.007598758
      %v2049 = vmul.f32 %v158, 0.007598758
      %v2050 = vmul.f32 %v159, 0.007598758
      %v2051 = vmul.f32 %v160, 0.007598758
      %v2052 = vmul.f32 %v161, 0.007598758
      %v2053 = vmul.f32 %v162, 0.007598758
      %v2054 = vmul.f32 %v163, 0.007598758
      %v2055 = vmul.f32 %v164, 0.007598758
      %v2056 = vmul.f32 %v165, 0.007598758
      %v2057 = vmul.f32 %v166, 0.007598758
      %v2058 = vmul.f32 %v167, 0.007598758
      %v2059 = vmul.f32 %v168, 0.007598758
      %v2060 = vmul.f32 %v169, 0.007598758
      %v2061 = vmul.f32 %v170, 0.007598758
      %v2062 = vmul.f32 %v171, 0.007598758
      %v2063 = vmul.f32 %v172, 0.007598758
      %v2064 = vmul.f32 %v173, 0.007598758
      %v2065 = vmul.f32 %v174, 0.007598758
      %v2066 = vmul.f32 %v175, 0.007598758
      %v2067 = vmul.f32 %v176, 0.007598758
      %v2068 = vmul.f32 %v177, 0.007598758
      %v2069 = vmul.f32 %v178, 0.007598758
      %v2070 = vmul.f32 %v179, 0.007598758
      %v2071 = vmul.f32 %v180, 0.007598758
      %v2072 = vmul.f32 %v181, 0.007598758
      %v2073 = vadd.f32 %v2009, %v2041
      %v2074 = vadd.f32 %v2010, %v2042
      %v2075 = vadd.f32 %v2011, %v2043
      %v2076 = vadd.f32 %v2012, %v2044
      %v2077 = vadd.f32 %v2013, %v2045
      %v2078 = vadd.f32 %v2014, %v2046
      %v2079 = vadd.f32 %v2015, %v2047
      %v2080 = vadd.f32 %v2016, %v2048
      %v2081 = vadd.f32 %v2017, %v2049
      %v2082 = vadd.f32 %v2018, %v2050
      %v2083 = vadd.f32 %v2019, %v2051
      %v2084 = vadd.f32 %v2020, %v2052
      %v2085 = vadd.f32 %v2021, %v2053
      %v2086 = vadd.f32 %v2022, %v2054
      %v2087 = vadd.f32 %v2023, %v2055
      %v2088 = vadd.f32 %v2024, %v2056
      %v2089 = vadd.f32 %v2025, %v2057
      %v2090 = vadd.f32 %v2026, %v2058
      %v2091 = vadd.f32 %v2027, %v2059
      %v2092 = vadd.f32 %v2028, %v2060
      %v2093 = vadd.f32 %v2029, %v2061
      %v2094 = vadd.f32 %v2030, %v2062
      %v2095 = vadd.f32 %v2031, %v2063
      %v2096 = vadd.f32 %v2032, %v2064
      %v2097 = vadd.f32 %v2033, %v2065
      %v2098 = vadd.f32 %v2034, %v2066
      %v2099 = vadd.f32 %v2035, %v2067
      %v2100 = vadd.f32 %v2036, %v2068
      %v2101 = vadd.f32 %v2037, %v2069
      %v2102 = vadd.f32 %v2038, %v2070
      %v2103 = vadd.f32 %v2039, %v2071
      %v2104 = vadd.f32 %v2040, %v2072
      %v2105 = vmul.f32 %v154, 0.036000773
      %v2106 = vmul.f32 %v155, 0.036000773
      %v2107 = vmul.f32 %v156, 0.036000773
      %v2108 = vmul.f32 %v157, 0.036000773
      %v2109 = vmul.f32 %v158, 0.036000773
      %v2110 = vmul.f32 %v159, 0.036000773
      %v2111 = vmul.f32 %v160, 0.036000773
      %v2112 = vmul.f32 %v161, 0.036000773
      %v2113 = vmul.f32 %v162, 0.036000773
      %v2114 = vmul.f32 %v163, 0.036000773
      %v2115 = vmul.f32 %v164, 0.036000773
      %v2116 = vmul.f32 %v165, 0.036000773
      %v2117 = vmul.f32 %v166, 0.036000773
      %v2118 = vmul.f32 %v167, 0.036000773
      %v2119 = vmul.f32 %v168, 0.036000773
      %v2120 = vmul.f32 %v169, 0.036000773
      %v2121 = vmul.f32 %v170, 0.036000773
      %v2122 = vmul.f32 %v171, 0.036000773
      %v2123 = vmul.f32 %v172, 0.036000773
      %v2124 = vmul.f32 %v173, 0.036000773
      %v2125 = vmul.f32 %v174, 0.036000773
      %v2126 = vmul.f32 %v175, 0.036000773
      %v2127 = vmul.f32 %v176, 0.036000773
      %v2128 = vmul.f32 %v177, 0.036000773
      %v2129 = vmul.f32 %v178, 0.036000773
      %v2130 = vmul.f32 %v179, 0.036000773
      %v2131 = vmul.f32 %v180, 0.036000773
      %v2132 = vmul.f32 %v181, 0.036000773
      %v2133 = vmul.f32 %v182, 0.036000773
      %v2134 = vmul.f32 %v183, 0.036000773
      %v2135 = vmul.f32 %v184, 0.036000773
      %v2136 = vmul.f32 %v185, 0.036000773
      %v2137 = vadd.f32 %v2073, %v2105
      %v2138 = vadd.f32 %v2074, %v2106
      %v2139 = vadd.f32 %v2075, %v2107
      %v2140 = vadd.f32 %v2076, %v2108
      %v2141 = vadd.f32 %v2077, %v2109
      %v2142 = vadd.f32 %v2078, %v2110
      %v2143 = vadd.f32 %v2079, %v2111
      %v2144 = vadd.f32 %v2080, %v2112
      %v2145 = vadd.f32 %v2081, %v2113
      %v2146 = vadd.f32 %v2082, %v2114
      %v2147 = vadd.f32 %v2083, %v2115
      %v2148 = vadd.f32 %v2084, %v2116
      %v2149 = vadd.f32 %v2085, %v2117
      %v2150 = vadd.f32 %v2086, %v2118
      %v2151 = vadd.f32 %v2087, %v2119
      %v2152 = vadd.f32 %v2088, %v2120
      %v2153 = vadd.f32 %v2089, %v2121
      %v2154 = vadd.f32 %v2090, %v2122
      %v2155 = vadd.f32 %v2091, %v2123
      %v2156 = vadd.f32 %v2092, %v2124
      %v2157 = vadd.f32 %v2093, %v2125
      %v2158 = vadd.f32 %v2094, %v2126
      %v2159 = vadd.f32 %v2095, %v2127
      %v2160 = vadd.f32 %v2096, %v2128
      %v2161 = vadd.f32 %v2097, %v2129
      %v2162 = vadd.f32 %v2098, %v2130
      %v2163 = vadd.f32 %v2099, %v2131
      %v2164 = vadd.f32 %v2100, %v2132
      %v2165 = vadd.f32 %v2101, %v2133
      %v2166 = vadd.f32 %v2102, %v2134
      %v2167 = vadd.f32 %v2103, %v2135
      %v2168 = vadd.f32 %v2104, %v2136
      %v2169 = vmul.f32 %v158, 0.10936069
      %v2170 = vmul.f32 %v159, 0.10936069
      %v2171 = vmul.f32 %v160, 0.10936069
      %v2172 = vmul.f32 %v161, 0.10936069
      %v2173 = vmul.f32 %v162, 0.10936069
      %v2174 = vmul.f32 %v163, 0.10936069
      %v2175 = vmul.f32 %v164, 0.10936069
      %v2176 = vmul.f32 %v165, 0.10936069
      %v2177 = vmul.f32 %v166, 0.10936069
      %v2178 = vmul.f32 %v167, 0.10936069
      %v2179 = vmul.f32 %v168, 0.10936069
      %v2180 = vmul.f32 %v169, 0.10936069
      %v2181 = vmul.f32 %v170, 0.10936069
      %v2182 = vmul.f32 %v171, 0.10936069
      %v2183 = vmul.f32 %v172, 0.10936069
      %v2184 = vmul.f32 %v173, 0.10936069
      %v2185 = vmul.f32 %v174, 0.10936069
      %v2186 = vmul.f32 %v175, 0.10936069
      %v2187 = vmul.f32 %v176, 0.10936069
      %v2188 = vmul.f32 %v177, 0.10936069
      %v2189 = vmul.f32 %v178, 0.10936069
      %v2190 = vmul.f32 %v179, 0.10936069
      %v2191 = vmul.f32 %v180, 0.10936069
      %v2192 = vmul.f32 %v181, 0.10936069
      %v2193 = vmul.f32 %v182, 0.10936069
      %v2194 = vmul.f32 %v183, 0.10936069
      %v2195 = vmul.f32 %v184, 0.10936069
      %v2196 = vmul.f32 %v185, 0.10936069
      %v2197 = vmul.f32 %v186, 0.10936069
      %v2198 = vmul.f32 %v187, 0.10936069
      %v2199 = vmul.f32 %v188, 0.10936069
      %v2200 = vmul.f32 %v189, 0.10936069
      %v2201 = vadd.f32 %v2137, %v2169
      %v2202 = vadd.f32 %v2138, %v2170
      %v2203 = vadd.f32 %v2139, %v2171
      %v2204 = vadd.f32 %v2140, %v2172
      %v2205 = vadd.f32 %v2141, %v2173
      %v2206 = vadd.f32 %v2142, %v2174
      %v2207 = vadd.f32 %v2143, %v2175
      %v2208 = vadd.f32 %v2144, %v2176
      %v2209 = vadd.f32 %v2145, %v2177
      %v2210 = vadd.f32 %v2146, %v2178
      %v2211 = vadd.f32 %v2147, %v2179
      %v2212 = vadd.f32 %v2148, %v2180
      %v2213 = vadd.f32 %v2149, %v2181
      %v2214 = vadd.f32 %v2150, %v2182
      %v2215 = vadd.f32 %v2151, %v2183
      %v2216 = vadd.f32 %v2152, %v2184
      %v2217 = vadd.f32 %v2153, %v2185
      %v2218 = vadd.f32 %v2154, %v2186
      %v2219 = vadd.f32 %v2155, %v2187
      %v2220 = vadd.f32 %v2156, %v2188
      %v2221 = vadd.f32 %v2157, %v2189
      %v2222 = vadd.f32 %v2158, %v2190
      %v2223 = vadd.f32 %v2159, %v2191
      %v2224 = vadd.f32 %v2160, %v2192
      %v2225 = vadd.f32 %v2161, %v2193
      %v2226 = vadd.f32 %v2162, %v2194
      %v2227 = vadd.f32 %v2163, %v2195
      %v2228 = vadd.f32 %v2164, %v2196
      %v2229 = vadd.f32 %v2165, %v2197
      %v2230 = vadd.f32 %v2166, %v2198
      %v2231 = vadd.f32 %v2167, %v2199
      %v2232 = vadd.f32 %v2168, %v2200
      %v2233 = vmul.f32 %v162, 0.21300554
      %v2234 = vmul.f32 %v163, 0.21300554
      %v2235 = vmul.f32 %v164, 0.21300554
      %v2236 = vmul.f32 %v165, 0.21300554
      %v2237 = vmul.f32 %v166, 0.21300554
      %v2238 = vmul.f32 %v167, 0.21300554
      %v2239 = vmul.f32 %v168, 0.21300554
      %v2240 = vmul.f32 %v169, 0.21300554
      %v2241 = vmul.f32 %v170, 0.21300554
      %v2242 = vmul.f32 %v171, 0.21300554
      %v2243 = vmul.f32 %v172, 0.21300554
      %v2244 = vmul.f32 %v173, 0.21300554
      %v2245 = vmul.f32 %v174, 0.21300554
      %v2246 = vmul.f32 %v175, 0.21300554
      %v2247 = vmul.f32 %v176, 0.21300554
      %v2248 = vmul.f32 %v177, 0.21300554
      %v2249 = vmul.f32 %v178, 0.21300554
      %v2250 = vmul.f32 %v179, 0.21300554
      %v2251 = vmul.f32 %v180, 0.21300554
      %v2252 = vmul.f32 %v181, 0.21300554
      %v2253 = vmul.f32 %v182, 0.21300554
      %v2254 = vmul.f32 %v183, 0.21300554
      %v2255 = vmul.f32 %v184, 0.21300554
      %v2256 = vmul.f32 %v185, 0.21300554
      %v2257 = vmul.f32 %v186, 0.21300554
      %v2258 = vmul.f32 %v187, 0.21300554
      %v2259 = vmul.f32 %v188, 0.21300554
      %v2260 = vmul.f32 %v189, 0.21300554
      %v2261 = vmul.f32 %v190, 0.21300554
      %v2262 = vmul.f32 %v191, 0.21300554
      %v2263 = vmul.f32 %v192, 0.21300554
      %v2264 = vmul.f32 %v193, 0.21300554
      %v2265 = vadd.f32 %v2201, %v2233
      %v2266 = vadd.f32 %v2202, %v2234
      %v2267 = vadd.f32 %v2203, %v2235
      %v2268 = vadd.f32 %v2204, %v2236
      %v2269 = vadd.f32 %v2205, %v2237
      %v2270 = vadd.f32 %v2206, %v2238
      %v2271 = vadd.f32 %v2207, %v2239
      %v2272 = vadd.f32 %v2208, %v2240
      %v2273 = vadd.f32 %v2209, %v2241
      %v2274 = vadd.f32 %v2210, %v2242
      %v2275 = vadd.f32 %v2211, %v2243
      %v2276 = vadd.f32 %v2212, %v2244
      %v2277 = vadd.f32 %v2213, %v2245
      %v2278 = vadd.f32 %v2214, %v2246
      %v2279 = vadd.f32 %v2215, %v2247
      %v2280 = vadd.f32 %v2216, %v2248
      %v2281 = vadd.f32 %v2217, %v2249
      %v2282 = vadd.f32 %v2218, %v2250
      %v2283 = vadd.f32 %v2219, %v2251
      %v2284 = vadd.f32 %v2220, %v2252
      %v2285 = vadd.f32 %v2221, %v2253
      %v2286 = vadd.f32 %v2222, %v2254
      %v2287 = vadd.f32 %v2223, %v2255
      %v2288 = vadd.f32 %v2224, %v2256
      %v2289 = vadd.f32 %v2225, %v2257
      %v2290 = vadd.f32 %v2226, %v2258
      %v2291 = vadd.f32 %v2227, %v2259
      %v2292 = vadd.f32 %v2228, %v2260
      %v2293 = vadd.f32 %v2229, %v2261
      %v2294 = vadd.f32 %v2230, %v2262
      %v2295 = vadd.f32 %v2231, %v2263
      %v2296 = vadd.f32 %v2232, %v2264
      %v2297 = vmul.f32 %v166, 0.26601171
      %v2298 = vmul.f32 %v167, 0.26601171
      %v2299 = vmul.f32 %v168, 0.26601171
      %v2300 = vmul.f32 %v169, 0.26601171
      %v2301 = vmul.f32 %v170, 0.26601171
      %v2302 = vmul.f32 %v171, 0.26601171
      %v2303 = vmul.f32 %v172, 0.26601171
      %v2304 = vmul.f32 %v173, 0.26601171
      %v2305 = vmul.f32 %v174, 0.26601171
      %v2306 = vmul.f32 %v175, 0.26601171
      %v2307 = vmul.f32 %v176, 0.26601171
      %v2308 = vmul.f32 %v177, 0.26601171
      %v2309 = vmul.f32 %v178, 0.26601171
      %v2310 = vmul.f32 %v179, 0.26601171
      %v2311 = vmul.f32 %v180, 0.26601171
      %v2312 = vmul.f32 %v181, 0.26601171
      %v2313 = vmul.f32 %v182, 0.26601171
      %v2314 = vmul.f32 %v183, 0.26601171
      %v2315 = vmul.f32 %v184, 0.26601171
      %v2316 = vmul.f32 %v185, 0.26601171
      %v2317 = vmul.f32 %v186, 0.26601171
      %v2318 = vmul.f32 %v187, 0.26601171
      %v2319 = vmul.f32 %v188, 0.26601171
      %v2320 = vmul.f32 %v189, 0.26601171
      %v2321 = vmul.f32 %v190, 0.26601171
      %v2322 = vmul.f32 %v191, 0.26601171
      %v2323 = vmul.f32 %v192, 0.26601171
      %v2324 = vmul.f32 %v193, 0.26601171
      %v2325 = vmul.f32 %v194, 0.26601171
      %v2326 = vmul.f32 %v195, 0.26601171
      %v2327 = vmul.f32 %v196, 0.26601171
      %v2328 = vmul.f32 %v197, 0.26601171
      %v2329 = vadd.f32 %v2265, %v2297
      %v2330 = vadd.f32 %v2266, %v2298
      %v2331 = vadd.f32 %v2267, %v2299
      %v2332 = vadd.f32 %v2268, %v2300
      %v2333 = vadd.f32 %v2269, %v2301
      %v2334 = vadd.f32 %v2270, %v2302
      %v2335 = vadd.f32 %v2271, %v2303
      %v2336 = vadd.f32 %v2272, %v2304
      %v2337 = vadd.f32 %v2273, %v2305
      %v2338 = vadd.f32 %v2274, %v2306
      %v2339 = vadd.f32 %v2275, %v2307
      %v2340 = vadd.f32 %v2276, %v2308
      %v2341 = vadd.f32 %v2277, %v2309
      %v2342 = vadd.f32 %v2278, %v2310
      %v2343 = vadd.f32 %v2279, %v2311
      %v2344 = vadd.f32 %v2280, %v2312
      %v2345 = vadd.f32 %v2281, %v2313
      %v2346 = vadd.f32 %v2282, %v2314
      %v2347 = vadd.f32 %v2283, %v2315
      %v2348 = vadd.f32 %v2284, %v2316
      %v2349 = vadd.f32 %v2285, %v2317
      %v2350 = vadd.f32 %v2286, %v2318
      %v2351 = vadd.f32 %v2287, %v2319
      %v2352 = vadd.f32 %v2288, %v2320
      %v2353 = vadd.f32 %v2289, %v2321
      %v2354 = vadd.f32 %v2290, %v2322
      %v2355 = vadd.f32 %v2291, %v2323
      %v2356 = vadd.f32 %v2292, %v2324
      %v2357 = vadd.f32 %v2293, %v2325
      %v2358 = vadd.f32 %v2294, %v2326
      %v2359 = vadd.f32 %v2295, %v2327
      %v2360 = vadd.f32 %v2296, %v2328
      %v2361 = vmul.f32 %v194, 0.21300554
      %v2362 = vmul.f32 %v195, 0.21300554
      %v2363 = vmul.f32 %v196, 0.21300554
      %v2364 = vmul.f32 %v197, 0.21300554
      %v2365 = vmul.f32 %v198, 0.21300554
      %v2366 = vmul.f32 %v199, 0.21300554
      %v2367 = vmul.f32 %v200, 0.21300554
      %v2368 = vmul.f32 %v201, 0.21300554
      %v2369 = vadd.f32 %v2329, %v2241
      %v2370 = vadd.f32 %v2330, %v2242
      %v2371 = vadd.f32 %v2331, %v2243
      %v2372 = vadd.f32 %v2332, %v2244
      %v2373 = vadd.f32 %v2333, %v2245
      %v2374 = vadd.f32 %v2334, %v2246
      %v2375 = vadd.f32 %v2335, %v2247
      %v2376 = vadd.f32 %v2336, %v2248
      %v2377 = vadd.f32 %v2337, %v2249
      %v2378 = vadd.f32 %v2338, %v2250
      %v2379 = vadd.f32 %v2339, %v2251
      %v2380 = vadd.f32 %v2340, %v2252
      %v2381 = vadd.f32 %v2341, %v2253
      %v2382 = vadd.f32 %v2342, %v2254
      %v2383 = vadd.f32 %v2343, %v2255
      %v2384 = vadd.f32 %v2344, %v2256
      %v2385 = vadd.f32 %v2345, %v2257
      %v2386 = vadd.f32 %v2346, %v2258
      %v2387 = vadd.f32 %v2347, %v2259
      %v2388 = vadd.f32 %v2348, %v2260
      %v2389 = vadd.f32 %v2349, %v2261
      %v2390 = vadd.f32 %v2350, %v2262
      %v2391 = vadd.f32 %v2351, %v2263
      %v2392 = vadd.f32 %v2352, %v2264
      %v2393 = vadd.f32 %v2353, %v2361
      %v2394 = vadd.f32 %v2354, %v2362
      %v2395 = vadd.f32 %v2355, %v2363
      %v2396 = vadd.f32 %v2356, %v2364
      %v2397 = vadd.f32 %v2357, %v2365
      %v2398 = vadd.f32 %v2358, %v2366
      %v2399 = vadd.f32 %v2359, %v2367
      %v2400 = vadd.f32 %v2360, %v2368
      %v2401 = vmul.f32 %v190, 0.10936069
      %v2402 = vmul.f32 %v191, 0.10936069
      %v2403 = vmul.f32 %v192, 0.10936069
      %v2404 = vmul.f32 %v193, 0.10936069
      %v2405 = vmul.f32 %v194, 0.10936069
      %v2406 = vmul.f32 %v195, 0.10936069
      %v2407 = vmul.f32 %v196, 0.10936069
      %v2408 = vmul.f32 %v197, 0.10936069
      %v2409 = vmul.f32 %v198, 0.10936069
      %v2410 = vmul.f32 %v199, 0.10936069
      %v2411 = vmul.f32 %v200, 0.10936069
      %v2412 = vmul.f32 %v201, 0.10936069
      %v2413 = vmul.f32 %v202, 0.10936069
      %v2414 = vmul.f32 %v203, 0.10936069
      %v2415 = vmul.f32 %v204, 0.10936069
      %v2416 = vmul.f32 %v205, 0.10936069
      %v2417 = vadd.f32 %v2369, %v2185
      %v2418 = vadd.f32 %v2370, %v2186
      %v2419 = vadd.f32 %v2371, %v2187
      %v2420 = vadd.f32 %v2372, %v2188
      %v2421 = vadd.f32 %v2373, %v2189
      %v2422 = vadd.f32 %v2374, %v2190
      %v2423 = vadd.f32 %v2375, %v2191
      %v2424 = vadd.f32 %v2376, %v2192
      %v2425 = vadd.f32 %v2377, %v2193
      %v2426 = vadd.f32 %v2378, %v2194
      %v2427 = vadd.f32 %v2379, %v2195
      %v2428 = vadd.f32 %v2380, %v2196
      %v2429 = vadd.f32 %v2381, %v2197
      %v2430 = vadd.f32 %v2382, %v2198
      %v2431 = vadd.f32 %v2383, %v2199
      %v2432 = vadd.f32 %v2384, %v2200
      %v2433 = vadd.f32 %v2385, %v2401
      %v2434 = vadd.f32 %v2386, %v2402
      %v2435 = vadd.f32 %v2387, %v2403
      %v2436 = vadd.f32 %v2388, %v2404
      %v2437 = vadd.f32 %v2389, %v2405
      %v2438 = vadd.f32 %v2390, %v2406
      %v2439 = vadd.f32 %v2391, %v2407
      %v2440 = vadd.f32 %v2392, %v2408
      %v2441 = vadd.f32 %v2393, %v2409
      %v2442 = vadd.f32 %v2394, %v2410
      %v2443 = vadd.f32 %v2395, %v2411
      %v2444 = vadd.f32 %v2396, %v2412
      %v2445 = vadd.f32 %v2397, %v2413
      %v2446 = vadd.f32 %v2398, %v2414
      %v2447 = vadd.f32 %v2399, %v2415
      %v2448 = vadd.f32 %v2400, %v2416
      %v2449 = vmul.f32 %v186, 0.036000773
      %v2450 = vmul.f32 %v187, 0.036000773
      %v2451 = vmul.f32 %v188, 0.036000773
      %v2452 = vmul.f32 %v189, 0.036000773
      %v2453 = vmul.f32 %v190, 0.036000773
      %v2454 = vmul.f32 %v191, 0.036000773
      %v2455 = vmul.f32 %v192, 0.036000773
      %v2456 = vmul.f32 %v193, 0.036000773
      %v2457 = vmul.f32 %v194, 0.036000773
      %v2458 = vmul.f32 %v195, 0.036000773
      %v2459 = vmul.f32 %v196, 0.036000773
      %v2460 = vmul.f32 %v197, 0.036000773
      %v2461 = vmul.f32 %v198, 0.036000773
      %v2462 = vmul.f32 %v199, 0.036000773
      %v2463 = vmul.f32 %v200, 0.036000773
      %v2464 = vmul.f32 %v201, 0.036000773
      %v2465 = vmul.f32 %v202, 0.036000773
      %v2466 = vmul.f32 %v203, 0.036000773
      %v2467 = vmul.f32 %v204, 0.036000773
      %v2468 = vmul.f32 %v205, 0.036000773
      %v2469 = vmul.f32 %v206, 0.036000773
      %v2470 = vmul.f32 %v207, 0.036000773
      %v2471 = vmul.f32 %v208, 0.036000773
      %v2472 = vmul.f32 %v209, 0.036000773
      %v2473 = vadd.f32 %v2417, %v2129
      %v2474 = vadd.f32 %v2418, %v2130
      %v2475 = vadd.f32 %v2419, %v2131
      %v2476 = vadd.f32 %v2420, %v2132
      %v2477 = vadd.f32 %v2421, %v2133
      %v2478 = vadd.f32 %v2422, %v2134
      %v2479 = vadd.f32 %v2423, %v2135
      %v2480 = vadd.f32 %v2424, %v2136
      %v2481 = vadd.f32 %v2425, %v2449
      %v2482 = vadd.f32 %v2426, %v2450
      %v2483 = vadd.f32 %v2427, %v2451
      %v2484 = vadd.f32 %v2428, %v2452
      %v2485 = vadd.f32 %v2429, %v2453
      %v2486 = vadd.f32 %v2430, %v2454
      %v2487 = vadd.f32 %v2431, %v2455
      %v2488 = vadd.f32 %v2432, %v2456
      %v2489 = vadd.f32 %v2433, %v2457
      %v2490 = vadd.f32 %v2434, %v2458
      %v2491 = vadd.f32 %v2435, %v2459
      %v2492 = vadd.f32 %v2436, %v2460
      %v2493 = vadd.f32 %v2437, %v2461
      %v2494 = vadd.f32 %v2438, %v2462
      %v2495 = vadd.f32 %v2439, %v2463
      %v2496 = vadd.f32 %v2440, %v2464
      %v2497 = vadd.f32 %v2441, %v2465
      %v2498 = vadd.f32 %v2442, %v2466
      %v2499 = vadd.f32 %v2443, %v2467
      %v2500 = vadd.f32 %v2444, %v2468
      %v2501 = vadd.f32 %v2445, %v2469
      %v2502 = vadd.f32 %v2446, %v2470
      %v2503 = vadd.f32 %v2447, %v2471
      %v2504 = vadd.f32 %v2448, %v2472
      %v2505 = vmul.f32 %v182, 0.007598758
      %v2506 = vmul.f32 %v183, 0.007598758
      %v2507 = vmul.f32 %v184, 0.007598758
      %v2508 = vmul.f32 %v185, 0.007598758
      %v2509 = vmul.f32 %v186, 0.007598758
      %v2510 = vmul.f32 %v187, 0.007598758
      %v2511 = vmul.f32 %v188, 0.007598758
      %v2512 = vmul.f32 %v189, 0.007598758
      %v2513 = vmul.f32 %v190, 0.007598758
      %v2514 = vmul.f32 %v191, 0.007598758
      %v2515 = vmul.f32 %v192, 0.007598758
      %v2516 = vmul.f32 %v193, 0.007598758
      %v2517 = vmul.f32 %v194, 0.007598758
      %v2518 = vmul.f32 %v195, 0.007598758
      %v2519 = vmul.f32 %v196, 0.007598758
      %v2520 = vmul.f32 %v197, 0.007598758
      %v2521 = vmul.f32 %v198, 0.007598758
      %v2522 = vmul.f32 %v199, 0.007598758
      %v2523 = vmul.f32 %v200, 0.007598758
      %v2524 = vmul.f32 %v201, 0.007598758
      %v2525 = vmul.f32 %v202, 0.007598758
      %v2526 = vmul.f32 %v203, 0.007598758
      %v2527 = vmul.f32 %v204, 0.007598758
      %v2528 = vmul.f32 %v205, 0.007598758
      %v2529 = vmul.f32 %v206, 0.007598758
      %v2530 = vmul.f32 %v207, 0.007598758
      %v2531 = vmul.f32 %v208, 0.007598758
      %v2532 = vmul.f32 %v209, 0.007598758
      %v2533 = vmul.f32 %v210, 0.007598758
      %v2534 = vmul.f32 %v211, 0.007598758
      %v2535 = vmul.f32 %v212, 0.007598758
      %v2536 = vmul.f32 %v213, 0.007598758
      %v2537 = vadd.f32 %v2473, %v2505
      %v2538 = vadd.f32 %v2474, %v2506
      %v2539 = vadd.f32 %v2475, %v2507
      %v2540 = vadd.f32 %v2476, %v2508
      %v2541 = vadd.f32 %v2477, %v2509
      %v2542 = vadd.f32 %v2478, %v2510
      %v2543 = vadd.f32 %v2479, %v2511
      %v2544 = vadd.f32 %v2480, %v2512
      %v2545 = vadd.f32 %v2481, %v2513
      %v2546 = vadd.f32 %v2482, %v2514
      %v2547 = vadd.f32 %v2483, %v2515
      %v2548 = vadd.f32 %v2484, %v2516
      %v2549 = vadd.f32 %v2485, %v2517
      %v2550 = vadd.f32 %v2486, %v2518
      %v2551 = vadd.f32 %v2487, %v2519
      %v2552 = vadd.f32 %v2488, %v2520
      %v2553 = vadd.f32 %v2489, %v2521
      %v2554 = vadd.f32 %v2490, %v2522
      %v2555 = vadd.f32 %v2491, %v2523
      %v2556 = vadd.f32 %v2492, %v2524
      %v2557 = vadd.f32 %v2493, %v2525
      %v2558 = vadd.f32 %v2494, %v2526
      %v2559 = vadd.f32 %v2495, %v2527
      %v2560 = vadd.f32 %v2496, %v2528
      %v2561 = vadd.f32 %v2497, %v2529
      %v2562 = vadd.f32 %v2498, %v2530
      %v2563 = vadd.f32 %v2499, %v2531
      %v2564 = vadd.f32 %v2500, %v2532
      %v2565 = vadd.f32 %v2501, %v2533
      %v2566 = vadd.f32 %v2502, %v2534
      %v2567 = vadd.f32 %v2503, %v2535
      %v2568 = vadd.f32 %v2504, %v2536
      %v2569 = vmul.f32 %v186, 0.0010283801
      %v2570 = vmul.f32 %v187, 0.0010283801
      %v2571 = vmul.f32 %v188, 0.0010283801
      %v2572 = vmul.f32 %v189, 0.0010283801
      %v2573 = vmul.f32 %v190, 0.0010283801
      %v2574 = vmul.f32 %v191, 0.0010283801
      %v2575 = vmul.f32 %v192, 0.0010283801
      %v2576 = vmul.f32 %v193, 0.0010283801
      %v2577 = vmul.f32 %v194, 0.0010283801
      %v2578 = vmul.f32 %v195, 0.0010283801
      %v2579 = vmul.f32 %v196, 0.0010283801
      %v2580 = vmul.f32 %v197, 0.0010283801
      %v2581 = vmul.f32 %v198, 0.0010283801
      %v2582 = vmul.f32 %v199, 0.0010283801
      %v2583 = vmul.f32 %v200, 0.0010283801
      %v2584 = vmul.f32 %v201, 0.0010283801
      %v2585 = vmul.f32 %v202, 0.0010283801
      %v2586 = vmul.f32 %v203, 0.0010283801
      %v2587 = vmul.f32 %v204, 0.0010283801
      %v2588 = vmul.f32 %v205, 0.0010283801
      %v2589 = vmul.f32 %v206, 0.0010283801
      %v2590 = vmul.f32 %v207, 0.0010283801
      %v2591 = vmul.f32 %v208, 0.0010283801
      %v2592 = vmul.f32 %v209, 0.0010283801
      %v2593 = vmul.f32 %v210, 0.0010283801
      %v2594 = vmul.f32 %v211, 0.0010283801
      %v2595 = vmul.f32 %v212, 0.0010283801
      %v2596 = vmul.f32 %v213, 0.0010283801
      %v2597 = vmul.f32 %v214, 0.0010283801
      %v2598 = vmul.f32 %v215, 0.0010283801
      %v2599 = vmul.f32 %v216, 0.0010283801
      %v2600 = vmul.f32 %v217, 0.0010283801
      %v2601 = vadd.f32 %v2537, %v2569
      %v2602 = vadd.f32 %v2538, %v2570
      %v2603 = vadd.f32 %v2539, %v2571
      %v2604 = vadd.f32 %v2540, %v2572
      %v2605 = vadd.f32 %v2541, %v2573
      %v2606 = vadd.f32 %v2542, %v2574
      %v2607 = vadd.f32 %v2543, %v2575
      %v2608 = vadd.f32 %v2544, %v2576
      %v2609 = vadd.f32 %v2545, %v2577
      %v2610 = vadd.f32 %v2546, %v2578
      %v2611 = vadd.f32 %v2547, %v2579
      %v2612 = vadd.f32 %v2548, %v2580
      %v2613 = vadd.f32 %v2549, %v2581
      %v2614 = vadd.f32 %v2550, %v2582
      %v2615 = vadd.f32 %v2551, %v2583
      %v2616 = vadd.f32 %v2552, %v2584
      %v2617 = vadd.f32 %v2553, %v2585
      %v2618 = vadd.f32 %v2554, %v2586
      %v2619 = vadd.f32 %v2555, %v2587
      %v2620 = vadd.f32 %v2556, %v2588
      %v2621 = vadd.f32 %v2557, %v2589
      %v2622 = vadd.f32 %v2558, %v2590
      %v2623 = vadd.f32 %v2559, %v2591
      %v2624 = vadd.f32 %v2560, %v2592
      %v2625 = vadd.f32 %v2561, %v2593
      %v2626 = vadd.f32 %v2562, %v2594
      %v2627 = vadd.f32 %v2563, %v2595
      %v2628 = vadd.f32 %v2564, %v2596
      %v2629 = vadd.f32 %v2565, %v2597
      %v2630 = vadd.f32 %v2566, %v2598
      %v2631 = vadd.f32 %v2567, %v2599
      %v2632 = vadd.f32 %v2568, %v2600
      %v2633 = vmul.f32 %v2601, 0.0010283801
      %v2634 = vmul.f32 %v2602, 0.0010283801
      %v2635 = vmul.f32 %v2605, 0.0010283801
      %v2636 = vmul.f32 %v2606, 0.0010283801
      %v2637 = vmul.f32 %v2609, 0.0010283801
      %v2638 = vmul.f32 %v2610, 0.0010283801
      %v2639 = vmul.f32 %v2613, 0.0010283801
      %v2640 = vmul.f32 %v2614, 0.0010283801
      %v2641 = vmul.f32 %v2617, 0.0010283801
      %v2642 = vmul.f32 %v2618, 0.0010283801
      %v2643 = vmul.f32 %v2621, 0.0010283801
      %v2644 = vmul.f32 %v2622, 0.0010283801
      %v2645 = vmul.f32 %v2625, 0.0010283801
      %v2646 = vmul.f32 %v2626, 0.0010283801
      %v2647 = vmul.f32 %v2629, 0.0010283801
      %v2648 = vmul.f32 %v2630, 0.0010283801
      %v2649 = vmul.f32 %v2601, 0.007598758
      %v2650 = vmul.f32 %v2602, 0.007598758
      %v2651 = vmul.f32 %v2603, 0.007598758
      %v2652 = vmul.f32 %v2605, 0.007598758
      %v2653 = vmul.f32 %v2606, 0.007598758
      %v2654 = vmul.f32 %v2607, 0.007598758
      %v2655 = vmul.f32 %v2609, 0.007598758
      %v2656 = vmul.f32 %v2610, 0.007598758
      %v2657 = vmul.f32 %v2611, 0.007598758
      %v2658 = vmul.f32 %v2613, 0.007598758
      %v2659 = vmul.f32 %v2614, 0.007598758
      %v2660 = vmul.f32 %v2615, 0.007598758
      %v2661 = vmul.f32 %v2617, 0.007598758
      %v2662 = vmul.f32 %v2618, 0.007598758
      %v2663 = vmul.f32 %v2619, 0.007598758
      %v2664 = vmul.f32 %v2621, 0.007598758
      %v2665 = vmul.f32 %v2622, 0.007598758
      %v2666 = vmul.f32 %v2623, 0.007598758
      %v2667 = vmul.f32 %v2625, 0.007598758
      %v2668 = vmul.f32 %v2626, 0.007598758
      %v2669 = vmul.f32 %v2627, 0.007598758
      %v2670 = vmul.f32 %v2629, 0.007598758
      %v2671 = vmul.f32 %v2630, 0.007598758
      %v2672 = vmul.f32 %v2631, 0.007598758
      %v2697 = vrot.slane %v2649, 1
      %v2698 = vrot.slane %v2650, 1
      %v2699 = vsel %vm1122, %v2697, %v2698
      %v2700 = vrot.slane %v2651, 1
      %v2701 = vsel %vm1122, %v2698, %v2700
      %v2702 = vrot.slane %v2652, 1
      %v2703 = vrot.slane %v2653, 1
      %v2704 = vsel %vm1122, %v2702, %v2703
      %v2705 = vrot.slane %v2654, 1
      %v2706 = vsel %vm1122, %v2703, %v2705
      %v2707 = vrot.slane %v2655, 1
      %v2708 = vrot.slane %v2656, 1
      %v2709 = vsel %vm1122, %v2707, %v2708
      %v2710 = vrot.slane %v2657, 1
      %v2711 = vsel %vm1122, %v2708, %v2710
      %v2712 = vrot.slane %v2658, 1
      %v2713 = vrot.slane %v2659, 1
      %v2714 = vsel %vm1122, %v2712, %v2713
      %v2715 = vrot.slane %v2660, 1
      %v2716 = vsel %vm1122, %v2713, %v2715
      %v2717 = vrot.slane %v2661, 1
      %v2718 = vrot.slane %v2662, 1
      %v2719 = vsel %vm1122, %v2717, %v2718
      %v2720 = vrot.slane %v2663, 1
      %v2721 = vsel %vm1122, %v2718, %v2720
      %v2722 = vrot.slane %v2664, 1
      %v2723 = vrot.slane %v2665, 1
      %v2724 = vsel %vm1122, %v2722, %v2723
      %v2725 = vrot.slane %v2666, 1
      %v2726 = vsel %vm1122, %v2723, %v2725
      %v2727 = vrot.slane %v2667, 1
      %v2728 = vrot.slane %v2668, 1
      %v2729 = vsel %vm1122, %v2727, %v2728
      %v2730 = vrot.slane %v2669, 1
      %v2731 = vsel %vm1122, %v2728, %v2730
      %v2732 = vrot.slane %v2670, 1
      %v2733 = vrot.slane %v2671, 1
      %v2734 = vsel %vm1122, %v2732, %v2733
      %v2735 = vrot.slane %v2672, 1
      %v2736 = vsel %vm1122, %v2733, %v2735
      %v2753 = vadd.f32 %v2633, %v2699
      %v2754 = vadd.f32 %v2634, %v2701
      %v2755 = vadd.f32 %v2635, %v2704
      %v2756 = vadd.f32 %v2636, %v2706
      %v2757 = vadd.f32 %v2637, %v2709
      %v2758 = vadd.f32 %v2638, %v2711
      %v2759 = vadd.f32 %v2639, %v2714
      %v2760 = vadd.f32 %v2640, %v2716
      %v2761 = vadd.f32 %v2641, %v2719
      %v2762 = vadd.f32 %v2642, %v2721
      %v2763 = vadd.f32 %v2643, %v2724
      %v2764 = vadd.f32 %v2644, %v2726
      %v2765 = vadd.f32 %v2645, %v2729
      %v2766 = vadd.f32 %v2646, %v2731
      %v2767 = vadd.f32 %v2647, %v2734
      %v2768 = vadd.f32 %v2648, %v2736
      %v2769 = vmul.f32 %v2601, 0.036000773
      %v2770 = vmul.f32 %v2602, 0.036000773
      %v2771 = vmul.f32 %v2603, 0.036000773
      %v2772 = vmul.f32 %v2605, 0.036000773
      %v2773 = vmul.f32 %v2606, 0.036000773
      %v2774 = vmul.f32 %v2607, 0.036000773
      %v2775 = vmul.f32 %v2609, 0.036000773
      %v2776 = vmul.f32 %v2610, 0.036000773
      %v2777 = vmul.f32 %v2611, 0.036000773
      %v2778 = vmul.f32 %v2613, 0.036000773
      %v2779 = vmul.f32 %v2614, 0.036000773
      %v2780 = vmul.f32 %v2615, 0.036000773
      %v2781 = vmul.f32 %v2617, 0.036000773
      %v2782 = vmul.f32 %v2618, 0.036000773
      %v2783 = vmul.f32 %v2619, 0.036000773
      %v2784 = vmul.f32 %v2621, 0.036000773
      %v2785 = vmul.f32 %v2622, 0.036000773
      %v2786 = vmul.f32 %v2623, 0.036000773
      %v2787 = vmul.f32 %v2625, 0.036000773
      %v2788 = vmul.f32 %v2626, 0.036000773
      %v2789 = vmul.f32 %v2627, 0.036000773
      %v2790 = vmul.f32 %v2629, 0.036000773
      %v2791 = vmul.f32 %v2630, 0.036000773
      %v2792 = vmul.f32 %v2631, 0.036000773
      %v2817 = vrot.slane %v2769, 2
      %v2818 = vrot.slane %v2770, 2
      %v2819 = vsel %vm1243, %v2817, %v2818
      %v2820 = vrot.slane %v2771, 2
      %v2821 = vsel %vm1243, %v2818, %v2820
      %v2822 = vrot.slane %v2772, 2
      %v2823 = vrot.slane %v2773, 2
      %v2824 = vsel %vm1243, %v2822, %v2823
      %v2825 = vrot.slane %v2774, 2
      %v2826 = vsel %vm1243, %v2823, %v2825
      %v2827 = vrot.slane %v2775, 2
      %v2828 = vrot.slane %v2776, 2
      %v2829 = vsel %vm1243, %v2827, %v2828
      %v2830 = vrot.slane %v2777, 2
      %v2831 = vsel %vm1243, %v2828, %v2830
      %v2832 = vrot.slane %v2778, 2
      %v2833 = vrot.slane %v2779, 2
      %v2834 = vsel %vm1243, %v2832, %v2833
      %v2835 = vrot.slane %v2780, 2
      %v2836 = vsel %vm1243, %v2833, %v2835
      %v2837 = vrot.slane %v2781, 2
      %v2838 = vrot.slane %v2782, 2
      %v2839 = vsel %vm1243, %v2837, %v2838
      %v2840 = vrot.slane %v2783, 2
      %v2841 = vsel %vm1243, %v2838, %v2840
      %v2842 = vrot.slane %v2784, 2
      %v2843 = vrot.slane %v2785, 2
      %v2844 = vsel %vm1243, %v2842, %v2843
      %v2845 = vrot.slane %v2786, 2
      %v2846 = vsel %vm1243, %v2843, %v2845
      %v2847 = vrot.slane %v2787, 2
      %v2848 = vrot.slane %v2788, 2
      %v2849 = vsel %vm1243, %v2847, %v2848
      %v2850 = vrot.slane %v2789, 2
      %v2851 = vsel %vm1243, %v2848, %v2850
      %v2852 = vrot.slane %v2790, 2
      %v2853 = vrot.slane %v2791, 2
      %v2854 = vsel %vm1243, %v2852, %v2853
      %v2855 = vrot.slane %v2792, 2
      %v2856 = vsel %vm1243, %v2853, %v2855
      %v2873 = vadd.f32 %v2753, %v2819
      %v2874 = vadd.f32 %v2754, %v2821
      %v2875 = vadd.f32 %v2755, %v2824
      %v2876 = vadd.f32 %v2756, %v2826
      %v2877 = vadd.f32 %v2757, %v2829
      %v2878 = vadd.f32 %v2758, %v2831
      %v2879 = vadd.f32 %v2759, %v2834
      %v2880 = vadd.f32 %v2760, %v2836
      %v2881 = vadd.f32 %v2761, %v2839
      %v2882 = vadd.f32 %v2762, %v2841
      %v2883 = vadd.f32 %v2763, %v2844
      %v2884 = vadd.f32 %v2764, %v2846
      %v2885 = vadd.f32 %v2765, %v2849
      %v2886 = vadd.f32 %v2766, %v2851
      %v2887 = vadd.f32 %v2767, %v2854
      %v2888 = vadd.f32 %v2768, %v2856
      %v2889 = vmul.f32 %v2601, 0.10936069
      %v2890 = vmul.f32 %v2602, 0.10936069
      %v2891 = vmul.f32 %v2603, 0.10936069
      %v2892 = vmul.f32 %v2605, 0.10936069
      %v2893 = vmul.f32 %v2606, 0.10936069
      %v2894 = vmul.f32 %v2607, 0.10936069
      %v2895 = vmul.f32 %v2609, 0.10936069
      %v2896 = vmul.f32 %v2610, 0.10936069
      %v2897 = vmul.f32 %v2611, 0.10936069
      %v2898 = vmul.f32 %v2613, 0.10936069
      %v2899 = vmul.f32 %v2614, 0.10936069
      %v2900 = vmul.f32 %v2615, 0.10936069
      %v2901 = vmul.f32 %v2617, 0.10936069
      %v2902 = vmul.f32 %v2618, 0.10936069
      %v2903 = vmul.f32 %v2619, 0.10936069
      %v2904 = vmul.f32 %v2621, 0.10936069
      %v2905 = vmul.f32 %v2622, 0.10936069
      %v2906 = vmul.f32 %v2623, 0.10936069
      %v2907 = vmul.f32 %v2625, 0.10936069
      %v2908 = vmul.f32 %v2626, 0.10936069
      %v2909 = vmul.f32 %v2627, 0.10936069
      %v2910 = vmul.f32 %v2629, 0.10936069
      %v2911 = vmul.f32 %v2630, 0.10936069
      %v2912 = vmul.f32 %v2631, 0.10936069
      %v2937 = vrot.slane %v2889, 3
      %v2938 = vrot.slane %v2890, 3
      %v2939 = vsel %vm1364, %v2937, %v2938
      %v2940 = vrot.slane %v2891, 3
      %v2941 = vsel %vm1364, %v2938, %v2940
      %v2942 = vrot.slane %v2892, 3
      %v2943 = vrot.slane %v2893, 3
      %v2944 = vsel %vm1364, %v2942, %v2943
      %v2945 = vrot.slane %v2894, 3
      %v2946 = vsel %vm1364, %v2943, %v2945
      %v2947 = vrot.slane %v2895, 3
      %v2948 = vrot.slane %v2896, 3
      %v2949 = vsel %vm1364, %v2947, %v2948
      %v2950 = vrot.slane %v2897, 3
      %v2951 = vsel %vm1364, %v2948, %v2950
      %v2952 = vrot.slane %v2898, 3
      %v2953 = vrot.slane %v2899, 3
      %v2954 = vsel %vm1364, %v2952, %v2953
      %v2955 = vrot.slane %v2900, 3
      %v2956 = vsel %vm1364, %v2953, %v2955
      %v2957 = vrot.slane %v2901, 3
      %v2958 = vrot.slane %v2902, 3
      %v2959 = vsel %vm1364, %v2957, %v2958
      %v2960 = vrot.slane %v2903, 3
      %v2961 = vsel %vm1364, %v2958, %v2960
      %v2962 = vrot.slane %v2904, 3
      %v2963 = vrot.slane %v2905, 3
      %v2964 = vsel %vm1364, %v2962, %v2963
      %v2965 = vrot.slane %v2906, 3
      %v2966 = vsel %vm1364, %v2963, %v2965
      %v2967 = vrot.slane %v2907, 3
      %v2968 = vrot.slane %v2908, 3
      %v2969 = vsel %vm1364, %v2967, %v2968
      %v2970 = vrot.slane %v2909, 3
      %v2971 = vsel %vm1364, %v2968, %v2970
      %v2972 = vrot.slane %v2910, 3
      %v2973 = vrot.slane %v2911, 3
      %v2974 = vsel %vm1364, %v2972, %v2973
      %v2975 = vrot.slane %v2912, 3
      %v2976 = vsel %vm1364, %v2973, %v2975
      %v2993 = vadd.f32 %v2873, %v2939
      %v2994 = vadd.f32 %v2874, %v2941
      %v2995 = vadd.f32 %v2875, %v2944
      %v2996 = vadd.f32 %v2876, %v2946
      %v2997 = vadd.f32 %v2877, %v2949
      %v2998 = vadd.f32 %v2878, %v2951
      %v2999 = vadd.f32 %v2879, %v2954
      %v3000 = vadd.f32 %v2880, %v2956
      %v3001 = vadd.f32 %v2881, %v2959
      %v3002 = vadd.f32 %v2882, %v2961
      %v3003 = vadd.f32 %v2883, %v2964
      %v3004 = vadd.f32 %v2884, %v2966
      %v3005 = vadd.f32 %v2885, %v2969
      %v3006 = vadd.f32 %v2886, %v2971
      %v3007 = vadd.f32 %v2887, %v2974
      %v3008 = vadd.f32 %v2888, %v2976
      %v3009 = vmul.f32 %v2601, 0.21300554
      %v3010 = vmul.f32 %v2602, 0.21300554
      %v3011 = vmul.f32 %v2603, 0.21300554
      %v3012 = vmul.f32 %v2605, 0.21300554
      %v3013 = vmul.f32 %v2606, 0.21300554
      %v3014 = vmul.f32 %v2607, 0.21300554
      %v3015 = vmul.f32 %v2609, 0.21300554
      %v3016 = vmul.f32 %v2610, 0.21300554
      %v3017 = vmul.f32 %v2611, 0.21300554
      %v3018 = vmul.f32 %v2613, 0.21300554
      %v3019 = vmul.f32 %v2614, 0.21300554
      %v3020 = vmul.f32 %v2615, 0.21300554
      %v3021 = vmul.f32 %v2617, 0.21300554
      %v3022 = vmul.f32 %v2618, 0.21300554
      %v3023 = vmul.f32 %v2619, 0.21300554
      %v3024 = vmul.f32 %v2621, 0.21300554
      %v3025 = vmul.f32 %v2622, 0.21300554
      %v3026 = vmul.f32 %v2623, 0.21300554
      %v3027 = vmul.f32 %v2625, 0.21300554
      %v3028 = vmul.f32 %v2626, 0.21300554
      %v3029 = vmul.f32 %v2627, 0.21300554
      %v3030 = vmul.f32 %v2629, 0.21300554
      %v3031 = vmul.f32 %v2630, 0.21300554
      %v3032 = vmul.f32 %v2631, 0.21300554
      %v3057 = vrot.slane %v3009, 4
      %v3058 = vrot.slane %v3010, 4
      %v3059 = vsel %vm1485, %v3057, %v3058
      %v3060 = vrot.slane %v3011, 4
      %v3061 = vsel %vm1485, %v3058, %v3060
      %v3062 = vrot.slane %v3012, 4
      %v3063 = vrot.slane %v3013, 4
      %v3064 = vsel %vm1485, %v3062, %v3063
      %v3065 = vrot.slane %v3014, 4
      %v3066 = vsel %vm1485, %v3063, %v3065
      %v3067 = vrot.slane %v3015, 4
      %v3068 = vrot.slane %v3016, 4
      %v3069 = vsel %vm1485, %v3067, %v3068
      %v3070 = vrot.slane %v3017, 4
      %v3071 = vsel %vm1485, %v3068, %v3070
      %v3072 = vrot.slane %v3018, 4
      %v3073 = vrot.slane %v3019, 4
      %v3074 = vsel %vm1485, %v3072, %v3073
      %v3075 = vrot.slane %v3020, 4
      %v3076 = vsel %vm1485, %v3073, %v3075
      %v3077 = vrot.slane %v3021, 4
      %v3078 = vrot.slane %v3022, 4
      %v3079 = vsel %vm1485, %v3077, %v3078
      %v3080 = vrot.slane %v3023, 4
      %v3081 = vsel %vm1485, %v3078, %v3080
      %v3082 = vrot.slane %v3024, 4
      %v3083 = vrot.slane %v3025, 4
      %v3084 = vsel %vm1485, %v3082, %v3083
      %v3085 = vrot.slane %v3026, 4
      %v3086 = vsel %vm1485, %v3083, %v3085
      %v3087 = vrot.slane %v3027, 4
      %v3088 = vrot.slane %v3028, 4
      %v3089 = vsel %vm1485, %v3087, %v3088
      %v3090 = vrot.slane %v3029, 4
      %v3091 = vsel %vm1485, %v3088, %v3090
      %v3092 = vrot.slane %v3030, 4
      %v3093 = vrot.slane %v3031, 4
      %v3094 = vsel %vm1485, %v3092, %v3093
      %v3095 = vrot.slane %v3032, 4
      %v3096 = vsel %vm1485, %v3093, %v3095
      %v3113 = vadd.f32 %v2993, %v3059
      %v3114 = vadd.f32 %v2994, %v3061
      %v3115 = vadd.f32 %v2995, %v3064
      %v3116 = vadd.f32 %v2996, %v3066
      %v3117 = vadd.f32 %v2997, %v3069
      %v3118 = vadd.f32 %v2998, %v3071
      %v3119 = vadd.f32 %v2999, %v3074
      %v3120 = vadd.f32 %v3000, %v3076
      %v3121 = vadd.f32 %v3001, %v3079
      %v3122 = vadd.f32 %v3002, %v3081
      %v3123 = vadd.f32 %v3003, %v3084
      %v3124 = vadd.f32 %v3004, %v3086
      %v3125 = vadd.f32 %v3005, %v3089
      %v3126 = vadd.f32 %v3006, %v3091
      %v3127 = vadd.f32 %v3007, %v3094
      %v3128 = vadd.f32 %v3008, %v3096
      %v3129 = vmul.f32 %v2601, 0.26601171
      %v3130 = vmul.f32 %v2602, 0.26601171
      %v3131 = vmul.f32 %v2603, 0.26601171
      %v3132 = vmul.f32 %v2605, 0.26601171
      %v3133 = vmul.f32 %v2606, 0.26601171
      %v3134 = vmul.f32 %v2607, 0.26601171
      %v3135 = vmul.f32 %v2609, 0.26601171
      %v3136 = vmul.f32 %v2610, 0.26601171
      %v3137 = vmul.f32 %v2611, 0.26601171
      %v3138 = vmul.f32 %v2613, 0.26601171
      %v3139 = vmul.f32 %v2614, 0.26601171
      %v3140 = vmul.f32 %v2615, 0.26601171
      %v3141 = vmul.f32 %v2617, 0.26601171
      %v3142 = vmul.f32 %v2618, 0.26601171
      %v3143 = vmul.f32 %v2619, 0.26601171
      %v3144 = vmul.f32 %v2621, 0.26601171
      %v3145 = vmul.f32 %v2622, 0.26601171
      %v3146 = vmul.f32 %v2623, 0.26601171
      %v3147 = vmul.f32 %v2625, 0.26601171
      %v3148 = vmul.f32 %v2626, 0.26601171
      %v3149 = vmul.f32 %v2627, 0.26601171
      %v3150 = vmul.f32 %v2629, 0.26601171
      %v3151 = vmul.f32 %v2630, 0.26601171
      %v3152 = vmul.f32 %v2631, 0.26601171
      %v3177 = vrot.slane %v3129, 5
      %v3178 = vrot.slane %v3130, 5
      %v3179 = vsel %vm1606, %v3177, %v3178
      %v3180 = vrot.slane %v3131, 5
      %v3181 = vsel %vm1606, %v3178, %v3180
      %v3182 = vrot.slane %v3132, 5
      %v3183 = vrot.slane %v3133, 5
      %v3184 = vsel %vm1606, %v3182, %v3183
      %v3185 = vrot.slane %v3134, 5
      %v3186 = vsel %vm1606, %v3183, %v3185
      %v3187 = vrot.slane %v3135, 5
      %v3188 = vrot.slane %v3136, 5
      %v3189 = vsel %vm1606, %v3187, %v3188
      %v3190 = vrot.slane %v3137, 5
      %v3191 = vsel %vm1606, %v3188, %v3190
      %v3192 = vrot.slane %v3138, 5
      %v3193 = vrot.slane %v3139, 5
      %v3194 = vsel %vm1606, %v3192, %v3193
      %v3195 = vrot.slane %v3140, 5
      %v3196 = vsel %vm1606, %v3193, %v3195
      %v3197 = vrot.slane %v3141, 5
      %v3198 = vrot.slane %v3142, 5
      %v3199 = vsel %vm1606, %v3197, %v3198
      %v3200 = vrot.slane %v3143, 5
      %v3201 = vsel %vm1606, %v3198, %v3200
      %v3202 = vrot.slane %v3144, 5
      %v3203 = vrot.slane %v3145, 5
      %v3204 = vsel %vm1606, %v3202, %v3203
      %v3205 = vrot.slane %v3146, 5
      %v3206 = vsel %vm1606, %v3203, %v3205
      %v3207 = vrot.slane %v3147, 5
      %v3208 = vrot.slane %v3148, 5
      %v3209 = vsel %vm1606, %v3207, %v3208
      %v3210 = vrot.slane %v3149, 5
      %v3211 = vsel %vm1606, %v3208, %v3210
      %v3212 = vrot.slane %v3150, 5
      %v3213 = vrot.slane %v3151, 5
      %v3214 = vsel %vm1606, %v3212, %v3213
      %v3215 = vrot.slane %v3152, 5
      %v3216 = vsel %vm1606, %v3213, %v3215
      %v3233 = vadd.f32 %v3113, %v3179
      %v3234 = vadd.f32 %v3114, %v3181
      %v3235 = vadd.f32 %v3115, %v3184
      %v3236 = vadd.f32 %v3116, %v3186
      %v3237 = vadd.f32 %v3117, %v3189
      %v3238 = vadd.f32 %v3118, %v3191
      %v3239 = vadd.f32 %v3119, %v3194
      %v3240 = vadd.f32 %v3120, %v3196
      %v3241 = vadd.f32 %v3121, %v3199
      %v3242 = vadd.f32 %v3122, %v3201
      %v3243 = vadd.f32 %v3123, %v3204
      %v3244 = vadd.f32 %v3124, %v3206
      %v3245 = vadd.f32 %v3125, %v3209
      %v3246 = vadd.f32 %v3126, %v3211
      %v3247 = vadd.f32 %v3127, %v3214
      %v3248 = vadd.f32 %v3128, %v3216
      %v3249 = vrot.slane %v3009, 6
      %v3250 = vrot.slane %v3010, 6
      %v3251 = vsel %vm1679, %v3249, %v3250
      %v3252 = vrot.slane %v3011, 6
      %v3253 = vsel %vm1679, %v3250, %v3252
      %v3254 = vrot.slane %v3012, 6
      %v3255 = vrot.slane %v3013, 6
      %v3256 = vsel %vm1679, %v3254, %v3255
      %v3257 = vrot.slane %v3014, 6
      %v3258 = vsel %vm1679, %v3255, %v3257
      %v3259 = vrot.slane %v3015, 6
      %v3260 = vrot.slane %v3016, 6
      %v3261 = vsel %vm1679, %v3259, %v3260
      %v3262 = vrot.slane %v3017, 6
      %v3263 = vsel %vm1679, %v3260, %v3262
      %v3264 = vrot.slane %v3018, 6
      %v3265 = vrot.slane %v3019, 6
      %v3266 = vsel %vm1679, %v3264, %v3265
      %v3267 = vrot.slane %v3020, 6
      %v3268 = vsel %vm1679, %v3265, %v3267
      %v3269 = vrot.slane %v3021, 6
      %v3270 = vrot.slane %v3022, 6
      %v3271 = vsel %vm1679, %v3269, %v3270
      %v3272 = vrot.slane %v3023, 6
      %v3273 = vsel %vm1679, %v3270, %v3272
      %v3274 = vrot.slane %v3024, 6
      %v3275 = vrot.slane %v3025, 6
      %v3276 = vsel %vm1679, %v3274, %v3275
      %v3277 = vrot.slane %v3026, 6
      %v3278 = vsel %vm1679, %v3275, %v3277
      %v3279 = vrot.slane %v3027, 6
      %v3280 = vrot.slane %v3028, 6
      %v3281 = vsel %vm1679, %v3279, %v3280
      %v3282 = vrot.slane %v3029, 6
      %v3283 = vsel %vm1679, %v3280, %v3282
      %v3284 = vrot.slane %v3030, 6
      %v3285 = vrot.slane %v3031, 6
      %v3286 = vsel %vm1679, %v3284, %v3285
      %v3287 = vrot.slane %v3032, 6
      %v3288 = vsel %vm1679, %v3285, %v3287
      %v3305 = vadd.f32 %v3233, %v3251
      %v3306 = vadd.f32 %v3234, %v3253
      %v3307 = vadd.f32 %v3235, %v3256
      %v3308 = vadd.f32 %v3236, %v3258
      %v3309 = vadd.f32 %v3237, %v3261
      %v3310 = vadd.f32 %v3238, %v3263
      %v3311 = vadd.f32 %v3239, %v3266
      %v3312 = vadd.f32 %v3240, %v3268
      %v3313 = vadd.f32 %v3241, %v3271
      %v3314 = vadd.f32 %v3242, %v3273
      %v3315 = vadd.f32 %v3243, %v3276
      %v3316 = vadd.f32 %v3244, %v3278
      %v3317 = vadd.f32 %v3245, %v3281
      %v3318 = vadd.f32 %v3246, %v3283
      %v3319 = vadd.f32 %v3247, %v3286
      %v3320 = vadd.f32 %v3248, %v3288
      %v3321 = vrot.slane %v2889, 7
      %v3322 = vrot.slane %v2890, 7
      %v3323 = vsel %vm1752, %v3321, %v3322
      %v3324 = vrot.slane %v2891, 7
      %v3325 = vsel %vm1752, %v3322, %v3324
      %v3326 = vrot.slane %v2892, 7
      %v3327 = vrot.slane %v2893, 7
      %v3328 = vsel %vm1752, %v3326, %v3327
      %v3329 = vrot.slane %v2894, 7
      %v3330 = vsel %vm1752, %v3327, %v3329
      %v3331 = vrot.slane %v2895, 7
      %v3332 = vrot.slane %v2896, 7
      %v3333 = vsel %vm1752, %v3331, %v3332
      %v3334 = vrot.slane %v2897, 7
      %v3335 = vsel %vm1752, %v3332, %v3334
      %v3336 = vrot.slane %v2898, 7
      %v3337 = vrot.slane %v2899, 7
      %v3338 = vsel %vm1752, %v3336, %v3337
      %v3339 = vrot.slane %v2900, 7
      %v3340 = vsel %vm1752, %v3337, %v3339
      %v3341 = vrot.slane %v2901, 7
      %v3342 = vrot.slane %v2902, 7
      %v3343 = vsel %vm1752, %v3341, %v3342
      %v3344 = vrot.slane %v2903, 7
      %v3345 = vsel %vm1752, %v3342, %v3344
      %v3346 = vrot.slane %v2904, 7
      %v3347 = vrot.slane %v2905, 7
      %v3348 = vsel %vm1752, %v3346, %v3347
      %v3349 = vrot.slane %v2906, 7
      %v3350 = vsel %vm1752, %v3347, %v3349
      %v3351 = vrot.slane %v2907, 7
      %v3352 = vrot.slane %v2908, 7
      %v3353 = vsel %vm1752, %v3351, %v3352
      %v3354 = vrot.slane %v2909, 7
      %v3355 = vsel %vm1752, %v3352, %v3354
      %v3356 = vrot.slane %v2910, 7
      %v3357 = vrot.slane %v2911, 7
      %v3358 = vsel %vm1752, %v3356, %v3357
      %v3359 = vrot.slane %v2912, 7
      %v3360 = vsel %vm1752, %v3357, %v3359
      %v3377 = vadd.f32 %v3305, %v3323
      %v3378 = vadd.f32 %v3306, %v3325
      %v3379 = vadd.f32 %v3307, %v3328
      %v3380 = vadd.f32 %v3308, %v3330
      %v3381 = vadd.f32 %v3309, %v3333
      %v3382 = vadd.f32 %v3310, %v3335
      %v3383 = vadd.f32 %v3311, %v3338
      %v3384 = vadd.f32 %v3312, %v3340
      %v3385 = vadd.f32 %v3313, %v3343
      %v3386 = vadd.f32 %v3314, %v3345
      %v3387 = vadd.f32 %v3315, %v3348
      %v3388 = vadd.f32 %v3316, %v3350
      %v3389 = vadd.f32 %v3317, %v3353
      %v3390 = vadd.f32 %v3318, %v3355
      %v3391 = vadd.f32 %v3319, %v3358
      %v3392 = vadd.f32 %v3320, %v3360
      %v3393 = vadd.f32 %v3377, %v2770
      %v3394 = vadd.f32 %v3378, %v2771
      %v3395 = vadd.f32 %v3379, %v2773
      %v3396 = vadd.f32 %v3380, %v2774
      %v3397 = vadd.f32 %v3381, %v2776
      %v3398 = vadd.f32 %v3382, %v2777
      %v3399 = vadd.f32 %v3383, %v2779
      %v3400 = vadd.f32 %v3384, %v2780
      %v3401 = vadd.f32 %v3385, %v2782
      %v3402 = vadd.f32 %v3386, %v2783
      %v3403 = vadd.f32 %v3387, %v2785
      %v3404 = vadd.f32 %v3388, %v2786
      %v3405 = vadd.f32 %v3389, %v2788
      %v3406 = vadd.f32 %v3390, %v2789
      %v3407 = vadd.f32 %v3391, %v2791
      %v3408 = vadd.f32 %v3392, %v2792
      %v3409 = vmul.f32 %v2604, 0.007598758
      %v3410 = vmul.f32 %v2608, 0.007598758
      %v3411 = vmul.f32 %v2612, 0.007598758
      %v3412 = vmul.f32 %v2616, 0.007598758
      %v3413 = vmul.f32 %v2620, 0.007598758
      %v3414 = vmul.f32 %v2624, 0.007598758
      %v3415 = vmul.f32 %v2628, 0.007598758
      %v3416 = vmul.f32 %v2632, 0.007598758
      %v3425 = vrot.slane %v3409, 1
      %v3426 = vsel %vm1122, %v2700, %v3425
      %v3427 = vrot.slane %v3410, 1
      %v3428 = vsel %vm1122, %v2705, %v3427
      %v3429 = vrot.slane %v3411, 1
      %v3430 = vsel %vm1122, %v2710, %v3429
      %v3431 = vrot.slane %v3412, 1
      %v3432 = vsel %vm1122, %v2715, %v3431
      %v3433 = vrot.slane %v3413, 1
      %v3434 = vsel %vm1122, %v2720, %v3433
      %v3435 = vrot.slane %v3414, 1
      %v3436 = vsel %vm1122, %v2725, %v3435
      %v3437 = vrot.slane %v3415, 1
      %v3438 = vsel %vm1122, %v2730, %v3437
      %v3439 = vrot.slane %v3416, 1
      %v3440 = vsel %vm1122, %v2735, %v3439
      %v3449 = vadd.f32 %v3393, %v2701
      %v3450 = vadd.f32 %v3394, %v3426
      %v3451 = vadd.f32 %v3395, %v2706
      %v3452 = vadd.f32 %v3396, %v3428
      %v3453 = vadd.f32 %v3397, %v2711
      %v3454 = vadd.f32 %v3398, %v3430
      %v3455 = vadd.f32 %v3399, %v2716
      %v3456 = vadd.f32 %v3400, %v3432
      %v3457 = vadd.f32 %v3401, %v2721
      %v3458 = vadd.f32 %v3402, %v3434
      %v3459 = vadd.f32 %v3403, %v2726
      %v3460 = vadd.f32 %v3404, %v3436
      %v3461 = vadd.f32 %v3405, %v2731
      %v3462 = vadd.f32 %v3406, %v3438
      %v3463 = vadd.f32 %v3407, %v2736
      %v3464 = vadd.f32 %v3408, %v3440
      %v3465 = vmul.f32 %v2603, 0.0010283801
      %v3466 = vmul.f32 %v2604, 0.0010283801
      %v3467 = vmul.f32 %v2607, 0.0010283801
      %v3468 = vmul.f32 %v2608, 0.0010283801
      %v3469 = vmul.f32 %v2611, 0.0010283801
      %v3470 = vmul.f32 %v2612, 0.0010283801
      %v3471 = vmul.f32 %v2615, 0.0010283801
      %v3472 = vmul.f32 %v2616, 0.0010283801
      %v3473 = vmul.f32 %v2619, 0.0010283801
      %v3474 = vmul.f32 %v2620, 0.0010283801
      %v3475 = vmul.f32 %v2623, 0.0010283801
      %v3476 = vmul.f32 %v2624, 0.0010283801
      %v3477 = vmul.f32 %v2627, 0.0010283801
      %v3478 = vmul.f32 %v2628, 0.0010283801
      %v3479 = vmul.f32 %v2631, 0.0010283801
      %v3480 = vmul.f32 %v2632, 0.0010283801
      %v3505 = vrot.slane %v2634, 2
      %v3506 = vrot.slane %v3465, 2
      %v3507 = vsel %vm1243, %v3505, %v3506
      %v3508 = vrot.slane %v3466, 2
      %v3509 = vsel %vm1243, %v3506, %v3508
      %v3510 = vrot.slane %v2636, 2
      %v3511 = vrot.slane %v3467, 2
      %v3512 = vsel %vm1243, %v3510, %v3511
      %v3513 = vrot.slane %v3468, 2
      %v3514 = vsel %vm1243, %v3511, %v3513
      %v3515 = vrot.slane %v2638, 2
      %v3516 = vrot.slane %v3469, 2
      %v3517 = vsel %vm1243, %v3515, %v3516
      %v3518 = vrot.slane %v3470, 2
      %v3519 = vsel %vm1243, %v3516, %v3518
      %v3520 = vrot.slane %v2640, 2
      %v3521 = vrot.slane %v3471, 2
      %v3522 = vsel %vm1243, %v3520, %v3521
      %v3523 = vrot.slane %v3472, 2
      %v3524 = vsel %vm1243, %v3521, %v3523
      %v3525 = vrot.slane %v2642, 2
      %v3526 = vrot.slane %v3473, 2
      %v3527 = vsel %vm1243, %v3525, %v3526
      %v3528 = vrot.slane %v3474, 2
      %v3529 = vsel %vm1243, %v3526, %v3528
      %v3530 = vrot.slane %v2644, 2
      %v3531 = vrot.slane %v3475, 2
      %v3532 = vsel %vm1243, %v3530, %v3531
      %v3533 = vrot.slane %v3476, 2
      %v3534 = vsel %vm1243, %v3531, %v3533
      %v3535 = vrot.slane %v2646, 2
      %v3536 = vrot.slane %v3477, 2
      %v3537 = vsel %vm1243, %v3535, %v3536
      %v3538 = vrot.slane %v3478, 2
      %v3539 = vsel %vm1243, %v3536, %v3538
      %v3540 = vrot.slane %v2648, 2
      %v3541 = vrot.slane %v3479, 2
      %v3542 = vsel %vm1243, %v3540, %v3541
      %v3543 = vrot.slane %v3480, 2
      %v3544 = vsel %vm1243, %v3541, %v3543
      %v3561 = vadd.f32 %v3449, %v3507
      %v3562 = vadd.f32 %v3450, %v3509
      %v3563 = vadd.f32 %v3451, %v3512
      %v3564 = vadd.f32 %v3452, %v3514
      %v3565 = vadd.f32 %v3453, %v3517
      %v3566 = vadd.f32 %v3454, %v3519
      %v3567 = vadd.f32 %v3455, %v3522
      %v3568 = vadd.f32 %v3456, %v3524
      %v3569 = vadd.f32 %v3457, %v3527
      %v3570 = vadd.f32 %v3458, %v3529
      %v3571 = vadd.f32 %v3459, %v3532
      %v3572 = vadd.f32 %v3460, %v3534
      %v3573 = vadd.f32 %v3461, %v3537
      %v3574 = vadd.f32 %v3462, %v3539
      %v3575 = vadd.f32 %v3463, %v3542
      %v3576 = vadd.f32 %v3464, %v3544
      %v3577 = vmul.f32 %v218, 0.0010283801
      %v3578 = vmul.f32 %v219, 0.0010283801
      %v3579 = vmul.f32 %v220, 0.0010283801
      %v3580 = vmul.f32 %v221, 0.0010283801
      %v3581 = vmul.f32 %v222, 0.0010283801
      %v3582 = vmul.f32 %v223, 0.0010283801
      %v3583 = vmul.f32 %v224, 0.0010283801
      %v3584 = vmul.f32 %v225, 0.0010283801
      %v3585 = vmul.f32 %v226, 0.0010283801
      %v3586 = vmul.f32 %v227, 0.0010283801
      %v3587 = vmul.f32 %v228, 0.0010283801
      %v3588 = vmul.f32 %v229, 0.0010283801
      %v3589 = vmul.f32 %v230, 0.0010283801
      %v3590 = vmul.f32 %v231, 0.0010283801
      %v3591 = vmul.f32 %v232, 0.0010283801
      %v3592 = vmul.f32 %v233, 0.0010283801
      %v3593 = vmul.f32 %v234, 0.0010283801
      %v3594 = vmul.f32 %v235, 0.0010283801
      %v3595 = vmul.f32 %v236, 0.0010283801
      %v3596 = vmul.f32 %v237, 0.0010283801
      %v3597 = vmul.f32 %v238, 0.0010283801
      %v3598 = vmul.f32 %v239, 0.0010283801
      %v3599 = vmul.f32 %v240, 0.0010283801
      %v3600 = vmul.f32 %v241, 0.0010283801
      %v3601 = vmul.f32 %v242, 0.0010283801
      %v3602 = vmul.f32 %v243, 0.0010283801
      %v3603 = vmul.f32 %v244, 0.0010283801
      %v3604 = vmul.f32 %v245, 0.0010283801
      %v3605 = vmul.f32 %v246, 0.0010283801
      %v3606 = vmul.f32 %v247, 0.0010283801
      %v3607 = vmul.f32 %v248, 0.0010283801
      %v3608 = vmul.f32 %v249, 0.0010283801
      %v3609 = vmul.f32 %v222, 0.007598758
      %v3610 = vmul.f32 %v223, 0.007598758
      %v3611 = vmul.f32 %v224, 0.007598758
      %v3612 = vmul.f32 %v225, 0.007598758
      %v3613 = vmul.f32 %v226, 0.007598758
      %v3614 = vmul.f32 %v227, 0.007598758
      %v3615 = vmul.f32 %v228, 0.007598758
      %v3616 = vmul.f32 %v229, 0.007598758
      %v3617 = vmul.f32 %v230, 0.007598758
      %v3618 = vmul.f32 %v231, 0.007598758
      %v3619 = vmul.f32 %v232, 0.007598758
      %v3620 = vmul.f32 %v233, 0.007598758
      %v3621 = vmul.f32 %v234, 0.007598758
      %v3622 = vmul.f32 %v235, 0.007598758
      %v3623 = vmul.f32 %v236, 0.007598758
      %v3624 = vmul.f32 %v237, 0.007598758
      %v3625 = vmul.f32 %v238, 0.007598758
      %v3626 = vmul.f32 %v239, 0.007598758
      %v3627 = vmul.f32 %v240, 0.007598758
      %v3628 = vmul.f32 %v241, 0.007598758
      %v3629 = vmul.f32 %v242, 0.007598758
      %v3630 = vmul.f32 %v243, 0.007598758
      %v3631 = vmul.f32 %v244, 0.007598758
      %v3632 = vmul.f32 %v245, 0.007598758
      %v3633 = vmul.f32 %v246, 0.007598758
      %v3634 = vmul.f32 %v247, 0.007598758
      %v3635 = vmul.f32 %v248, 0.007598758
      %v3636 = vmul.f32 %v249, 0.007598758
      %v3637 = vmul.f32 %v250, 0.007598758
      %v3638 = vmul.f32 %v251, 0.007598758
      %v3639 = vmul.f32 %v252, 0.007598758
      %v3640 = vmul.f32 %v253, 0.007598758
      %v3641 = vadd.f32 %v3577, %v3609
      %v3642 = vadd.f32 %v3578, %v3610
      %v3643 = vadd.f32 %v3579, %v3611
      %v3644 = vadd.f32 %v3580, %v3612
      %v3645 = vadd.f32 %v3581, %v3613
      %v3646 = vadd.f32 %v3582, %v3614
      %v3647 = vadd.f32 %v3583, %v3615
      %v3648 = vadd.f32 %v3584, %v3616
      %v3649 = vadd.f32 %v3585, %v3617
      %v3650 = vadd.f32 %v3586, %v3618
      %v3651 = vadd.f32 %v3587, %v3619
      %v3652 = vadd.f32 %v3588, %v3620
      %v3653 = vadd.f32 %v3589, %v3621
      %v3654 = vadd.f32 %v3590, %v3622
      %v3655 = vadd.f32 %v3591, %v3623
      %v3656 = vadd.f32 %v3592, %v3624
      %v3657 = vadd.f32 %v3593, %v3625
      %v3658 = vadd.f32 %v3594, %v3626
      %v3659 = vadd.f32 %v3595, %v3627
      %v3660 = vadd.f32 %v3596, %v3628
      %v3661 = vadd.f32 %v3597, %v3629
      %v3662 = vadd.f32 %v3598, %v3630
      %v3663 = vadd.f32 %v3599, %v3631
      %v3664 = vadd.f32 %v3600, %v3632
      %v3665 = vadd.f32 %v3601, %v3633
      %v3666 = vadd.f32 %v3602, %v3634
      %v3667 = vadd.f32 %v3603, %v3635
      %v3668 = vadd.f32 %v3604, %v3636
      %v3669 = vadd.f32 %v3605, %v3637
      %v3670 = vadd.f32 %v3606, %v3638
      %v3671 = vadd.f32 %v3607, %v3639
      %v3672 = vadd.f32 %v3608, %v3640
      %v3673 = vmul.f32 %v226, 0.036000773
      %v3674 = vmul.f32 %v227, 0.036000773
      %v3675 = vmul.f32 %v228, 0.036000773
      %v3676 = vmul.f32 %v229, 0.036000773
      %v3677 = vmul.f32 %v230, 0.036000773
      %v3678 = vmul.f32 %v231, 0.036000773
      %v3679 = vmul.f32 %v232, 0.036000773
      %v3680 = vmul.f32 %v233, 0.036000773
      %v3681 = vmul.f32 %v234, 0.036000773
      %v3682 = vmul.f32 %v235, 0.036000773
      %v3683 = vmul.f32 %v236, 0.036000773
      %v3684 = vmul.f32 %v237, 0.036000773
      %v3685 = vmul.f32 %v238, 0.036000773
      %v3686 = vmul.f32 %v239, 0.036000773
      %v3687 = vmul.f32 %v240, 0.036000773
      %v3688 = vmul.f32 %v241, 0.036000773
      %v3689 = vmul.f32 %v242, 0.036000773
      %v3690 = vmul.f32 %v243, 0.036000773
      %v3691 = vmul.f32 %v244, 0.036000773
      %v3692 = vmul.f32 %v245, 0.036000773
      %v3693 = vmul.f32 %v246, 0.036000773
      %v3694 = vmul.f32 %v247, 0.036000773
      %v3695 = vmul.f32 %v248, 0.036000773
      %v3696 = vmul.f32 %v249, 0.036000773
      %v3697 = vmul.f32 %v250, 0.036000773
      %v3698 = vmul.f32 %v251, 0.036000773
      %v3699 = vmul.f32 %v252, 0.036000773
      %v3700 = vmul.f32 %v253, 0.036000773
      %v3701 = vmul.f32 %v254, 0.036000773
      %v3702 = vmul.f32 %v255, 0.036000773
      %v3703 = vmul.f32 %v256, 0.036000773
      %v3704 = vmul.f32 %v257, 0.036000773
      %v3705 = vadd.f32 %v3641, %v3673
      %v3706 = vadd.f32 %v3642, %v3674
      %v3707 = vadd.f32 %v3643, %v3675
      %v3708 = vadd.f32 %v3644, %v3676
      %v3709 = vadd.f32 %v3645, %v3677
      %v3710 = vadd.f32 %v3646, %v3678
      %v3711 = vadd.f32 %v3647, %v3679
      %v3712 = vadd.f32 %v3648, %v3680
      %v3713 = vadd.f32 %v3649, %v3681
      %v3714 = vadd.f32 %v3650, %v3682
      %v3715 = vadd.f32 %v3651, %v3683
      %v3716 = vadd.f32 %v3652, %v3684
      %v3717 = vadd.f32 %v3653, %v3685
      %v3718 = vadd.f32 %v3654, %v3686
      %v3719 = vadd.f32 %v3655, %v3687
      %v3720 = vadd.f32 %v3656, %v3688
      %v3721 = vadd.f32 %v3657, %v3689
      %v3722 = vadd.f32 %v3658, %v3690
      %v3723 = vadd.f32 %v3659, %v3691
      %v3724 = vadd.f32 %v3660, %v3692
      %v3725 = vadd.f32 %v3661, %v3693
      %v3726 = vadd.f32 %v3662, %v3694
      %v3727 = vadd.f32 %v3663, %v3695
      %v3728 = vadd.f32 %v3664, %v3696
      %v3729 = vadd.f32 %v3665, %v3697
      %v3730 = vadd.f32 %v3666, %v3698
      %v3731 = vadd.f32 %v3667, %v3699
      %v3732 = vadd.f32 %v3668, %v3700
      %v3733 = vadd.f32 %v3669, %v3701
      %v3734 = vadd.f32 %v3670, %v3702
      %v3735 = vadd.f32 %v3671, %v3703
      %v3736 = vadd.f32 %v3672, %v3704
      %v3737 = vmul.f32 %v230, 0.10936069
      %v3738 = vmul.f32 %v231, 0.10936069
      %v3739 = vmul.f32 %v232, 0.10936069
      %v3740 = vmul.f32 %v233, 0.10936069
      %v3741 = vmul.f32 %v234, 0.10936069
      %v3742 = vmul.f32 %v235, 0.10936069
      %v3743 = vmul.f32 %v236, 0.10936069
      %v3744 = vmul.f32 %v237, 0.10936069
      %v3745 = vmul.f32 %v238, 0.10936069
      %v3746 = vmul.f32 %v239, 0.10936069
      %v3747 = vmul.f32 %v240, 0.10936069
      %v3748 = vmul.f32 %v241, 0.10936069
      %v3749 = vmul.f32 %v242, 0.10936069
      %v3750 = vmul.f32 %v243, 0.10936069
      %v3751 = vmul.f32 %v244, 0.10936069
      %v3752 = vmul.f32 %v245, 0.10936069
      %v3753 = vmul.f32 %v246, 0.10936069
      %v3754 = vmul.f32 %v247, 0.10936069
      %v3755 = vmul.f32 %v248, 0.10936069
      %v3756 = vmul.f32 %v249, 0.10936069
      %v3757 = vmul.f32 %v250, 0.10936069
      %v3758 = vmul.f32 %v251, 0.10936069
      %v3759 = vmul.f32 %v252, 0.10936069
      %v3760 = vmul.f32 %v253, 0.10936069
      %v3761 = vmul.f32 %v254, 0.10936069
      %v3762 = vmul.f32 %v255, 0.10936069
      %v3763 = vmul.f32 %v256, 0.10936069
      %v3764 = vmul.f32 %v257, 0.10936069
      %v3765 = vmul.f32 %v258, 0.10936069
      %v3766 = vmul.f32 %v259, 0.10936069
      %v3767 = vmul.f32 %v260, 0.10936069
      %v3768 = vmul.f32 %v261, 0.10936069
      %v3769 = vadd.f32 %v3705, %v3737
      %v3770 = vadd.f32 %v3706, %v3738
      %v3771 = vadd.f32 %v3707, %v3739
      %v3772 = vadd.f32 %v3708, %v3740
      %v3773 = vadd.f32 %v3709, %v3741
      %v3774 = vadd.f32 %v3710, %v3742
      %v3775 = vadd.f32 %v3711, %v3743
      %v3776 = vadd.f32 %v3712, %v3744
      %v3777 = vadd.f32 %v3713, %v3745
      %v3778 = vadd.f32 %v3714, %v3746
      %v3779 = vadd.f32 %v3715, %v3747
      %v3780 = vadd.f32 %v3716, %v3748
      %v3781 = vadd.f32 %v3717, %v3749
      %v3782 = vadd.f32 %v3718, %v3750
      %v3783 = vadd.f32 %v3719, %v3751
      %v3784 = vadd.f32 %v3720, %v3752
      %v3785 = vadd.f32 %v3721, %v3753
      %v3786 = vadd.f32 %v3722, %v3754
      %v3787 = vadd.f32 %v3723, %v3755
      %v3788 = vadd.f32 %v3724, %v3756
      %v3789 = vadd.f32 %v3725, %v3757
      %v3790 = vadd.f32 %v3726, %v3758
      %v3791 = vadd.f32 %v3727, %v3759
      %v3792 = vadd.f32 %v3728, %v3760
      %v3793 = vadd.f32 %v3729, %v3761
      %v3794 = vadd.f32 %v3730, %v3762
      %v3795 = vadd.f32 %v3731, %v3763
      %v3796 = vadd.f32 %v3732, %v3764
      %v3797 = vadd.f32 %v3733, %v3765
      %v3798 = vadd.f32 %v3734, %v3766
      %v3799 = vadd.f32 %v3735, %v3767
      %v3800 = vadd.f32 %v3736, %v3768
      %v3801 = vmul.f32 %v234, 0.21300554
      %v3802 = vmul.f32 %v235, 0.21300554
      %v3803 = vmul.f32 %v236, 0.21300554
      %v3804 = vmul.f32 %v237, 0.21300554
      %v3805 = vmul.f32 %v238, 0.21300554
      %v3806 = vmul.f32 %v239, 0.21300554
      %v3807 = vmul.f32 %v240, 0.21300554
      %v3808 = vmul.f32 %v241, 0.21300554
      %v3809 = vmul.f32 %v242, 0.21300554
      %v3810 = vmul.f32 %v243, 0.21300554
      %v3811 = vmul.f32 %v244, 0.21300554
      %v3812 = vmul.f32 %v245, 0.21300554
      %v3813 = vmul.f32 %v246, 0.21300554
      %v3814 = vmul.f32 %v247, 0.21300554
      %v3815 = vmul.f32 %v248, 0.21300554
      %v3816 = vmul.f32 %v249, 0.21300554
      %v3817 = vmul.f32 %v250, 0.21300554
      %v3818 = vmul.f32 %v251, 0.21300554
      %v3819 = vmul.f32 %v252, 0.21300554
      %v3820 = vmul.f32 %v253, 0.21300554
      %v3821 = vmul.f32 %v254, 0.21300554
      %v3822 = vmul.f32 %v255, 0.21300554
      %v3823 = vmul.f32 %v256, 0.21300554
      %v3824 = vmul.f32 %v257, 0.21300554
      %v3825 = vmul.f32 %v258, 0.21300554
      %v3826 = vmul.f32 %v259, 0.21300554
      %v3827 = vmul.f32 %v260, 0.21300554
      %v3828 = vmul.f32 %v261, 0.21300554
      %v3829 = vmul.f32 %v262, 0.21300554
      %v3830 = vmul.f32 %v263, 0.21300554
      %v3831 = vmul.f32 %v264, 0.21300554
      %v3832 = vmul.f32 %v265, 0.21300554
      %v3833 = vadd.f32 %v3769, %v3801
      %v3834 = vadd.f32 %v3770, %v3802
      %v3835 = vadd.f32 %v3771, %v3803
      %v3836 = vadd.f32 %v3772, %v3804
      %v3837 = vadd.f32 %v3773, %v3805
      %v3838 = vadd.f32 %v3774, %v3806
      %v3839 = vadd.f32 %v3775, %v3807
      %v3840 = vadd.f32 %v3776, %v3808
      %v3841 = vadd.f32 %v3777, %v3809
      %v3842 = vadd.f32 %v3778, %v3810
      %v3843 = vadd.f32 %v3779, %v3811
      %v3844 = vadd.f32 %v3780, %v3812
      %v3845 = vadd.f32 %v3781, %v3813
      %v3846 = vadd.f32 %v3782, %v3814
      %v3847 = vadd.f32 %v3783, %v3815
      %v3848 = vadd.f32 %v3784, %v3816
      %v3849 = vadd.f32 %v3785, %v3817
      %v3850 = vadd.f32 %v3786, %v3818
      %v3851 = vadd.f32 %v3787, %v3819
      %v3852 = vadd.f32 %v3788, %v3820
      %v3853 = vadd.f32 %v3789, %v3821
      %v3854 = vadd.f32 %v3790, %v3822
      %v3855 = vadd.f32 %v3791, %v3823
      %v3856 = vadd.f32 %v3792, %v3824
      %v3857 = vadd.f32 %v3793, %v3825
      %v3858 = vadd.f32 %v3794, %v3826
      %v3859 = vadd.f32 %v3795, %v3827
      %v3860 = vadd.f32 %v3796, %v3828
      %v3861 = vadd.f32 %v3797, %v3829
      %v3862 = vadd.f32 %v3798, %v3830
      %v3863 = vadd.f32 %v3799, %v3831
      %v3864 = vadd.f32 %v3800, %v3832
      %v3865 = vmul.f32 %v238, 0.26601171
      %v3866 = vmul.f32 %v239, 0.26601171
      %v3867 = vmul.f32 %v240, 0.26601171
      %v3868 = vmul.f32 %v241, 0.26601171
      %v3869 = vmul.f32 %v242, 0.26601171
      %v3870 = vmul.f32 %v243, 0.26601171
      %v3871 = vmul.f32 %v244, 0.26601171
      %v3872 = vmul.f32 %v245, 0.26601171
      %v3873 = vmul.f32 %v246, 0.26601171
      %v3874 = vmul.f32 %v247, 0.26601171
      %v3875 = vmul.f32 %v248, 0.26601171
      %v3876 = vmul.f32 %v249, 0.26601171
      %v3877 = vmul.f32 %v250, 0.26601171
      %v3878 = vmul.f32 %v251, 0.26601171
      %v3879 = vmul.f32 %v252, 0.26601171
      %v3880 = vmul.f32 %v253, 0.26601171
      %v3881 = vmul.f32 %v254, 0.26601171
      %v3882 = vmul.f32 %v255, 0.26601171
      %v3883 = vmul.f32 %v256, 0.26601171
      %v3884 = vmul.f32 %v257, 0.26601171
      %v3885 = vmul.f32 %v258, 0.26601171
      %v3886 = vmul.f32 %v259, 0.26601171
      %v3887 = vmul.f32 %v260, 0.26601171
      %v3888 = vmul.f32 %v261, 0.26601171
      %v3889 = vmul.f32 %v262, 0.26601171
      %v3890 = vmul.f32 %v263, 0.26601171
      %v3891 = vmul.f32 %v264, 0.26601171
      %v3892 = vmul.f32 %v265, 0.26601171
      %v3893 = vmul.f32 %v266, 0.26601171
      %v3894 = vmul.f32 %v267, 0.26601171
      %v3895 = vmul.f32 %v268, 0.26601171
      %v3896 = vmul.f32 %v269, 0.26601171
      %v3897 = vadd.f32 %v3833, %v3865
      %v3898 = vadd.f32 %v3834, %v3866
      %v3899 = vadd.f32 %v3835, %v3867
      %v3900 = vadd.f32 %v3836, %v3868
      %v3901 = vadd.f32 %v3837, %v3869
      %v3902 = vadd.f32 %v3838, %v3870
      %v3903 = vadd.f32 %v3839, %v3871
      %v3904 = vadd.f32 %v3840, %v3872
      %v3905 = vadd.f32 %v3841, %v3873
      %v3906 = vadd.f32 %v3842, %v3874
      %v3907 = vadd.f32 %v3843, %v3875
      %v3908 = vadd.f32 %v3844, %v3876
      %v3909 = vadd.f32 %v3845, %v3877
      %v3910 = vadd.f32 %v3846, %v3878
      %v3911 = vadd.f32 %v3847, %v3879
      %v3912 = vadd.f32 %v3848, %v3880
      %v3913 = vadd.f32 %v3849, %v3881
      %v3914 = vadd.f32 %v3850, %v3882
      %v3915 = vadd.f32 %v3851, %v3883
      %v3916 = vadd.f32 %v3852, %v3884
      %v3917 = vadd.f32 %v3853, %v3885
      %v3918 = vadd.f32 %v3854, %v3886
      %v3919 = vadd.f32 %v3855, %v3887
      %v3920 = vadd.f32 %v3856, %v3888
      %v3921 = vadd.f32 %v3857, %v3889
      %v3922 = vadd.f32 %v3858, %v3890
      %v3923 = vadd.f32 %v3859, %v3891
      %v3924 = vadd.f32 %v3860, %v3892
      %v3925 = vadd.f32 %v3861, %v3893
      %v3926 = vadd.f32 %v3862, %v3894
      %v3927 = vadd.f32 %v3863, %v3895
      %v3928 = vadd.f32 %v3864, %v3896
      %v3929 = vmul.f32 %v266, 0.21300554
      %v3930 = vmul.f32 %v267, 0.21300554
      %v3931 = vmul.f32 %v268, 0.21300554
      %v3932 = vmul.f32 %v269, 0.21300554
      %v3933 = vmul.f32 %v270, 0.21300554
      %v3934 = vmul.f32 %v271, 0.21300554
      %v3935 = vmul.f32 %v272, 0.21300554
      %v3936 = vmul.f32 %v273, 0.21300554
      %v3937 = vadd.f32 %v3897, %v3809
      %v3938 = vadd.f32 %v3898, %v3810
      %v3939 = vadd.f32 %v3899, %v3811
      %v3940 = vadd.f32 %v3900, %v3812
      %v3941 = vadd.f32 %v3901, %v3813
      %v3942 = vadd.f32 %v3902, %v3814
      %v3943 = vadd.f32 %v3903, %v3815
      %v3944 = vadd.f32 %v3904, %v3816
      %v3945 = vadd.f32 %v3905, %v3817
      %v3946 = vadd.f32 %v3906, %v3818
      %v3947 = vadd.f32 %v3907, %v3819
      %v3948 = vadd.f32 %v3908, %v3820
      %v3949 = vadd.f32 %v3909, %v3821
      %v3950 = vadd.f32 %v3910, %v3822
      %v3951 = vadd.f32 %v3911, %v3823
      %v3952 = vadd.f32 %v3912, %v3824
      %v3953 = vadd.f32 %v3913, %v3825
      %v3954 = vadd.f32 %v3914, %v3826
      %v3955 = vadd.f32 %v3915, %v3827
      %v3956 = vadd.f32 %v3916, %v3828
      %v3957 = vadd.f32 %v3917, %v3829
      %v3958 = vadd.f32 %v3918, %v3830
      %v3959 = vadd.f32 %v3919, %v3831
      %v3960 = vadd.f32 %v3920, %v3832
      %v3961 = vadd.f32 %v3921, %v3929
      %v3962 = vadd.f32 %v3922, %v3930
      %v3963 = vadd.f32 %v3923, %v3931
      %v3964 = vadd.f32 %v3924, %v3932
      %v3965 = vadd.f32 %v3925, %v3933
      %v3966 = vadd.f32 %v3926, %v3934
      %v3967 = vadd.f32 %v3927, %v3935
      %v3968 = vadd.f32 %v3928, %v3936
      %v3969 = vmul.f32 %v262, 0.10936069
      %v3970 = vmul.f32 %v263, 0.10936069
      %v3971 = vmul.f32 %v264, 0.10936069
      %v3972 = vmul.f32 %v265, 0.10936069
      %v3973 = vmul.f32 %v266, 0.10936069
      %v3974 = vmul.f32 %v267, 0.10936069
      %v3975 = vmul.f32 %v268, 0.10936069
      %v3976 = vmul.f32 %v269, 0.10936069
      %v3977 = vmul.f32 %v270, 0.10936069
      %v3978 = vmul.f32 %v271, 0.10936069
      %v3979 = vmul.f32 %v272, 0.10936069
      %v3980 = vmul.f32 %v273, 0.10936069
      %v3981 = vmul.f32 %v274, 0.10936069
      %v3982 = vmul.f32 %v275, 0.10936069
      %v3983 = vmul.f32 %v276, 0.10936069
      %v3984 = vmul.f32 %v277, 0.10936069
      %v3985 = vadd.f32 %v3937, %v3753
      %v3986 = vadd.f32 %v3938, %v3754
      %v3987 = vadd.f32 %v3939, %v3755
      %v3988 = vadd.f32 %v3940, %v3756
      %v3989 = vadd.f32 %v3941, %v3757
      %v3990 = vadd.f32 %v3942, %v3758
      %v3991 = vadd.f32 %v3943, %v3759
      %v3992 = vadd.f32 %v3944, %v3760
      %v3993 = vadd.f32 %v3945, %v3761
      %v3994 = vadd.f32 %v3946, %v3762
      %v3995 = vadd.f32 %v3947, %v3763
      %v3996 = vadd.f32 %v3948, %v3764
      %v3997 = vadd.f32 %v3949, %v3765
      %v3998 = vadd.f32 %v3950, %v3766
      %v3999 = vadd.f32 %v3951, %v3767
      %v4000 = vadd.f32 %v3952, %v3768
      %v4001 = vadd.f32 %v3953, %v3969
      %v4002 = vadd.f32 %v3954, %v3970
      %v4003 = vadd.f32 %v3955, %v3971
      %v4004 = vadd.f32 %v3956, %v3972
      %v4005 = vadd.f32 %v3957, %v3973
      %v4006 = vadd.f32 %v3958, %v3974
      %v4007 = vadd.f32 %v3959, %v3975
      %v4008 = vadd.f32 %v3960, %v3976
      %v4009 = vadd.f32 %v3961, %v3977
      %v4010 = vadd.f32 %v3962, %v3978
      %v4011 = vadd.f32 %v3963, %v3979
      %v4012 = vadd.f32 %v3964, %v3980
      %v4013 = vadd.f32 %v3965, %v3981
      %v4014 = vadd.f32 %v3966, %v3982
      %v4015 = vadd.f32 %v3967, %v3983
      %v4016 = vadd.f32 %v3968, %v3984
      %v4017 = vmul.f32 %v258, 0.036000773
      %v4018 = vmul.f32 %v259, 0.036000773
      %v4019 = vmul.f32 %v260, 0.036000773
      %v4020 = vmul.f32 %v261, 0.036000773
      %v4021 = vmul.f32 %v262, 0.036000773
      %v4022 = vmul.f32 %v263, 0.036000773
      %v4023 = vmul.f32 %v264, 0.036000773
      %v4024 = vmul.f32 %v265, 0.036000773
      %v4025 = vmul.f32 %v266, 0.036000773
      %v4026 = vmul.f32 %v267, 0.036000773
      %v4027 = vmul.f32 %v268, 0.036000773
      %v4028 = vmul.f32 %v269, 0.036000773
      %v4029 = vmul.f32 %v270, 0.036000773
      %v4030 = vmul.f32 %v271, 0.036000773
      %v4031 = vmul.f32 %v272, 0.036000773
      %v4032 = vmul.f32 %v273, 0.036000773
      %v4033 = vmul.f32 %v274, 0.036000773
      %v4034 = vmul.f32 %v275, 0.036000773
      %v4035 = vmul.f32 %v276, 0.036000773
      %v4036 = vmul.f32 %v277, 0.036000773
      %v4037 = vmul.f32 %v278, 0.036000773
      %v4038 = vmul.f32 %v279, 0.036000773
      %v4039 = vmul.f32 %v280, 0.036000773
      %v4040 = vmul.f32 %v281, 0.036000773
      %v4041 = vadd.f32 %v3985, %v3697
      %v4042 = vadd.f32 %v3986, %v3698
      %v4043 = vadd.f32 %v3987, %v3699
      %v4044 = vadd.f32 %v3988, %v3700
      %v4045 = vadd.f32 %v3989, %v3701
      %v4046 = vadd.f32 %v3990, %v3702
      %v4047 = vadd.f32 %v3991, %v3703
      %v4048 = vadd.f32 %v3992, %v3704
      %v4049 = vadd.f32 %v3993, %v4017
      %v4050 = vadd.f32 %v3994, %v4018
      %v4051 = vadd.f32 %v3995, %v4019
      %v4052 = vadd.f32 %v3996, %v4020
      %v4053 = vadd.f32 %v3997, %v4021
      %v4054 = vadd.f32 %v3998, %v4022
      %v4055 = vadd.f32 %v3999, %v4023
      %v4056 = vadd.f32 %v4000, %v4024
      %v4057 = vadd.f32 %v4001, %v4025
      %v4058 = vadd.f32 %v4002, %v4026
      %v4059 = vadd.f32 %v4003, %v4027
      %v4060 = vadd.f32 %v4004, %v4028
      %v4061 = vadd.f32 %v4005, %v4029
      %v4062 = vadd.f32 %v4006, %v4030
      %v4063 = vadd.f32 %v4007, %v4031
      %v4064 = vadd.f32 %v4008, %v4032
      %v4065 = vadd.f32 %v4009, %v4033
      %v4066 = vadd.f32 %v4010, %v4034
      %v4067 = vadd.f32 %v4011, %v4035
      %v4068 = vadd.f32 %v4012, %v4036
      %v4069 = vadd.f32 %v4013, %v4037
      %v4070 = vadd.f32 %v4014, %v4038
      %v4071 = vadd.f32 %v4015, %v4039
      %v4072 = vadd.f32 %v4016, %v4040
      %v4073 = vmul.f32 %v254, 0.007598758
      %v4074 = vmul.f32 %v255, 0.007598758
      %v4075 = vmul.f32 %v256, 0.007598758
      %v4076 = vmul.f32 %v257, 0.007598758
      %v4077 = vmul.f32 %v258, 0.007598758
      %v4078 = vmul.f32 %v259, 0.007598758
      %v4079 = vmul.f32 %v260, 0.007598758
      %v4080 = vmul.f32 %v261, 0.007598758
      %v4081 = vmul.f32 %v262, 0.007598758
      %v4082 = vmul.f32 %v263, 0.007598758
      %v4083 = vmul.f32 %v264, 0.007598758
      %v4084 = vmul.f32 %v265, 0.007598758
      %v4085 = vmul.f32 %v266, 0.007598758
      %v4086 = vmul.f32 %v267, 0.007598758
      %v4087 = vmul.f32 %v268, 0.007598758
      %v4088 = vmul.f32 %v269, 0.007598758
      %v4089 = vmul.f32 %v270, 0.007598758
      %v4090 = vmul.f32 %v271, 0.007598758
      %v4091 = vmul.f32 %v272, 0.007598758
      %v4092 = vmul.f32 %v273, 0.007598758
      %v4093 = vmul.f32 %v274, 0.007598758
      %v4094 = vmul.f32 %v275, 0.007598758
      %v4095 = vmul.f32 %v276, 0.007598758
      %v4096 = vmul.f32 %v277, 0.007598758
      %v4097 = vmul.f32 %v278, 0.007598758
      %v4098 = vmul.f32 %v279, 0.007598758
      %v4099 = vmul.f32 %v280, 0.007598758
      %v4100 = vmul.f32 %v281, 0.007598758
      %v4101 = vmul.f32 %v282, 0.007598758
      %v4102 = vmul.f32 %v283, 0.007598758
      %v4103 = vmul.f32 %v284, 0.007598758
      %v4104 = vmul.f32 %v285, 0.007598758
      %v4105 = vadd.f32 %v4041, %v4073
      %v4106 = vadd.f32 %v4042, %v4074
      %v4107 = vadd.f32 %v4043, %v4075
      %v4108 = vadd.f32 %v4044, %v4076
      %v4109 = vadd.f32 %v4045, %v4077
      %v4110 = vadd.f32 %v4046, %v4078
      %v4111 = vadd.f32 %v4047, %v4079
      %v4112 = vadd.f32 %v4048, %v4080
      %v4113 = vadd.f32 %v4049, %v4081
      %v4114 = vadd.f32 %v4050, %v4082
      %v4115 = vadd.f32 %v4051, %v4083
      %v4116 = vadd.f32 %v4052, %v4084
      %v4117 = vadd.f32 %v4053, %v4085
      %v4118 = vadd.f32 %v4054, %v4086
      %v4119 = vadd.f32 %v4055, %v4087
      %v4120 = vadd.f32 %v4056, %v4088
      %v4121 = vadd.f32 %v4057, %v4089
      %v4122 = vadd.f32 %v4058, %v4090
      %v4123 = vadd.f32 %v4059, %v4091
      %v4124 = vadd.f32 %v4060, %v4092
      %v4125 = vadd.f32 %v4061, %v4093
      %v4126 = vadd.f32 %v4062, %v4094
      %v4127 = vadd.f32 %v4063, %v4095
      %v4128 = vadd.f32 %v4064, %v4096
      %v4129 = vadd.f32 %v4065, %v4097
      %v4130 = vadd.f32 %v4066, %v4098
      %v4131 = vadd.f32 %v4067, %v4099
      %v4132 = vadd.f32 %v4068, %v4100
      %v4133 = vadd.f32 %v4069, %v4101
      %v4134 = vadd.f32 %v4070, %v4102
      %v4135 = vadd.f32 %v4071, %v4103
      %v4136 = vadd.f32 %v4072, %v4104
      %v4137 = vmul.f32 %v258, 0.0010283801
      %v4138 = vmul.f32 %v259, 0.0010283801
      %v4139 = vmul.f32 %v260, 0.0010283801
      %v4140 = vmul.f32 %v261, 0.0010283801
      %v4141 = vmul.f32 %v262, 0.0010283801
      %v4142 = vmul.f32 %v263, 0.0010283801
      %v4143 = vmul.f32 %v264, 0.0010283801
      %v4144 = vmul.f32 %v265, 0.0010283801
      %v4145 = vmul.f32 %v266, 0.0010283801
      %v4146 = vmul.f32 %v267, 0.0010283801
      %v4147 = vmul.f32 %v268, 0.0010283801
      %v4148 = vmul.f32 %v269, 0.0010283801
      %v4149 = vmul.f32 %v270, 0.0010283801
      %v4150 = vmul.f32 %v271, 0.0010283801
      %v4151 = vmul.f32 %v272, 0.0010283801
      %v4152 = vmul.f32 %v273, 0.0010283801
      %v4153 = vmul.f32 %v274, 0.0010283801
      %v4154 = vmul.f32 %v275, 0.0010283801
      %v4155 = vmul.f32 %v276, 0.0010283801
      %v4156 = vmul.f32 %v277, 0.0010283801
      %v4157 = vmul.f32 %v278, 0.0010283801
      %v4158 = vmul.f32 %v279, 0.0010283801
      %v4159 = vmul.f32 %v280, 0.0010283801
      %v4160 = vmul.f32 %v281, 0.0010283801
      %v4161 = vmul.f32 %v282, 0.0010283801
      %v4162 = vmul.f32 %v283, 0.0010283801
      %v4163 = vmul.f32 %v284, 0.0010283801
      %v4164 = vmul.f32 %v285, 0.0010283801
      %v4165 = vmul.f32 %v286, 0.0010283801
      %v4166 = vmul.f32 %v287, 0.0010283801
      %v4167 = vmul.f32 %v288, 0.0010283801
      %v4168 = vmul.f32 %v289, 0.0010283801
      %v4169 = vadd.f32 %v4105, %v4137
      %v4170 = vadd.f32 %v4106, %v4138
      %v4171 = vadd.f32 %v4107, %v4139
      %v4172 = vadd.f32 %v4108, %v4140
      %v4173 = vadd.f32 %v4109, %v4141
      %v4174 = vadd.f32 %v4110, %v4142
      %v4175 = vadd.f32 %v4111, %v4143
      %v4176 = vadd.f32 %v4112, %v4144
      %v4177 = vadd.f32 %v4113, %v4145
      %v4178 = vadd.f32 %v4114, %v4146
      %v4179 = vadd.f32 %v4115, %v4147
      %v4180 = vadd.f32 %v4116, %v4148
      %v4181 = vadd.f32 %v4117, %v4149
      %v4182 = vadd.f32 %v4118, %v4150
      %v4183 = vadd.f32 %v4119, %v4151
      %v4184 = vadd.f32 %v4120, %v4152
      %v4185 = vadd.f32 %v4121, %v4153
      %v4186 = vadd.f32 %v4122, %v4154
      %v4187 = vadd.f32 %v4123, %v4155
      %v4188 = vadd.f32 %v4124, %v4156
      %v4189 = vadd.f32 %v4125, %v4157
      %v4190 = vadd.f32 %v4126, %v4158
      %v4191 = vadd.f32 %v4127, %v4159
      %v4192 = vadd.f32 %v4128, %v4160
      %v4193 = vadd.f32 %v4129, %v4161
      %v4194 = vadd.f32 %v4130, %v4162
      %v4195 = vadd.f32 %v4131, %v4163
      %v4196 = vadd.f32 %v4132, %v4164
      %v4197 = vadd.f32 %v4133, %v4165
      %v4198 = vadd.f32 %v4134, %v4166
      %v4199 = vadd.f32 %v4135, %v4167
      %v4200 = vadd.f32 %v4136, %v4168
      %v4201 = vmul.f32 %v4169, 0.0010283801
      %v4202 = vmul.f32 %v4170, 0.0010283801
      %v4203 = vmul.f32 %v4173, 0.0010283801
      %v4204 = vmul.f32 %v4174, 0.0010283801
      %v4205 = vmul.f32 %v4177, 0.0010283801
      %v4206 = vmul.f32 %v4178, 0.0010283801
      %v4207 = vmul.f32 %v4181, 0.0010283801
      %v4208 = vmul.f32 %v4182, 0.0010283801
      %v4209 = vmul.f32 %v4185, 0.0010283801
      %v4210 = vmul.f32 %v4186, 0.0010283801
      %v4211 = vmul.f32 %v4189, 0.0010283801
      %v4212 = vmul.f32 %v4190, 0.0010283801
      %v4213 = vmul.f32 %v4193, 0.0010283801
      %v4214 = vmul.f32 %v4194, 0.0010283801
      %v4215 = vmul.f32 %v4197, 0.0010283801
      %v4216 = vmul.f32 %v4198, 0.0010283801
      %v4217 = vmul.f32 %v4169, 0.007598758
      %v4218 = vmul.f32 %v4170, 0.007598758
      %v4219 = vmul.f32 %v4171, 0.007598758
      %v4220 = vmul.f32 %v4173, 0.007598758
      %v4221 = vmul.f32 %v4174, 0.007598758
      %v4222 = vmul.f32 %v4175, 0.007598758
      %v4223 = vmul.f32 %v4177, 0.007598758
      %v4224 = vmul.f32 %v4178, 0.007598758
      %v4225 = vmul.f32 %v4179, 0.007598758
      %v4226 = vmul.f32 %v4181, 0.007598758
      %v4227 = vmul.f32 %v4182, 0.007598758
      %v4228 = vmul.f32 %v4183, 0.007598758
      %v4229 = vmul.f32 %v4185, 0.007598758
      %v4230 = vmul.f32 %v4186, 0.007598758
      %v4231 = vmul.f32 %v4187, 0.007598758
      %v4232 = vmul.f32 %v4189, 0.007598758
      %v4233 = vmul.f32 %v4190, 0.007598758
      %v4234 = vmul.f32 %v4191, 0.007598758
      %v4235 = vmul.f32 %v4193, 0.007598758
      %v4236 = vmul.f32 %v4194, 0.007598758
      %v4237 = vmul.f32 %v4195, 0.007598758
      %v4238 = vmul.f32 %v4197, 0.007598758
      %v4239 = vmul.f32 %v4198, 0.007598758
      %v4240 = vmul.f32 %v4199, 0.007598758
      %v4265 = vrot.slane %v4217, 1
      %v4266 = vrot.slane %v4218, 1
      %v4267 = vsel %vm1122, %v4265, %v4266
      %v4268 = vrot.slane %v4219, 1
      %v4269 = vsel %vm1122, %v4266, %v4268
      %v4270 = vrot.slane %v4220, 1
      %v4271 = vrot.slane %v4221, 1
      %v4272 = vsel %vm1122, %v4270, %v4271
      %v4273 = vrot.slane %v4222, 1
      %v4274 = vsel %vm1122, %v4271, %v4273
      %v4275 = vrot.slane %v4223, 1
      %v4276 = vrot.slane %v4224, 1
      %v4277 = vsel %vm1122, %v4275, %v4276
      %v4278 = vrot.slane %v4225, 1
      %v4279 = vsel %vm1122, %v4276, %v4278
      %v4280 = vrot.slane %v4226, 1
      %v4281 = vrot.slane %v4227, 1
      %v4282 = vsel %vm1122, %v4280, %v4281
      %v4283 = vrot.slane %v4228, 1
      %v4284 = vsel %vm1122, %v4281, %v4283
      %v4285 = vrot.slane %v4229, 1
      %v4286 = vrot.slane %v4230, 1
      %v4287 = vsel %vm1122, %v4285, %v4286
      %v4288 = vrot.slane %v4231, 1
      %v4289 = vsel %vm1122, %v4286, %v4288
      %v4290 = vrot.slane %v4232, 1
      %v4291 = vrot.slane %v4233, 1
      %v4292 = vsel %vm1122, %v4290, %v4291
      %v4293 = vrot.slane %v4234, 1
      %v4294 = vsel %vm1122, %v4291, %v4293
      %v4295 = vrot.slane %v4235, 1
      %v4296 = vrot.slane %v4236, 1
      %v4297 = vsel %vm1122, %v4295, %v4296
      %v4298 = vrot.slane %v4237, 1
      %v4299 = vsel %vm1122, %v4296, %v4298
      %v4300 = vrot.slane %v4238, 1
      %v4301 = vrot.slane %v4239, 1
      %v4302 = vsel %vm1122, %v4300, %v4301
      %v4303 = vrot.slane %v4240, 1
      %v4304 = vsel %vm1122, %v4301, %v4303
      %v4321 = vadd.f32 %v4201, %v4267
      %v4322 = vadd.f32 %v4202, %v4269
      %v4323 = vadd.f32 %v4203, %v4272
      %v4324 = vadd.f32 %v4204, %v4274
      %v4325 = vadd.f32 %v4205, %v4277
      %v4326 = vadd.f32 %v4206, %v4279
      %v4327 = vadd.f32 %v4207, %v4282
      %v4328 = vadd.f32 %v4208, %v4284
      %v4329 = vadd.f32 %v4209, %v4287
      %v4330 = vadd.f32 %v4210, %v4289
      %v4331 = vadd.f32 %v4211, %v4292
      %v4332 = vadd.f32 %v4212, %v4294
      %v4333 = vadd.f32 %v4213, %v4297
      %v4334 = vadd.f32 %v4214, %v4299
      %v4335 = vadd.f32 %v4215, %v4302
      %v4336 = vadd.f32 %v4216, %v4304
      %v4337 = vmul.f32 %v4169, 0.036000773
      %v4338 = vmul.f32 %v4170, 0.036000773
      %v4339 = vmul.f32 %v4171, 0.036000773
      %v4340 = vmul.f32 %v4173, 0.036000773
      %v4341 = vmul.f32 %v4174, 0.036000773
      %v4342 = vmul.f32 %v4175, 0.036000773
      %v4343 = vmul.f32 %v4177, 0.036000773
      %v4344 = vmul.f32 %v4178, 0.036000773
      %v4345 = vmul.f32 %v4179, 0.036000773
      %v4346 = vmul.f32 %v4181, 0.036000773
      %v4347 = vmul.f32 %v4182, 0.036000773
      %v4348 = vmul.f32 %v4183, 0.036000773
      %v4349 = vmul.f32 %v4185, 0.036000773
      %v4350 = vmul.f32 %v4186, 0.036000773
      %v4351 = vmul.f32 %v4187, 0.036000773
      %v4352 = vmul.f32 %v4189, 0.036000773
      %v4353 = vmul.f32 %v4190, 0.036000773
      %v4354 = vmul.f32 %v4191, 0.036000773
      %v4355 = vmul.f32 %v4193, 0.036000773
      %v4356 = vmul.f32 %v4194, 0.036000773
      %v4357 = vmul.f32 %v4195, 0.036000773
      %v4358 = vmul.f32 %v4197, 0.036000773
      %v4359 = vmul.f32 %v4198, 0.036000773
      %v4360 = vmul.f32 %v4199, 0.036000773
      %v4385 = vrot.slane %v4337, 2
      %v4386 = vrot.slane %v4338, 2
      %v4387 = vsel %vm1243, %v4385, %v4386
      %v4388 = vrot.slane %v4339, 2
      %v4389 = vsel %vm1243, %v4386, %v4388
      %v4390 = vrot.slane %v4340, 2
      %v4391 = vrot.slane %v4341, 2
      %v4392 = vsel %vm1243, %v4390, %v4391
      %v4393 = vrot.slane %v4342, 2
      %v4394 = vsel %vm1243, %v4391, %v4393
      %v4395 = vrot.slane %v4343, 2
      %v4396 = vrot.slane %v4344, 2
      %v4397 = vsel %vm1243, %v4395, %v4396
      %v4398 = vrot.slane %v4345, 2
      %v4399 = vsel %vm1243, %v4396, %v4398
      %v4400 = vrot.slane %v4346, 2
      %v4401 = vrot.slane %v4347, 2
      %v4402 = vsel %vm1243, %v4400, %v4401
      %v4403 = vrot.slane %v4348, 2
      %v4404 = vsel %vm1243, %v4401, %v4403
      %v4405 = vrot.slane %v4349, 2
      %v4406 = vrot.slane %v4350, 2
      %v4407 = vsel %vm1243, %v4405, %v4406
      %v4408 = vrot.slane %v4351, 2
      %v4409 = vsel %vm1243, %v4406, %v4408
      %v4410 = vrot.slane %v4352, 2
      %v4411 = vrot.slane %v4353, 2
      %v4412 = vsel %vm1243, %v4410, %v4411
      %v4413 = vrot.slane %v4354, 2
      %v4414 = vsel %vm1243, %v4411, %v4413
      %v4415 = vrot.slane %v4355, 2
      %v4416 = vrot.slane %v4356, 2
      %v4417 = vsel %vm1243, %v4415, %v4416
      %v4418 = vrot.slane %v4357, 2
      %v4419 = vsel %vm1243, %v4416, %v4418
      %v4420 = vrot.slane %v4358, 2
      %v4421 = vrot.slane %v4359, 2
      %v4422 = vsel %vm1243, %v4420, %v4421
      %v4423 = vrot.slane %v4360, 2
      %v4424 = vsel %vm1243, %v4421, %v4423
      %v4441 = vadd.f32 %v4321, %v4387
      %v4442 = vadd.f32 %v4322, %v4389
      %v4443 = vadd.f32 %v4323, %v4392
      %v4444 = vadd.f32 %v4324, %v4394
      %v4445 = vadd.f32 %v4325, %v4397
      %v4446 = vadd.f32 %v4326, %v4399
      %v4447 = vadd.f32 %v4327, %v4402
      %v4448 = vadd.f32 %v4328, %v4404
      %v4449 = vadd.f32 %v4329, %v4407
      %v4450 = vadd.f32 %v4330, %v4409
      %v4451 = vadd.f32 %v4331, %v4412
      %v4452 = vadd.f32 %v4332, %v4414
      %v4453 = vadd.f32 %v4333, %v4417
      %v4454 = vadd.f32 %v4334, %v4419
      %v4455 = vadd.f32 %v4335, %v4422
      %v4456 = vadd.f32 %v4336, %v4424
      %v4457 = vmul.f32 %v4169, 0.10936069
      %v4458 = vmul.f32 %v4170, 0.10936069
      %v4459 = vmul.f32 %v4171, 0.10936069
      %v4460 = vmul.f32 %v4173, 0.10936069
      %v4461 = vmul.f32 %v4174, 0.10936069
      %v4462 = vmul.f32 %v4175, 0.10936069
      %v4463 = vmul.f32 %v4177, 0.10936069
      %v4464 = vmul.f32 %v4178, 0.10936069
      %v4465 = vmul.f32 %v4179, 0.10936069
      %v4466 = vmul.f32 %v4181, 0.10936069
      %v4467 = vmul.f32 %v4182, 0.10936069
      %v4468 = vmul.f32 %v4183, 0.10936069
      %v4469 = vmul.f32 %v4185, 0.10936069
      %v4470 = vmul.f32 %v4186, 0.10936069
      %v4471 = vmul.f32 %v4187, 0.10936069
      %v4472 = vmul.f32 %v4189, 0.10936069
      %v4473 = vmul.f32 %v4190, 0.10936069
      %v4474 = vmul.f32 %v4191, 0.10936069
      %v4475 = vmul.f32 %v4193, 0.10936069
      %v4476 = vmul.f32 %v4194, 0.10936069
      %v4477 = vmul.f32 %v4195, 0.10936069
      %v4478 = vmul.f32 %v4197, 0.10936069
      %v4479 = vmul.f32 %v4198, 0.10936069
      %v4480 = vmul.f32 %v4199, 0.10936069
      %v4505 = vrot.slane %v4457, 3
      %v4506 = vrot.slane %v4458, 3
      %v4507 = vsel %vm1364, %v4505, %v4506
      %v4508 = vrot.slane %v4459, 3
      %v4509 = vsel %vm1364, %v4506, %v4508
      %v4510 = vrot.slane %v4460, 3
      %v4511 = vrot.slane %v4461, 3
      %v4512 = vsel %vm1364, %v4510, %v4511
      %v4513 = vrot.slane %v4462, 3
      %v4514 = vsel %vm1364, %v4511, %v4513
      %v4515 = vrot.slane %v4463, 3
      %v4516 = vrot.slane %v4464, 3
      %v4517 = vsel %vm1364, %v4515, %v4516
      %v4518 = vrot.slane %v4465, 3
      %v4519 = vsel %vm1364, %v4516, %v4518
      %v4520 = vrot.slane %v4466, 3
      %v4521 = vrot.slane %v4467, 3
      %v4522 = vsel %vm1364, %v4520, %v4521
      %v4523 = vrot.slane %v4468, 3
      %v4524 = vsel %vm1364, %v4521, %v4523
      %v4525 = vrot.slane %v4469, 3
      %v4526 = vrot.slane %v4470, 3
      %v4527 = vsel %vm1364, %v4525, %v4526
      %v4528 = vrot.slane %v4471, 3
      %v4529 = vsel %vm1364, %v4526, %v4528
      %v4530 = vrot.slane %v4472, 3
      %v4531 = vrot.slane %v4473, 3
      %v4532 = vsel %vm1364, %v4530, %v4531
      %v4533 = vrot.slane %v4474, 3
      %v4534 = vsel %vm1364, %v4531, %v4533
      %v4535 = vrot.slane %v4475, 3
      %v4536 = vrot.slane %v4476, 3
      %v4537 = vsel %vm1364, %v4535, %v4536
      %v4538 = vrot.slane %v4477, 3
      %v4539 = vsel %vm1364, %v4536, %v4538
      %v4540 = vrot.slane %v4478, 3
      %v4541 = vrot.slane %v4479, 3
      %v4542 = vsel %vm1364, %v4540, %v4541
      %v4543 = vrot.slane %v4480, 3
      %v4544 = vsel %vm1364, %v4541, %v4543
      %v4561 = vadd.f32 %v4441, %v4507
      %v4562 = vadd.f32 %v4442, %v4509
      %v4563 = vadd.f32 %v4443, %v4512
      %v4564 = vadd.f32 %v4444, %v4514
      %v4565 = vadd.f32 %v4445, %v4517
      %v4566 = vadd.f32 %v4446, %v4519
      %v4567 = vadd.f32 %v4447, %v4522
      %v4568 = vadd.f32 %v4448, %v4524
      %v4569 = vadd.f32 %v4449, %v4527
      %v4570 = vadd.f32 %v4450, %v4529
      %v4571 = vadd.f32 %v4451, %v4532
      %v4572 = vadd.f32 %v4452, %v4534
      %v4573 = vadd.f32 %v4453, %v4537
      %v4574 = vadd.f32 %v4454, %v4539
      %v4575 = vadd.f32 %v4455, %v4542
      %v4576 = vadd.f32 %v4456, %v4544
      %v4577 = vmul.f32 %v4169, 0.21300554
      %v4578 = vmul.f32 %v4170, 0.21300554
      %v4579 = vmul.f32 %v4171, 0.21300554
      %v4580 = vmul.f32 %v4173, 0.21300554
      %v4581 = vmul.f32 %v4174, 0.21300554
      %v4582 = vmul.f32 %v4175, 0.21300554
      %v4583 = vmul.f32 %v4177, 0.21300554
      %v4584 = vmul.f32 %v4178, 0.21300554
      %v4585 = vmul.f32 %v4179, 0.21300554
      %v4586 = vmul.f32 %v4181, 0.21300554
      %v4587 = vmul.f32 %v4182, 0.21300554
      %v4588 = vmul.f32 %v4183, 0.21300554
      %v4589 = vmul.f32 %v4185, 0.21300554
      %v4590 = vmul.f32 %v4186, 0.21300554
      %v4591 = vmul.f32 %v4187, 0.21300554
      %v4592 = vmul.f32 %v4189, 0.21300554
      %v4593 = vmul.f32 %v4190, 0.21300554
      %v4594 = vmul.f32 %v4191, 0.21300554
      %v4595 = vmul.f32 %v4193, 0.21300554
      %v4596 = vmul.f32 %v4194, 0.21300554
      %v4597 = vmul.f32 %v4195, 0.21300554
      %v4598 = vmul.f32 %v4197, 0.21300554
      %v4599 = vmul.f32 %v4198, 0.21300554
      %v4600 = vmul.f32 %v4199, 0.21300554
      %v4625 = vrot.slane %v4577, 4
      %v4626 = vrot.slane %v4578, 4
      %v4627 = vsel %vm1485, %v4625, %v4626
      %v4628 = vrot.slane %v4579, 4
      %v4629 = vsel %vm1485, %v4626, %v4628
      %v4630 = vrot.slane %v4580, 4
      %v4631 = vrot.slane %v4581, 4
      %v4632 = vsel %vm1485, %v4630, %v4631
      %v4633 = vrot.slane %v4582, 4
      %v4634 = vsel %vm1485, %v4631, %v4633
      %v4635 = vrot.slane %v4583, 4
      %v4636 = vrot.slane %v4584, 4
      %v4637 = vsel %vm1485, %v4635, %v4636
      %v4638 = vrot.slane %v4585, 4
      %v4639 = vsel %vm1485, %v4636, %v4638
      %v4640 = vrot.slane %v4586, 4
      %v4641 = vrot.slane %v4587, 4
      %v4642 = vsel %vm1485, %v4640, %v4641
      %v4643 = vrot.slane %v4588, 4
      %v4644 = vsel %vm1485, %v4641, %v4643
      %v4645 = vrot.slane %v4589, 4
      %v4646 = vrot.slane %v4590, 4
      %v4647 = vsel %vm1485, %v4645, %v4646
      %v4648 = vrot.slane %v4591, 4
      %v4649 = vsel %vm1485, %v4646, %v4648
      %v4650 = vrot.slane %v4592, 4
      %v4651 = vrot.slane %v4593, 4
      %v4652 = vsel %vm1485, %v4650, %v4651
      %v4653 = vrot.slane %v4594, 4
      %v4654 = vsel %vm1485, %v4651, %v4653
      %v4655 = vrot.slane %v4595, 4
      %v4656 = vrot.slane %v4596, 4
      %v4657 = vsel %vm1485, %v4655, %v4656
      %v4658 = vrot.slane %v4597, 4
      %v4659 = vsel %vm1485, %v4656, %v4658
      %v4660 = vrot.slane %v4598, 4
      %v4661 = vrot.slane %v4599, 4
      %v4662 = vsel %vm1485, %v4660, %v4661
      %v4663 = vrot.slane %v4600, 4
      %v4664 = vsel %vm1485, %v4661, %v4663
      %v4681 = vadd.f32 %v4561, %v4627
      %v4682 = vadd.f32 %v4562, %v4629
      %v4683 = vadd.f32 %v4563, %v4632
      %v4684 = vadd.f32 %v4564, %v4634
      %v4685 = vadd.f32 %v4565, %v4637
      %v4686 = vadd.f32 %v4566, %v4639
      %v4687 = vadd.f32 %v4567, %v4642
      %v4688 = vadd.f32 %v4568, %v4644
      %v4689 = vadd.f32 %v4569, %v4647
      %v4690 = vadd.f32 %v4570, %v4649
      %v4691 = vadd.f32 %v4571, %v4652
      %v4692 = vadd.f32 %v4572, %v4654
      %v4693 = vadd.f32 %v4573, %v4657
      %v4694 = vadd.f32 %v4574, %v4659
      %v4695 = vadd.f32 %v4575, %v4662
      %v4696 = vadd.f32 %v4576, %v4664
      %v4697 = vmul.f32 %v4169, 0.26601171
      %v4698 = vmul.f32 %v4170, 0.26601171
      %v4699 = vmul.f32 %v4171, 0.26601171
      %v4700 = vmul.f32 %v4173, 0.26601171
      %v4701 = vmul.f32 %v4174, 0.26601171
      %v4702 = vmul.f32 %v4175, 0.26601171
      %v4703 = vmul.f32 %v4177, 0.26601171
      %v4704 = vmul.f32 %v4178, 0.26601171
      %v4705 = vmul.f32 %v4179, 0.26601171
      %v4706 = vmul.f32 %v4181, 0.26601171
      %v4707 = vmul.f32 %v4182, 0.26601171
      %v4708 = vmul.f32 %v4183, 0.26601171
      %v4709 = vmul.f32 %v4185, 0.26601171
      %v4710 = vmul.f32 %v4186, 0.26601171
      %v4711 = vmul.f32 %v4187, 0.26601171
      %v4712 = vmul.f32 %v4189, 0.26601171
      %v4713 = vmul.f32 %v4190, 0.26601171
      %v4714 = vmul.f32 %v4191, 0.26601171
      %v4715 = vmul.f32 %v4193, 0.26601171
      %v4716 = vmul.f32 %v4194, 0.26601171
      %v4717 = vmul.f32 %v4195, 0.26601171
      %v4718 = vmul.f32 %v4197, 0.26601171
      %v4719 = vmul.f32 %v4198, 0.26601171
      %v4720 = vmul.f32 %v4199, 0.26601171
      %v4745 = vrot.slane %v4697, 5
      %v4746 = vrot.slane %v4698, 5
      %v4747 = vsel %vm1606, %v4745, %v4746
      %v4748 = vrot.slane %v4699, 5
      %v4749 = vsel %vm1606, %v4746, %v4748
      %v4750 = vrot.slane %v4700, 5
      %v4751 = vrot.slane %v4701, 5
      %v4752 = vsel %vm1606, %v4750, %v4751
      %v4753 = vrot.slane %v4702, 5
      %v4754 = vsel %vm1606, %v4751, %v4753
      %v4755 = vrot.slane %v4703, 5
      %v4756 = vrot.slane %v4704, 5
      %v4757 = vsel %vm1606, %v4755, %v4756
      %v4758 = vrot.slane %v4705, 5
      %v4759 = vsel %vm1606, %v4756, %v4758
      %v4760 = vrot.slane %v4706, 5
      %v4761 = vrot.slane %v4707, 5
      %v4762 = vsel %vm1606, %v4760, %v4761
      %v4763 = vrot.slane %v4708, 5
      %v4764 = vsel %vm1606, %v4761, %v4763
      %v4765 = vrot.slane %v4709, 5
      %v4766 = vrot.slane %v4710, 5
      %v4767 = vsel %vm1606, %v4765, %v4766
      %v4768 = vrot.slane %v4711, 5
      %v4769 = vsel %vm1606, %v4766, %v4768
      %v4770 = vrot.slane %v4712, 5
      %v4771 = vrot.slane %v4713, 5
      %v4772 = vsel %vm1606, %v4770, %v4771
      %v4773 = vrot.slane %v4714, 5
      %v4774 = vsel %vm1606, %v4771, %v4773
      %v4775 = vrot.slane %v4715, 5
      %v4776 = vrot.slane %v4716, 5
      %v4777 = vsel %vm1606, %v4775, %v4776
      %v4778 = vrot.slane %v4717, 5
      %v4779 = vsel %vm1606, %v4776, %v4778
      %v4780 = vrot.slane %v4718, 5
      %v4781 = vrot.slane %v4719, 5
      %v4782 = vsel %vm1606, %v4780, %v4781
      %v4783 = vrot.slane %v4720, 5
      %v4784 = vsel %vm1606, %v4781, %v4783
      %v4801 = vadd.f32 %v4681, %v4747
      %v4802 = vadd.f32 %v4682, %v4749
      %v4803 = vadd.f32 %v4683, %v4752
      %v4804 = vadd.f32 %v4684, %v4754
      %v4805 = vadd.f32 %v4685, %v4757
      %v4806 = vadd.f32 %v4686, %v4759
      %v4807 = vadd.f32 %v4687, %v4762
      %v4808 = vadd.f32 %v4688, %v4764
      %v4809 = vadd.f32 %v4689, %v4767
      %v4810 = vadd.f32 %v4690, %v4769
      %v4811 = vadd.f32 %v4691, %v4772
      %v4812 = vadd.f32 %v4692, %v4774
      %v4813 = vadd.f32 %v4693, %v4777
      %v4814 = vadd.f32 %v4694, %v4779
      %v4815 = vadd.f32 %v4695, %v4782
      %v4816 = vadd.f32 %v4696, %v4784
      %v4817 = vrot.slane %v4577, 6
      %v4818 = vrot.slane %v4578, 6
      %v4819 = vsel %vm1679, %v4817, %v4818
      %v4820 = vrot.slane %v4579, 6
      %v4821 = vsel %vm1679, %v4818, %v4820
      %v4822 = vrot.slane %v4580, 6
      %v4823 = vrot.slane %v4581, 6
      %v4824 = vsel %vm1679, %v4822, %v4823
      %v4825 = vrot.slane %v4582, 6
      %v4826 = vsel %vm1679, %v4823, %v4825
      %v4827 = vrot.slane %v4583, 6
      %v4828 = vrot.slane %v4584, 6
      %v4829 = vsel %vm1679, %v4827, %v4828
      %v4830 = vrot.slane %v4585, 6
      %v4831 = vsel %vm1679, %v4828, %v4830
      %v4832 = vrot.slane %v4586, 6
      %v4833 = vrot.slane %v4587, 6
      %v4834 = vsel %vm1679, %v4832, %v4833
      %v4835 = vrot.slane %v4588, 6
      %v4836 = vsel %vm1679, %v4833, %v4835
      %v4837 = vrot.slane %v4589, 6
      %v4838 = vrot.slane %v4590, 6
      %v4839 = vsel %vm1679, %v4837, %v4838
      %v4840 = vrot.slane %v4591, 6
      %v4841 = vsel %vm1679, %v4838, %v4840
      %v4842 = vrot.slane %v4592, 6
      %v4843 = vrot.slane %v4593, 6
      %v4844 = vsel %vm1679, %v4842, %v4843
      %v4845 = vrot.slane %v4594, 6
      %v4846 = vsel %vm1679, %v4843, %v4845
      %v4847 = vrot.slane %v4595, 6
      %v4848 = vrot.slane %v4596, 6
      %v4849 = vsel %vm1679, %v4847, %v4848
      %v4850 = vrot.slane %v4597, 6
      %v4851 = vsel %vm1679, %v4848, %v4850
      %v4852 = vrot.slane %v4598, 6
      %v4853 = vrot.slane %v4599, 6
      %v4854 = vsel %vm1679, %v4852, %v4853
      %v4855 = vrot.slane %v4600, 6
      %v4856 = vsel %vm1679, %v4853, %v4855
      %v4873 = vadd.f32 %v4801, %v4819
      %v4874 = vadd.f32 %v4802, %v4821
      %v4875 = vadd.f32 %v4803, %v4824
      %v4876 = vadd.f32 %v4804, %v4826
      %v4877 = vadd.f32 %v4805, %v4829
      %v4878 = vadd.f32 %v4806, %v4831
      %v4879 = vadd.f32 %v4807, %v4834
      %v4880 = vadd.f32 %v4808, %v4836
      %v4881 = vadd.f32 %v4809, %v4839
      %v4882 = vadd.f32 %v4810, %v4841
      %v4883 = vadd.f32 %v4811, %v4844
      %v4884 = vadd.f32 %v4812, %v4846
      %v4885 = vadd.f32 %v4813, %v4849
      %v4886 = vadd.f32 %v4814, %v4851
      %v4887 = vadd.f32 %v4815, %v4854
      %v4888 = vadd.f32 %v4816, %v4856
      %v4889 = vrot.slane %v4457, 7
      %v4890 = vrot.slane %v4458, 7
      %v4891 = vsel %vm1752, %v4889, %v4890
      %v4892 = vrot.slane %v4459, 7
      %v4893 = vsel %vm1752, %v4890, %v4892
      %v4894 = vrot.slane %v4460, 7
      %v4895 = vrot.slane %v4461, 7
      %v4896 = vsel %vm1752, %v4894, %v4895
      %v4897 = vrot.slane %v4462, 7
      %v4898 = vsel %vm1752, %v4895, %v4897
      %v4899 = vrot.slane %v4463, 7
      %v4900 = vrot.slane %v4464, 7
      %v4901 = vsel %vm1752, %v4899, %v4900
      %v4902 = vrot.slane %v4465, 7
      %v4903 = vsel %vm1752, %v4900, %v4902
      %v4904 = vrot.slane %v4466, 7
      %v4905 = vrot.slane %v4467, 7
      %v4906 = vsel %vm1752, %v4904, %v4905
      %v4907 = vrot.slane %v4468, 7
      %v4908 = vsel %vm1752, %v4905, %v4907
      %v4909 = vrot.slane %v4469, 7
      %v4910 = vrot.slane %v4470, 7
      %v4911 = vsel %vm1752, %v4909, %v4910
      %v4912 = vrot.slane %v4471, 7
      %v4913 = vsel %vm1752, %v4910, %v4912
      %v4914 = vrot.slane %v4472, 7
      %v4915 = vrot.slane %v4473, 7
      %v4916 = vsel %vm1752, %v4914, %v4915
      %v4917 = vrot.slane %v4474, 7
      %v4918 = vsel %vm1752, %v4915, %v4917
      %v4919 = vrot.slane %v4475, 7
      %v4920 = vrot.slane %v4476, 7
      %v4921 = vsel %vm1752, %v4919, %v4920
      %v4922 = vrot.slane %v4477, 7
      %v4923 = vsel %vm1752, %v4920, %v4922
      %v4924 = vrot.slane %v4478, 7
      %v4925 = vrot.slane %v4479, 7
      %v4926 = vsel %vm1752, %v4924, %v4925
      %v4927 = vrot.slane %v4480, 7
      %v4928 = vsel %vm1752, %v4925, %v4927
      %v4945 = vadd.f32 %v4873, %v4891
      %v4946 = vadd.f32 %v4874, %v4893
      %v4947 = vadd.f32 %v4875, %v4896
      %v4948 = vadd.f32 %v4876, %v4898
      %v4949 = vadd.f32 %v4877, %v4901
      %v4950 = vadd.f32 %v4878, %v4903
      %v4951 = vadd.f32 %v4879, %v4906
      %v4952 = vadd.f32 %v4880, %v4908
      %v4953 = vadd.f32 %v4881, %v4911
      %v4954 = vadd.f32 %v4882, %v4913
      %v4955 = vadd.f32 %v4883, %v4916
      %v4956 = vadd.f32 %v4884, %v4918
      %v4957 = vadd.f32 %v4885, %v4921
      %v4958 = vadd.f32 %v4886, %v4923
      %v4959 = vadd.f32 %v4887, %v4926
      %v4960 = vadd.f32 %v4888, %v4928
      %v4961 = vadd.f32 %v4945, %v4338
      %v4962 = vadd.f32 %v4946, %v4339
      %v4963 = vadd.f32 %v4947, %v4341
      %v4964 = vadd.f32 %v4948, %v4342
      %v4965 = vadd.f32 %v4949, %v4344
      %v4966 = vadd.f32 %v4950, %v4345
      %v4967 = vadd.f32 %v4951, %v4347
      %v4968 = vadd.f32 %v4952, %v4348
      %v4969 = vadd.f32 %v4953, %v4350
      %v4970 = vadd.f32 %v4954, %v4351
      %v4971 = vadd.f32 %v4955, %v4353
      %v4972 = vadd.f32 %v4956, %v4354
      %v4973 = vadd.f32 %v4957, %v4356
      %v4974 = vadd.f32 %v4958, %v4357
      %v4975 = vadd.f32 %v4959, %v4359
      %v4976 = vadd.f32 %v4960, %v4360
      %v4977 = vmul.f32 %v4172, 0.007598758
      %v4978 = vmul.f32 %v4176, 0.007598758
      %v4979 = vmul.f32 %v4180, 0.007598758
      %v4980 = vmul.f32 %v4184, 0.007598758
      %v4981 = vmul.f32 %v4188, 0.007598758
      %v4982 = vmul.f32 %v4192, 0.007598758
      %v4983 = vmul.f32 %v4196, 0.007598758
      %v4984 = vmul.f32 %v4200, 0.007598758
      %v4993 = vrot.slane %v4977, 1
      %v4994 = vsel %vm1122, %v4268, %v4993
      %v4995 = vrot.slane %v4978, 1
      %v4996 = vsel %vm1122, %v4273, %v4995
      %v4997 = vrot.slane %v4979, 1
      %v4998 = vsel %vm1122, %v4278, %v4997
      %v4999 = vrot.slane %v4980, 1
      %v5000 = vsel %vm1122, %v4283, %v4999
      %v5001 = vrot.slane %v4981, 1
      %v5002 = vsel %vm1122, %v4288, %v5001
      %v5003 = vrot.slane %v4982, 1
      %v5004 = vsel %vm1122, %v4293, %v5003
      %v5005 = vrot.slane %v4983, 1
      %v5006 = vsel %vm1122, %v4298, %v5005
      %v5007 = vrot.slane %v4984, 1
      %v5008 = vsel %vm1122, %v4303, %v5007
      %v5017 = vadd.f32 %v4961, %v4269
      %v5018 = vadd.f32 %v4962, %v4994
      %v5019 = vadd.f32 %v4963, %v4274
      %v5020 = vadd.f32 %v4964, %v4996
      %v5021 = vadd.f32 %v4965, %v4279
      %v5022 = vadd.f32 %v4966, %v4998
      %v5023 = vadd.f32 %v4967, %v4284
      %v5024 = vadd.f32 %v4968, %v5000
      %v5025 = vadd.f32 %v4969, %v4289
      %v5026 = vadd.f32 %v4970, %v5002
      %v5027 = vadd.f32 %v4971, %v4294
      %v5028 = vadd.f32 %v4972, %v5004
      %v5029 = vadd.f32 %v4973, %v4299
      %v5030 = vadd.f32 %v4974, %v5006
      %v5031 = vadd.f32 %v4975, %v4304
      %v5032 = vadd.f32 %v4976, %v5008
      %v5033 = vmul.f32 %v4171, 0.0010283801
      %v5034 = vmul.f32 %v4172, 0.0010283801
      %v5035 = vmul.f32 %v4175, 0.0010283801
      %v5036 = vmul.f32 %v4176, 0.0010283801
      %v5037 = vmul.f32 %v4179, 0.0010283801
      %v5038 = vmul.f32 %v4180, 0.0010283801
      %v5039 = vmul.f32 %v4183, 0.0010283801
      %v5040 = vmul.f32 %v4184, 0.0010283801
      %v5041 = vmul.f32 %v4187, 0.0010283801
      %v5042 = vmul.f32 %v4188, 0.0010283801
      %v5043 = vmul.f32 %v4191, 0.0010283801
      %v5044 = vmul.f32 %v4192, 0.0010283801
      %v5045 = vmul.f32 %v4195, 0.0010283801
      %v5046 = vmul.f32 %v4196, 0.0010283801
      %v5047 = vmul.f32 %v4199, 0.0010283801
      %v5048 = vmul.f32 %v4200, 0.0010283801
      %v5073 = vrot.slane %v4202, 2
      %v5074 = vrot.slane %v5033, 2
      %v5075 = vsel %vm1243, %v5073, %v5074
      %v5076 = vrot.slane %v5034, 2
      %v5077 = vsel %vm1243, %v5074, %v5076
      %v5078 = vrot.slane %v4204, 2
      %v5079 = vrot.slane %v5035, 2
      %v5080 = vsel %vm1243, %v5078, %v5079
      %v5081 = vrot.slane %v5036, 2
      %v5082 = vsel %vm1243, %v5079, %v5081
      %v5083 = vrot.slane %v4206, 2
      %v5084 = vrot.slane %v5037, 2
      %v5085 = vsel %vm1243, %v5083, %v5084
      %v5086 = vrot.slane %v5038, 2
      %v5087 = vsel %vm1243, %v5084, %v5086
      %v5088 = vrot.slane %v4208, 2
      %v5089 = vrot.slane %v5039, 2
      %v5090 = vsel %vm1243, %v5088, %v5089
      %v5091 = vrot.slane %v5040, 2
      %v5092 = vsel %vm1243, %v5089, %v5091
      %v5093 = vrot.slane %v4210, 2
      %v5094 = vrot.slane %v5041, 2
      %v5095 = vsel %vm1243, %v5093, %v5094
      %v5096 = vrot.slane %v5042, 2
      %v5097 = vsel %vm1243, %v5094, %v5096
      %v5098 = vrot.slane %v4212, 2
      %v5099 = vrot.slane %v5043, 2
      %v5100 = vsel %vm1243, %v5098, %v5099
      %v5101 = vrot.slane %v5044, 2
      %v5102 = vsel %vm1243, %v5099, %v5101
      %v5103 = vrot.slane %v4214, 2
      %v5104 = vrot.slane %v5045, 2
      %v5105 = vsel %vm1243, %v5103, %v5104
      %v5106 = vrot.slane %v5046, 2
      %v5107 = vsel %vm1243, %v5104, %v5106
      %v5108 = vrot.slane %v4216, 2
      %v5109 = vrot.slane %v5047, 2
      %v5110 = vsel %vm1243, %v5108, %v5109
      %v5111 = vrot.slane %v5048, 2
      %v5112 = vsel %vm1243, %v5109, %v5111
      %v5129 = vadd.f32 %v5017, %v5075
      %v5130 = vadd.f32 %v5018, %v5077
      %v5131 = vadd.f32 %v5019, %v5080
      %v5132 = vadd.f32 %v5020, %v5082
      %v5133 = vadd.f32 %v5021, %v5085
      %v5134 = vadd.f32 %v5022, %v5087
      %v5135 = vadd.f32 %v5023, %v5090
      %v5136 = vadd.f32 %v5024, %v5092
      %v5137 = vadd.f32 %v5025, %v5095
      %v5138 = vadd.f32 %v5026, %v5097
      %v5139 = vadd.f32 %v5027, %v5100
      %v5140 = vadd.f32 %v5028, %v5102
      %v5141 = vadd.f32 %v5029, %v5105
      %v5142 = vadd.f32 %v5030, %v5107
      %v5143 = vadd.f32 %v5031, %v5110
      %v5144 = vadd.f32 %v5032, %v5112
      %v5145 = vmul.f32 %v290, 0.0010283801
      %v5146 = vmul.f32 %v291, 0.0010283801
      %v5147 = vmul.f32 %v292, 0.0010283801
      %v5148 = vmul.f32 %v293, 0.0010283801
      %v5149 = vmul.f32 %v294, 0.0010283801
      %v5150 = vmul.f32 %v295, 0.0010283801
      %v5151 = vmul.f32 %v296, 0.0010283801
      %v5152 = vmul.f32 %v297, 0.0010283801
      %v5153 = vmul.f32 %v298, 0.0010283801
      %v5154 = vmul.f32 %v299, 0.0010283801
      %v5155 = vmul.f32 %v300, 0.0010283801
      %v5156 = vmul.f32 %v301, 0.0010283801
      %v5157 = vmul.f32 %v302, 0.0010283801
      %v5158 = vmul.f32 %v303, 0.0010283801
      %v5159 = vmul.f32 %v304, 0.0010283801
      %v5160 = vmul.f32 %v305, 0.0010283801
      %v5161 = vmul.f32 %v306, 0.0010283801
      %v5162 = vmul.f32 %v307, 0.0010283801
      %v5163 = vmul.f32 %v308, 0.0010283801
      %v5164 = vmul.f32 %v309, 0.0010283801
      %v5165 = vmul.f32 %v310, 0.0010283801
      %v5166 = vmul.f32 %v311, 0.0010283801
      %v5167 = vmul.f32 %v312, 0.0010283801
      %v5168 = vmul.f32 %v313, 0.0010283801
      %v5169 = vmul.f32 %v314, 0.0010283801
      %v5170 = vmul.f32 %v315, 0.0010283801
      %v5171 = vmul.f32 %v316, 0.0010283801
      %v5172 = vmul.f32 %v317, 0.0010283801
      %v5173 = vmul.f32 %v318, 0.0010283801
      %v5174 = vmul.f32 %v319, 0.0010283801
      %v5175 = vmul.f32 %v320, 0.0010283801
      %v5176 = vmul.f32 %v321, 0.0010283801
      %v5177 = vmul.f32 %v294, 0.007598758
      %v5178 = vmul.f32 %v295, 0.007598758
      %v5179 = vmul.f32 %v296, 0.007598758
      %v5180 = vmul.f32 %v297, 0.007598758
      %v5181 = vmul.f32 %v298, 0.007598758
      %v5182 = vmul.f32 %v299, 0.007598758
      %v5183 = vmul.f32 %v300, 0.007598758
      %v5184 = vmul.f32 %v301, 0.007598758
      %v5185 = vmul.f32 %v302, 0.007598758
      %v5186 = vmul.f32 %v303, 0.007598758
      %v5187 = vmul.f32 %v304, 0.007598758
      %v5188 = vmul.f32 %v305, 0.007598758
      %v5189 = vmul.f32 %v306, 0.007598758
      %v5190 = vmul.f32 %v307, 0.007598758
      %v5191 = vmul.f32 %v308, 0.007598758
      %v5192 = vmul.f32 %v309, 0.007598758
      %v5193 = vmul.f32 %v310, 0.007598758
      %v5194 = vmul.f32 %v311, 0.007598758
      %v5195 = vmul.f32 %v312, 0.007598758
      %v5196 = vmul.f32 %v313, 0.007598758
      %v5197 = vmul.f32 %v314, 0.007598758
      %v5198 = vmul.f32 %v315, 0.007598758
      %v5199 = vmul.f32 %v316, 0.007598758
      %v5200 = vmul.f32 %v317, 0.007598758
      %v5201 = vmul.f32 %v318, 0.007598758
      %v5202 = vmul.f32 %v319, 0.007598758
      %v5203 = vmul.f32 %v320, 0.007598758
      %v5204 = vmul.f32 %v321, 0.007598758
      %v5205 = vmul.f32 %v322, 0.007598758
      %v5206 = vmul.f32 %v323, 0.007598758
      %v5207 = vmul.f32 %v324, 0.007598758
      %v5208 = vmul.f32 %v325, 0.007598758
      %v5209 = vadd.f32 %v5145, %v5177
      %v5210 = vadd.f32 %v5146, %v5178
      %v5211 = vadd.f32 %v5147, %v5179
      %v5212 = vadd.f32 %v5148, %v5180
      %v5213 = vadd.f32 %v5149, %v5181
      %v5214 = vadd.f32 %v5150, %v5182
      %v5215 = vadd.f32 %v5151, %v5183
      %v5216 = vadd.f32 %v5152, %v5184
      %v5217 = vadd.f32 %v5153, %v5185
      %v5218 = vadd.f32 %v5154, %v5186
      %v5219 = vadd.f32 %v5155, %v5187
      %v5220 = vadd.f32 %v5156, %v5188
      %v5221 = vadd.f32 %v5157, %v5189
      %v5222 = vadd.f32 %v5158, %v5190
      %v5223 = vadd.f32 %v5159, %v5191
      %v5224 = vadd.f32 %v5160, %v5192
      %v5225 = vadd.f32 %v5161, %v5193
      %v5226 = vadd.f32 %v5162, %v5194
      %v5227 = vadd.f32 %v5163, %v5195
      %v5228 = vadd.f32 %v5164, %v5196
      %v5229 = vadd.f32 %v5165, %v5197
      %v5230 = vadd.f32 %v5166, %v5198
      %v5231 = vadd.f32 %v5167, %v5199
      %v5232 = vadd.f32 %v5168, %v5200
      %v5233 = vadd.f32 %v5169, %v5201
      %v5234 = vadd.f32 %v5170, %v5202
      %v5235 = vadd.f32 %v5171, %v5203
      %v5236 = vadd.f32 %v5172, %v5204
      %v5237 = vadd.f32 %v5173, %v5205
      %v5238 = vadd.f32 %v5174, %v5206
      %v5239 = vadd.f32 %v5175, %v5207
      %v5240 = vadd.f32 %v5176, %v5208
      %v5241 = vmul.f32 %v298, 0.036000773
      %v5242 = vmul.f32 %v299, 0.036000773
      %v5243 = vmul.f32 %v300, 0.036000773
      %v5244 = vmul.f32 %v301, 0.036000773
      %v5245 = vmul.f32 %v302, 0.036000773
      %v5246 = vmul.f32 %v303, 0.036000773
      %v5247 = vmul.f32 %v304, 0.036000773
      %v5248 = vmul.f32 %v305, 0.036000773
      %v5249 = vmul.f32 %v306, 0.036000773
      %v5250 = vmul.f32 %v307, 0.036000773
      %v5251 = vmul.f32 %v308, 0.036000773
      %v5252 = vmul.f32 %v309, 0.036000773
      %v5253 = vmul.f32 %v310, 0.036000773
      %v5254 = vmul.f32 %v311, 0.036000773
      %v5255 = vmul.f32 %v312, 0.036000773
      %v5256 = vmul.f32 %v313, 0.036000773
      %v5257 = vmul.f32 %v314, 0.036000773
      %v5258 = vmul.f32 %v315, 0.036000773
      %v5259 = vmul.f32 %v316, 0.036000773
      %v5260 = vmul.f32 %v317, 0.036000773
      %v5261 = vmul.f32 %v318, 0.036000773
      %v5262 = vmul.f32 %v319, 0.036000773
      %v5263 = vmul.f32 %v320, 0.036000773
      %v5264 = vmul.f32 %v321, 0.036000773
      %v5265 = vmul.f32 %v322, 0.036000773
      %v5266 = vmul.f32 %v323, 0.036000773
      %v5267 = vmul.f32 %v324, 0.036000773
      %v5268 = vmul.f32 %v325, 0.036000773
      %v5269 = vmul.f32 %v326, 0.036000773
      %v5270 = vmul.f32 %v327, 0.036000773
      %v5271 = vmul.f32 %v328, 0.036000773
      %v5272 = vmul.f32 %v329, 0.036000773
      %v5273 = vadd.f32 %v5209, %v5241
      %v5274 = vadd.f32 %v5210, %v5242
      %v5275 = vadd.f32 %v5211, %v5243
      %v5276 = vadd.f32 %v5212, %v5244
      %v5277 = vadd.f32 %v5213, %v5245
      %v5278 = vadd.f32 %v5214, %v5246
      %v5279 = vadd.f32 %v5215, %v5247
      %v5280 = vadd.f32 %v5216, %v5248
      %v5281 = vadd.f32 %v5217, %v5249
      %v5282 = vadd.f32 %v5218, %v5250
      %v5283 = vadd.f32 %v5219, %v5251
      %v5284 = vadd.f32 %v5220, %v5252
      %v5285 = vadd.f32 %v5221, %v5253
      %v5286 = vadd.f32 %v5222, %v5254
      %v5287 = vadd.f32 %v5223, %v5255
      %v5288 = vadd.f32 %v5224, %v5256
      %v5289 = vadd.f32 %v5225, %v5257
      %v5290 = vadd.f32 %v5226, %v5258
      %v5291 = vadd.f32 %v5227, %v5259
      %v5292 = vadd.f32 %v5228, %v5260
      %v5293 = vadd.f32 %v5229, %v5261
      %v5294 = vadd.f32 %v5230, %v5262
      %v5295 = vadd.f32 %v5231, %v5263
      %v5296 = vadd.f32 %v5232, %v5264
      %v5297 = vadd.f32 %v5233, %v5265
      %v5298 = vadd.f32 %v5234, %v5266
      %v5299 = vadd.f32 %v5235, %v5267
      %v5300 = vadd.f32 %v5236, %v5268
      %v5301 = vadd.f32 %v5237, %v5269
      %v5302 = vadd.f32 %v5238, %v5270
      %v5303 = vadd.f32 %v5239, %v5271
      %v5304 = vadd.f32 %v5240, %v5272
      %v5305 = vmul.f32 %v302, 0.10936069
      %v5306 = vmul.f32 %v303, 0.10936069
      %v5307 = vmul.f32 %v304, 0.10936069
      %v5308 = vmul.f32 %v305, 0.10936069
      %v5309 = vmul.f32 %v306, 0.10936069
      %v5310 = vmul.f32 %v307, 0.10936069
      %v5311 = vmul.f32 %v308, 0.10936069
      %v5312 = vmul.f32 %v309, 0.10936069
      %v5313 = vmul.f32 %v310, 0.10936069
      %v5314 = vmul.f32 %v311, 0.10936069
      %v5315 = vmul.f32 %v312, 0.10936069
      %v5316 = vmul.f32 %v313, 0.10936069
      %v5317 = vmul.f32 %v314, 0.10936069
      %v5318 = vmul.f32 %v315, 0.10936069
      %v5319 = vmul.f32 %v316, 0.10936069
      %v5320 = vmul.f32 %v317, 0.10936069
      %v5321 = vmul.f32 %v318, 0.10936069
      %v5322 = vmul.f32 %v319, 0.10936069
      %v5323 = vmul.f32 %v320, 0.10936069
      %v5324 = vmul.f32 %v321, 0.10936069
      %v5325 = vmul.f32 %v322, 0.10936069
      %v5326 = vmul.f32 %v323, 0.10936069
      %v5327 = vmul.f32 %v324, 0.10936069
      %v5328 = vmul.f32 %v325, 0.10936069
      %v5329 = vmul.f32 %v326, 0.10936069
      %v5330 = vmul.f32 %v327, 0.10936069
      %v5331 = vmul.f32 %v328, 0.10936069
      %v5332 = vmul.f32 %v329, 0.10936069
      %v5333 = vmul.f32 %v330, 0.10936069
      %v5334 = vmul.f32 %v331, 0.10936069
      %v5335 = vmul.f32 %v332, 0.10936069
      %v5336 = vmul.f32 %v333, 0.10936069
      %v5337 = vadd.f32 %v5273, %v5305
      %v5338 = vadd.f32 %v5274, %v5306
      %v5339 = vadd.f32 %v5275, %v5307
      %v5340 = vadd.f32 %v5276, %v5308
      %v5341 = vadd.f32 %v5277, %v5309
      %v5342 = vadd.f32 %v5278, %v5310
      %v5343 = vadd.f32 %v5279, %v5311
      %v5344 = vadd.f32 %v5280, %v5312
      %v5345 = vadd.f32 %v5281, %v5313
      %v5346 = vadd.f32 %v5282, %v5314
      %v5347 = vadd.f32 %v5283, %v5315
      %v5348 = vadd.f32 %v5284, %v5316
      %v5349 = vadd.f32 %v5285, %v5317
      %v5350 = vadd.f32 %v5286, %v5318
      %v5351 = vadd.f32 %v5287, %v5319
      %v5352 = vadd.f32 %v5288, %v5320
      %v5353 = vadd.f32 %v5289, %v5321
      %v5354 = vadd.f32 %v5290, %v5322
      %v5355 = vadd.f32 %v5291, %v5323
      %v5356 = vadd.f32 %v5292, %v5324
      %v5357 = vadd.f32 %v5293, %v5325
      %v5358 = vadd.f32 %v5294, %v5326
      %v5359 = vadd.f32 %v5295, %v5327
      %v5360 = vadd.f32 %v5296, %v5328
      %v5361 = vadd.f32 %v5297, %v5329
      %v5362 = vadd.f32 %v5298, %v5330
      %v5363 = vadd.f32 %v5299, %v5331
      %v5364 = vadd.f32 %v5300, %v5332
      %v5365 = vadd.f32 %v5301, %v5333
      %v5366 = vadd.f32 %v5302, %v5334
      %v5367 = vadd.f32 %v5303, %v5335
      %v5368 = vadd.f32 %v5304, %v5336
      %v5369 = vmul.f32 %v306, 0.21300554
      %v5370 = vmul.f32 %v307, 0.21300554
      %v5371 = vmul.f32 %v308, 0.21300554
      %v5372 = vmul.f32 %v309, 0.21300554
      %v5373 = vmul.f32 %v310, 0.21300554
      %v5374 = vmul.f32 %v311, 0.21300554
      %v5375 = vmul.f32 %v312, 0.21300554
      %v5376 = vmul.f32 %v313, 0.21300554
      %v5377 = vmul.f32 %v314, 0.21300554
      %v5378 = vmul.f32 %v315, 0.21300554
      %v5379 = vmul.f32 %v316, 0.21300554
      %v5380 = vmul.f32 %v317, 0.21300554
      %v5381 = vmul.f32 %v318, 0.21300554
      %v5382 = vmul.f32 %v319, 0.21300554
      %v5383 = vmul.f32 %v320, 0.21300554
      %v5384 = vmul.f32 %v321, 0.21300554
      %v5385 = vmul.f32 %v322, 0.21300554
      %v5386 = vmul.f32 %v323, 0.21300554
      %v5387 = vmul.f32 %v324, 0.21300554
      %v5388 = vmul.f32 %v325, 0.21300554
      %v5389 = vmul.f32 %v326, 0.21300554
      %v5390 = vmul.f32 %v327, 0.21300554
      %v5391 = vmul.f32 %v328, 0.21300554
      %v5392 = vmul.f32 %v329, 0.21300554
      %v5393 = vmul.f32 %v330, 0.21300554
      %v5394 = vmul.f32 %v331, 0.21300554
      %v5395 = vmul.f32 %v332, 0.21300554
      %v5396 = vmul.f32 %v333, 0.21300554
      %v5397 = vmul.f32 %v334, 0.21300554
      %v5398 = vmul.f32 %v335, 0.21300554
      %v5399 = vmul.f32 %v336, 0.21300554
      %v5400 = vmul.f32 %v337, 0.21300554
      %v5401 = vadd.f32 %v5337, %v5369
      %v5402 = vadd.f32 %v5338, %v5370
      %v5403 = vadd.f32 %v5339, %v5371
      %v5404 = vadd.f32 %v5340, %v5372
      %v5405 = vadd.f32 %v5341, %v5373
      %v5406 = vadd.f32 %v5342, %v5374
      %v5407 = vadd.f32 %v5343, %v5375
      %v5408 = vadd.f32 %v5344, %v5376
      %v5409 = vadd.f32 %v5345, %v5377
      %v5410 = vadd.f32 %v5346, %v5378
      %v5411 = vadd.f32 %v5347, %v5379
      %v5412 = vadd.f32 %v5348, %v5380
      %v5413 = vadd.f32 %v5349, %v5381
      %v5414 = vadd.f32 %v5350, %v5382
      %v5415 = vadd.f32 %v5351, %v5383
      %v5416 = vadd.f32 %v5352, %v5384
      %v5417 = vadd.f32 %v5353, %v5385
      %v5418 = vadd.f32 %v5354, %v5386
      %v5419 = vadd.f32 %v5355, %v5387
      %v5420 = vadd.f32 %v5356, %v5388
      %v5421 = vadd.f32 %v5357, %v5389
      %v5422 = vadd.f32 %v5358, %v5390
      %v5423 = vadd.f32 %v5359, %v5391
      %v5424 = vadd.f32 %v5360, %v5392
      %v5425 = vadd.f32 %v5361, %v5393
      %v5426 = vadd.f32 %v5362, %v5394
      %v5427 = vadd.f32 %v5363, %v5395
      %v5428 = vadd.f32 %v5364, %v5396
      %v5429 = vadd.f32 %v5365, %v5397
      %v5430 = vadd.f32 %v5366, %v5398
      %v5431 = vadd.f32 %v5367, %v5399
      %v5432 = vadd.f32 %v5368, %v5400
      %v5433 = vmul.f32 %v310, 0.26601171
      %v5434 = vmul.f32 %v311, 0.26601171
      %v5435 = vmul.f32 %v312, 0.26601171
      %v5436 = vmul.f32 %v313, 0.26601171
      %v5437 = vmul.f32 %v314, 0.26601171
      %v5438 = vmul.f32 %v315, 0.26601171
      %v5439 = vmul.f32 %v316, 0.26601171
      %v5440 = vmul.f32 %v317, 0.26601171
      %v5441 = vmul.f32 %v318, 0.26601171
      %v5442 = vmul.f32 %v319, 0.26601171
      %v5443 = vmul.f32 %v320, 0.26601171
      %v5444 = vmul.f32 %v321, 0.26601171
      %v5445 = vmul.f32 %v322, 0.26601171
      %v5446 = vmul.f32 %v323, 0.26601171
      %v5447 = vmul.f32 %v324, 0.26601171
      %v5448 = vmul.f32 %v325, 0.26601171
      %v5449 = vmul.f32 %v326, 0.26601171
      %v5450 = vmul.f32 %v327, 0.26601171
      %v5451 = vmul.f32 %v328, 0.26601171
      %v5452 = vmul.f32 %v329, 0.26601171
      %v5453 = vmul.f32 %v330, 0.26601171
      %v5454 = vmul.f32 %v331, 0.26601171
      %v5455 = vmul.f32 %v332, 0.26601171
      %v5456 = vmul.f32 %v333, 0.26601171
      %v5457 = vmul.f32 %v334, 0.26601171
      %v5458 = vmul.f32 %v335, 0.26601171
      %v5459 = vmul.f32 %v336, 0.26601171
      %v5460 = vmul.f32 %v337, 0.26601171
      %v5461 = vmul.f32 %v338, 0.26601171
      %v5462 = vmul.f32 %v339, 0.26601171
      %v5463 = vmul.f32 %v340, 0.26601171
      %v5464 = vmul.f32 %v341, 0.26601171
      %v5465 = vadd.f32 %v5401, %v5433
      %v5466 = vadd.f32 %v5402, %v5434
      %v5467 = vadd.f32 %v5403, %v5435
      %v5468 = vadd.f32 %v5404, %v5436
      %v5469 = vadd.f32 %v5405, %v5437
      %v5470 = vadd.f32 %v5406, %v5438
      %v5471 = vadd.f32 %v5407, %v5439
      %v5472 = vadd.f32 %v5408, %v5440
      %v5473 = vadd.f32 %v5409, %v5441
      %v5474 = vadd.f32 %v5410, %v5442
      %v5475 = vadd.f32 %v5411, %v5443
      %v5476 = vadd.f32 %v5412, %v5444
      %v5477 = vadd.f32 %v5413, %v5445
      %v5478 = vadd.f32 %v5414, %v5446
      %v5479 = vadd.f32 %v5415, %v5447
      %v5480 = vadd.f32 %v5416, %v5448
      %v5481 = vadd.f32 %v5417, %v5449
      %v5482 = vadd.f32 %v5418, %v5450
      %v5483 = vadd.f32 %v5419, %v5451
      %v5484 = vadd.f32 %v5420, %v5452
      %v5485 = vadd.f32 %v5421, %v5453
      %v5486 = vadd.f32 %v5422, %v5454
      %v5487 = vadd.f32 %v5423, %v5455
      %v5488 = vadd.f32 %v5424, %v5456
      %v5489 = vadd.f32 %v5425, %v5457
      %v5490 = vadd.f32 %v5426, %v5458
      %v5491 = vadd.f32 %v5427, %v5459
      %v5492 = vadd.f32 %v5428, %v5460
      %v5493 = vadd.f32 %v5429, %v5461
      %v5494 = vadd.f32 %v5430, %v5462
      %v5495 = vadd.f32 %v5431, %v5463
      %v5496 = vadd.f32 %v5432, %v5464
      %v5497 = vmul.f32 %v338, 0.21300554
      %v5498 = vmul.f32 %v339, 0.21300554
      %v5499 = vmul.f32 %v340, 0.21300554
      %v5500 = vmul.f32 %v341, 0.21300554
      %v5501 = vmul.f32 %v342, 0.21300554
      %v5502 = vmul.f32 %v343, 0.21300554
      %v5503 = vmul.f32 %v344, 0.21300554
      %v5504 = vmul.f32 %v345, 0.21300554
      %v5505 = vadd.f32 %v5465, %v5377
      %v5506 = vadd.f32 %v5466, %v5378
      %v5507 = vadd.f32 %v5467, %v5379
      %v5508 = vadd.f32 %v5468, %v5380
      %v5509 = vadd.f32 %v5469, %v5381
      %v5510 = vadd.f32 %v5470, %v5382
      %v5511 = vadd.f32 %v5471, %v5383
      %v5512 = vadd.f32 %v5472, %v5384
      %v5513 = vadd.f32 %v5473, %v5385
      %v5514 = vadd.f32 %v5474, %v5386
      %v5515 = vadd.f32 %v5475, %v5387
      %v5516 = vadd.f32 %v5476, %v5388
      %v5517 = vadd.f32 %v5477, %v5389
      %v5518 = vadd.f32 %v5478, %v5390
      %v5519 = vadd.f32 %v5479, %v5391
      %v5520 = vadd.f32 %v5480, %v5392
      %v5521 = vadd.f32 %v5481, %v5393
      %v5522 = vadd.f32 %v5482, %v5394
      %v5523 = vadd.f32 %v5483, %v5395
      %v5524 = vadd.f32 %v5484, %v5396
      %v5525 = vadd.f32 %v5485, %v5397
      %v5526 = vadd.f32 %v5486, %v5398
      %v5527 = vadd.f32 %v5487, %v5399
      %v5528 = vadd.f32 %v5488, %v5400
      %v5529 = vadd.f32 %v5489, %v5497
      %v5530 = vadd.f32 %v5490, %v5498
      %v5531 = vadd.f32 %v5491, %v5499
      %v5532 = vadd.f32 %v5492, %v5500
      %v5533 = vadd.f32 %v5493, %v5501
      %v5534 = vadd.f32 %v5494, %v5502
      %v5535 = vadd.f32 %v5495, %v5503
      %v5536 = vadd.f32 %v5496, %v5504
      %v5537 = vmul.f32 %v334, 0.10936069
      %v5538 = vmul.f32 %v335, 0.10936069
      %v5539 = vmul.f32 %v336, 0.10936069
      %v5540 = vmul.f32 %v337, 0.10936069
      %v5541 = vmul.f32 %v338, 0.10936069
      %v5542 = vmul.f32 %v339, 0.10936069
      %v5543 = vmul.f32 %v340, 0.10936069
      %v5544 = vmul.f32 %v341, 0.10936069
      %v5545 = vmul.f32 %v342, 0.10936069
      %v5546 = vmul.f32 %v343, 0.10936069
      %v5547 = vmul.f32 %v344, 0.10936069
      %v5548 = vmul.f32 %v345, 0.10936069
      %v5549 = vmul.f32 %v346, 0.10936069
      %v5550 = vmul.f32 %v347, 0.10936069
      %v5551 = vmul.f32 %v348, 0.10936069
      %v5552 = vmul.f32 %v349, 0.10936069
      %v5553 = vadd.f32 %v5505, %v5321
      %v5554 = vadd.f32 %v5506, %v5322
      %v5555 = vadd.f32 %v5507, %v5323
      %v5556 = vadd.f32 %v5508, %v5324
      %v5557 = vadd.f32 %v5509, %v5325
      %v5558 = vadd.f32 %v5510, %v5326
      %v5559 = vadd.f32 %v5511, %v5327
      %v5560 = vadd.f32 %v5512, %v5328
      %v5561 = vadd.f32 %v5513, %v5329
      %v5562 = vadd.f32 %v5514, %v5330
      %v5563 = vadd.f32 %v5515, %v5331
      %v5564 = vadd.f32 %v5516, %v5332
      %v5565 = vadd.f32 %v5517, %v5333
      %v5566 = vadd.f32 %v5518, %v5334
      %v5567 = vadd.f32 %v5519, %v5335
      %v5568 = vadd.f32 %v5520, %v5336
      %v5569 = vadd.f32 %v5521, %v5537
      %v5570 = vadd.f32 %v5522, %v5538
      %v5571 = vadd.f32 %v5523, %v5539
      %v5572 = vadd.f32 %v5524, %v5540
      %v5573 = vadd.f32 %v5525, %v5541
      %v5574 = vadd.f32 %v5526, %v5542
      %v5575 = vadd.f32 %v5527, %v5543
      %v5576 = vadd.f32 %v5528, %v5544
      %v5577 = vadd.f32 %v5529, %v5545
      %v5578 = vadd.f32 %v5530, %v5546
      %v5579 = vadd.f32 %v5531, %v5547
      %v5580 = vadd.f32 %v5532, %v5548
      %v5581 = vadd.f32 %v5533, %v5549
      %v5582 = vadd.f32 %v5534, %v5550
      %v5583 = vadd.f32 %v5535, %v5551
      %v5584 = vadd.f32 %v5536, %v5552
      %v5585 = vmul.f32 %v330, 0.036000773
      %v5586 = vmul.f32 %v331, 0.036000773
      %v5587 = vmul.f32 %v332, 0.036000773
      %v5588 = vmul.f32 %v333, 0.036000773
      %v5589 = vmul.f32 %v334, 0.036000773
      %v5590 = vmul.f32 %v335, 0.036000773
      %v5591 = vmul.f32 %v336, 0.036000773
      %v5592 = vmul.f32 %v337, 0.036000773
      %v5593 = vmul.f32 %v338, 0.036000773
      %v5594 = vmul.f32 %v339, 0.036000773
      %v5595 = vmul.f32 %v340, 0.036000773
      %v5596 = vmul.f32 %v341, 0.036000773
      %v5597 = vmul.f32 %v342, 0.036000773
      %v5598 = vmul.f32 %v343, 0.036000773
      %v5599 = vmul.f32 %v344, 0.036000773
      %v5600 = vmul.f32 %v345, 0.036000773
      %v5601 = vmul.f32 %v346, 0.036000773
      %v5602 = vmul.f32 %v347, 0.036000773
      %v5603 = vmul.f32 %v348, 0.036000773
      %v5604 = vmul.f32 %v349, 0.036000773
      %v5605 = vmul.f32 %v350, 0.036000773
      %v5606 = vmul.f32 %v351, 0.036000773
      %v5607 = vmul.f32 %v352, 0.036000773
      %v5608 = vmul.f32 %v353, 0.036000773
      %v5609 = vadd.f32 %v5553, %v5265
      %v5610 = vadd.f32 %v5554, %v5266
      %v5611 = vadd.f32 %v5555, %v5267
      %v5612 = vadd.f32 %v5556, %v5268
      %v5613 = vadd.f32 %v5557, %v5269
      %v5614 = vadd.f32 %v5558, %v5270
      %v5615 = vadd.f32 %v5559, %v5271
      %v5616 = vadd.f32 %v5560, %v5272
      %v5617 = vadd.f32 %v5561, %v5585
      %v5618 = vadd.f32 %v5562, %v5586
      %v5619 = vadd.f32 %v5563, %v5587
      %v5620 = vadd.f32 %v5564, %v5588
      %v5621 = vadd.f32 %v5565, %v5589
      %v5622 = vadd.f32 %v5566, %v5590
      %v5623 = vadd.f32 %v5567, %v5591
      %v5624 = vadd.f32 %v5568, %v5592
      %v5625 = vadd.f32 %v5569, %v5593
      %v5626 = vadd.f32 %v5570, %v5594
      %v5627 = vadd.f32 %v5571, %v5595
      %v5628 = vadd.f32 %v5572, %v5596
      %v5629 = vadd.f32 %v5573, %v5597
      %v5630 = vadd.f32 %v5574, %v5598
      %v5631 = vadd.f32 %v5575, %v5599
      %v5632 = vadd.f32 %v5576, %v5600
      %v5633 = vadd.f32 %v5577, %v5601
      %v5634 = vadd.f32 %v5578, %v5602
      %v5635 = vadd.f32 %v5579, %v5603
      %v5636 = vadd.f32 %v5580, %v5604
      %v5637 = vadd.f32 %v5581, %v5605
      %v5638 = vadd.f32 %v5582, %v5606
      %v5639 = vadd.f32 %v5583, %v5607
      %v5640 = vadd.f32 %v5584, %v5608
      %v5641 = vmul.f32 %v326, 0.007598758
      %v5642 = vmul.f32 %v327, 0.007598758
      %v5643 = vmul.f32 %v328, 0.007598758
      %v5644 = vmul.f32 %v329, 0.007598758
      %v5645 = vmul.f32 %v330, 0.007598758
      %v5646 = vmul.f32 %v331, 0.007598758
      %v5647 = vmul.f32 %v332, 0.007598758
      %v5648 = vmul.f32 %v333, 0.007598758
      %v5649 = vmul.f32 %v334, 0.007598758
      %v5650 = vmul.f32 %v335, 0.007598758
      %v5651 = vmul.f32 %v336, 0.007598758
      %v5652 = vmul.f32 %v337, 0.007598758
      %v5653 = vmul.f32 %v338, 0.007598758
      %v5654 = vmul.f32 %v339, 0.007598758
      %v5655 = vmul.f32 %v340, 0.007598758
      %v5656 = vmul.f32 %v341, 0.007598758
      %v5657 = vmul.f32 %v342, 0.007598758
      %v5658 = vmul.f32 %v343, 0.007598758
      %v5659 = vmul.f32 %v344, 0.007598758
      %v5660 = vmul.f32 %v345, 0.007598758
      %v5661 = vmul.f32 %v346, 0.007598758
      %v5662 = vmul.f32 %v347, 0.007598758
      %v5663 = vmul.f32 %v348, 0.007598758
      %v5664 = vmul.f32 %v349, 0.007598758
      %v5665 = vmul.f32 %v350, 0.007598758
      %v5666 = vmul.f32 %v351, 0.007598758
      %v5667 = vmul.f32 %v352, 0.007598758
      %v5668 = vmul.f32 %v353, 0.007598758
      %v5669 = vmul.f32 %v354, 0.007598758
      %v5670 = vmul.f32 %v355, 0.007598758
      %v5671 = vmul.f32 %v356, 0.007598758
      %v5672 = vmul.f32 %v357, 0.007598758
      %v5673 = vadd.f32 %v5609, %v5641
      %v5674 = vadd.f32 %v5610, %v5642
      %v5675 = vadd.f32 %v5611, %v5643
      %v5676 = vadd.f32 %v5612, %v5644
      %v5677 = vadd.f32 %v5613, %v5645
      %v5678 = vadd.f32 %v5614, %v5646
      %v5679 = vadd.f32 %v5615, %v5647
      %v5680 = vadd.f32 %v5616, %v5648
      %v5681 = vadd.f32 %v5617, %v5649
      %v5682 = vadd.f32 %v5618, %v5650
      %v5683 = vadd.f32 %v5619, %v5651
      %v5684 = vadd.f32 %v5620, %v5652
      %v5685 = vadd.f32 %v5621, %v5653
      %v5686 = vadd.f32 %v5622, %v5654
      %v5687 = vadd.f32 %v5623, %v5655
      %v5688 = vadd.f32 %v5624, %v5656
      %v5689 = vadd.f32 %v5625, %v5657
      %v5690 = vadd.f32 %v5626, %v5658
      %v5691 = vadd.f32 %v5627, %v5659
      %v5692 = vadd.f32 %v5628, %v5660
      %v5693 = vadd.f32 %v5629, %v5661
      %v5694 = vadd.f32 %v5630, %v5662
      %v5695 = vadd.f32 %v5631, %v5663
      %v5696 = vadd.f32 %v5632, %v5664
      %v5697 = vadd.f32 %v5633, %v5665
      %v5698 = vadd.f32 %v5634, %v5666
      %v5699 = vadd.f32 %v5635, %v5667
      %v5700 = vadd.f32 %v5636, %v5668
      %v5701 = vadd.f32 %v5637, %v5669
      %v5702 = vadd.f32 %v5638, %v5670
      %v5703 = vadd.f32 %v5639, %v5671
      %v5704 = vadd.f32 %v5640, %v5672
      %v5705 = vmul.f32 %v330, 0.0010283801
      %v5706 = vmul.f32 %v331, 0.0010283801
      %v5707 = vmul.f32 %v332, 0.0010283801
      %v5708 = vmul.f32 %v333, 0.0010283801
      %v5709 = vmul.f32 %v334, 0.0010283801
      %v5710 = vmul.f32 %v335, 0.0010283801
      %v5711 = vmul.f32 %v336, 0.0010283801
      %v5712 = vmul.f32 %v337, 0.0010283801
      %v5713 = vmul.f32 %v338, 0.0010283801
      %v5714 = vmul.f32 %v339, 0.0010283801
      %v5715 = vmul.f32 %v340, 0.0010283801
      %v5716 = vmul.f32 %v341, 0.0010283801
      %v5717 = vmul.f32 %v342, 0.0010283801
      %v5718 = vmul.f32 %v343, 0.0010283801
      %v5719 = vmul.f32 %v344, 0.0010283801
      %v5720 = vmul.f32 %v345, 0.0010283801
      %v5721 = vmul.f32 %v346, 0.0010283801
      %v5722 = vmul.f32 %v347, 0.0010283801
      %v5723 = vmul.f32 %v348, 0.0010283801
      %v5724 = vmul.f32 %v349, 0.0010283801
      %v5725 = vmul.f32 %v350, 0.0010283801
      %v5726 = vmul.f32 %v351, 0.0010283801
      %v5727 = vmul.f32 %v352, 0.0010283801
      %v5728 = vmul.f32 %v353, 0.0010283801
      %v5729 = vmul.f32 %v354, 0.0010283801
      %v5730 = vmul.f32 %v355, 0.0010283801
      %v5731 = vmul.f32 %v356, 0.0010283801
      %v5732 = vmul.f32 %v357, 0.0010283801
      %v5733 = vmul.f32 %v358, 0.0010283801
      %v5734 = vmul.f32 %v359, 0.0010283801
      %v5735 = vmul.f32 %v360, 0.0010283801
      %v5736 = vmul.f32 %v361, 0.0010283801
      %v5737 = vadd.f32 %v5673, %v5705
      %v5738 = vadd.f32 %v5674, %v5706
      %v5739 = vadd.f32 %v5675, %v5707
      %v5740 = vadd.f32 %v5676, %v5708
      %v5741 = vadd.f32 %v5677, %v5709
      %v5742 = vadd.f32 %v5678, %v5710
      %v5743 = vadd.f32 %v5679, %v5711
      %v5744 = vadd.f32 %v5680, %v5712
      %v5745 = vadd.f32 %v5681, %v5713
      %v5746 = vadd.f32 %v5682, %v5714
      %v5747 = vadd.f32 %v5683, %v5715
      %v5748 = vadd.f32 %v5684, %v5716
      %v5749 = vadd.f32 %v5685, %v5717
      %v5750 = vadd.f32 %v5686, %v5718
      %v5751 = vadd.f32 %v5687, %v5719
      %v5752 = vadd.f32 %v5688, %v5720
      %v5753 = vadd.f32 %v5689, %v5721
      %v5754 = vadd.f32 %v5690, %v5722
      %v5755 = vadd.f32 %v5691, %v5723
      %v5756 = vadd.f32 %v5692, %v5724
      %v5757 = vadd.f32 %v5693, %v5725
      %v5758 = vadd.f32 %v5694, %v5726
      %v5759 = vadd.f32 %v5695, %v5727
      %v5760 = vadd.f32 %v5696, %v5728
      %v5761 = vadd.f32 %v5697, %v5729
      %v5762 = vadd.f32 %v5698, %v5730
      %v5763 = vadd.f32 %v5699, %v5731
      %v5764 = vadd.f32 %v5700, %v5732
      %v5765 = vadd.f32 %v5701, %v5733
      %v5766 = vadd.f32 %v5702, %v5734
      %v5767 = vadd.f32 %v5703, %v5735
      %v5768 = vadd.f32 %v5704, %v5736
      %v5769 = vmul.f32 %v5737, 0.0010283801
      %v5770 = vmul.f32 %v5738, 0.0010283801
      %v5771 = vmul.f32 %v5741, 0.0010283801
      %v5772 = vmul.f32 %v5742, 0.0010283801
      %v5773 = vmul.f32 %v5745, 0.0010283801
      %v5774 = vmul.f32 %v5746, 0.0010283801
      %v5775 = vmul.f32 %v5749, 0.0010283801
      %v5776 = vmul.f32 %v5750, 0.0010283801
      %v5777 = vmul.f32 %v5753, 0.0010283801
      %v5778 = vmul.f32 %v5754, 0.0010283801
      %v5779 = vmul.f32 %v5757, 0.0010283801
      %v5780 = vmul.f32 %v5758, 0.0010283801
      %v5781 = vmul.f32 %v5761, 0.0010283801
      %v5782 = vmul.f32 %v5762, 0.0010283801
      %v5783 = vmul.f32 %v5765, 0.0010283801
      %v5784 = vmul.f32 %v5766, 0.0010283801
      %v5785 = vmul.f32 %v5737, 0.007598758
      %v5786 = vmul.f32 %v5738, 0.007598758
      %v5787 = vmul.f32 %v5739, 0.007598758
      %v5788 = vmul.f32 %v5741, 0.007598758
      %v5789 = vmul.f32 %v5742, 0.007598758
      %v5790 = vmul.f32 %v5743, 0.007598758
      %v5791 = vmul.f32 %v5745, 0.007598758
      %v5792 = vmul.f32 %v5746, 0.007598758
      %v5793 = vmul.f32 %v5747, 0.007598758
      %v5794 = vmul.f32 %v5749, 0.007598758
      %v5795 = vmul.f32 %v5750, 0.007598758
      %v5796 = vmul.f32 %v5751, 0.007598758
      %v5797 = vmul.f32 %v5753, 0.007598758
      %v5798 = vmul.f32 %v5754, 0.007598758
      %v5799 = vmul.f32 %v5755, 0.007598758
      %v5800 = vmul.f32 %v5757, 0.007598758
      %v5801 = vmul.f32 %v5758, 0.007598758
      %v5802 = vmul.f32 %v5759, 0.007598758
      %v5803 = vmul.f32 %v5761, 0.007598758
      %v5804 = vmul.f32 %v5762, 0.007598758
      %v5805 = vmul.f32 %v5763, 0.007598758
      %v5806 = vmul.f32 %v5765, 0.007598758
      %v5807 = vmul.f32 %v5766, 0.007598758
      %v5808 = vmul.f32 %v5767, 0.007598758
      %v5833 = vrot.slane %v5785, 1
      %v5834 = vrot.slane %v5786, 1
      %v5835 = vsel %vm1122, %v5833, %v5834
      %v5836 = vrot.slane %v5787, 1
      %v5837 = vsel %vm1122, %v5834, %v5836
      %v5838 = vrot.slane %v5788, 1
      %v5839 = vrot.slane %v5789, 1
      %v5840 = vsel %vm1122, %v5838, %v5839
      %v5841 = vrot.slane %v5790, 1
      %v5842 = vsel %vm1122, %v5839, %v5841
      %v5843 = vrot.slane %v5791, 1
      %v5844 = vrot.slane %v5792, 1
      %v5845 = vsel %vm1122, %v5843, %v5844
      %v5846 = vrot.slane %v5793, 1
      %v5847 = vsel %vm1122, %v5844, %v5846
      %v5848 = vrot.slane %v5794, 1
      %v5849 = vrot.slane %v5795, 1
      %v5850 = vsel %vm1122, %v5848, %v5849
      %v5851 = vrot.slane %v5796, 1
      %v5852 = vsel %vm1122, %v5849, %v5851
      %v5853 = vrot.slane %v5797, 1
      %v5854 = vrot.slane %v5798, 1
      %v5855 = vsel %vm1122, %v5853, %v5854
      %v5856 = vrot.slane %v5799, 1
      %v5857 = vsel %vm1122, %v5854, %v5856
      %v5858 = vrot.slane %v5800, 1
      %v5859 = vrot.slane %v5801, 1
      %v5860 = vsel %vm1122, %v5858, %v5859
      %v5861 = vrot.slane %v5802, 1
      %v5862 = vsel %vm1122, %v5859, %v5861
      %v5863 = vrot.slane %v5803, 1
      %v5864 = vrot.slane %v5804, 1
      %v5865 = vsel %vm1122, %v5863, %v5864
      %v5866 = vrot.slane %v5805, 1
      %v5867 = vsel %vm1122, %v5864, %v5866
      %v5868 = vrot.slane %v5806, 1
      %v5869 = vrot.slane %v5807, 1
      %v5870 = vsel %vm1122, %v5868, %v5869
      %v5871 = vrot.slane %v5808, 1
      %v5872 = vsel %vm1122, %v5869, %v5871
      %v5889 = vadd.f32 %v5769, %v5835
      %v5890 = vadd.f32 %v5770, %v5837
      %v5891 = vadd.f32 %v5771, %v5840
      %v5892 = vadd.f32 %v5772, %v5842
      %v5893 = vadd.f32 %v5773, %v5845
      %v5894 = vadd.f32 %v5774, %v5847
      %v5895 = vadd.f32 %v5775, %v5850
      %v5896 = vadd.f32 %v5776, %v5852
      %v5897 = vadd.f32 %v5777, %v5855
      %v5898 = vadd.f32 %v5778, %v5857
      %v5899 = vadd.f32 %v5779, %v5860
      %v5900 = vadd.f32 %v5780, %v5862
      %v5901 = vadd.f32 %v5781, %v5865
      %v5902 = vadd.f32 %v5782, %v5867
      %v5903 = vadd.f32 %v5783, %v5870
      %v5904 = vadd.f32 %v5784, %v5872
      %v5905 = vmul.f32 %v5737, 0.036000773
      %v5906 = vmul.f32 %v5738, 0.036000773
      %v5907 = vmul.f32 %v5739, 0.036000773
      %v5908 = vmul.f32 %v5741, 0.036000773
      %v5909 = vmul.f32 %v5742, 0.036000773
      %v5910 = vmul.f32 %v5743, 0.036000773
      %v5911 = vmul.f32 %v5745, 0.036000773
      %v5912 = vmul.f32 %v5746, 0.036000773
      %v5913 = vmul.f32 %v5747, 0.036000773
      %v5914 = vmul.f32 %v5749, 0.036000773
      %v5915 = vmul.f32 %v5750, 0.036000773
      %v5916 = vmul.f32 %v5751, 0.036000773
      %v5917 = vmul.f32 %v5753, 0.036000773
      %v5918 = vmul.f32 %v5754, 0.036000773
      %v5919 = vmul.f32 %v5755, 0.036000773
      %v5920 = vmul.f32 %v5757, 0.036000773
      %v5921 = vmul.f32 %v5758, 0.036000773
      %v5922 = vmul.f32 %v5759, 0.036000773
      %v5923 = vmul.f32 %v5761, 0.036000773
      %v5924 = vmul.f32 %v5762, 0.036000773
      %v5925 = vmul.f32 %v5763, 0.036000773
      %v5926 = vmul.f32 %v5765, 0.036000773
      %v5927 = vmul.f32 %v5766, 0.036000773
      %v5928 = vmul.f32 %v5767, 0.036000773
      %v5953 = vrot.slane %v5905, 2
      %v5954 = vrot.slane %v5906, 2
      %v5955 = vsel %vm1243, %v5953, %v5954
      %v5956 = vrot.slane %v5907, 2
      %v5957 = vsel %vm1243, %v5954, %v5956
      %v5958 = vrot.slane %v5908, 2
      %v5959 = vrot.slane %v5909, 2
      %v5960 = vsel %vm1243, %v5958, %v5959
      %v5961 = vrot.slane %v5910, 2
      %v5962 = vsel %vm1243, %v5959, %v5961
      %v5963 = vrot.slane %v5911, 2
      %v5964 = vrot.slane %v5912, 2
      %v5965 = vsel %vm1243, %v5963, %v5964
      %v5966 = vrot.slane %v5913, 2
      %v5967 = vsel %vm1243, %v5964, %v5966
      %v5968 = vrot.slane %v5914, 2
      %v5969 = vrot.slane %v5915, 2
      %v5970 = vsel %vm1243, %v5968, %v5969
      %v5971 = vrot.slane %v5916, 2
      %v5972 = vsel %vm1243, %v5969, %v5971
      %v5973 = vrot.slane %v5917, 2
      %v5974 = vrot.slane %v5918, 2
      %v5975 = vsel %vm1243, %v5973, %v5974
      %v5976 = vrot.slane %v5919, 2
      %v5977 = vsel %vm1243, %v5974, %v5976
      %v5978 = vrot.slane %v5920, 2
      %v5979 = vrot.slane %v5921, 2
      %v5980 = vsel %vm1243, %v5978, %v5979
      %v5981 = vrot.slane %v5922, 2
      %v5982 = vsel %vm1243, %v5979, %v5981
      %v5983 = vrot.slane %v5923, 2
      %v5984 = vrot.slane %v5924, 2
      %v5985 = vsel %vm1243, %v5983, %v5984
      %v5986 = vrot.slane %v5925, 2
      %v5987 = vsel %vm1243, %v5984, %v5986
      %v5988 = vrot.slane %v5926, 2
      %v5989 = vrot.slane %v5927, 2
      %v5990 = vsel %vm1243, %v5988, %v5989
      %v5991 = vrot.slane %v5928, 2
      %v5992 = vsel %vm1243, %v5989, %v5991
      %v6009 = vadd.f32 %v5889, %v5955
      %v6010 = vadd.f32 %v5890, %v5957
      %v6011 = vadd.f32 %v5891, %v5960
      %v6012 = vadd.f32 %v5892, %v5962
      %v6013 = vadd.f32 %v5893, %v5965
      %v6014 = vadd.f32 %v5894, %v5967
      %v6015 = vadd.f32 %v5895, %v5970
      %v6016 = vadd.f32 %v5896, %v5972
      %v6017 = vadd.f32 %v5897, %v5975
      %v6018 = vadd.f32 %v5898, %v5977
      %v6019 = vadd.f32 %v5899, %v5980
      %v6020 = vadd.f32 %v5900, %v5982
      %v6021 = vadd.f32 %v5901, %v5985
      %v6022 = vadd.f32 %v5902, %v5987
      %v6023 = vadd.f32 %v5903, %v5990
      %v6024 = vadd.f32 %v5904, %v5992
      %v6025 = vmul.f32 %v5737, 0.10936069
      %v6026 = vmul.f32 %v5738, 0.10936069
      %v6027 = vmul.f32 %v5739, 0.10936069
      %v6028 = vmul.f32 %v5741, 0.10936069
      %v6029 = vmul.f32 %v5742, 0.10936069
      %v6030 = vmul.f32 %v5743, 0.10936069
      %v6031 = vmul.f32 %v5745, 0.10936069
      %v6032 = vmul.f32 %v5746, 0.10936069
      %v6033 = vmul.f32 %v5747, 0.10936069
      %v6034 = vmul.f32 %v5749, 0.10936069
      %v6035 = vmul.f32 %v5750, 0.10936069
      %v6036 = vmul.f32 %v5751, 0.10936069
      %v6037 = vmul.f32 %v5753, 0.10936069
      %v6038 = vmul.f32 %v5754, 0.10936069
      %v6039 = vmul.f32 %v5755, 0.10936069
      %v6040 = vmul.f32 %v5757, 0.10936069
      %v6041 = vmul.f32 %v5758, 0.10936069
      %v6042 = vmul.f32 %v5759, 0.10936069
      %v6043 = vmul.f32 %v5761, 0.10936069
      %v6044 = vmul.f32 %v5762, 0.10936069
      %v6045 = vmul.f32 %v5763, 0.10936069
      %v6046 = vmul.f32 %v5765, 0.10936069
      %v6047 = vmul.f32 %v5766, 0.10936069
      %v6048 = vmul.f32 %v5767, 0.10936069
      %v6073 = vrot.slane %v6025, 3
      %v6074 = vrot.slane %v6026, 3
      %v6075 = vsel %vm1364, %v6073, %v6074
      %v6076 = vrot.slane %v6027, 3
      %v6077 = vsel %vm1364, %v6074, %v6076
      %v6078 = vrot.slane %v6028, 3
      %v6079 = vrot.slane %v6029, 3
      %v6080 = vsel %vm1364, %v6078, %v6079
      %v6081 = vrot.slane %v6030, 3
      %v6082 = vsel %vm1364, %v6079, %v6081
      %v6083 = vrot.slane %v6031, 3
      %v6084 = vrot.slane %v6032, 3
      %v6085 = vsel %vm1364, %v6083, %v6084
      %v6086 = vrot.slane %v6033, 3
      %v6087 = vsel %vm1364, %v6084, %v6086
      %v6088 = vrot.slane %v6034, 3
      %v6089 = vrot.slane %v6035, 3
      %v6090 = vsel %vm1364, %v6088, %v6089
      %v6091 = vrot.slane %v6036, 3
      %v6092 = vsel %vm1364, %v6089, %v6091
      %v6093 = vrot.slane %v6037, 3
      %v6094 = vrot.slane %v6038, 3
      %v6095 = vsel %vm1364, %v6093, %v6094
      %v6096 = vrot.slane %v6039, 3
      %v6097 = vsel %vm1364, %v6094, %v6096
      %v6098 = vrot.slane %v6040, 3
      %v6099 = vrot.slane %v6041, 3
      %v6100 = vsel %vm1364, %v6098, %v6099
      %v6101 = vrot.slane %v6042, 3
      %v6102 = vsel %vm1364, %v6099, %v6101
      %v6103 = vrot.slane %v6043, 3
      %v6104 = vrot.slane %v6044, 3
      %v6105 = vsel %vm1364, %v6103, %v6104
      %v6106 = vrot.slane %v6045, 3
      %v6107 = vsel %vm1364, %v6104, %v6106
      %v6108 = vrot.slane %v6046, 3
      %v6109 = vrot.slane %v6047, 3
      %v6110 = vsel %vm1364, %v6108, %v6109
      %v6111 = vrot.slane %v6048, 3
      %v6112 = vsel %vm1364, %v6109, %v6111
      %v6129 = vadd.f32 %v6009, %v6075
      %v6130 = vadd.f32 %v6010, %v6077
      %v6131 = vadd.f32 %v6011, %v6080
      %v6132 = vadd.f32 %v6012, %v6082
      %v6133 = vadd.f32 %v6013, %v6085
      %v6134 = vadd.f32 %v6014, %v6087
      %v6135 = vadd.f32 %v6015, %v6090
      %v6136 = vadd.f32 %v6016, %v6092
      %v6137 = vadd.f32 %v6017, %v6095
      %v6138 = vadd.f32 %v6018, %v6097
      %v6139 = vadd.f32 %v6019, %v6100
      %v6140 = vadd.f32 %v6020, %v6102
      %v6141 = vadd.f32 %v6021, %v6105
      %v6142 = vadd.f32 %v6022, %v6107
      %v6143 = vadd.f32 %v6023, %v6110
      %v6144 = vadd.f32 %v6024, %v6112
      %v6145 = vmul.f32 %v5737, 0.21300554
      %v6146 = vmul.f32 %v5738, 0.21300554
      %v6147 = vmul.f32 %v5739, 0.21300554
      %v6148 = vmul.f32 %v5741, 0.21300554
      %v6149 = vmul.f32 %v5742, 0.21300554
      %v6150 = vmul.f32 %v5743, 0.21300554
      %v6151 = vmul.f32 %v5745, 0.21300554
      %v6152 = vmul.f32 %v5746, 0.21300554
      %v6153 = vmul.f32 %v5747, 0.21300554
      %v6154 = vmul.f32 %v5749, 0.21300554
      %v6155 = vmul.f32 %v5750, 0.21300554
      %v6156 = vmul.f32 %v5751, 0.21300554
      %v6157 = vmul.f32 %v5753, 0.21300554
      %v6158 = vmul.f32 %v5754, 0.21300554
      %v6159 = vmul.f32 %v5755, 0.21300554
      %v6160 = vmul.f32 %v5757, 0.21300554
      %v6161 = vmul.f32 %v5758, 0.21300554
      %v6162 = vmul.f32 %v5759, 0.21300554
      %v6163 = vmul.f32 %v5761, 0.21300554
      %v6164 = vmul.f32 %v5762, 0.21300554
      %v6165 = vmul.f32 %v5763, 0.21300554
      %v6166 = vmul.f32 %v5765, 0.21300554
      %v6167 = vmul.f32 %v5766, 0.21300554
      %v6168 = vmul.f32 %v5767, 0.21300554
      %v6193 = vrot.slane %v6145, 4
      %v6194 = vrot.slane %v6146, 4
      %v6195 = vsel %vm1485, %v6193, %v6194
      %v6196 = vrot.slane %v6147, 4
      %v6197 = vsel %vm1485, %v6194, %v6196
      %v6198 = vrot.slane %v6148, 4
      %v6199 = vrot.slane %v6149, 4
      %v6200 = vsel %vm1485, %v6198, %v6199
      %v6201 = vrot.slane %v6150, 4
      %v6202 = vsel %vm1485, %v6199, %v6201
      %v6203 = vrot.slane %v6151, 4
      %v6204 = vrot.slane %v6152, 4
      %v6205 = vsel %vm1485, %v6203, %v6204
      %v6206 = vrot.slane %v6153, 4
      %v6207 = vsel %vm1485, %v6204, %v6206
      %v6208 = vrot.slane %v6154, 4
      %v6209 = vrot.slane %v6155, 4
      %v6210 = vsel %vm1485, %v6208, %v6209
      %v6211 = vrot.slane %v6156, 4
      %v6212 = vsel %vm1485, %v6209, %v6211
      %v6213 = vrot.slane %v6157, 4
      %v6214 = vrot.slane %v6158, 4
      %v6215 = vsel %vm1485, %v6213, %v6214
      %v6216 = vrot.slane %v6159, 4
      %v6217 = vsel %vm1485, %v6214, %v6216
      %v6218 = vrot.slane %v6160, 4
      %v6219 = vrot.slane %v6161, 4
      %v6220 = vsel %vm1485, %v6218, %v6219
      %v6221 = vrot.slane %v6162, 4
      %v6222 = vsel %vm1485, %v6219, %v6221
      %v6223 = vrot.slane %v6163, 4
      %v6224 = vrot.slane %v6164, 4
      %v6225 = vsel %vm1485, %v6223, %v6224
      %v6226 = vrot.slane %v6165, 4
      %v6227 = vsel %vm1485, %v6224, %v6226
      %v6228 = vrot.slane %v6166, 4
      %v6229 = vrot.slane %v6167, 4
      %v6230 = vsel %vm1485, %v6228, %v6229
      %v6231 = vrot.slane %v6168, 4
      %v6232 = vsel %vm1485, %v6229, %v6231
      %v6249 = vadd.f32 %v6129, %v6195
      %v6250 = vadd.f32 %v6130, %v6197
      %v6251 = vadd.f32 %v6131, %v6200
      %v6252 = vadd.f32 %v6132, %v6202
      %v6253 = vadd.f32 %v6133, %v6205
      %v6254 = vadd.f32 %v6134, %v6207
      %v6255 = vadd.f32 %v6135, %v6210
      %v6256 = vadd.f32 %v6136, %v6212
      %v6257 = vadd.f32 %v6137, %v6215
      %v6258 = vadd.f32 %v6138, %v6217
      %v6259 = vadd.f32 %v6139, %v6220
      %v6260 = vadd.f32 %v6140, %v6222
      %v6261 = vadd.f32 %v6141, %v6225
      %v6262 = vadd.f32 %v6142, %v6227
      %v6263 = vadd.f32 %v6143, %v6230
      %v6264 = vadd.f32 %v6144, %v6232
      %v6265 = vmul.f32 %v5737, 0.26601171
      %v6266 = vmul.f32 %v5738, 0.26601171
      %v6267 = vmul.f32 %v5739, 0.26601171
      %v6268 = vmul.f32 %v5741, 0.26601171
      %v6269 = vmul.f32 %v5742, 0.26601171
      %v6270 = vmul.f32 %v5743, 0.26601171
      %v6271 = vmul.f32 %v5745, 0.26601171
      %v6272 = vmul.f32 %v5746, 0.26601171
      %v6273 = vmul.f32 %v5747, 0.26601171
      %v6274 = vmul.f32 %v5749, 0.26601171
      %v6275 = vmul.f32 %v5750, 0.26601171
      %v6276 = vmul.f32 %v5751, 0.26601171
      %v6277 = vmul.f32 %v5753, 0.26601171
      %v6278 = vmul.f32 %v5754, 0.26601171
      %v6279 = vmul.f32 %v5755, 0.26601171
      %v6280 = vmul.f32 %v5757, 0.26601171
      %v6281 = vmul.f32 %v5758, 0.26601171
      %v6282 = vmul.f32 %v5759, 0.26601171
      %v6283 = vmul.f32 %v5761, 0.26601171
      %v6284 = vmul.f32 %v5762, 0.26601171
      %v6285 = vmul.f32 %v5763, 0.26601171
      %v6286 = vmul.f32 %v5765, 0.26601171
      %v6287 = vmul.f32 %v5766, 0.26601171
      %v6288 = vmul.f32 %v5767, 0.26601171
      %v6313 = vrot.slane %v6265, 5
      %v6314 = vrot.slane %v6266, 5
      %v6315 = vsel %vm1606, %v6313, %v6314
      %v6316 = vrot.slane %v6267, 5
      %v6317 = vsel %vm1606, %v6314, %v6316
      %v6318 = vrot.slane %v6268, 5
      %v6319 = vrot.slane %v6269, 5
      %v6320 = vsel %vm1606, %v6318, %v6319
      %v6321 = vrot.slane %v6270, 5
      %v6322 = vsel %vm1606, %v6319, %v6321
      %v6323 = vrot.slane %v6271, 5
      %v6324 = vrot.slane %v6272, 5
      %v6325 = vsel %vm1606, %v6323, %v6324
      %v6326 = vrot.slane %v6273, 5
      %v6327 = vsel %vm1606, %v6324, %v6326
      %v6328 = vrot.slane %v6274, 5
      %v6329 = vrot.slane %v6275, 5
      %v6330 = vsel %vm1606, %v6328, %v6329
      %v6331 = vrot.slane %v6276, 5
      %v6332 = vsel %vm1606, %v6329, %v6331
      %v6333 = vrot.slane %v6277, 5
      %v6334 = vrot.slane %v6278, 5
      %v6335 = vsel %vm1606, %v6333, %v6334
      %v6336 = vrot.slane %v6279, 5
      %v6337 = vsel %vm1606, %v6334, %v6336
      %v6338 = vrot.slane %v6280, 5
      %v6339 = vrot.slane %v6281, 5
      %v6340 = vsel %vm1606, %v6338, %v6339
      %v6341 = vrot.slane %v6282, 5
      %v6342 = vsel %vm1606, %v6339, %v6341
      %v6343 = vrot.slane %v6283, 5
      %v6344 = vrot.slane %v6284, 5
      %v6345 = vsel %vm1606, %v6343, %v6344
      %v6346 = vrot.slane %v6285, 5
      %v6347 = vsel %vm1606, %v6344, %v6346
      %v6348 = vrot.slane %v6286, 5
      %v6349 = vrot.slane %v6287, 5
      %v6350 = vsel %vm1606, %v6348, %v6349
      %v6351 = vrot.slane %v6288, 5
      %v6352 = vsel %vm1606, %v6349, %v6351
      %v6369 = vadd.f32 %v6249, %v6315
      %v6370 = vadd.f32 %v6250, %v6317
      %v6371 = vadd.f32 %v6251, %v6320
      %v6372 = vadd.f32 %v6252, %v6322
      %v6373 = vadd.f32 %v6253, %v6325
      %v6374 = vadd.f32 %v6254, %v6327
      %v6375 = vadd.f32 %v6255, %v6330
      %v6376 = vadd.f32 %v6256, %v6332
      %v6377 = vadd.f32 %v6257, %v6335
      %v6378 = vadd.f32 %v6258, %v6337
      %v6379 = vadd.f32 %v6259, %v6340
      %v6380 = vadd.f32 %v6260, %v6342
      %v6381 = vadd.f32 %v6261, %v6345
      %v6382 = vadd.f32 %v6262, %v6347
      %v6383 = vadd.f32 %v6263, %v6350
      %v6384 = vadd.f32 %v6264, %v6352
      %v6385 = vrot.slane %v6145, 6
      %v6386 = vrot.slane %v6146, 6
      %v6387 = vsel %vm1679, %v6385, %v6386
      %v6388 = vrot.slane %v6147, 6
      %v6389 = vsel %vm1679, %v6386, %v6388
      %v6390 = vrot.slane %v6148, 6
      %v6391 = vrot.slane %v6149, 6
      %v6392 = vsel %vm1679, %v6390, %v6391
      %v6393 = vrot.slane %v6150, 6
      %v6394 = vsel %vm1679, %v6391, %v6393
      %v6395 = vrot.slane %v6151, 6
      %v6396 = vrot.slane %v6152, 6
      %v6397 = vsel %vm1679, %v6395, %v6396
      %v6398 = vrot.slane %v6153, 6
      %v6399 = vsel %vm1679, %v6396, %v6398
      %v6400 = vrot.slane %v6154, 6
      %v6401 = vrot.slane %v6155, 6
      %v6402 = vsel %vm1679, %v6400, %v6401
      %v6403 = vrot.slane %v6156, 6
      %v6404 = vsel %vm1679, %v6401, %v6403
      %v6405 = vrot.slane %v6157, 6
      %v6406 = vrot.slane %v6158, 6
      %v6407 = vsel %vm1679, %v6405, %v6406
      %v6408 = vrot.slane %v6159, 6
      %v6409 = vsel %vm1679, %v6406, %v6408
      %v6410 = vrot.slane %v6160, 6
      %v6411 = vrot.slane %v6161, 6
      %v6412 = vsel %vm1679, %v6410, %v6411
      %v6413 = vrot.slane %v6162, 6
      %v6414 = vsel %vm1679, %v6411, %v6413
      %v6415 = vrot.slane %v6163, 6
      %v6416 = vrot.slane %v6164, 6
      %v6417 = vsel %vm1679, %v6415, %v6416
      %v6418 = vrot.slane %v6165, 6
      %v6419 = vsel %vm1679, %v6416, %v6418
      %v6420 = vrot.slane %v6166, 6
      %v6421 = vrot.slane %v6167, 6
      %v6422 = vsel %vm1679, %v6420, %v6421
      %v6423 = vrot.slane %v6168, 6
      %v6424 = vsel %vm1679, %v6421, %v6423
      %v6441 = vadd.f32 %v6369, %v6387
      %v6442 = vadd.f32 %v6370, %v6389
      %v6443 = vadd.f32 %v6371, %v6392
      %v6444 = vadd.f32 %v6372, %v6394
      %v6445 = vadd.f32 %v6373, %v6397
      %v6446 = vadd.f32 %v6374, %v6399
      %v6447 = vadd.f32 %v6375, %v6402
      %v6448 = vadd.f32 %v6376, %v6404
      %v6449 = vadd.f32 %v6377, %v6407
      %v6450 = vadd.f32 %v6378, %v6409
      %v6451 = vadd.f32 %v6379, %v6412
      %v6452 = vadd.f32 %v6380, %v6414
      %v6453 = vadd.f32 %v6381, %v6417
      %v6454 = vadd.f32 %v6382, %v6419
      %v6455 = vadd.f32 %v6383, %v6422
      %v6456 = vadd.f32 %v6384, %v6424
      %v6457 = vrot.slane %v6025, 7
      %v6458 = vrot.slane %v6026, 7
      %v6459 = vsel %vm1752, %v6457, %v6458
      %v6460 = vrot.slane %v6027, 7
      %v6461 = vsel %vm1752, %v6458, %v6460
      %v6462 = vrot.slane %v6028, 7
      %v6463 = vrot.slane %v6029, 7
      %v6464 = vsel %vm1752, %v6462, %v6463
      %v6465 = vrot.slane %v6030, 7
      %v6466 = vsel %vm1752, %v6463, %v6465
      %v6467 = vrot.slane %v6031, 7
      %v6468 = vrot.slane %v6032, 7
      %v6469 = vsel %vm1752, %v6467, %v6468
      %v6470 = vrot.slane %v6033, 7
      %v6471 = vsel %vm1752, %v6468, %v6470
      %v6472 = vrot.slane %v6034, 7
      %v6473 = vrot.slane %v6035, 7
      %v6474 = vsel %vm1752, %v6472, %v6473
      %v6475 = vrot.slane %v6036, 7
      %v6476 = vsel %vm1752, %v6473, %v6475
      %v6477 = vrot.slane %v6037, 7
      %v6478 = vrot.slane %v6038, 7
      %v6479 = vsel %vm1752, %v6477, %v6478
      %v6480 = vrot.slane %v6039, 7
      %v6481 = vsel %vm1752, %v6478, %v6480
      %v6482 = vrot.slane %v6040, 7
      %v6483 = vrot.slane %v6041, 7
      %v6484 = vsel %vm1752, %v6482, %v6483
      %v6485 = vrot.slane %v6042, 7
      %v6486 = vsel %vm1752, %v6483, %v6485
      %v6487 = vrot.slane %v6043, 7
      %v6488 = vrot.slane %v6044, 7
      %v6489 = vsel %vm1752, %v6487, %v6488
      %v6490 = vrot.slane %v6045, 7
      %v6491 = vsel %vm1752, %v6488, %v6490
      %v6492 = vrot.slane %v6046, 7
      %v6493 = vrot.slane %v6047, 7
      %v6494 = vsel %vm1752, %v6492, %v6493
      %v6495 = vrot.slane %v6048, 7
      %v6496 = vsel %vm1752, %v6493, %v6495
      %v6513 = vadd.f32 %v6441, %v6459
      %v6514 = vadd.f32 %v6442, %v6461
      %v6515 = vadd.f32 %v6443, %v6464
      %v6516 = vadd.f32 %v6444, %v6466
      %v6517 = vadd.f32 %v6445, %v6469
      %v6518 = vadd.f32 %v6446, %v6471
      %v6519 = vadd.f32 %v6447, %v6474
      %v6520 = vadd.f32 %v6448, %v6476
      %v6521 = vadd.f32 %v6449, %v6479
      %v6522 = vadd.f32 %v6450, %v6481
      %v6523 = vadd.f32 %v6451, %v6484
      %v6524 = vadd.f32 %v6452, %v6486
      %v6525 = vadd.f32 %v6453, %v6489
      %v6526 = vadd.f32 %v6454, %v6491
      %v6527 = vadd.f32 %v6455, %v6494
      %v6528 = vadd.f32 %v6456, %v6496
      %v6529 = vadd.f32 %v6513, %v5906
      %v6530 = vadd.f32 %v6514, %v5907
      %v6531 = vadd.f32 %v6515, %v5909
      %v6532 = vadd.f32 %v6516, %v5910
      %v6533 = vadd.f32 %v6517, %v5912
      %v6534 = vadd.f32 %v6518, %v5913
      %v6535 = vadd.f32 %v6519, %v5915
      %v6536 = vadd.f32 %v6520, %v5916
      %v6537 = vadd.f32 %v6521, %v5918
      %v6538 = vadd.f32 %v6522, %v5919
      %v6539 = vadd.f32 %v6523, %v5921
      %v6540 = vadd.f32 %v6524, %v5922
      %v6541 = vadd.f32 %v6525, %v5924
      %v6542 = vadd.f32 %v6526, %v5925
      %v6543 = vadd.f32 %v6527, %v5927
      %v6544 = vadd.f32 %v6528, %v5928
      %v6545 = vmul.f32 %v5740, 0.007598758
      %v6546 = vmul.f32 %v5744, 0.007598758
      %v6547 = vmul.f32 %v5748, 0.007598758
      %v6548 = vmul.f32 %v5752, 0.007598758
      %v6549 = vmul.f32 %v5756, 0.007598758
      %v6550 = vmul.f32 %v5760, 0.007598758
      %v6551 = vmul.f32 %v5764, 0.007598758
      %v6552 = vmul.f32 %v5768, 0.007598758
      %v6561 = vrot.slane %v6545, 1
      %v6562 = vsel %vm1122, %v5836, %v6561
      %v6563 = vrot.slane %v6546, 1
      %v6564 = vsel %vm1122, %v5841, %v6563
      %v6565 = vrot.slane %v6547, 1
      %v6566 = vsel %vm1122, %v5846, %v6565
      %v6567 = vrot.slane %v6548, 1
      %v6568 = vsel %vm1122, %v5851, %v6567
      %v6569 = vrot.slane %v6549, 1
      %v6570 = vsel %vm1122, %v5856, %v6569
      %v6571 = vrot.slane %v6550, 1
      %v6572 = vsel %vm1122, %v5861, %v6571
      %v6573 = vrot.slane %v6551, 1
      %v6574 = vsel %vm1122, %v5866, %v6573
      %v6575 = vrot.slane %v6552, 1
      %v6576 = vsel %vm1122, %v5871, %v6575
      %v6585 = vadd.f32 %v6529, %v5837
      %v6586 = vadd.f32 %v6530, %v6562
      %v6587 = vadd.f32 %v6531, %v5842
      %v6588 = vadd.f32 %v6532, %v6564
      %v6589 = vadd.f32 %v6533, %v5847
      %v6590 = vadd.f32 %v6534, %v6566
      %v6591 = vadd.f32 %v6535, %v5852
      %v6592 = vadd.f32 %v6536, %v6568
      %v6593 = vadd.f32 %v6537, %v5857
      %v6594 = vadd.f32 %v6538, %v6570
      %v6595 = vadd.f32 %v6539, %v5862
      %v6596 = vadd.f32 %v6540, %v6572
      %v6597 = vadd.f32 %v6541, %v5867
      %v6598 = vadd.f32 %v6542, %v6574
      %v6599 = vadd.f32 %v6543, %v5872
      %v6600 = vadd.f32 %v6544, %v6576
      %v6601 = vmul.f32 %v5739, 0.0010283801
      %v6602 = vmul.f32 %v5740, 0.0010283801
      %v6603 = vmul.f32 %v5743, 0.0010283801
      %v6604 = vmul.f32 %v5744, 0.0010283801
      %v6605 = vmul.f32 %v5747, 0.0010283801
      %v6606 = vmul.f32 %v5748, 0.0010283801
      %v6607 = vmul.f32 %v5751, 0.0010283801
      %v6608 = vmul.f32 %v5752, 0.0010283801
      %v6609 = vmul.f32 %v5755, 0.0010283801
      %v6610 = vmul.f32 %v5756, 0.0010283801
      %v6611 = vmul.f32 %v5759, 0.0010283801
      %v6612 = vmul.f32 %v5760, 0.0010283801
      %v6613 = vmul.f32 %v5763, 0.0010283801
      %v6614 = vmul.f32 %v5764, 0.0010283801
      %v6615 = vmul.f32 %v5767, 0.0010283801
      %v6616 = vmul.f32 %v5768, 0.0010283801
      %v6641 = vrot.slane %v5770, 2
      %v6642 = vrot.slane %v6601, 2
      %v6643 = vsel %vm1243, %v6641, %v6642
      %v6644 = vrot.slane %v6602, 2
      %v6645 = vsel %vm1243, %v6642, %v6644
      %v6646 = vrot.slane %v5772, 2
      %v6647 = vrot.slane %v6603, 2
      %v6648 = vsel %vm1243, %v6646, %v6647
      %v6649 = vrot.slane %v6604, 2
      %v6650 = vsel %vm1243, %v6647, %v6649
      %v6651 = vrot.slane %v5774, 2
      %v6652 = vrot.slane %v6605, 2
      %v6653 = vsel %vm1243, %v6651, %v6652
      %v6654 = vrot.slane %v6606, 2
      %v6655 = vsel %vm1243, %v6652, %v6654
      %v6656 = vrot.slane %v5776, 2
      %v6657 = vrot.slane %v6607, 2
      %v6658 = vsel %vm1243, %v6656, %v6657
      %v6659 = vrot.slane %v6608, 2
      %v6660 = vsel %vm1243, %v6657, %v6659
      %v6661 = vrot.slane %v5778, 2
      %v6662 = vrot.slane %v6609, 2
      %v6663 = vsel %vm1243, %v6661, %v6662
      %v6664 = vrot.slane %v6610, 2
      %v6665 = vsel %vm1243, %v6662, %v6664
      %v6666 = vrot.slane %v5780, 2
      %v6667 = vrot.slane %v6611, 2
      %v6668 = vsel %vm1243, %v6666, %v6667
      %v6669 = vrot.slane %v6612, 2
      %v6670 = vsel %vm1243, %v6667, %v6669
      %v6671 = vrot.slane %v5782, 2
      %v6672 = vrot.slane %v6613, 2
      %v6673 = vsel %vm1243, %v6671, %v6672
      %v6674 = vrot.slane %v6614, 2
      %v6675 = vsel %vm1243, %v6672, %v6674
      %v6676 = vrot.slane %v5784, 2
      %v6677 = vrot.slane %v6615, 2
      %v6678 = vsel %vm1243, %v6676, %v6677
      %v6679 = vrot.slane %v6616, 2
      %v6680 = vsel %vm1243, %v6677, %v6679
      %v6697 = vadd.f32 %v6585, %v6643
      %v6698 = vadd.f32 %v6586, %v6645
      %v6699 = vadd.f32 %v6587, %v6648
      %v6700 = vadd.f32 %v6588, %v6650
      %v6701 = vadd.f32 %v6589, %v6653
      %v6702 = vadd.f32 %v6590, %v6655
      %v6703 = vadd.f32 %v6591, %v6658
      %v6704 = vadd.f32 %v6592, %v6660
      %v6705 = vadd.f32 %v6593, %v6663
      %v6706 = vadd.f32 %v6594, %v6665
      %v6707 = vadd.f32 %v6595, %v6668
      %v6708 = vadd.f32 %v6596, %v6670
      %v6709 = vadd.f32 %v6597, %v6673
      %v6710 = vadd.f32 %v6598, %v6675
      %v6711 = vadd.f32 %v6599, %v6678
      %v6712 = vadd.f32 %v6600, %v6680
      %v6713 = vmul.f32 %v362, 0.0010283801
      %v6714 = vmul.f32 %v363, 0.0010283801
      %v6715 = vmul.f32 %v364, 0.0010283801
      %v6716 = vmul.f32 %v365, 0.0010283801
      %v6717 = vmul.f32 %v366, 0.0010283801
      %v6718 = vmul.f32 %v367, 0.0010283801
      %v6719 = vmul.f32 %v368, 0.0010283801
      %v6720 = vmul.f32 %v369, 0.0010283801
      %v6721 = vmul.f32 %v370, 0.0010283801
      %v6722 = vmul.f32 %v371, 0.0010283801
      %v6723 = vmul.f32 %v372, 0.0010283801
      %v6724 = vmul.f32 %v373, 0.0010283801
      %v6725 = vmul.f32 %v374, 0.0010283801
      %v6726 = vmul.f32 %v375, 0.0010283801
      %v6727 = vmul.f32 %v376, 0.0010283801
      %v6728 = vmul.f32 %v377, 0.0010283801
      %v6729 = vmul.f32 %v378, 0.0010283801
      %v6730 = vmul.f32 %v379, 0.0010283801
      %v6731 = vmul.f32 %v380, 0.0010283801
      %v6732 = vmul.f32 %v381, 0.0010283801
      %v6733 = vmul.f32 %v382, 0.0010283801
      %v6734 = vmul.f32 %v383, 0.0010283801
      %v6735 = vmul.f32 %v384, 0.0010283801
      %v6736 = vmul.f32 %v385, 0.0010283801
      %v6737 = vmul.f32 %v386, 0.0010283801
      %v6738 = vmul.f32 %v387, 0.0010283801
      %v6739 = vmul.f32 %v388, 0.0010283801
      %v6740 = vmul.f32 %v389, 0.0010283801
      %v6741 = vmul.f32 %v390, 0.0010283801
      %v6742 = vmul.f32 %v391, 0.0010283801
      %v6743 = vmul.f32 %v392, 0.0010283801
      %v6744 = vmul.f32 %v393, 0.0010283801
      %v6745 = vmul.f32 %v366, 0.007598758
      %v6746 = vmul.f32 %v367, 0.007598758
      %v6747 = vmul.f32 %v368, 0.007598758
      %v6748 = vmul.f32 %v369, 0.007598758
      %v6749 = vmul.f32 %v370, 0.007598758
      %v6750 = vmul.f32 %v371, 0.007598758
      %v6751 = vmul.f32 %v372, 0.007598758
      %v6752 = vmul.f32 %v373, 0.007598758
      %v6753 = vmul.f32 %v374, 0.007598758
      %v6754 = vmul.f32 %v375, 0.007598758
      %v6755 = vmul.f32 %v376, 0.007598758
      %v6756 = vmul.f32 %v377, 0.007598758
      %v6757 = vmul.f32 %v378, 0.007598758
      %v6758 = vmul.f32 %v379, 0.007598758
      %v6759 = vmul.f32 %v380, 0.007598758
      %v6760 = vmul.f32 %v381, 0.007598758
      %v6761 = vmul.f32 %v382, 0.007598758
      %v6762 = vmul.f32 %v383, 0.007598758
      %v6763 = vmul.f32 %v384, 0.007598758
      %v6764 = vmul.f32 %v385, 0.007598758
      %v6765 = vmul.f32 %v386, 0.007598758
      %v6766 = vmul.f32 %v387, 0.007598758
      %v6767 = vmul.f32 %v388, 0.007598758
      %v6768 = vmul.f32 %v389, 0.007598758
      %v6769 = vmul.f32 %v390, 0.007598758
      %v6770 = vmul.f32 %v391, 0.007598758
      %v6771 = vmul.f32 %v392, 0.007598758
      %v6772 = vmul.f32 %v393, 0.007598758
      %v6773 = vmul.f32 %v394, 0.007598758
      %v6774 = vmul.f32 %v395, 0.007598758
      %v6775 = vmul.f32 %v396, 0.007598758
      %v6776 = vmul.f32 %v397, 0.007598758
      %v6777 = vadd.f32 %v6713, %v6745
      %v6778 = vadd.f32 %v6714, %v6746
      %v6779 = vadd.f32 %v6715, %v6747
      %v6780 = vadd.f32 %v6716, %v6748
      %v6781 = vadd.f32 %v6717, %v6749
      %v6782 = vadd.f32 %v6718, %v6750
      %v6783 = vadd.f32 %v6719, %v6751
      %v6784 = vadd.f32 %v6720, %v6752
      %v6785 = vadd.f32 %v6721, %v6753
      %v6786 = vadd.f32 %v6722, %v6754
      %v6787 = vadd.f32 %v6723, %v6755
      %v6788 = vadd.f32 %v6724, %v6756
      %v6789 = vadd.f32 %v6725, %v6757
      %v6790 = vadd.f32 %v6726, %v6758
      %v6791 = vadd.f32 %v6727, %v6759
      %v6792 = vadd.f32 %v6728, %v6760
      %v6793 = vadd.f32 %v6729, %v6761
      %v6794 = vadd.f32 %v6730, %v6762
      %v6795 = vadd.f32 %v6731, %v6763
      %v6796 = vadd.f32 %v6732, %v6764
      %v6797 = vadd.f32 %v6733, %v6765
      %v6798 = vadd.f32 %v6734, %v6766
      %v6799 = vadd.f32 %v6735, %v6767
      %v6800 = vadd.f32 %v6736, %v6768
      %v6801 = vadd.f32 %v6737, %v6769
      %v6802 = vadd.f32 %v6738, %v6770
      %v6803 = vadd.f32 %v6739, %v6771
      %v6804 = vadd.f32 %v6740, %v6772
      %v6805 = vadd.f32 %v6741, %v6773
      %v6806 = vadd.f32 %v6742, %v6774
      %v6807 = vadd.f32 %v6743, %v6775
      %v6808 = vadd.f32 %v6744, %v6776
      %v6809 = vmul.f32 %v370, 0.036000773
      %v6810 = vmul.f32 %v371, 0.036000773
      %v6811 = vmul.f32 %v372, 0.036000773
      %v6812 = vmul.f32 %v373, 0.036000773
      %v6813 = vmul.f32 %v374, 0.036000773
      %v6814 = vmul.f32 %v375, 0.036000773
      %v6815 = vmul.f32 %v376, 0.036000773
      %v6816 = vmul.f32 %v377, 0.036000773
      %v6817 = vmul.f32 %v378, 0.036000773
      %v6818 = vmul.f32 %v379, 0.036000773
      %v6819 = vmul.f32 %v380, 0.036000773
      %v6820 = vmul.f32 %v381, 0.036000773
      %v6821 = vmul.f32 %v382, 0.036000773
      %v6822 = vmul.f32 %v383, 0.036000773
      %v6823 = vmul.f32 %v384, 0.036000773
      %v6824 = vmul.f32 %v385, 0.036000773
      %v6825 = vmul.f32 %v386, 0.036000773
      %v6826 = vmul.f32 %v387, 0.036000773
      %v6827 = vmul.f32 %v388, 0.036000773
      %v6828 = vmul.f32 %v389, 0.036000773
      %v6829 = vmul.f32 %v390, 0.036000773
      %v6830 = vmul.f32 %v391, 0.036000773
      %v6831 = vmul.f32 %v392, 0.036000773
      %v6832 = vmul.f32 %v393, 0.036000773
      %v6833 = vmul.f32 %v394, 0.036000773
      %v6834 = vmul.f32 %v395, 0.036000773
      %v6835 = vmul.f32 %v396, 0.036000773
      %v6836 = vmul.f32 %v397, 0.036000773
      %v6837 = vmul.f32 %v398, 0.036000773
      %v6838 = vmul.f32 %v399, 0.036000773
      %v6839 = vmul.f32 %v400, 0.036000773
      %v6840 = vmul.f32 %v401, 0.036000773
      %v6841 = vadd.f32 %v6777, %v6809
      %v6842 = vadd.f32 %v6778, %v6810
      %v6843 = vadd.f32 %v6779, %v6811
      %v6844 = vadd.f32 %v6780, %v6812
      %v6845 = vadd.f32 %v6781, %v6813
      %v6846 = vadd.f32 %v6782, %v6814
      %v6847 = vadd.f32 %v6783, %v6815
      %v6848 = vadd.f32 %v6784, %v6816
      %v6849 = vadd.f32 %v6785, %v6817
      %v6850 = vadd.f32 %v6786, %v6818
      %v6851 = vadd.f32 %v6787, %v6819
      %v6852 = vadd.f32 %v6788, %v6820
      %v6853 = vadd.f32 %v6789, %v6821
      %v6854 = vadd.f32 %v6790, %v6822
      %v6855 = vadd.f32 %v6791, %v6823
      %v6856 = vadd.f32 %v6792, %v6824
      %v6857 = vadd.f32 %v6793, %v6825
      %v6858 = vadd.f32 %v6794, %v6826
      %v6859 = vadd.f32 %v6795, %v6827
      %v6860 = vadd.f32 %v6796, %v6828
      %v6861 = vadd.f32 %v6797, %v6829
      %v6862 = vadd.f32 %v6798, %v6830
      %v6863 = vadd.f32 %v6799, %v6831
      %v6864 = vadd.f32 %v6800, %v6832
      %v6865 = vadd.f32 %v6801, %v6833
      %v6866 = vadd.f32 %v6802, %v6834
      %v6867 = vadd.f32 %v6803, %v6835
      %v6868 = vadd.f32 %v6804, %v6836
      %v6869 = vadd.f32 %v6805, %v6837
      %v6870 = vadd.f32 %v6806, %v6838
      %v6871 = vadd.f32 %v6807, %v6839
      %v6872 = vadd.f32 %v6808, %v6840
      %v6873 = vmul.f32 %v374, 0.10936069
      %v6874 = vmul.f32 %v375, 0.10936069
      %v6875 = vmul.f32 %v376, 0.10936069
      %v6876 = vmul.f32 %v377, 0.10936069
      %v6877 = vmul.f32 %v378, 0.10936069
      %v6878 = vmul.f32 %v379, 0.10936069
      %v6879 = vmul.f32 %v380, 0.10936069
      %v6880 = vmul.f32 %v381, 0.10936069
      %v6881 = vmul.f32 %v382, 0.10936069
      %v6882 = vmul.f32 %v383, 0.10936069
      %v6883 = vmul.f32 %v384, 0.10936069
      %v6884 = vmul.f32 %v385, 0.10936069
      %v6885 = vmul.f32 %v386, 0.10936069
      %v6886 = vmul.f32 %v387, 0.10936069
      %v6887 = vmul.f32 %v388, 0.10936069
      %v6888 = vmul.f32 %v389, 0.10936069
      %v6889 = vmul.f32 %v390, 0.10936069
      %v6890 = vmul.f32 %v391, 0.10936069
      %v6891 = vmul.f32 %v392, 0.10936069
      %v6892 = vmul.f32 %v393, 0.10936069
      %v6893 = vmul.f32 %v394, 0.10936069
      %v6894 = vmul.f32 %v395, 0.10936069
      %v6895 = vmul.f32 %v396, 0.10936069
      %v6896 = vmul.f32 %v397, 0.10936069
      %v6897 = vmul.f32 %v398, 0.10936069
      %v6898 = vmul.f32 %v399, 0.10936069
      %v6899 = vmul.f32 %v400, 0.10936069
      %v6900 = vmul.f32 %v401, 0.10936069
      %v6901 = vmul.f32 %v402, 0.10936069
      %v6902 = vmul.f32 %v403, 0.10936069
      %v6903 = vmul.f32 %v404, 0.10936069
      %v6904 = vmul.f32 %v405, 0.10936069
      %v6905 = vadd.f32 %v6841, %v6873
      %v6906 = vadd.f32 %v6842, %v6874
      %v6907 = vadd.f32 %v6843, %v6875
      %v6908 = vadd.f32 %v6844, %v6876
      %v6909 = vadd.f32 %v6845, %v6877
      %v6910 = vadd.f32 %v6846, %v6878
      %v6911 = vadd.f32 %v6847, %v6879
      %v6912 = vadd.f32 %v6848, %v6880
      %v6913 = vadd.f32 %v6849, %v6881
      %v6914 = vadd.f32 %v6850, %v6882
      %v6915 = vadd.f32 %v6851, %v6883
      %v6916 = vadd.f32 %v6852, %v6884
      %v6917 = vadd.f32 %v6853, %v6885
      %v6918 = vadd.f32 %v6854, %v6886
      %v6919 = vadd.f32 %v6855, %v6887
      %v6920 = vadd.f32 %v6856, %v6888
      %v6921 = vadd.f32 %v6857, %v6889
      %v6922 = vadd.f32 %v6858, %v6890
      %v6923 = vadd.f32 %v6859, %v6891
      %v6924 = vadd.f32 %v6860, %v6892
      %v6925 = vadd.f32 %v6861, %v6893
      %v6926 = vadd.f32 %v6862, %v6894
      %v6927 = vadd.f32 %v6863, %v6895
      %v6928 = vadd.f32 %v6864, %v6896
      %v6929 = vadd.f32 %v6865, %v6897
      %v6930 = vadd.f32 %v6866, %v6898
      %v6931 = vadd.f32 %v6867, %v6899
      %v6932 = vadd.f32 %v6868, %v6900
      %v6933 = vadd.f32 %v6869, %v6901
      %v6934 = vadd.f32 %v6870, %v6902
      %v6935 = vadd.f32 %v6871, %v6903
      %v6936 = vadd.f32 %v6872, %v6904
      %v6937 = vmul.f32 %v378, 0.21300554
      %v6938 = vmul.f32 %v379, 0.21300554
      %v6939 = vmul.f32 %v380, 0.21300554
      %v6940 = vmul.f32 %v381, 0.21300554
      %v6941 = vmul.f32 %v382, 0.21300554
      %v6942 = vmul.f32 %v383, 0.21300554
      %v6943 = vmul.f32 %v384, 0.21300554
      %v6944 = vmul.f32 %v385, 0.21300554
      %v6945 = vmul.f32 %v386, 0.21300554
      %v6946 = vmul.f32 %v387, 0.21300554
      %v6947 = vmul.f32 %v388, 0.21300554
      %v6948 = vmul.f32 %v389, 0.21300554
      %v6949 = vmul.f32 %v390, 0.21300554
      %v6950 = vmul.f32 %v391, 0.21300554
      %v6951 = vmul.f32 %v392, 0.21300554
      %v6952 = vmul.f32 %v393, 0.21300554
      %v6953 = vmul.f32 %v394, 0.21300554
      %v6954 = vmul.f32 %v395, 0.21300554
      %v6955 = vmul.f32 %v396, 0.21300554
      %v6956 = vmul.f32 %v397, 0.21300554
      %v6957 = vmul.f32 %v398, 0.21300554
      %v6958 = vmul.f32 %v399, 0.21300554
      %v6959 = vmul.f32 %v400, 0.21300554
      %v6960 = vmul.f32 %v401, 0.21300554
      %v6961 = vmul.f32 %v402, 0.21300554
      %v6962 = vmul.f32 %v403, 0.21300554
      %v6963 = vmul.f32 %v404, 0.21300554
      %v6964 = vmul.f32 %v405, 0.21300554
      %v6965 = vmul.f32 %v406, 0.21300554
      %v6966 = vmul.f32 %v407, 0.21300554
      %v6967 = vmul.f32 %v408, 0.21300554
      %v6968 = vmul.f32 %v409, 0.21300554
      %v6969 = vadd.f32 %v6905, %v6937
      %v6970 = vadd.f32 %v6906, %v6938
      %v6971 = vadd.f32 %v6907, %v6939
      %v6972 = vadd.f32 %v6908, %v6940
      %v6973 = vadd.f32 %v6909, %v6941
      %v6974 = vadd.f32 %v6910, %v6942
      %v6975 = vadd.f32 %v6911, %v6943
      %v6976 = vadd.f32 %v6912, %v6944
      %v6977 = vadd.f32 %v6913, %v6945
      %v6978 = vadd.f32 %v6914, %v6946
      %v6979 = vadd.f32 %v6915, %v6947
      %v6980 = vadd.f32 %v6916, %v6948
      %v6981 = vadd.f32 %v6917, %v6949
      %v6982 = vadd.f32 %v6918, %v6950
      %v6983 = vadd.f32 %v6919, %v6951
      %v6984 = vadd.f32 %v6920, %v6952
      %v6985 = vadd.f32 %v6921, %v6953
      %v6986 = vadd.f32 %v6922, %v6954
      %v6987 = vadd.f32 %v6923, %v6955
      %v6988 = vadd.f32 %v6924, %v6956
      %v6989 = vadd.f32 %v6925, %v6957
      %v6990 = vadd.f32 %v6926, %v6958
      %v6991 = vadd.f32 %v6927, %v6959
      %v6992 = vadd.f32 %v6928, %v6960
      %v6993 = vadd.f32 %v6929, %v6961
      %v6994 = vadd.f32 %v6930, %v6962
      %v6995 = vadd.f32 %v6931, %v6963
      %v6996 = vadd.f32 %v6932, %v6964
      %v6997 = vadd.f32 %v6933, %v6965
      %v6998 = vadd.f32 %v6934, %v6966
      %v6999 = vadd.f32 %v6935, %v6967
      %v7000 = vadd.f32 %v6936, %v6968
      %v7001 = vmul.f32 %v382, 0.26601171
      %v7002 = vmul.f32 %v383, 0.26601171
      %v7003 = vmul.f32 %v384, 0.26601171
      %v7004 = vmul.f32 %v385, 0.26601171
      %v7005 = vmul.f32 %v386, 0.26601171
      %v7006 = vmul.f32 %v387, 0.26601171
      %v7007 = vmul.f32 %v388, 0.26601171
      %v7008 = vmul.f32 %v389, 0.26601171
      %v7009 = vmul.f32 %v390, 0.26601171
      %v7010 = vmul.f32 %v391, 0.26601171
      %v7011 = vmul.f32 %v392, 0.26601171
      %v7012 = vmul.f32 %v393, 0.26601171
      %v7013 = vmul.f32 %v394, 0.26601171
      %v7014 = vmul.f32 %v395, 0.26601171
      %v7015 = vmul.f32 %v396, 0.26601171
      %v7016 = vmul.f32 %v397, 0.26601171
      %v7017 = vmul.f32 %v398, 0.26601171
      %v7018 = vmul.f32 %v399, 0.26601171
      %v7019 = vmul.f32 %v400, 0.26601171
      %v7020 = vmul.f32 %v401, 0.26601171
      %v7021 = vmul.f32 %v402, 0.26601171
      %v7022 = vmul.f32 %v403, 0.26601171
      %v7023 = vmul.f32 %v404, 0.26601171
      %v7024 = vmul.f32 %v405, 0.26601171
      %v7025 = vmul.f32 %v406, 0.26601171
      %v7026 = vmul.f32 %v407, 0.26601171
      %v7027 = vmul.f32 %v408, 0.26601171
      %v7028 = vmul.f32 %v409, 0.26601171
      %v7029 = vmul.f32 %v410, 0.26601171
      %v7030 = vmul.f32 %v411, 0.26601171
      %v7031 = vmul.f32 %v412, 0.26601171
      %v7032 = vmul.f32 %v413, 0.26601171
      %v7033 = vadd.f32 %v6969, %v7001
      %v7034 = vadd.f32 %v6970, %v7002
      %v7035 = vadd.f32 %v6971, %v7003
      %v7036 = vadd.f32 %v6972, %v7004
      %v7037 = vadd.f32 %v6973, %v7005
      %v7038 = vadd.f32 %v6974, %v7006
      %v7039 = vadd.f32 %v6975, %v7007
      %v7040 = vadd.f32 %v6976, %v7008
      %v7041 = vadd.f32 %v6977, %v7009
      %v7042 = vadd.f32 %v6978, %v7010
      %v7043 = vadd.f32 %v6979, %v7011
      %v7044 = vadd.f32 %v6980, %v7012
      %v7045 = vadd.f32 %v6981, %v7013
      %v7046 = vadd.f32 %v6982, %v7014
      %v7047 = vadd.f32 %v6983, %v7015
      %v7048 = vadd.f32 %v6984, %v7016
      %v7049 = vadd.f32 %v6985, %v7017
      %v7050 = vadd.f32 %v6986, %v7018
      %v7051 = vadd.f32 %v6987, %v7019
      %v7052 = vadd.f32 %v6988, %v7020
      %v7053 = vadd.f32 %v6989, %v7021
      %v7054 = vadd.f32 %v6990, %v7022
      %v7055 = vadd.f32 %v6991, %v7023
      %v7056 = vadd.f32 %v6992, %v7024
      %v7057 = vadd.f32 %v6993, %v7025
      %v7058 = vadd.f32 %v6994, %v7026
      %v7059 = vadd.f32 %v6995, %v7027
      %v7060 = vadd.f32 %v6996, %v7028
      %v7061 = vadd.f32 %v6997, %v7029
      %v7062 = vadd.f32 %v6998, %v7030
      %v7063 = vadd.f32 %v6999, %v7031
      %v7064 = vadd.f32 %v7000, %v7032
      %v7065 = vmul.f32 %v410, 0.21300554
      %v7066 = vmul.f32 %v411, 0.21300554
      %v7067 = vmul.f32 %v412, 0.21300554
      %v7068 = vmul.f32 %v413, 0.21300554
      %v7069 = vmul.f32 %v414, 0.21300554
      %v7070 = vmul.f32 %v415, 0.21300554
      %v7071 = vmul.f32 %v416, 0.21300554
      %v7072 = vmul.f32 %v417, 0.21300554
      %v7073 = vadd.f32 %v7033, %v6945
      %v7074 = vadd.f32 %v7034, %v6946
      %v7075 = vadd.f32 %v7035, %v6947
      %v7076 = vadd.f32 %v7036, %v6948
      %v7077 = vadd.f32 %v7037, %v6949
      %v7078 = vadd.f32 %v7038, %v6950
      %v7079 = vadd.f32 %v7039, %v6951
      %v7080 = vadd.f32 %v7040, %v6952
      %v7081 = vadd.f32 %v7041, %v6953
      %v7082 = vadd.f32 %v7042, %v6954
      %v7083 = vadd.f32 %v7043, %v6955
      %v7084 = vadd.f32 %v7044, %v6956
      %v7085 = vadd.f32 %v7045, %v6957
      %v7086 = vadd.f32 %v7046, %v6958
      %v7087 = vadd.f32 %v7047, %v6959
      %v7088 = vadd.f32 %v7048, %v6960
      %v7089 = vadd.f32 %v7049, %v6961
      %v7090 = vadd.f32 %v7050, %v6962
      %v7091 = vadd.f32 %v7051, %v6963
      %v7092 = vadd.f32 %v7052, %v6964
      %v7093 = vadd.f32 %v7053, %v6965
      %v7094 = vadd.f32 %v7054, %v6966
      %v7095 = vadd.f32 %v7055, %v6967
      %v7096 = vadd.f32 %v7056, %v6968
      %v7097 = vadd.f32 %v7057, %v7065
      %v7098 = vadd.f32 %v7058, %v7066
      %v7099 = vadd.f32 %v7059, %v7067
      %v7100 = vadd.f32 %v7060, %v7068
      %v7101 = vadd.f32 %v7061, %v7069
      %v7102 = vadd.f32 %v7062, %v7070
      %v7103 = vadd.f32 %v7063, %v7071
      %v7104 = vadd.f32 %v7064, %v7072
      %v7105 = vmul.f32 %v406, 0.10936069
      %v7106 = vmul.f32 %v407, 0.10936069
      %v7107 = vmul.f32 %v408, 0.10936069
      %v7108 = vmul.f32 %v409, 0.10936069
      %v7109 = vmul.f32 %v410, 0.10936069
      %v7110 = vmul.f32 %v411, 0.10936069
      %v7111 = vmul.f32 %v412, 0.10936069
      %v7112 = vmul.f32 %v413, 0.10936069
      %v7113 = vmul.f32 %v414, 0.10936069
      %v7114 = vmul.f32 %v415, 0.10936069
      %v7115 = vmul.f32 %v416, 0.10936069
      %v7116 = vmul.f32 %v417, 0.10936069
      %v7117 = vmul.f32 %v418, 0.10936069
      %v7118 = vmul.f32 %v419, 0.10936069
      %v7119 = vmul.f32 %v420, 0.10936069
      %v7120 = vmul.f32 %v421, 0.10936069
      %v7121 = vadd.f32 %v7073, %v6889
      %v7122 = vadd.f32 %v7074, %v6890
      %v7123 = vadd.f32 %v7075, %v6891
      %v7124 = vadd.f32 %v7076, %v6892
      %v7125 = vadd.f32 %v7077, %v6893
      %v7126 = vadd.f32 %v7078, %v6894
      %v7127 = vadd.f32 %v7079, %v6895
      %v7128 = vadd.f32 %v7080, %v6896
      %v7129 = vadd.f32 %v7081, %v6897
      %v7130 = vadd.f32 %v7082, %v6898
      %v7131 = vadd.f32 %v7083, %v6899
      %v7132 = vadd.f32 %v7084, %v6900
      %v7133 = vadd.f32 %v7085, %v6901
      %v7134 = vadd.f32 %v7086, %v6902
      %v7135 = vadd.f32 %v7087, %v6903
      %v7136 = vadd.f32 %v7088, %v6904
      %v7137 = vadd.f32 %v7089, %v7105
      %v7138 = vadd.f32 %v7090, %v7106
      %v7139 = vadd.f32 %v7091, %v7107
      %v7140 = vadd.f32 %v7092, %v7108
      %v7141 = vadd.f32 %v7093, %v7109
      %v7142 = vadd.f32 %v7094, %v7110
      %v7143 = vadd.f32 %v7095, %v7111
      %v7144 = vadd.f32 %v7096, %v7112
      %v7145 = vadd.f32 %v7097, %v7113
      %v7146 = vadd.f32 %v7098, %v7114
      %v7147 = vadd.f32 %v7099, %v7115
      %v7148 = vadd.f32 %v7100, %v7116
      %v7149 = vadd.f32 %v7101, %v7117
      %v7150 = vadd.f32 %v7102, %v7118
      %v7151 = vadd.f32 %v7103, %v7119
      %v7152 = vadd.f32 %v7104, %v7120
      %v7153 = vmul.f32 %v402, 0.036000773
      %v7154 = vmul.f32 %v403, 0.036000773
      %v7155 = vmul.f32 %v404, 0.036000773
      %v7156 = vmul.f32 %v405, 0.036000773
      %v7157 = vmul.f32 %v406, 0.036000773
      %v7158 = vmul.f32 %v407, 0.036000773
      %v7159 = vmul.f32 %v408, 0.036000773
      %v7160 = vmul.f32 %v409, 0.036000773
      %v7161 = vmul.f32 %v410, 0.036000773
      %v7162 = vmul.f32 %v411, 0.036000773
      %v7163 = vmul.f32 %v412, 0.036000773
      %v7164 = vmul.f32 %v413, 0.036000773
      %v7165 = vmul.f32 %v414, 0.036000773
      %v7166 = vmul.f32 %v415, 0.036000773
      %v7167 = vmul.f32 %v416, 0.036000773
      %v7168 = vmul.f32 %v417, 0.036000773
      %v7169 = vmul.f32 %v418, 0.036000773
      %v7170 = vmul.f32 %v419, 0.036000773
      %v7171 = vmul.f32 %v420, 0.036000773
      %v7172 = vmul.f32 %v421, 0.036000773
      %v7173 = vmul.f32 %v422, 0.036000773
      %v7174 = vmul.f32 %v423, 0.036000773
      %v7175 = vmul.f32 %v424, 0.036000773
      %v7176 = vmul.f32 %v425, 0.036000773
      %v7177 = vadd.f32 %v7121, %v6833
      %v7178 = vadd.f32 %v7122, %v6834
      %v7179 = vadd.f32 %v7123, %v6835
      %v7180 = vadd.f32 %v7124, %v6836
      %v7181 = vadd.f32 %v7125, %v6837
      %v7182 = vadd.f32 %v7126, %v6838
      %v7183 = vadd.f32 %v7127, %v6839
      %v7184 = vadd.f32 %v7128, %v6840
      %v7185 = vadd.f32 %v7129, %v7153
      %v7186 = vadd.f32 %v7130, %v7154
      %v7187 = vadd.f32 %v7131, %v7155
      %v7188 = vadd.f32 %v7132, %v7156
      %v7189 = vadd.f32 %v7133, %v7157
      %v7190 = vadd.f32 %v7134, %v7158
      %v7191 = vadd.f32 %v7135, %v7159
      %v7192 = vadd.f32 %v7136, %v7160
      %v7193 = vadd.f32 %v7137, %v7161
      %v7194 = vadd.f32 %v7138, %v7162
      %v7195 = vadd.f32 %v7139, %v7163
      %v7196 = vadd.f32 %v7140, %v7164
      %v7197 = vadd.f32 %v7141, %v7165
      %v7198 = vadd.f32 %v7142, %v7166
      %v7199 = vadd.f32 %v7143, %v7167
      %v7200 = vadd.f32 %v7144, %v7168
      %v7201 = vadd.f32 %v7145, %v7169
      %v7202 = vadd.f32 %v7146, %v7170
      %v7203 = vadd.f32 %v7147, %v7171
      %v7204 = vadd.f32 %v7148, %v7172
      %v7205 = vadd.f32 %v7149, %v7173
      %v7206 = vadd.f32 %v7150, %v7174
      %v7207 = vadd.f32 %v7151, %v7175
      %v7208 = vadd.f32 %v7152, %v7176
      %v7209 = vmul.f32 %v398, 0.007598758
      %v7210 = vmul.f32 %v399, 0.007598758
      %v7211 = vmul.f32 %v400, 0.007598758
      %v7212 = vmul.f32 %v401, 0.007598758
      %v7213 = vmul.f32 %v402, 0.007598758
      %v7214 = vmul.f32 %v403, 0.007598758
      %v7215 = vmul.f32 %v404, 0.007598758
      %v7216 = vmul.f32 %v405, 0.007598758
      %v7217 = vmul.f32 %v406, 0.007598758
      %v7218 = vmul.f32 %v407, 0.007598758
      %v7219 = vmul.f32 %v408, 0.007598758
      %v7220 = vmul.f32 %v409, 0.007598758
      %v7221 = vmul.f32 %v410, 0.007598758
      %v7222 = vmul.f32 %v411, 0.007598758
      %v7223 = vmul.f32 %v412, 0.007598758
      %v7224 = vmul.f32 %v413, 0.007598758
      %v7225 = vmul.f32 %v414, 0.007598758
      %v7226 = vmul.f32 %v415, 0.007598758
      %v7227 = vmul.f32 %v416, 0.007598758
      %v7228 = vmul.f32 %v417, 0.007598758
      %v7229 = vmul.f32 %v418, 0.007598758
      %v7230 = vmul.f32 %v419, 0.007598758
      %v7231 = vmul.f32 %v420, 0.007598758
      %v7232 = vmul.f32 %v421, 0.007598758
      %v7233 = vmul.f32 %v422, 0.007598758
      %v7234 = vmul.f32 %v423, 0.007598758
      %v7235 = vmul.f32 %v424, 0.007598758
      %v7236 = vmul.f32 %v425, 0.007598758
      %v7237 = vmul.f32 %v426, 0.007598758
      %v7238 = vmul.f32 %v427, 0.007598758
      %v7239 = vmul.f32 %v428, 0.007598758
      %v7240 = vmul.f32 %v429, 0.007598758
      %v7241 = vadd.f32 %v7177, %v7209
      %v7242 = vadd.f32 %v7178, %v7210
      %v7243 = vadd.f32 %v7179, %v7211
      %v7244 = vadd.f32 %v7180, %v7212
      %v7245 = vadd.f32 %v7181, %v7213
      %v7246 = vadd.f32 %v7182, %v7214
      %v7247 = vadd.f32 %v7183, %v7215
      %v7248 = vadd.f32 %v7184, %v7216
      %v7249 = vadd.f32 %v7185, %v7217
      %v7250 = vadd.f32 %v7186, %v7218
      %v7251 = vadd.f32 %v7187, %v7219
      %v7252 = vadd.f32 %v7188, %v7220
      %v7253 = vadd.f32 %v7189, %v7221
      %v7254 = vadd.f32 %v7190, %v7222
      %v7255 = vadd.f32 %v7191, %v7223
      %v7256 = vadd.f32 %v7192, %v7224
      %v7257 = vadd.f32 %v7193, %v7225
      %v7258 = vadd.f32 %v7194, %v7226
      %v7259 = vadd.f32 %v7195, %v7227
      %v7260 = vadd.f32 %v7196, %v7228
      %v7261 = vadd.f32 %v7197, %v7229
      %v7262 = vadd.f32 %v7198, %v7230
      %v7263 = vadd.f32 %v7199, %v7231
      %v7264 = vadd.f32 %v7200, %v7232
      %v7265 = vadd.f32 %v7201, %v7233
      %v7266 = vadd.f32 %v7202, %v7234
      %v7267 = vadd.f32 %v7203, %v7235
      %v7268 = vadd.f32 %v7204, %v7236
      %v7269 = vadd.f32 %v7205, %v7237
      %v7270 = vadd.f32 %v7206, %v7238
      %v7271 = vadd.f32 %v7207, %v7239
      %v7272 = vadd.f32 %v7208, %v7240
      %v7273 = vmul.f32 %v402, 0.0010283801
      %v7274 = vmul.f32 %v403, 0.0010283801
      %v7275 = vmul.f32 %v404, 0.0010283801
      %v7276 = vmul.f32 %v405, 0.0010283801
      %v7277 = vmul.f32 %v406, 0.0010283801
      %v7278 = vmul.f32 %v407, 0.0010283801
      %v7279 = vmul.f32 %v408, 0.0010283801
      %v7280 = vmul.f32 %v409, 0.0010283801
      %v7281 = vmul.f32 %v410, 0.0010283801
      %v7282 = vmul.f32 %v411, 0.0010283801
      %v7283 = vmul.f32 %v412, 0.0010283801
      %v7284 = vmul.f32 %v413, 0.0010283801
      %v7285 = vmul.f32 %v414, 0.0010283801
      %v7286 = vmul.f32 %v415, 0.0010283801
      %v7287 = vmul.f32 %v416, 0.0010283801
      %v7288 = vmul.f32 %v417, 0.0010283801
      %v7289 = vmul.f32 %v418, 0.0010283801
      %v7290 = vmul.f32 %v419, 0.0010283801
      %v7291 = vmul.f32 %v420, 0.0010283801
      %v7292 = vmul.f32 %v421, 0.0010283801
      %v7293 = vmul.f32 %v422, 0.0010283801
      %v7294 = vmul.f32 %v423, 0.0010283801
      %v7295 = vmul.f32 %v424, 0.0010283801
      %v7296 = vmul.f32 %v425, 0.0010283801
      %v7297 = vmul.f32 %v426, 0.0010283801
      %v7298 = vmul.f32 %v427, 0.0010283801
      %v7299 = vmul.f32 %v428, 0.0010283801
      %v7300 = vmul.f32 %v429, 0.0010283801
      %v7301 = vmul.f32 %v430, 0.0010283801
      %v7302 = vmul.f32 %v431, 0.0010283801
      %v7303 = vmul.f32 %v432, 0.0010283801
      %v7304 = vmul.f32 %v433, 0.0010283801
      %v7305 = vadd.f32 %v7241, %v7273
      %v7306 = vadd.f32 %v7242, %v7274
      %v7307 = vadd.f32 %v7243, %v7275
      %v7308 = vadd.f32 %v7244, %v7276
      %v7309 = vadd.f32 %v7245, %v7277
      %v7310 = vadd.f32 %v7246, %v7278
      %v7311 = vadd.f32 %v7247, %v7279
      %v7312 = vadd.f32 %v7248, %v7280
      %v7313 = vadd.f32 %v7249, %v7281
      %v7314 = vadd.f32 %v7250, %v7282
      %v7315 = vadd.f32 %v7251, %v7283
      %v7316 = vadd.f32 %v7252, %v7284
      %v7317 = vadd.f32 %v7253, %v7285
      %v7318 = vadd.f32 %v7254, %v7286
      %v7319 = vadd.f32 %v7255, %v7287
      %v7320 = vadd.f32 %v7256, %v7288
      %v7321 = vadd.f32 %v7257, %v7289
      %v7322 = vadd.f32 %v7258, %v7290
      %v7323 = vadd.f32 %v7259, %v7291
      %v7324 = vadd.f32 %v7260, %v7292
      %v7325 = vadd.f32 %v7261, %v7293
      %v7326 = vadd.f32 %v7262, %v7294
      %v7327 = vadd.f32 %v7263, %v7295
      %v7328 = vadd.f32 %v7264, %v7296
      %v7329 = vadd.f32 %v7265, %v7297
      %v7330 = vadd.f32 %v7266, %v7298
      %v7331 = vadd.f32 %v7267, %v7299
      %v7332 = vadd.f32 %v7268, %v7300
      %v7333 = vadd.f32 %v7269, %v7301
      %v7334 = vadd.f32 %v7270, %v7302
      %v7335 = vadd.f32 %v7271, %v7303
      %v7336 = vadd.f32 %v7272, %v7304
      %v7337 = vmul.f32 %v7305, 0.0010283801
      %v7338 = vmul.f32 %v7306, 0.0010283801
      %v7339 = vmul.f32 %v7309, 0.0010283801
      %v7340 = vmul.f32 %v7310, 0.0010283801
      %v7341 = vmul.f32 %v7313, 0.0010283801
      %v7342 = vmul.f32 %v7314, 0.0010283801
      %v7343 = vmul.f32 %v7317, 0.0010283801
      %v7344 = vmul.f32 %v7318, 0.0010283801
      %v7345 = vmul.f32 %v7321, 0.0010283801
      %v7346 = vmul.f32 %v7322, 0.0010283801
      %v7347 = vmul.f32 %v7325, 0.0010283801
      %v7348 = vmul.f32 %v7326, 0.0010283801
      %v7349 = vmul.f32 %v7329, 0.0010283801
      %v7350 = vmul.f32 %v7330, 0.0010283801
      %v7351 = vmul.f32 %v7333, 0.0010283801
      %v7352 = vmul.f32 %v7334, 0.0010283801
      %v7353 = vmul.f32 %v7305, 0.007598758
      %v7354 = vmul.f32 %v7306, 0.007598758
      %v7355 = vmul.f32 %v7307, 0.007598758
      %v7356 = vmul.f32 %v7309, 0.007598758
      %v7357 = vmul.f32 %v7310, 0.007598758
      %v7358 = vmul.f32 %v7311, 0.007598758
      %v7359 = vmul.f32 %v7313, 0.007598758
      %v7360 = vmul.f32 %v7314, 0.007598758
      %v7361 = vmul.f32 %v7315, 0.007598758
      %v7362 = vmul.f32 %v7317, 0.007598758
      %v7363 = vmul.f32 %v7318, 0.007598758
      %v7364 = vmul.f32 %v7319, 0.007598758
      %v7365 = vmul.f32 %v7321, 0.007598758
      %v7366 = vmul.f32 %v7322, 0.007598758
      %v7367 = vmul.f32 %v7323, 0.007598758
      %v7368 = vmul.f32 %v7325, 0.007598758
      %v7369 = vmul.f32 %v7326, 0.007598758
      %v7370 = vmul.f32 %v7327, 0.007598758
      %v7371 = vmul.f32 %v7329, 0.007598758
      %v7372 = vmul.f32 %v7330, 0.007598758
      %v7373 = vmul.f32 %v7331, 0.007598758
      %v7374 = vmul.f32 %v7333, 0.007598758
      %v7375 = vmul.f32 %v7334, 0.007598758
      %v7376 = vmul.f32 %v7335, 0.007598758
      %v7401 = vrot.slane %v7353, 1
      %v7402 = vrot.slane %v7354, 1
      %v7403 = vsel %vm1122, %v7401, %v7402
      %v7404 = vrot.slane %v7355, 1
      %v7405 = vsel %vm1122, %v7402, %v7404
      %v7406 = vrot.slane %v7356, 1
      %v7407 = vrot.slane %v7357, 1
      %v7408 = vsel %vm1122, %v7406, %v7407
      %v7409 = vrot.slane %v7358, 1
      %v7410 = vsel %vm1122, %v7407, %v7409
      %v7411 = vrot.slane %v7359, 1
      %v7412 = vrot.slane %v7360, 1
      %v7413 = vsel %vm1122, %v7411, %v7412
      %v7414 = vrot.slane %v7361, 1
      %v7415 = vsel %vm1122, %v7412, %v7414
      %v7416 = vrot.slane %v7362, 1
      %v7417 = vrot.slane %v7363, 1
      %v7418 = vsel %vm1122, %v7416, %v7417
      %v7419 = vrot.slane %v7364, 1
      %v7420 = vsel %vm1122, %v7417, %v7419
      %v7421 = vrot.slane %v7365, 1
      %v7422 = vrot.slane %v7366, 1
      %v7423 = vsel %vm1122, %v7421, %v7422
      %v7424 = vrot.slane %v7367, 1
      %v7425 = vsel %vm1122, %v7422, %v7424
      %v7426 = vrot.slane %v7368, 1
      %v7427 = vrot.slane %v7369, 1
      %v7428 = vsel %vm1122, %v7426, %v7427
      %v7429 = vrot.slane %v7370, 1
      %v7430 = vsel %vm1122, %v7427, %v7429
      %v7431 = vrot.slane %v7371, 1
      %v7432 = vrot.slane %v7372, 1
      %v7433 = vsel %vm1122, %v7431, %v7432
      %v7434 = vrot.slane %v7373, 1
      %v7435 = vsel %vm1122, %v7432, %v7434
      %v7436 = vrot.slane %v7374, 1
      %v7437 = vrot.slane %v7375, 1
      %v7438 = vsel %vm1122, %v7436, %v7437
      %v7439 = vrot.slane %v7376, 1
      %v7440 = vsel %vm1122, %v7437, %v7439
      %v7457 = vadd.f32 %v7337, %v7403
      %v7458 = vadd.f32 %v7338, %v7405
      %v7459 = vadd.f32 %v7339, %v7408
      %v7460 = vadd.f32 %v7340, %v7410
      %v7461 = vadd.f32 %v7341, %v7413
      %v7462 = vadd.f32 %v7342, %v7415
      %v7463 = vadd.f32 %v7343, %v7418
      %v7464 = vadd.f32 %v7344, %v7420
      %v7465 = vadd.f32 %v7345, %v7423
      %v7466 = vadd.f32 %v7346, %v7425
      %v7467 = vadd.f32 %v7347, %v7428
      %v7468 = vadd.f32 %v7348, %v7430
      %v7469 = vadd.f32 %v7349, %v7433
      %v7470 = vadd.f32 %v7350, %v7435
      %v7471 = vadd.f32 %v7351, %v7438
      %v7472 = vadd.f32 %v7352, %v7440
      %v7473 = vmul.f32 %v7305, 0.036000773
      %v7474 = vmul.f32 %v7306, 0.036000773
      %v7475 = vmul.f32 %v7307, 0.036000773
      %v7476 = vmul.f32 %v7309, 0.036000773
      %v7477 = vmul.f32 %v7310, 0.036000773
      %v7478 = vmul.f32 %v7311, 0.036000773
      %v7479 = vmul.f32 %v7313, 0.036000773
      %v7480 = vmul.f32 %v7314, 0.036000773
      %v7481 = vmul.f32 %v7315, 0.036000773
      %v7482 = vmul.f32 %v7317, 0.036000773
      %v7483 = vmul.f32 %v7318, 0.036000773
      %v7484 = vmul.f32 %v7319, 0.036000773
      %v7485 = vmul.f32 %v7321, 0.036000773
      %v7486 = vmul.f32 %v7322, 0.036000773
      %v7487 = vmul.f32 %v7323, 0.036000773
      %v7488 = vmul.f32 %v7325, 0.036000773
      %v7489 = vmul.f32 %v7326, 0.036000773
      %v7490 = vmul.f32 %v7327, 0.036000773
      %v7491 = vmul.f32 %v7329, 0.036000773
      %v7492 = vmul.f32 %v7330, 0.036000773
      %v7493 = vmul.f32 %v7331, 0.036000773
      %v7494 = vmul.f32 %v7333, 0.036000773
      %v7495 = vmul.f32 %v7334, 0.036000773
      %v7496 = vmul.f32 %v7335, 0.036000773
      %v7521 = vrot.slane %v7473, 2
      %v7522 = vrot.slane %v7474, 2
      %v7523 = vsel %vm1243, %v7521, %v7522
      %v7524 = vrot.slane %v7475, 2
      %v7525 = vsel %vm1243, %v7522, %v7524
      %v7526 = vrot.slane %v7476, 2
      %v7527 = vrot.slane %v7477, 2
      %v7528 = vsel %vm1243, %v7526, %v7527
      %v7529 = vrot.slane %v7478, 2
      %v7530 = vsel %vm1243, %v7527, %v7529
      %v7531 = vrot.slane %v7479, 2
      %v7532 = vrot.slane %v7480, 2
      %v7533 = vsel %vm1243, %v7531, %v7532
      %v7534 = vrot.slane %v7481, 2
      %v7535 = vsel %vm1243, %v7532, %v7534
      %v7536 = vrot.slane %v7482, 2
      %v7537 = vrot.slane %v7483, 2
      %v7538 = vsel %vm1243, %v7536, %v7537
      %v7539 = vrot.slane %v7484, 2
      %v7540 = vsel %vm1243, %v7537, %v7539
      %v7541 = vrot.slane %v7485, 2
      %v7542 = vrot.slane %v7486, 2
      %v7543 = vsel %vm1243, %v7541, %v7542
      %v7544 = vrot.slane %v7487, 2
      %v7545 = vsel %vm1243, %v7542, %v7544
      %v7546 = vrot.slane %v7488, 2
      %v7547 = vrot.slane %v7489, 2
      %v7548 = vsel %vm1243, %v7546, %v7547
      %v7549 = vrot.slane %v7490, 2
      %v7550 = vsel %vm1243, %v7547, %v7549
      %v7551 = vrot.slane %v7491, 2
      %v7552 = vrot.slane %v7492, 2
      %v7553 = vsel %vm1243, %v7551, %v7552
      %v7554 = vrot.slane %v7493, 2
      %v7555 = vsel %vm1243, %v7552, %v7554
      %v7556 = vrot.slane %v7494, 2
      %v7557 = vrot.slane %v7495, 2
      %v7558 = vsel %vm1243, %v7556, %v7557
      %v7559 = vrot.slane %v7496, 2
      %v7560 = vsel %vm1243, %v7557, %v7559
      %v7577 = vadd.f32 %v7457, %v7523
      %v7578 = vadd.f32 %v7458, %v7525
      %v7579 = vadd.f32 %v7459, %v7528
      %v7580 = vadd.f32 %v7460, %v7530
      %v7581 = vadd.f32 %v7461, %v7533
      %v7582 = vadd.f32 %v7462, %v7535
      %v7583 = vadd.f32 %v7463, %v7538
      %v7584 = vadd.f32 %v7464, %v7540
      %v7585 = vadd.f32 %v7465, %v7543
      %v7586 = vadd.f32 %v7466, %v7545
      %v7587 = vadd.f32 %v7467, %v7548
      %v7588 = vadd.f32 %v7468, %v7550
      %v7589 = vadd.f32 %v7469, %v7553
      %v7590 = vadd.f32 %v7470, %v7555
      %v7591 = vadd.f32 %v7471, %v7558
      %v7592 = vadd.f32 %v7472, %v7560
      %v7593 = vmul.f32 %v7305, 0.10936069
      %v7594 = vmul.f32 %v7306, 0.10936069
      %v7595 = vmul.f32 %v7307, 0.10936069
      %v7596 = vmul.f32 %v7309, 0.10936069
      %v7597 = vmul.f32 %v7310, 0.10936069
      %v7598 = vmul.f32 %v7311, 0.10936069
      %v7599 = vmul.f32 %v7313, 0.10936069
      %v7600 = vmul.f32 %v7314, 0.10936069
      %v7601 = vmul.f32 %v7315, 0.10936069
      %v7602 = vmul.f32 %v7317, 0.10936069
      %v7603 = vmul.f32 %v7318, 0.10936069
      %v7604 = vmul.f32 %v7319, 0.10936069
      %v7605 = vmul.f32 %v7321, 0.10936069
      %v7606 = vmul.f32 %v7322, 0.10936069
      %v7607 = vmul.f32 %v7323, 0.10936069
      %v7608 = vmul.f32 %v7325, 0.10936069
      %v7609 = vmul.f32 %v7326, 0.10936069
      %v7610 = vmul.f32 %v7327, 0.10936069
      %v7611 = vmul.f32 %v7329, 0.10936069
      %v7612 = vmul.f32 %v7330, 0.10936069
      %v7613 = vmul.f32 %v7331, 0.10936069
      %v7614 = vmul.f32 %v7333, 0.10936069
      %v7615 = vmul.f32 %v7334, 0.10936069
      %v7616 = vmul.f32 %v7335, 0.10936069
      %v7641 = vrot.slane %v7593, 3
      %v7642 = vrot.slane %v7594, 3
      %v7643 = vsel %vm1364, %v7641, %v7642
      %v7644 = vrot.slane %v7595, 3
      %v7645 = vsel %vm1364, %v7642, %v7644
      %v7646 = vrot.slane %v7596, 3
      %v7647 = vrot.slane %v7597, 3
      %v7648 = vsel %vm1364, %v7646, %v7647
      %v7649 = vrot.slane %v7598, 3
      %v7650 = vsel %vm1364, %v7647, %v7649
      %v7651 = vrot.slane %v7599, 3
      %v7652 = vrot.slane %v7600, 3
      %v7653 = vsel %vm1364, %v7651, %v7652
      %v7654 = vrot.slane %v7601, 3
      %v7655 = vsel %vm1364, %v7652, %v7654
      %v7656 = vrot.slane %v7602, 3
      %v7657 = vrot.slane %v7603, 3
      %v7658 = vsel %vm1364, %v7656, %v7657
      %v7659 = vrot.slane %v7604, 3
      %v7660 = vsel %vm1364, %v7657, %v7659
      %v7661 = vrot.slane %v7605, 3
      %v7662 = vrot.slane %v7606, 3
      %v7663 = vsel %vm1364, %v7661, %v7662
      %v7664 = vrot.slane %v7607, 3
      %v7665 = vsel %vm1364, %v7662, %v7664
      %v7666 = vrot.slane %v7608, 3
      %v7667 = vrot.slane %v7609, 3
      %v7668 = vsel %vm1364, %v7666, %v7667
      %v7669 = vrot.slane %v7610, 3
      %v7670 = vsel %vm1364, %v7667, %v7669
      %v7671 = vrot.slane %v7611, 3
      %v7672 = vrot.slane %v7612, 3
      %v7673 = vsel %vm1364, %v7671, %v7672
      %v7674 = vrot.slane %v7613, 3
      %v7675 = vsel %vm1364, %v7672, %v7674
      %v7676 = vrot.slane %v7614, 3
      %v7677 = vrot.slane %v7615, 3
      %v7678 = vsel %vm1364, %v7676, %v7677
      %v7679 = vrot.slane %v7616, 3
      %v7680 = vsel %vm1364, %v7677, %v7679
      %v7697 = vadd.f32 %v7577, %v7643
      %v7698 = vadd.f32 %v7578, %v7645
      %v7699 = vadd.f32 %v7579, %v7648
      %v7700 = vadd.f32 %v7580, %v7650
      %v7701 = vadd.f32 %v7581, %v7653
      %v7702 = vadd.f32 %v7582, %v7655
      %v7703 = vadd.f32 %v7583, %v7658
      %v7704 = vadd.f32 %v7584, %v7660
      %v7705 = vadd.f32 %v7585, %v7663
      %v7706 = vadd.f32 %v7586, %v7665
      %v7707 = vadd.f32 %v7587, %v7668
      %v7708 = vadd.f32 %v7588, %v7670
      %v7709 = vadd.f32 %v7589, %v7673
      %v7710 = vadd.f32 %v7590, %v7675
      %v7711 = vadd.f32 %v7591, %v7678
      %v7712 = vadd.f32 %v7592, %v7680
      %v7713 = vmul.f32 %v7305, 0.21300554
      %v7714 = vmul.f32 %v7306, 0.21300554
      %v7715 = vmul.f32 %v7307, 0.21300554
      %v7716 = vmul.f32 %v7309, 0.21300554
      %v7717 = vmul.f32 %v7310, 0.21300554
      %v7718 = vmul.f32 %v7311, 0.21300554
      %v7719 = vmul.f32 %v7313, 0.21300554
      %v7720 = vmul.f32 %v7314, 0.21300554
      %v7721 = vmul.f32 %v7315, 0.21300554
      %v7722 = vmul.f32 %v7317, 0.21300554
      %v7723 = vmul.f32 %v7318, 0.21300554
      %v7724 = vmul.f32 %v7319, 0.21300554
      %v7725 = vmul.f32 %v7321, 0.21300554
      %v7726 = vmul.f32 %v7322, 0.21300554
      %v7727 = vmul.f32 %v7323, 0.21300554
      %v7728 = vmul.f32 %v7325, 0.21300554
      %v7729 = vmul.f32 %v7326, 0.21300554
      %v7730 = vmul.f32 %v7327, 0.21300554
      %v7731 = vmul.f32 %v7329, 0.21300554
      %v7732 = vmul.f32 %v7330, 0.21300554
      %v7733 = vmul.f32 %v7331, 0.21300554
      %v7734 = vmul.f32 %v7333, 0.21300554
      %v7735 = vmul.f32 %v7334, 0.21300554
      %v7736 = vmul.f32 %v7335, 0.21300554
      %v7761 = vrot.slane %v7713, 4
      %v7762 = vrot.slane %v7714, 4
      %v7763 = vsel %vm1485, %v7761, %v7762
      %v7764 = vrot.slane %v7715, 4
      %v7765 = vsel %vm1485, %v7762, %v7764
      %v7766 = vrot.slane %v7716, 4
      %v7767 = vrot.slane %v7717, 4
      %v7768 = vsel %vm1485, %v7766, %v7767
      %v7769 = vrot.slane %v7718, 4
      %v7770 = vsel %vm1485, %v7767, %v7769
      %v7771 = vrot.slane %v7719, 4
      %v7772 = vrot.slane %v7720, 4
      %v7773 = vsel %vm1485, %v7771, %v7772
      %v7774 = vrot.slane %v7721, 4
      %v7775 = vsel %vm1485, %v7772, %v7774
      %v7776 = vrot.slane %v7722, 4
      %v7777 = vrot.slane %v7723, 4
      %v7778 = vsel %vm1485, %v7776, %v7777
      %v7779 = vrot.slane %v7724, 4
      %v7780 = vsel %vm1485, %v7777, %v7779
      %v7781 = vrot.slane %v7725, 4
      %v7782 = vrot.slane %v7726, 4
      %v7783 = vsel %vm1485, %v7781, %v7782
      %v7784 = vrot.slane %v7727, 4
      %v7785 = vsel %vm1485, %v7782, %v7784
      %v7786 = vrot.slane %v7728, 4
      %v7787 = vrot.slane %v7729, 4
      %v7788 = vsel %vm1485, %v7786, %v7787
      %v7789 = vrot.slane %v7730, 4
      %v7790 = vsel %vm1485, %v7787, %v7789
      %v7791 = vrot.slane %v7731, 4
      %v7792 = vrot.slane %v7732, 4
      %v7793 = vsel %vm1485, %v7791, %v7792
      %v7794 = vrot.slane %v7733, 4
      %v7795 = vsel %vm1485, %v7792, %v7794
      %v7796 = vrot.slane %v7734, 4
      %v7797 = vrot.slane %v7735, 4
      %v7798 = vsel %vm1485, %v7796, %v7797
      %v7799 = vrot.slane %v7736, 4
      %v7800 = vsel %vm1485, %v7797, %v7799
      %v7817 = vadd.f32 %v7697, %v7763
      %v7818 = vadd.f32 %v7698, %v7765
      %v7819 = vadd.f32 %v7699, %v7768
      %v7820 = vadd.f32 %v7700, %v7770
      %v7821 = vadd.f32 %v7701, %v7773
      %v7822 = vadd.f32 %v7702, %v7775
      %v7823 = vadd.f32 %v7703, %v7778
      %v7824 = vadd.f32 %v7704, %v7780
      %v7825 = vadd.f32 %v7705, %v7783
      %v7826 = vadd.f32 %v7706, %v7785
      %v7827 = vadd.f32 %v7707, %v7788
      %v7828 = vadd.f32 %v7708, %v7790
      %v7829 = vadd.f32 %v7709, %v7793
      %v7830 = vadd.f32 %v7710, %v7795
      %v7831 = vadd.f32 %v7711, %v7798
      %v7832 = vadd.f32 %v7712, %v7800
      %v7833 = vmul.f32 %v7305, 0.26601171
      %v7834 = vmul.f32 %v7306, 0.26601171
      %v7835 = vmul.f32 %v7307, 0.26601171
      %v7836 = vmul.f32 %v7309, 0.26601171
      %v7837 = vmul.f32 %v7310, 0.26601171
      %v7838 = vmul.f32 %v7311, 0.26601171
      %v7839 = vmul.f32 %v7313, 0.26601171
      %v7840 = vmul.f32 %v7314, 0.26601171
      %v7841 = vmul.f32 %v7315, 0.26601171
      %v7842 = vmul.f32 %v7317, 0.26601171
      %v7843 = vmul.f32 %v7318, 0.26601171
      %v7844 = vmul.f32 %v7319, 0.26601171
      %v7845 = vmul.f32 %v7321, 0.26601171
      %v7846 = vmul.f32 %v7322, 0.26601171
      %v7847 = vmul.f32 %v7323, 0.26601171
      %v7848 = vmul.f32 %v7325, 0.26601171
      %v7849 = vmul.f32 %v7326, 0.26601171
      %v7850 = vmul.f32 %v7327, 0.26601171
      %v7851 = vmul.f32 %v7329, 0.26601171
      %v7852 = vmul.f32 %v7330, 0.26601171
      %v7853 = vmul.f32 %v7331, 0.26601171
      %v7854 = vmul.f32 %v7333, 0.26601171
      %v7855 = vmul.f32 %v7334, 0.26601171
      %v7856 = vmul.f32 %v7335, 0.26601171
      %v7881 = vrot.slane %v7833, 5
      %v7882 = vrot.slane %v7834, 5
      %v7883 = vsel %vm1606, %v7881, %v7882
      %v7884 = vrot.slane %v7835, 5
      %v7885 = vsel %vm1606, %v7882, %v7884
      %v7886 = vrot.slane %v7836, 5
      %v7887 = vrot.slane %v7837, 5
      %v7888 = vsel %vm1606, %v7886, %v7887
      %v7889 = vrot.slane %v7838, 5
      %v7890 = vsel %vm1606, %v7887, %v7889
      %v7891 = vrot.slane %v7839, 5
      %v7892 = vrot.slane %v7840, 5
      %v7893 = vsel %vm1606, %v7891, %v7892
      %v7894 = vrot.slane %v7841, 5
      %v7895 = vsel %vm1606, %v7892, %v7894
      %v7896 = vrot.slane %v7842, 5
      %v7897 = vrot.slane %v7843, 5
      %v7898 = vsel %vm1606, %v7896, %v7897
      %v7899 = vrot.slane %v7844, 5
      %v7900 = vsel %vm1606, %v7897, %v7899
      %v7901 = vrot.slane %v7845, 5
      %v7902 = vrot.slane %v7846, 5
      %v7903 = vsel %vm1606, %v7901, %v7902
      %v7904 = vrot.slane %v7847, 5
      %v7905 = vsel %vm1606, %v7902, %v7904
      %v7906 = vrot.slane %v7848, 5
      %v7907 = vrot.slane %v7849, 5
      %v7908 = vsel %vm1606, %v7906, %v7907
      %v7909 = vrot.slane %v7850, 5
      %v7910 = vsel %vm1606, %v7907, %v7909
      %v7911 = vrot.slane %v7851, 5
      %v7912 = vrot.slane %v7852, 5
      %v7913 = vsel %vm1606, %v7911, %v7912
      %v7914 = vrot.slane %v7853, 5
      %v7915 = vsel %vm1606, %v7912, %v7914
      %v7916 = vrot.slane %v7854, 5
      %v7917 = vrot.slane %v7855, 5
      %v7918 = vsel %vm1606, %v7916, %v7917
      %v7919 = vrot.slane %v7856, 5
      %v7920 = vsel %vm1606, %v7917, %v7919
      %v7937 = vadd.f32 %v7817, %v7883
      %v7938 = vadd.f32 %v7818, %v7885
      %v7939 = vadd.f32 %v7819, %v7888
      %v7940 = vadd.f32 %v7820, %v7890
      %v7941 = vadd.f32 %v7821, %v7893
      %v7942 = vadd.f32 %v7822, %v7895
      %v7943 = vadd.f32 %v7823, %v7898
      %v7944 = vadd.f32 %v7824, %v7900
      %v7945 = vadd.f32 %v7825, %v7903
      %v7946 = vadd.f32 %v7826, %v7905
      %v7947 = vadd.f32 %v7827, %v7908
      %v7948 = vadd.f32 %v7828, %v7910
      %v7949 = vadd.f32 %v7829, %v7913
      %v7950 = vadd.f32 %v7830, %v7915
      %v7951 = vadd.f32 %v7831, %v7918
      %v7952 = vadd.f32 %v7832, %v7920
      %v7953 = vrot.slane %v7713, 6
      %v7954 = vrot.slane %v7714, 6
      %v7955 = vsel %vm1679, %v7953, %v7954
      %v7956 = vrot.slane %v7715, 6
      %v7957 = vsel %vm1679, %v7954, %v7956
      %v7958 = vrot.slane %v7716, 6
      %v7959 = vrot.slane %v7717, 6
      %v7960 = vsel %vm1679, %v7958, %v7959
      %v7961 = vrot.slane %v7718, 6
      %v7962 = vsel %vm1679, %v7959, %v7961
      %v7963 = vrot.slane %v7719, 6
      %v7964 = vrot.slane %v7720, 6
      %v7965 = vsel %vm1679, %v7963, %v7964
      %v7966 = vrot.slane %v7721, 6
      %v7967 = vsel %vm1679, %v7964, %v7966
      %v7968 = vrot.slane %v7722, 6
      %v7969 = vrot.slane %v7723, 6
      %v7970 = vsel %vm1679, %v7968, %v7969
      %v7971 = vrot.slane %v7724, 6
      %v7972 = vsel %vm1679, %v7969, %v7971
      %v7973 = vrot.slane %v7725, 6
      %v7974 = vrot.slane %v7726, 6
      %v7975 = vsel %vm1679, %v7973, %v7974
      %v7976 = vrot.slane %v7727, 6
      %v7977 = vsel %vm1679, %v7974, %v7976
      %v7978 = vrot.slane %v7728, 6
      %v7979 = vrot.slane %v7729, 6
      %v7980 = vsel %vm1679, %v7978, %v7979
      %v7981 = vrot.slane %v7730, 6
      %v7982 = vsel %vm1679, %v7979, %v7981
      %v7983 = vrot.slane %v7731, 6
      %v7984 = vrot.slane %v7732, 6
      %v7985 = vsel %vm1679, %v7983, %v7984
      %v7986 = vrot.slane %v7733, 6
      %v7987 = vsel %vm1679, %v7984, %v7986
      %v7988 = vrot.slane %v7734, 6
      %v7989 = vrot.slane %v7735, 6
      %v7990 = vsel %vm1679, %v7988, %v7989
      %v7991 = vrot.slane %v7736, 6
      %v7992 = vsel %vm1679, %v7989, %v7991
      %v8009 = vadd.f32 %v7937, %v7955
      %v8010 = vadd.f32 %v7938, %v7957
      %v8011 = vadd.f32 %v7939, %v7960
      %v8012 = vadd.f32 %v7940, %v7962
      %v8013 = vadd.f32 %v7941, %v7965
      %v8014 = vadd.f32 %v7942, %v7967
      %v8015 = vadd.f32 %v7943, %v7970
      %v8016 = vadd.f32 %v7944, %v7972
      %v8017 = vadd.f32 %v7945, %v7975
      %v8018 = vadd.f32 %v7946, %v7977
      %v8019 = vadd.f32 %v7947, %v7980
      %v8020 = vadd.f32 %v7948, %v7982
      %v8021 = vadd.f32 %v7949, %v7985
      %v8022 = vadd.f32 %v7950, %v7987
      %v8023 = vadd.f32 %v7951, %v7990
      %v8024 = vadd.f32 %v7952, %v7992
      %v8025 = vrot.slane %v7593, 7
      %v8026 = vrot.slane %v7594, 7
      %v8027 = vsel %vm1752, %v8025, %v8026
      %v8028 = vrot.slane %v7595, 7
      %v8029 = vsel %vm1752, %v8026, %v8028
      %v8030 = vrot.slane %v7596, 7
      %v8031 = vrot.slane %v7597, 7
      %v8032 = vsel %vm1752, %v8030, %v8031
      %v8033 = vrot.slane %v7598, 7
      %v8034 = vsel %vm1752, %v8031, %v8033
      %v8035 = vrot.slane %v7599, 7
      %v8036 = vrot.slane %v7600, 7
      %v8037 = vsel %vm1752, %v8035, %v8036
      %v8038 = vrot.slane %v7601, 7
      %v8039 = vsel %vm1752, %v8036, %v8038
      %v8040 = vrot.slane %v7602, 7
      %v8041 = vrot.slane %v7603, 7
      %v8042 = vsel %vm1752, %v8040, %v8041
      %v8043 = vrot.slane %v7604, 7
      %v8044 = vsel %vm1752, %v8041, %v8043
      %v8045 = vrot.slane %v7605, 7
      %v8046 = vrot.slane %v7606, 7
      %v8047 = vsel %vm1752, %v8045, %v8046
      %v8048 = vrot.slane %v7607, 7
      %v8049 = vsel %vm1752, %v8046, %v8048
      %v8050 = vrot.slane %v7608, 7
      %v8051 = vrot.slane %v7609, 7
      %v8052 = vsel %vm1752, %v8050, %v8051
      %v8053 = vrot.slane %v7610, 7
      %v8054 = vsel %vm1752, %v8051, %v8053
      %v8055 = vrot.slane %v7611, 7
      %v8056 = vrot.slane %v7612, 7
      %v8057 = vsel %vm1752, %v8055, %v8056
      %v8058 = vrot.slane %v7613, 7
      %v8059 = vsel %vm1752, %v8056, %v8058
      %v8060 = vrot.slane %v7614, 7
      %v8061 = vrot.slane %v7615, 7
      %v8062 = vsel %vm1752, %v8060, %v8061
      %v8063 = vrot.slane %v7616, 7
      %v8064 = vsel %vm1752, %v8061, %v8063
      %v8081 = vadd.f32 %v8009, %v8027
      %v8082 = vadd.f32 %v8010, %v8029
      %v8083 = vadd.f32 %v8011, %v8032
      %v8084 = vadd.f32 %v8012, %v8034
      %v8085 = vadd.f32 %v8013, %v8037
      %v8086 = vadd.f32 %v8014, %v8039
      %v8087 = vadd.f32 %v8015, %v8042
      %v8088 = vadd.f32 %v8016, %v8044
      %v8089 = vadd.f32 %v8017, %v8047
      %v8090 = vadd.f32 %v8018, %v8049
      %v8091 = vadd.f32 %v8019, %v8052
      %v8092 = vadd.f32 %v8020, %v8054
      %v8093 = vadd.f32 %v8021, %v8057
      %v8094 = vadd.f32 %v8022, %v8059
      %v8095 = vadd.f32 %v8023, %v8062
      %v8096 = vadd.f32 %v8024, %v8064
      %v8097 = vadd.f32 %v8081, %v7474
      %v8098 = vadd.f32 %v8082, %v7475
      %v8099 = vadd.f32 %v8083, %v7477
      %v8100 = vadd.f32 %v8084, %v7478
      %v8101 = vadd.f32 %v8085, %v7480
      %v8102 = vadd.f32 %v8086, %v7481
      %v8103 = vadd.f32 %v8087, %v7483
      %v8104 = vadd.f32 %v8088, %v7484
      %v8105 = vadd.f32 %v8089, %v7486
      %v8106 = vadd.f32 %v8090, %v7487
      %v8107 = vadd.f32 %v8091, %v7489
      %v8108 = vadd.f32 %v8092, %v7490
      %v8109 = vadd.f32 %v8093, %v7492
      %v8110 = vadd.f32 %v8094, %v7493
      %v8111 = vadd.f32 %v8095, %v7495
      %v8112 = vadd.f32 %v8096, %v7496
      %v8113 = vmul.f32 %v7308, 0.007598758
      %v8114 = vmul.f32 %v7312, 0.007598758
      %v8115 = vmul.f32 %v7316, 0.007598758
      %v8116 = vmul.f32 %v7320, 0.007598758
      %v8117 = vmul.f32 %v7324, 0.007598758
      %v8118 = vmul.f32 %v7328, 0.007598758
      %v8119 = vmul.f32 %v7332, 0.007598758
      %v8120 = vmul.f32 %v7336, 0.007598758
      %v8129 = vrot.slane %v8113, 1
      %v8130 = vsel %vm1122, %v7404, %v8129
      %v8131 = vrot.slane %v8114, 1
      %v8132 = vsel %vm1122, %v7409, %v8131
      %v8133 = vrot.slane %v8115, 1
      %v8134 = vsel %vm1122, %v7414, %v8133
      %v8135 = vrot.slane %v8116, 1
      %v8136 = vsel %vm1122, %v7419, %v8135
      %v8137 = vrot.slane %v8117, 1
      %v8138 = vsel %vm1122, %v7424, %v8137
      %v8139 = vrot.slane %v8118, 1
      %v8140 = vsel %vm1122, %v7429, %v8139
      %v8141 = vrot.slane %v8119, 1
      %v8142 = vsel %vm1122, %v7434, %v8141
      %v8143 = vrot.slane %v8120, 1
      %v8144 = vsel %vm1122, %v7439, %v8143
      %v8153 = vadd.f32 %v8097, %v7405
      %v8154 = vadd.f32 %v8098, %v8130
      %v8155 = vadd.f32 %v8099, %v7410
      %v8156 = vadd.f32 %v8100, %v8132
      %v8157 = vadd.f32 %v8101, %v7415
      %v8158 = vadd.f32 %v8102, %v8134
      %v8159 = vadd.f32 %v8103, %v7420
      %v8160 = vadd.f32 %v8104, %v8136
      %v8161 = vadd.f32 %v8105, %v7425
      %v8162 = vadd.f32 %v8106, %v8138
      %v8163 = vadd.f32 %v8107, %v7430
      %v8164 = vadd.f32 %v8108, %v8140
      %v8165 = vadd.f32 %v8109, %v7435
      %v8166 = vadd.f32 %v8110, %v8142
      %v8167 = vadd.f32 %v8111, %v7440
      %v8168 = vadd.f32 %v8112, %v8144
      %v8169 = vmul.f32 %v7307, 0.0010283801
      %v8170 = vmul.f32 %v7308, 0.0010283801
      %v8171 = vmul.f32 %v7311, 0.0010283801
      %v8172 = vmul.f32 %v7312, 0.0010283801
      %v8173 = vmul.f32 %v7315, 0.0010283801
      %v8174 = vmul.f32 %v7316, 0.0010283801
      %v8175 = vmul.f32 %v7319, 0.0010283801
      %v8176 = vmul.f32 %v7320, 0.0010283801
      %v8177 = vmul.f32 %v7323, 0.0010283801
      %v8178 = vmul.f32 %v7324, 0.0010283801
      %v8179 = vmul.f32 %v7327, 0.0010283801
      %v8180 = vmul.f32 %v7328, 0.0010283801
      %v8181 = vmul.f32 %v7331, 0.0010283801
      %v8182 = vmul.f32 %v7332, 0.0010283801
      %v8183 = vmul.f32 %v7335, 0.0010283801
      %v8184 = vmul.f32 %v7336, 0.0010283801
      %v8209 = vrot.slane %v7338, 2
      %v8210 = vrot.slane %v8169, 2
      %v8211 = vsel %vm1243, %v8209, %v8210
      %v8212 = vrot.slane %v8170, 2
      %v8213 = vsel %vm1243, %v8210, %v8212
      %v8214 = vrot.slane %v7340, 2
      %v8215 = vrot.slane %v8171, 2
      %v8216 = vsel %vm1243, %v8214, %v8215
      %v8217 = vrot.slane %v8172, 2
      %v8218 = vsel %vm1243, %v8215, %v8217
      %v8219 = vrot.slane %v7342, 2
      %v8220 = vrot.slane %v8173, 2
      %v8221 = vsel %vm1243, %v8219, %v8220
      %v8222 = vrot.slane %v8174, 2
      %v8223 = vsel %vm1243, %v8220, %v8222
      %v8224 = vrot.slane %v7344, 2
      %v8225 = vrot.slane %v8175, 2
      %v8226 = vsel %vm1243, %v8224, %v8225
      %v8227 = vrot.slane %v8176, 2
      %v8228 = vsel %vm1243, %v8225, %v8227
      %v8229 = vrot.slane %v7346, 2
      %v8230 = vrot.slane %v8177, 2
      %v8231 = vsel %vm1243, %v8229, %v8230
      %v8232 = vrot.slane %v8178, 2
      %v8233 = vsel %vm1243, %v8230, %v8232
      %v8234 = vrot.slane %v7348, 2
      %v8235 = vrot.slane %v8179, 2
      %v8236 = vsel %vm1243, %v8234, %v8235
      %v8237 = vrot.slane %v8180, 2
      %v8238 = vsel %vm1243, %v8235, %v8237
      %v8239 = vrot.slane %v7350, 2
      %v8240 = vrot.slane %v8181, 2
      %v8241 = vsel %vm1243, %v8239, %v8240
      %v8242 = vrot.slane %v8182, 2
      %v8243 = vsel %vm1243, %v8240, %v8242
      %v8244 = vrot.slane %v7352, 2
      %v8245 = vrot.slane %v8183, 2
      %v8246 = vsel %vm1243, %v8244, %v8245
      %v8247 = vrot.slane %v8184, 2
      %v8248 = vsel %vm1243, %v8245, %v8247
      %v8265 = vadd.f32 %v8153, %v8211
      %v8266 = vadd.f32 %v8154, %v8213
      %v8267 = vadd.f32 %v8155, %v8216
      %v8268 = vadd.f32 %v8156, %v8218
      %v8269 = vadd.f32 %v8157, %v8221
      %v8270 = vadd.f32 %v8158, %v8223
      %v8271 = vadd.f32 %v8159, %v8226
      %v8272 = vadd.f32 %v8160, %v8228
      %v8273 = vadd.f32 %v8161, %v8231
      %v8274 = vadd.f32 %v8162, %v8233
      %v8275 = vadd.f32 %v8163, %v8236
      %v8276 = vadd.f32 %v8164, %v8238
      %v8277 = vadd.f32 %v8165, %v8241
      %v8278 = vadd.f32 %v8166, %v8243
      %v8279 = vadd.f32 %v8167, %v8246
      %v8280 = vadd.f32 %v8168, %v8248
      %v8281 = vmul.f32 %v1993, %v1993
      %v8282 = vmul.f32 %v1994, %v1994
      %v8283 = vmul.f32 %v1995, %v1995
      %v8284 = vmul.f32 %v1996, %v1996
      %v8285 = vmul.f32 %v1997, %v1997
      %v8286 = vmul.f32 %v1998, %v1998
      %v8287 = vmul.f32 %v1999, %v1999
      %v8288 = vmul.f32 %v2000, %v2000
      %v8289 = vmul.f32 %v2001, %v2001
      %v8290 = vmul.f32 %v2002, %v2002
      %v8291 = vmul.f32 %v2003, %v2003
      %v8292 = vmul.f32 %v2004, %v2004
      %v8293 = vmul.f32 %v2005, %v2005
      %v8294 = vmul.f32 %v2006, %v2006
      %v8295 = vmul.f32 %v2007, %v2007
      %v8296 = vmul.f32 %v2008, %v2008
      %v8297 = vmul.f32 %v3561, %v3561
      %v8298 = vmul.f32 %v3562, %v3562
      %v8299 = vmul.f32 %v3563, %v3563
      %v8300 = vmul.f32 %v3564, %v3564
      %v8301 = vmul.f32 %v3565, %v3565
      %v8302 = vmul.f32 %v3566, %v3566
      %v8303 = vmul.f32 %v3567, %v3567
      %v8304 = vmul.f32 %v3568, %v3568
      %v8305 = vmul.f32 %v3569, %v3569
      %v8306 = vmul.f32 %v3570, %v3570
      %v8307 = vmul.f32 %v3571, %v3571
      %v8308 = vmul.f32 %v3572, %v3572
      %v8309 = vmul.f32 %v3573, %v3573
      %v8310 = vmul.f32 %v3574, %v3574
      %v8311 = vmul.f32 %v3575, %v3575
      %v8312 = vmul.f32 %v3576, %v3576
      %v8313 = vmul.f32 %v1993, %v3561
      %v8314 = vmul.f32 %v1994, %v3562
      %v8315 = vmul.f32 %v1995, %v3563
      %v8316 = vmul.f32 %v1996, %v3564
      %v8317 = vmul.f32 %v1997, %v3565
      %v8318 = vmul.f32 %v1998, %v3566
      %v8319 = vmul.f32 %v1999, %v3567
      %v8320 = vmul.f32 %v2000, %v3568
      %v8321 = vmul.f32 %v2001, %v3569
      %v8322 = vmul.f32 %v2002, %v3570
      %v8323 = vmul.f32 %v2003, %v3571
      %v8324 = vmul.f32 %v2004, %v3572
      %v8325 = vmul.f32 %v2005, %v3573
      %v8326 = vmul.f32 %v2006, %v3574
      %v8327 = vmul.f32 %v2007, %v3575
      %v8328 = vmul.f32 %v2008, %v3576
      %v8329 = vsub.f32 %v5129, %v8281
      %v8330 = vsub.f32 %v5130, %v8282
      %v8331 = vsub.f32 %v5131, %v8283
      %v8332 = vsub.f32 %v5132, %v8284
      %v8333 = vsub.f32 %v5133, %v8285
      %v8334 = vsub.f32 %v5134, %v8286
      %v8335 = vsub.f32 %v5135, %v8287
      %v8336 = vsub.f32 %v5136, %v8288
      %v8337 = vsub.f32 %v5137, %v8289
      %v8338 = vsub.f32 %v5138, %v8290
      %v8339 = vsub.f32 %v5139, %v8291
      %v8340 = vsub.f32 %v5140, %v8292
      %v8341 = vsub.f32 %v5141, %v8293
      %v8342 = vsub.f32 %v5142, %v8294
      %v8343 = vsub.f32 %v5143, %v8295
      %v8344 = vsub.f32 %v5144, %v8296
      %v8345 = vsub.f32 %v6697, %v8297
      %v8346 = vsub.f32 %v6698, %v8298
      %v8347 = vsub.f32 %v6699, %v8299
      %v8348 = vsub.f32 %v6700, %v8300
      %v8349 = vsub.f32 %v6701, %v8301
      %v8350 = vsub.f32 %v6702, %v8302
      %v8351 = vsub.f32 %v6703, %v8303
      %v8352 = vsub.f32 %v6704, %v8304
      %v8353 = vsub.f32 %v6705, %v8305
      %v8354 = vsub.f32 %v6706, %v8306
      %v8355 = vsub.f32 %v6707, %v8307
      %v8356 = vsub.f32 %v6708, %v8308
      %v8357 = vsub.f32 %v6709, %v8309
      %v8358 = vsub.f32 %v6710, %v8310
      %v8359 = vsub.f32 %v6711, %v8311
      %v8360 = vsub.f32 %v6712, %v8312
      %v8361 = vsub.f32 %v8265, %v8313
      %v8362 = vsub.f32 %v8266, %v8314
      %v8363 = vsub.f32 %v8267, %v8315
      %v8364 = vsub.f32 %v8268, %v8316
      %v8365 = vsub.f32 %v8269, %v8317
      %v8366 = vsub.f32 %v8270, %v8318
      %v8367 = vsub.f32 %v8271, %v8319
      %v8368 = vsub.f32 %v8272, %v8320
      %v8369 = vsub.f32 %v8273, %v8321
      %v8370 = vsub.f32 %v8274, %v8322
      %v8371 = vsub.f32 %v8275, %v8323
      %v8372 = vsub.f32 %v8276, %v8324
      %v8373 = vsub.f32 %v8277, %v8325
      %v8374 = vsub.f32 %v8278, %v8326
      %v8375 = vsub.f32 %v8279, %v8327
      %v8376 = vsub.f32 %v8280, %v8328
      %v8377 = vmul.f32 %v8361, 2.0
      %v8378 = vmul.f32 %v8362, 2.0
      %v8379 = vmul.f32 %v8363, 2.0
      %v8380 = vmul.f32 %v8364, 2.0
      %v8381 = vmul.f32 %v8365, 2.0
      %v8382 = vmul.f32 %v8366, 2.0
      %v8383 = vmul.f32 %v8367, 2.0
      %v8384 = vmul.f32 %v8368, 2.0
      %v8385 = vmul.f32 %v8369, 2.0
      %v8386 = vmul.f32 %v8370, 2.0
      %v8387 = vmul.f32 %v8371, 2.0
      %v8388 = vmul.f32 %v8372, 2.0
      %v8389 = vmul.f32 %v8373, 2.0
      %v8390 = vmul.f32 %v8374, 2.0
      %v8391 = vmul.f32 %v8375, 2.0
      %v8392 = vmul.f32 %v8376, 2.0
      %v8393 = vstv %s61
      %v8394 = vadd.f32 %v8377, %v8393
      %v8395 = vadd.f32 %v8378, %v8393
      %v8396 = vadd.f32 %v8379, %v8393
      %v8397 = vadd.f32 %v8380, %v8393
      %v8398 = vadd.f32 %v8381, %v8393
      %v8399 = vadd.f32 %v8382, %v8393
      %v8400 = vadd.f32 %v8383, %v8393
      %v8401 = vadd.f32 %v8384, %v8393
      %v8402 = vadd.f32 %v8385, %v8393
      %v8403 = vadd.f32 %v8386, %v8393
      %v8404 = vadd.f32 %v8387, %v8393
      %v8405 = vadd.f32 %v8388, %v8393
      %v8406 = vadd.f32 %v8389, %v8393
      %v8407 = vadd.f32 %v8390, %v8393
      %v8408 = vadd.f32 %v8391, %v8393
      %v8409 = vadd.f32 %v8392, %v8393
      %v8410 = vadd.f32 %v8329, %v8345
      %v8411 = vadd.f32 %v8330, %v8346
      %v8412 = vadd.f32 %v8331, %v8347
      %v8413 = vadd.f32 %v8332, %v8348
      %v8414 = vadd.f32 %v8333, %v8349
      %v8415 = vadd.f32 %v8334, %v8350
      %v8416 = vadd.f32 %v8335, %v8351
      %v8417 = vadd.f32 %v8336, %v8352
      %v8418 = vadd.f32 %v8337, %v8353
      %v8419 = vadd.f32 %v8338, %v8354
      %v8420 = vadd.f32 %v8339, %v8355
      %v8421 = vadd.f32 %v8340, %v8356
      %v8422 = vadd.f32 %v8341, %v8357
      %v8423 = vadd.f32 %v8342, %v8358
      %v8424 = vadd.f32 %v8343, %v8359
      %v8425 = vadd.f32 %v8344, %v8360
      %v8426 = vadd.f32 %v8410, %v8393
      %v8427 = vadd.f32 %v8411, %v8393
      %v8428 = vadd.f32 %v8412, %v8393
      %v8429 = vadd.f32 %v8413, %v8393
      %v8430 = vadd.f32 %v8414, %v8393
      %v8431 = vadd.f32 %v8415, %v8393
      %v8432 = vadd.f32 %v8416, %v8393
      %v8433 = vadd.f32 %v8417, %v8393
      %v8434 = vadd.f32 %v8418, %v8393
      %v8435 = vadd.f32 %v8419, %v8393
      %v8436 = vadd.f32 %v8420, %v8393
      %v8437 = vadd.f32 %v8421, %v8393
      %v8438 = vadd.f32 %v8422, %v8393
      %v8439 = vadd.f32 %v8423, %v8393
      %v8440 = vadd.f32 %v8424, %v8393
      %v8441 = vadd.f32 %v8425, %v8393
      %v8442 = vmul.f32 %v8313, 2.0
      %v8443 = vmul.f32 %v8314, 2.0
      %v8444 = vmul.f32 %v8315, 2.0
      %v8445 = vmul.f32 %v8316, 2.0
      %v8446 = vmul.f32 %v8317, 2.0
      %v8447 = vmul.f32 %v8318, 2.0
      %v8448 = vmul.f32 %v8319, 2.0
      %v8449 = vmul.f32 %v8320, 2.0
      %v8450 = vmul.f32 %v8321, 2.0
      %v8451 = vmul.f32 %v8322, 2.0
      %v8452 = vmul.f32 %v8323, 2.0
      %v8453 = vmul.f32 %v8324, 2.0
      %v8454 = vmul.f32 %v8325, 2.0
      %v8455 = vmul.f32 %v8326, 2.0
      %v8456 = vmul.f32 %v8327, 2.0
      %v8457 = vmul.f32 %v8328, 2.0
      %v8458 = vstv %s60
      %v8459 = vadd.f32 %v8442, %v8458
      %v8460 = vadd.f32 %v8443, %v8458
      %v8461 = vadd.f32 %v8444, %v8458
      %v8462 = vadd.f32 %v8445, %v8458
      %v8463 = vadd.f32 %v8446, %v8458
      %v8464 = vadd.f32 %v8447, %v8458
      %v8465 = vadd.f32 %v8448, %v8458
      %v8466 = vadd.f32 %v8449, %v8458
      %v8467 = vadd.f32 %v8450, %v8458
      %v8468 = vadd.f32 %v8451, %v8458
      %v8469 = vadd.f32 %v8452, %v8458
      %v8470 = vadd.f32 %v8453, %v8458
      %v8471 = vadd.f32 %v8454, %v8458
      %v8472 = vadd.f32 %v8455, %v8458
      %v8473 = vadd.f32 %v8456, %v8458
      %v8474 = vadd.f32 %v8457, %v8458
      %v8475 = vmul.f32 %v8459, %v8394
      %v8476 = vmul.f32 %v8460, %v8395
      %v8477 = vmul.f32 %v8461, %v8396
      %v8478 = vmul.f32 %v8462, %v8397
      %v8479 = vmul.f32 %v8463, %v8398
      %v8480 = vmul.f32 %v8464, %v8399
      %v8481 = vmul.f32 %v8465, %v8400
      %v8482 = vmul.f32 %v8466, %v8401
      %v8483 = vmul.f32 %v8467, %v8402
      %v8484 = vmul.f32 %v8468, %v8403
      %v8485 = vmul.f32 %v8469, %v8404
      %v8486 = vmul.f32 %v8470, %v8405
      %v8487 = vmul.f32 %v8471, %v8406
      %v8488 = vmul.f32 %v8472, %v8407
      %v8489 = vmul.f32 %v8473, %v8408
      %v8490 = vmul.f32 %v8474, %v8409
      %v8491 = vadd.f32 %v8281, %v8297
      %v8492 = vadd.f32 %v8282, %v8298
      %v8493 = vadd.f32 %v8283, %v8299
      %v8494 = vadd.f32 %v8284, %v8300
      %v8495 = vadd.f32 %v8285, %v8301
      %v8496 = vadd.f32 %v8286, %v8302
      %v8497 = vadd.f32 %v8287, %v8303
      %v8498 = vadd.f32 %v8288, %v8304
      %v8499 = vadd.f32 %v8289, %v8305
      %v8500 = vadd.f32 %v8290, %v8306
      %v8501 = vadd.f32 %v8291, %v8307
      %v8502 = vadd.f32 %v8292, %v8308
      %v8503 = vadd.f32 %v8293, %v8309
      %v8504 = vadd.f32 %v8294, %v8310
      %v8505 = vadd.f32 %v8295, %v8311
      %v8506 = vadd.f32 %v8296, %v8312
      %v8507 = vadd.f32 %v8491, %v8458
      %v8508 = vadd.f32 %v8492, %v8458
      %v8509 = vadd.f32 %v8493, %v8458
      %v8510 = vadd.f32 %v8494, %v8458
      %v8511 = vadd.f32 %v8495, %v8458
      %v8512 = vadd.f32 %v8496, %v8458
      %v8513 = vadd.f32 %v8497, %v8458
      %v8514 = vadd.f32 %v8498, %v8458
      %v8515 = vadd.f32 %v8499, %v8458
      %v8516 = vadd.f32 %v8500, %v8458
      %v8517 = vadd.f32 %v8501, %v8458
      %v8518 = vadd.f32 %v8502, %v8458
      %v8519 = vadd.f32 %v8503, %v8458
      %v8520 = vadd.f32 %v8504, %v8458
      %v8521 = vadd.f32 %v8505, %v8458
      %v8522 = vadd.f32 %v8506, %v8458
      %v8523 = vmul.f32 %v8507, %v8426
      %v8524 = vmul.f32 %v8508, %v8427
      %v8525 = vmul.f32 %v8509, %v8428
      %v8526 = vmul.f32 %v8510, %v8429
      %v8527 = vmul.f32 %v8511, %v8430
      %v8528 = vmul.f32 %v8512, %v8431
      %v8529 = vmul.f32 %v8513, %v8432
      %v8530 = vmul.f32 %v8514, %v8433
      %v8531 = vmul.f32 %v8515, %v8434
      %v8532 = vmul.f32 %v8516, %v8435
      %v8533 = vmul.f32 %v8517, %v8436
      %v8534 = vmul.f32 %v8518, %v8437
      %v8535 = vmul.f32 %v8519, %v8438
      %v8536 = vmul.f32 %v8520, %v8439
      %v8537 = vmul.f32 %v8521, %v8440
      %v8538 = vmul.f32 %v8522, %v8441
      %v8539 = vrcp.pop %v8523
      %v8540 = vmul.f32 %v8523, %v8539
      %v8541 = vsub.f32 1.0, %v8540
      %v8542 = vmul.f32 %v8539, %v8541
      %v8543 = vadd.f32 %v8539, %v8542
      %vm8544 = vweird.f32 %v8523
      %vm8545 = vweird.f32 %v8539
      %vm8546 = vmor %vm8544, %vm8545
      %v8547 = vsel %vm8546, %v8539, %v8543
      %v8548 = vand.u32 2147483647, %v8523
      %vm8549 = vcmp.eq.f32.partialorder %v8548, 8.507059e+37
      %v8550 = vand.u32 %v8523, 2147483648
      %v8551 = vor.u32 1.1754944e-38, %v8550
      %v8552 = vsel %vm8549, %v8551, %v8547
      %v8553 = vrcp.pop %v8524
      %v8554 = vmul.f32 %v8524, %v8553
      %v8555 = vsub.f32 1.0, %v8554
      %v8556 = vmul.f32 %v8553, %v8555
      %v8557 = vadd.f32 %v8553, %v8556
      %vm8558 = vweird.f32 %v8524
      %vm8559 = vweird.f32 %v8553
      %vm8560 = vmor %vm8558, %vm8559
      %v8561 = vsel %vm8560, %v8553, %v8557
      %v8562 = vand.u32 2147483647, %v8524
      %vm8563 = vcmp.eq.f32.partialorder %v8562, 8.507059e+37
      %v8564 = vand.u32 %v8524, 2147483648
      %v8565 = vor.u32 1.1754944e-38, %v8564
      %v8566 = vsel %vm8563, %v8565, %v8561
      %v8567 = vrcp.pop %v8525
      %v8568 = vmul.f32 %v8525, %v8567
      %v8569 = vsub.f32 1.0, %v8568
      %v8570 = vmul.f32 %v8567, %v8569
      %v8571 = vadd.f32 %v8567, %v8570
      %vm8572 = vweird.f32 %v8525
      %vm8573 = vweird.f32 %v8567
      %vm8574 = vmor %vm8572, %vm8573
      %v8575 = vsel %vm8574, %v8567, %v8571
      %v8576 = vand.u32 2147483647, %v8525
      %vm8577 = vcmp.eq.f32.partialorder %v8576, 8.507059e+37
      %v8578 = vand.u32 %v8525, 2147483648
      %v8579 = vor.u32 1.1754944e-38, %v8578
      %v8580 = vsel %vm8577, %v8579, %v8575
      %v8581 = vrcp.pop %v8526
      %v8582 = vmul.f32 %v8526, %v8581
      %v8583 = vsub.f32 1.0, %v8582
      %v8584 = vmul.f32 %v8581, %v8583
      %v8585 = vadd.f32 %v8581, %v8584
      %vm8586 = vweird.f32 %v8526
      %vm8587 = vweird.f32 %v8581
      %vm8588 = vmor %vm8586, %vm8587
      %v8589 = vsel %vm8588, %v8581, %v8585
      %v8590 = vand.u32 2147483647, %v8526
      %vm8591 = vcmp.eq.f32.partialorder %v8590, 8.507059e+37
      %v8592 = vand.u32 %v8526, 2147483648
      %v8593 = vor.u32 1.1754944e-38, %v8592
      %v8594 = vsel %vm8591, %v8593, %v8589
      %v8595 = vrcp.pop %v8527
      %v8596 = vmul.f32 %v8527, %v8595
      %v8597 = vsub.f32 1.0, %v8596
      %v8598 = vmul.f32 %v8595, %v8597
      %v8599 = vadd.f32 %v8595, %v8598
      %vm8600 = vweird.f32 %v8527
      %vm8601 = vweird.f32 %v8595
      %vm8602 = vmor %vm8600, %vm8601
      %v8603 = vsel %vm8602, %v8595, %v8599
      %v8604 = vand.u32 2147483647, %v8527
      %vm8605 = vcmp.eq.f32.partialorder %v8604, 8.507059e+37
      %v8606 = vand.u32 %v8527, 2147483648
      %v8607 = vor.u32 1.1754944e-38, %v8606
      %v8608 = vsel %vm8605, %v8607, %v8603
      %v8609 = vrcp.pop %v8528
      %v8610 = vmul.f32 %v8528, %v8609
      %v8611 = vsub.f32 1.0, %v8610
      %v8612 = vmul.f32 %v8609, %v8611
      %v8613 = vadd.f32 %v8609, %v8612
      %vm8614 = vweird.f32 %v8528
      %vm8615 = vweird.f32 %v8609
      %vm8616 = vmor %vm8614, %vm8615
      %v8617 = vsel %vm8616, %v8609, %v8613
      %v8618 = vand.u32 2147483647, %v8528
      %vm8619 = vcmp.eq.f32.partialorder %v8618, 8.507059e+37
      %v8620 = vand.u32 %v8528, 2147483648
      %v8621 = vor.u32 1.1754944e-38, %v8620
      %v8622 = vsel %vm8619, %v8621, %v8617
      %v8623 = vrcp.pop %v8529
      %v8624 = vmul.f32 %v8529, %v8623
      %v8625 = vsub.f32 1.0, %v8624
      %v8626 = vmul.f32 %v8623, %v8625
      %v8627 = vadd.f32 %v8623, %v8626
      %vm8628 = vweird.f32 %v8529
      %vm8629 = vweird.f32 %v8623
      %vm8630 = vmor %vm8628, %vm8629
      %v8631 = vsel %vm8630, %v8623, %v8627
      %v8632 = vand.u32 2147483647, %v8529
      %vm8633 = vcmp.eq.f32.partialorder %v8632, 8.507059e+37
      %v8634 = vand.u32 %v8529, 2147483648
      %v8635 = vor.u32 1.1754944e-38, %v8634
      %v8636 = vsel %vm8633, %v8635, %v8631
      %v8637 = vrcp.pop %v8530
      %v8638 = vmul.f32 %v8530, %v8637
      %v8639 = vsub.f32 1.0, %v8638
      %v8640 = vmul.f32 %v8637, %v8639
      %v8641 = vadd.f32 %v8637, %v8640
      %vm8642 = vweird.f32 %v8530
      %vm8643 = vweird.f32 %v8637
      %vm8644 = vmor %vm8642, %vm8643
      %v8645 = vsel %vm8644, %v8637, %v8641
      %v8646 = vand.u32 2147483647, %v8530
      %vm8647 = vcmp.eq.f32.partialorder %v8646, 8.507059e+37
      %v8648 = vand.u32 %v8530, 2147483648
      %v8649 = vor.u32 1.1754944e-38, %v8648
      %v8650 = vsel %vm8647, %v8649, %v8645
      %v8651 = vrcp.pop %v8531
      %v8652 = vmul.f32 %v8531, %v8651
      %v8653 = vsub.f32 1.0, %v8652
      %v8654 = vmul.f32 %v8651, %v8653
      %v8655 = vadd.f32 %v8651, %v8654
      %vm8656 = vweird.f32 %v8531
      %vm8657 = vweird.f32 %v8651
      %vm8658 = vmor %vm8656, %vm8657
      %v8659 = vsel %vm8658, %v8651, %v8655
      %v8660 = vand.u32 2147483647, %v8531
      %vm8661 = vcmp.eq.f32.partialorder %v8660, 8.507059e+37
      %v8662 = vand.u32 %v8531, 2147483648
      %v8663 = vor.u32 1.1754944e-38, %v8662
      %v8664 = vsel %vm8661, %v8663, %v8659
      %v8665 = vrcp.pop %v8532
      %v8666 = vmul.f32 %v8532, %v8665
      %v8667 = vsub.f32 1.0, %v8666
      %v8668 = vmul.f32 %v8665, %v8667
      %v8669 = vadd.f32 %v8665, %v8668
      %vm8670 = vweird.f32 %v8532
      %vm8671 = vweird.f32 %v8665
      %vm8672 = vmor %vm8670, %vm8671
      %v8673 = vsel %vm8672, %v8665, %v8669
      %v8674 = vand.u32 2147483647, %v8532
      %vm8675 = vcmp.eq.f32.partialorder %v8674, 8.507059e+37
      %v8676 = vand.u32 %v8532, 2147483648
      %v8677 = vor.u32 1.1754944e-38, %v8676
      %v8678 = vsel %vm8675, %v8677, %v8673
      %v8679 = vrcp.pop %v8533
      %v8680 = vmul.f32 %v8533, %v8679
      %v8681 = vsub.f32 1.0, %v8680
      %v8682 = vmul.f32 %v8679, %v8681
      %v8683 = vadd.f32 %v8679, %v8682
      %vm8684 = vweird.f32 %v8533
      %vm8685 = vweird.f32 %v8679
      %vm8686 = vmor %vm8684, %vm8685
      %v8687 = vsel %vm8686, %v8679, %v8683
      %v8688 = vand.u32 2147483647, %v8533
      %vm8689 = vcmp.eq.f32.partialorder %v8688, 8.507059e+37
      %v8690 = vand.u32 %v8533, 2147483648
      %v8691 = vor.u32 1.1754944e-38, %v8690
      %v8692 = vsel %vm8689, %v8691, %v8687
      %v8693 = vrcp.pop %v8534
      %v8694 = vmul.f32 %v8534, %v8693
      %v8695 = vsub.f32 1.0, %v8694
      %v8696 = vmul.f32 %v8693, %v8695
      %v8697 = vadd.f32 %v8693, %v8696
      %vm8698 = vweird.f32 %v8534
      %vm8699 = vweird.f32 %v8693
      %vm8700 = vmor %vm8698, %vm8699
      %v8701 = vsel %vm8700, %v8693, %v8697
      %v8702 = vand.u32 2147483647, %v8534
      %vm8703 = vcmp.eq.f32.partialorder %v8702, 8.507059e+37
      %v8704 = vand.u32 %v8534, 2147483648
      %v8705 = vor.u32 1.1754944e-38, %v8704
      %v8706 = vsel %vm8703, %v8705, %v8701
      %v8707 = vrcp.pop %v8535
      %v8708 = vmul.f32 %v8535, %v8707
      %v8709 = vsub.f32 1.0, %v8708
      %v8710 = vmul.f32 %v8707, %v8709
      %v8711 = vadd.f32 %v8707, %v8710
      %vm8712 = vweird.f32 %v8535
      %vm8713 = vweird.f32 %v8707
      %vm8714 = vmor %vm8712, %vm8713
      %v8715 = vsel %vm8714, %v8707, %v8711
      %v8716 = vand.u32 2147483647, %v8535
      %vm8717 = vcmp.eq.f32.partialorder %v8716, 8.507059e+37
      %v8718 = vand.u32 %v8535, 2147483648
      %v8719 = vor.u32 1.1754944e-38, %v8718
      %v8720 = vsel %vm8717, %v8719, %v8715
      %v8721 = vrcp.pop %v8536
      %v8722 = vmul.f32 %v8536, %v8721
      %v8723 = vsub.f32 1.0, %v8722
      %v8724 = vmul.f32 %v8721, %v8723
      %v8725 = vadd.f32 %v8721, %v8724
      %vm8726 = vweird.f32 %v8536
      %vm8727 = vweird.f32 %v8721
      %vm8728 = vmor %vm8726, %vm8727
      %v8729 = vsel %vm8728, %v8721, %v8725
      %v8730 = vand.u32 2147483647, %v8536
      %vm8731 = vcmp.eq.f32.partialorder %v8730, 8.507059e+37
      %v8732 = vand.u32 %v8536, 2147483648
      %v8733 = vor.u32 1.1754944e-38, %v8732
      %v8734 = vsel %vm8731, %v8733, %v8729
      %v8735 = vrcp.pop %v8537
      %v8736 = vmul.f32 %v8537, %v8735
      %v8737 = vsub.f32 1.0, %v8736
      %v8738 = vmul.f32 %v8735, %v8737
      %v8739 = vadd.f32 %v8735, %v8738
      %vm8740 = vweird.f32 %v8537
      %vm8741 = vweird.f32 %v8735
      %vm8742 = vmor %vm8740, %vm8741
      %v8743 = vsel %vm8742, %v8735, %v8739
      %v8744 = vand.u32 2147483647, %v8537
      %vm8745 = vcmp.eq.f32.partialorder %v8744, 8.507059e+37
      %v8746 = vand.u32 %v8537, 2147483648
      %v8747 = vor.u32 1.1754944e-38, %v8746
      %v8748 = vsel %vm8745, %v8747, %v8743
      %v8749 = vrcp.pop %v8538
      %v8750 = vmul.f32 %v8538, %v8749
      %v8751 = vsub.f32 1.0, %v8750
      %v8752 = vmul.f32 %v8749, %v8751
      %v8753 = vadd.f32 %v8749, %v8752
      %vm8754 = vweird.f32 %v8538
      %vm8755 = vweird.f32 %v8749
      %vm8756 = vmor %vm8754, %vm8755
      %v8757 = vsel %vm8756, %v8749, %v8753
      %v8758 = vand.u32 2147483647, %v8538
      %vm8759 = vcmp.eq.f32.partialorder %v8758, 8.507059e+37
      %v8760 = vand.u32 %v8538, 2147483648
      %v8761 = vor.u32 1.1754944e-38, %v8760
      %v8762 = vsel %vm8759, %v8761, %v8757
      %v8763 = vmul.f32 %v8475, %v8552
      %v8764 = vmul.f32 %v8476, %v8566
      %v8765 = vmul.f32 %v8477, %v8580
      %v8766 = vmul.f32 %v8478, %v8594
      %v8767 = vmul.f32 %v8479, %v8608
      %v8768 = vmul.f32 %v8480, %v8622
      %v8769 = vmul.f32 %v8481, %v8636
      %v8770 = vmul.f32 %v8482, %v8650
      %v8771 = vmul.f32 %v8483, %v8664
      %v8772 = vmul.f32 %v8484, %v8678
      %v8773 = vmul.f32 %v8485, %v8692
      %v8774 = vmul.f32 %v8486, %v8706
      %v8775 = vmul.f32 %v8487, %v8720
      %v8776 = vmul.f32 %v8488, %v8734
      %v8777 = vmul.f32 %v8489, %v8748
      %v8778 = vmul.f32 %v8490, %v8762
      %v8779 = vadd.f32 %v8763, %v8765
      %v8780 = vadd.f32 %v8779, %v8767
      %v8781 = vadd.f32 %v8780, %v8769
      %v8782 = vadd.f32 %v8781, %v8771
      %v8783 = vadd.f32 %v8782, %v8773
      %v8784 = vadd.f32 %v8783, %v8775
      %v8785 = vadd.f32 %v8784, %v8777
      %v8786 = vadd.f32 %v8764, %v8766
      %v8787 = vadd.f32 %v8786, %v8768
      %v8788 = vadd.f32 %v8787, %v8770
      %v8789 = vadd.f32 %v8788, %v8772
      %v8790 = vadd.f32 %v8789, %v8774
      %v8791 = vadd.f32 %v8790, %v8776
      %v8792 = vadd.f32 %v8791, %v8778
      %v8793 = vadd.f32 %v68, %v8785
      %v8794 = vadd.f32 %v69, %v8792
    $region30: #{tpu_custom_call.1} parent=1 // loop_footer
      %s67 = sadd.s32 1, %s63
    $region31: #{tpu_custom_call.1} parent=1 // loop_footer_branch
      %62 = sbr.rel target = $region27
    $region32: #{tpu_custom_call.1} parent=1 // loop_exit
      _
    %8795 = vst [vmem:[#allocation9] sm:$0xff] %v68
    %8796 = vst [vmem:[#allocation9 + $0x8] sm:$0xff] %v69
    // Predicated region
    $region33: #{tpu_custom_call.1} parent=1 // pred_check
      _
    $region34: #{tpu_custom_call.1} parent=1 // pred_check_branch
      %8798 = sbr.rel (0) target = $region36
    $region35: #{tpu_custom_call.1} parent=1 // pred_region
      %8800 = vsyncadd [#allocation4], 0
      %s8801 = sshll.u32 [#allocation9], 4
      %s8802 = int_to_ptr.vmem [resolvable:$true] %s8801
      %s8803 = sshll.u32 %s3, 4
      %s8804 = int_to_ptr.hbm [resolvable:$true] %s8803
      %8809 = dma.vmem_to_hbm [thread:$0]  %s8802, 256, %s8804, [#allocation4], 128, 128, 8
    $region36: #{tpu_custom_call.1} parent=1 // pred_fallthru
      _
    // Predicated region
    $region37: #{tpu_custom_call.1} parent=1 // pred_check
      _
    $region38: #{tpu_custom_call.1} parent=1 // pred_check_branch
      %8811 = sbr.rel (0) target = $region40
    $region39: #{tpu_custom_call.1} parent=1 // pred_region
      %8813 = dma.done [#allocation4], 256
    $region40: #{tpu_custom_call.1} parent=1 // pred_fallthru
      _
    %8814 = vsyncpa [#allocation3], 1
    %8815 = vsyncpa [#allocation8], 1
    %8816 = vsyncpa [#allocation4], 1
    %8817 = vsyncpa [#allocation5], 1

</llo_original>
